<compile_context>
chip_gen: v5e
topology: v5e:2x2
jax: 0.10.0
libtpu: 0.0.40
codegen_flags: <defaults>
</compile_context>

<pallas_src>
import jax
import jax.numpy as jnp
from jax.experimental import pallas as pl
from jax.experimental.pallas import tpu as pltpu


def _make_resnet_block_kernel(H, W, Cin, Cout, eps, has_res_conv, off=8):
    """Builds the fused ResnetBlock kernel.  `off` is the sublane-aligned interior
    column offset inside the haloed scratch buffers."""

    def groupnorm_swish(x2d, gamma, beta, gmap):
        # x2d: (H*W, C) f32 ; gamma/beta: (1, C) ; gmap: (C, C) with 1/(HW*Cg) folded in.
        s1 = jnp.sum(x2d, axis=0, keepdims=True)            # (1, C)
        s2 = jnp.sum(x2d * x2d, axis=0, keepdims=True)      # (1, C)
        mean_c = jnp.dot(s1, gmap, preferred_element_type=jnp.float32)   # per-group mean
        ex2_c = jnp.dot(s2, gmap, preferred_element_type=jnp.float32)    # per-group E[x^2]
        inv_c = jax.lax.rsqrt(ex2_c - mean_c * mean_c + eps)
        xn = (x2d - mean_c) * inv_c * gamma + beta
        return xn * (1.0 / (1.0 + jnp.exp(-xn)))             # Swish (exp -> EUP)

    def conv3x3(act, pad_ref, w_ref, b_ref, c):
        # act: (H*W, c) f32 ; pad_ref: (H+2, W_pad, c) mxu dtype ; w_ref: (9c, Cout)
        cout = w_ref.shape[1]
        dt = pad_ref.dtype
        # Zero only the halo strips the 9 views read (every step: parallel-safe).
        z_row = jnp.zeros((1, W + 2, c), dt)
        pad_ref[0:1, off - 1:off + W + 1, :] = z_row
        pad_ref[H + 1:H + 2, off - 1:off + W + 1, :] = z_row
        z_col = jnp.zeros((H, 1, c), dt)
        pad_ref[1:H + 1, off - 1:off, :] = z_col
        pad_ref[1:H + 1, off + W:off + W + 1, :] = z_col
        # Sublane-aligned interior write (cast to MXU dtype here).
        pad_ref[1:H + 1, off:off + W, :] = act.reshape(H, W, c).astype(dt)
        # 9 shifted-view matmuls (K = c each), accumulated in f32 — no im2col scratch.
        acc = jnp.zeros((H * W, cout), jnp.float32)
        for dy in range(3):
            for dx in range(3):
                t = dy * 3 + dx
                view = pad_ref[dy:dy + H, off - 1 + dx:off - 1 + dx + W, :]
                acc = acc + jnp.dot(view.reshape(H * W, c),
                                    w_ref[t * c:(t + 1) * c, :],
                                    preferred_element_type=jnp.float32)
        return acc + b_ref[...]

    def kernel(x_ref, noise_ref,
               gmap1_ref, g1_ref, be1_ref, w1_ref, cb1_ref,
               gmap2_ref, g2_ref, be2_ref, w2_ref, cb2_ref,
               *rest):
        if has_res_conv:
            wr_ref, br_ref, o_ref, pad1_ref, pad2_ref = rest
        else:
            o_ref, pad1_ref, pad2_ref = rest

        x2d = x_ref[0].astype(jnp.float32).reshape(H * W, Cin)

        # ---- block1: GroupNorm + Swish + 3x3 conv (9 accumulated shifted matmuls) ----
        a1 = groupnorm_swish(x2d, g1_ref[...], be1_ref[...], gmap1_ref[...])
        h = conv3x3(a1, pad1_ref, w1_ref, cb1_ref, Cin)            # (H*W, Cout) f32

        # ---- FeatureWiseAffine (additive): h += Linear(time_emb) ----
        h = h + noise_ref[0]                                        # (1, Cout) broadcast

        # ---- block2: GroupNorm + Swish + 3x3 conv ----
        a2 = groupnorm_swish(h, g2_ref[...], be2_ref[...], gmap2_ref[...])
        h2 = conv3x3(a2, pad2_ref, w2_ref, cb2_ref, Cout)           # (H*W, Cout) f32

        # ---- residual: 1x1 conv, or plain add when dim == dim_out ----
        if has_res_conv:
            res = jnp.dot(x2d.astype(wr_ref.dtype), wr_ref[...],
                          preferred_element_type=jnp.float32) + br_ref[...]
        else:
            res = x2d                                               # identity residual

        o_ref[...] = (h2 + res).reshape(1, H, W, Cout).astype(o_ref.dtype)

    return kernel


def resnet_block_forward(x_nchw, time_emb, params, *, groups, eps=1e-5,
                         mxu_dtype=jnp.bfloat16):
    """Equivalent of ResnetBlock(dim, dim_out, ...).forward(x, time_emb); NCHW in/out.

    mxu_dtype: dtype of the MXU operands (activation halo buffer + conv/residual
    weights). bf16 ~doubles MXU throughput and halves VMEM; accumulation stays f32.
    """
    (gn1_g, gn1_b, w1_oihw, b1,
     nz_w, nz_b,
     gn2_g, gn2_b, w2_oihw, b2,
     res_w_oihw, res_b) = params

    N, Cin, H, W = x_nchw.shape
    Cout = w1_oihw.shape[0]
    has_res_conv = res_w_oihw is not None
    if not has_res_conv:
        assert Cin == Cout, "identity residual requires dim == dim_out"
    assert Cin % groups == 0 and Cout % groups == 0

    OFF = 8                                        # sublane-aligned interior start
    W_PAD = -(-(OFF + W + 1) // 8) * 8             # padded width, multiple of 8

    # ---- cheap one-off layout / parameter prep (outside the hot loop) ----
    x = jnp.transpose(x_nchw, (0, 2, 3, 1))                          # NHWC for the kernel
    noise = (time_emb @ nz_w.T + nz_b).reshape(N, 1, Cout).astype(jnp.float32)

    # OIHW -> HWIO -> (9*Cin, Cout): row (t*Cin + ci) <-> tap t = dy*3+dx, channel ci
    w1 = jnp.transpose(w1_oihw, (2, 3, 1, 0)).reshape(9 * Cin, Cout).astype(mxu_dtype)
    w2 = jnp.transpose(w2_oihw, (2, 3, 1, 0)).reshape(9 * Cout, Cout).astype(mxu_dtype)

    # Group-broadcast matrix with 1/(H*W*Cg) folded in: (sum over channels) @ gmap
    # gives each channel its group's mean.
    def group_map(c):
        cg = c // groups
        ch = jnp.arange(c)
        same = (ch[:, None] // cg) == (ch[None, :] // cg)
        return same.astype(jnp.float32) / jnp.float32(H * W * cg)

    gmap1 = group_map(Cin)
    gmap2 = group_map(Cout)

    bcast2 = lambda n: (0, 0)
    inputs = [
        x, noise,
        gmap1, gn1_g.reshape(1, Cin).astype(jnp.float32), gn1_b.reshape(1, Cin).astype(jnp.float32),
        w1, b1.reshape(1, Cout).astype(jnp.float32),
        gmap2, gn2_g.reshape(1, Cout).astype(jnp.float32), gn2_b.reshape(1, Cout).astype(jnp.float32),
        w2, b2.reshape(1, Cout).astype(jnp.float32),
    ]
    in_specs = [
        pl.BlockSpec((1, H, W, Cin), lambda n: (n, 0, 0, 0)),    # x (per batch)
        pl.BlockSpec((1, 1, Cout), lambda n: (n, 0, 0)),         # noise (per batch)
        pl.BlockSpec((Cin, Cin), bcast2),                        # gn1 group map
        pl.BlockSpec((1, Cin), bcast2),                          # gn1 gamma
        pl.BlockSpec((1, Cin), bcast2),                          # gn1 beta
        pl.BlockSpec((9 * Cin, Cout), bcast2),                   # conv1 weight
        pl.BlockSpec((1, Cout), bcast2),                         # conv1 bias
        pl.BlockSpec((Cout, Cout), bcast2),                      # gn2 group map
        pl.BlockSpec((1, Cout), bcast2),                         # gn2 gamma
        pl.BlockSpec((1, Cout), bcast2),                         # gn2 beta
        pl.BlockSpec((9 * Cout, Cout), bcast2),                  # conv2 weight
        pl.BlockSpec((1, Cout), bcast2),                         # conv2 bias
    ]
    if has_res_conv:
        wr = jnp.transpose(res_w_oihw[:, :, 0, 0], (1, 0)).astype(mxu_dtype)  # (Cin, Cout)
        br = res_b.reshape(1, Cout).astype(jnp.float32)
        inputs += [wr, br]
        in_specs += [pl.BlockSpec((Cin, Cout), bcast2),          # res 1x1 weight
                     pl.BlockSpec((1, Cout), bcast2)]            # res bias

    # ---- explicit VMEM budget: per-step footprint + headroom (defaults are 16/32 MiB) ----
    itm = jnp.dtype(mxu_dtype).itemsize
    scratch_bytes = (H + 2) * W_PAD * (Cin + Cout) * itm
    io_bytes = 2 * (H * W * Cin * 4 + H * W * Cout * 4 + Cout * 4)   # double-buffered blocks
    param_bytes = 2 * ((9 * Cin * Cout + 9 * Cout * Cout + Cin * Cout) * itm
                       + (Cin * Cin + Cout * Cout + 6 * Cout + 2 * Cin) * 4)
    per_step = scratch_bytes + io_bytes + param_bytes
    vmem_limit = int(min(max(per_step * 2 + (8 << 20), 32 << 20), 100 << 20))

    kernel = _make_resnet_block_kernel(H, W, Cin, Cout, eps, has_res_conv, OFF)

    out_nhwc = pl.pallas_call(
        kernel,
        out_shape=jax.ShapeDtypeStruct((N, H, W, Cout), jnp.float32),
        grid=(N,),
        in_specs=in_specs,
        out_specs=pl.BlockSpec((1, H, W, Cout), lambda n: (n, 0, 0, 0)),
        scratch_shapes=[
            pltpu.VMEM((H + 2, W_PAD, Cin), mxu_dtype),          # haloed activation 1
            pltpu.VMEM((H + 2, W_PAD, Cout), mxu_dtype),         # haloed activation 2
        ],
        compiler_params=pltpu.CompilerParams(
            dimension_semantics=("parallel",),                   # batch across v7x TCs
            vmem_limit_bytes=vmem_limit),
    )(*inputs)

    return jnp.transpose(out_nhwc, (0, 3, 1, 2))                 # back to NCHW


def reference_forward(x_nchw, time_emb, params, *, groups, eps=1e-5):
    """Pure-JAX reference matching the PyTorch module semantics."""
    (gn1_g, gn1_b, w1_oihw, b1,
     nz_w, nz_b,
     gn2_g, gn2_b, w2_oihw, b2,
     res_w_oihw, res_b) = params

    def groupnorm(x, gamma, beta):
        N, C, H, W = x.shape
        xg = x.reshape(N, groups, -1)
        mu = xg.mean(-1, keepdims=True)
        var = ((xg - mu) ** 2).mean(-1, keepdims=True)
        xn = ((xg - mu) / jnp.sqrt(var + eps)).reshape(N, C, H, W)
        return xn * gamma[None, :, None, None] + beta[None, :, None, None]

    def swish(x):
        return x * jax.nn.sigmoid(x)

    def conv(x, w, b):
        out = jax.lax.conv_general_dilated(
            x, w, (1, 1), "SAME", dimension_numbers=("NCHW", "OIHW", "NCHW"))
        return out + b[None, :, None, None]

    h = conv(swish(groupnorm(x_nchw, gn1_g, gn1_b)), w1_oihw, b1)
    noise = time_emb @ nz_w.T + nz_b
    h = h + noise[:, :, None, None]
    h = conv(swish(groupnorm(h, gn2_g, gn2_b)), w2_oihw, b2)
    res = x_nchw if res_w_oihw is None else conv(x_nchw, res_w_oihw, res_b)
    return h + res


if __name__ == "__main__":
    # Small shapes consistent with ResnetBlock(dim=4, dim_out=8, noise_level_emb_dim=32,
    # norm_groups=2): x is NCHW, time_emb is (batch, emb_dim).
    N, Cin, Cout, H, W = 2, 4, 8, 16, 16
    groups = 2
    emb_dim = 32

    key = jax.random.PRNGKey(0)
    ks = jax.random.split(key, 12)

    x = jax.random.normal(ks[0], (N, Cin, H, W), jnp.float32)
    t_emb = jax.random.normal(ks[1], (N, emb_dim), jnp.float32)

    def u_init(k, shape, fan_in):
        bound = 1.0 / float(fan_in) ** 0.5
        return jax.random.uniform(k, shape, jnp.float32, -bound, bound)

    # GroupNorm affine params randomized around the PyTorch (1, 0) init.
    gn1_g = 1.0 + 0.1 * jax.random.normal(ks[2], (Cin,), jnp.float32)
    gn1_b = 0.1 * jax.random.normal(ks[3], (Cin,), jnp.float32)
    gn2_g = 1.0 + 0.1 * jax.random.normal(ks[4], (Cout,), jnp.float32)
    gn2_b = 0.1 * jax.random.normal(ks[5], (Cout,), jnp.float32)

    w1 = u_init(ks[6], (Cout, Cin, 3, 3), Cin * 9)        # Conv2d(Cin, Cout, 3)
    b1 = u_init(ks[7], (Cout,), Cin * 9)
    w2 = u_init(ks[8], (Cout, Cout, 3, 3), Cout * 9)      # Conv2d(Cout, Cout, 3)
    b2 = u_init(ks[9], (Cout,), Cout * 9)
    nz_w = u_init(ks[10], (Cout, emb_dim), emb_dim)       # Linear(emb_dim, Cout)
    nz_b = u_init(ks[11], (Cout,), emb_dim)
    res_w = u_init(jax.random.fold_in(key, 99), (Cout, Cin, 1, 1), Cin)   # Conv2d(Cin,Cout,1)
    res_b = u_init(jax.random.fold_in(key, 100), (Cout,), Cin)

    params = (gn1_g, gn1_b, w1, b1, nz_w, nz_b, gn2_g, gn2_b, w2, b2, res_w, res_b)

    ref = jax.block_until_ready(reference_forward(x, t_emb, params, groups=groups))

    # f32 MXU operands: tight numerical validation against the f32 reference.
    out_f32 = jax.block_until_ready(
        resnet_block_forward(x, t_emb, params, groups=groups, mxu_dtype=jnp.float32))
    assert out_f32.shape == (N, Cout, H, W), out_f32.shape
    err_f32 = float(jnp.max(jnp.abs(out_f32 - ref)))
    assert jnp.allclose(out_f32, ref, atol=2e-4, rtol=2e-4), err_f32

    # bf16 MXU operands (default, perf config): looser tolerance, f32 accumulation.
    out_bf16 = jax.block_until_ready(
        resnet_block_forward(x, t_emb, params, groups=groups, mxu_dtype=jnp.bfloat16))
    err_bf16 = float(jnp.max(jnp.abs(out_bf16 - ref)))
    assert err_bf16 < 8e-2, err_bf16

    print("KERNEL_OK")
</pallas_src>

<mosaic_0001>
module attributes {stable_mosaic.version = 11 : i64} {
  func.func @kernel(%arg0: i32, %arg1: memref<1x16x16x4xf32, #tpu.memory_space<vmem>>, %arg2: memref<1x1x8xf32, #tpu.memory_space<vmem>>, %arg3: memref<4x4xf32, #tpu.memory_space<vmem>>, %arg4: memref<1x4xf32, #tpu.memory_space<vmem>>, %arg5: memref<1x4xf32, #tpu.memory_space<vmem>>, %arg6: memref<36x8xf32, #tpu.memory_space<vmem>>, %arg7: memref<1x8xf32, #tpu.memory_space<vmem>>, %arg8: memref<8x8xf32, #tpu.memory_space<vmem>>, %arg9: memref<1x8xf32, #tpu.memory_space<vmem>>, %arg10: memref<1x8xf32, #tpu.memory_space<vmem>>, %arg11: memref<72x8xf32, #tpu.memory_space<vmem>>, %arg12: memref<1x8xf32, #tpu.memory_space<vmem>>, %arg13: memref<4x8xf32, #tpu.memory_space<vmem>>, %arg14: memref<1x8xf32, #tpu.memory_space<vmem>>, %arg15: memref<1x16x16x8xf32, #tpu.memory_space<vmem>>, %arg16: memref<18x32x4xf32, #tpu.memory_space<vmem>>, %arg17: memref<18x32x8xf32, #tpu.memory_space<vmem>>) attributes {dimension_semantics = [#tpu.dimension_semantics<parallel>], iteration_bounds = array<i64: 2>, scalar_prefetch = 0 : i64, scratch_operands = 2 : i64, tpu.core_type = #tpu.core_type<tc>, window_params = [{transform_indices = @transform_0, window_bounds = array<i64: 1, 16, 16, 4>}, {transform_indices = @transform_1, window_bounds = array<i64: 1, 1, 8>}, {pipeline_mode = #tpu.pipeline_mode<synchronous>, transform_indices = @transform_2, window_bounds = array<i64: 4, 4>}, {pipeline_mode = #tpu.pipeline_mode<synchronous>, transform_indices = @transform_3, window_bounds = array<i64: 1, 4>}, {pipeline_mode = #tpu.pipeline_mode<synchronous>, transform_indices = @transform_4, window_bounds = array<i64: 1, 4>}, {pipeline_mode = #tpu.pipeline_mode<synchronous>, transform_indices = @transform_5, window_bounds = array<i64: 36, 8>}, {pipeline_mode = #tpu.pipeline_mode<synchronous>, transform_indices = @transform_6, window_bounds = array<i64: 1, 8>}, {pipeline_mode = #tpu.pipeline_mode<synchronous>, transform_indices = @transform_7, window_bounds = array<i64: 8, 8>}, {pipeline_mode = #tpu.pipeline_mode<synchronous>, transform_indices = @transform_8, window_bounds = array<i64: 1, 8>}, {pipeline_mode = #tpu.pipeline_mode<synchronous>, transform_indices = @transform_9, window_bounds = array<i64: 1, 8>}, {pipeline_mode = #tpu.pipeline_mode<synchronous>, transform_indices = @transform_10, window_bounds = array<i64: 72, 8>}, {pipeline_mode = #tpu.pipeline_mode<synchronous>, transform_indices = @transform_11, window_bounds = array<i64: 1, 8>}, {pipeline_mode = #tpu.pipeline_mode<synchronous>, transform_indices = @transform_12, window_bounds = array<i64: 4, 8>}, {pipeline_mode = #tpu.pipeline_mode<synchronous>, transform_indices = @transform_13, window_bounds = array<i64: 1, 8>}, {transform_indices = @transform_14, window_bounds = array<i64: 1, 16, 16, 8>}]} {
    %c0 = arith.constant 0 : index
    %c0_0 = arith.constant 0 : index
    %c0_1 = arith.constant 0 : index
    %c0_2 = arith.constant 0 : index
    %0 = vector.load %arg1[%c0, %c0_0, %c0_1, %c0_2] : memref<1x16x16x4xf32, #tpu.memory_space<vmem>>, vector<1x16x16x4xf32>
    %1 = vector.shape_cast %0 : vector<1x16x16x4xf32> to vector<16x16x4xf32>
    %2 = vector.shape_cast %1 : vector<16x16x4xf32> to vector<256x4xf32>
    %c0_3 = arith.constant 0 : index
    %c0_4 = arith.constant 0 : index
    %3 = vector.load %arg4[%c0_3, %c0_4] : memref<1x4xf32, #tpu.memory_space<vmem>>, vector<1x4xf32>
    %c0_5 = arith.constant 0 : index
    %c0_6 = arith.constant 0 : index
    %4 = vector.load %arg5[%c0_5, %c0_6] : memref<1x4xf32, #tpu.memory_space<vmem>>, vector<1x4xf32>
    %c0_7 = arith.constant 0 : index
    %c0_8 = arith.constant 0 : index
    %5 = vector.load %arg3[%c0_7, %c0_8] : memref<4x4xf32, #tpu.memory_space<vmem>>, vector<4x4xf32>
    %cst = arith.constant dense<0.000000e+00> : vector<4xf32>
    %6 = vector.multi_reduction <add>, %2, %cst [0] : vector<256x4xf32> to vector<4xf32>
    %7 = vector.shape_cast %6 : vector<4xf32> to vector<1x4xf32>
    %8 = arith.mulf %2, %2 : vector<256x4xf32>
    %cst_9 = arith.constant dense<0.000000e+00> : vector<4xf32>
    %9 = vector.multi_reduction <add>, %8, %cst_9 [0] : vector<256x4xf32> to vector<4xf32>
    %10 = vector.shape_cast %9 : vector<4xf32> to vector<1x4xf32>
    %cst_10 = arith.constant dense<0.000000e+00> : vector<1x4xf32>
    %11 = tpu.matmul %7, %5, %cst_10 {dimension_numbers = #tpu.dot_dimension_numbers<[1], [0], [0], [1], [0, 0, 1, 1], [], []>} : vector<1x4xf32>, vector<4x4xf32>, vector<1x4xf32> -> vector<1x4xf32>
    %cst_11 = arith.constant dense<0.000000e+00> : vector<1x4xf32>
    %12 = tpu.matmul %10, %5, %cst_11 {dimension_numbers = #tpu.dot_dimension_numbers<[1], [0], [0], [1], [0, 0, 1, 1], [], []>} : vector<1x4xf32>, vector<4x4xf32>, vector<1x4xf32> -> vector<1x4xf32>
    %13 = arith.mulf %11, %11 : vector<1x4xf32>
    %14 = arith.subf %12, %13 : vector<1x4xf32>
    %cst_12 = arith.constant 9.99999974E-6 : f32
    %15 = vector.broadcast %cst_12 : f32 to vector<1x4xf32>
    %16 = arith.addf %14, %15 : vector<1x4xf32>
    %17 = math.rsqrt %16 : vector<1x4xf32>
    %18 = vector.broadcast %11 : vector<1x4xf32> to vector<256x4xf32>
    %19 = arith.subf %2, %18 : vector<256x4xf32>
    %20 = vector.broadcast %17 : vector<1x4xf32> to vector<256x4xf32>
    %21 = arith.mulf %19, %20 : vector<256x4xf32>
    %22 = vector.broadcast %3 : vector<1x4xf32> to vector<256x4xf32>
    %23 = arith.mulf %21, %22 : vector<256x4xf32>
    %24 = vector.broadcast %4 : vector<1x4xf32> to vector<256x4xf32>
    %25 = arith.addf %23, %24 : vector<256x4xf32>
    %cst_13 = arith.constant 0.000000e+00 : f32
    %26 = vector.broadcast %cst_13 : f32 to vector<256x4xf32>
    %27 = arith.subf %26, %25 : vector<256x4xf32>
    %28 = math.exp %27 : vector<256x4xf32>
    %cst_14 = arith.constant 1.000000e+00 : f32
    %29 = vector.broadcast %cst_14 : f32 to vector<256x4xf32>
    %30 = arith.addf %29, %28 : vector<256x4xf32>
    %cst_15 = arith.constant 1.000000e+00 : f32
    %31 = vector.broadcast %cst_15 : f32 to vector<256x4xf32>
    %32 = arith.divf %31, %30 : vector<256x4xf32>
    %33 = arith.mulf %25, %32 : vector<256x4xf32>
    %cst_16 = arith.constant 0.000000e+00 : f32
    %34 = vector.broadcast %cst_16 : f32 to vector<1x18x4xf32>
    %c0_17 = arith.constant 0 : index
    %c7 = arith.constant 7 : index
    %c0_18 = arith.constant 0 : index
    %35 = vector.load %arg16[%c0_17, %c7, %c0_18] : memref<18x32x4xf32, #tpu.memory_space<vmem>>, vector<1x18x4xf32>
    tpu.vector_store %arg16[%c0_17, %c7, %c0_18], %34 {strides = array<i32>} : memref<18x32x4xf32, #tpu.memory_space<vmem>>, vector<1x18x4xf32>,
    %c17 = arith.constant 17 : index
    %c7_19 = arith.constant 7 : index
    %c0_20 = arith.constant 0 : index
    %36 = vector.load %arg16[%c17, %c7_19, %c0_20] : memref<18x32x4xf32, #tpu.memory_space<vmem>>, vector<1x18x4xf32>
    tpu.vector_store %arg16[%c17, %c7_19, %c0_20], %34 {strides = array<i32>} : memref<18x32x4xf32, #tpu.memory_space<vmem>>, vector<1x18x4xf32>,
    %cst_21 = arith.constant 0.000000e+00 : f32
    %37 = vector.broadcast %cst_21 : f32 to vector<16x1x4xf32>
    %c1 = arith.constant 1 : index
    %c7_22 = arith.constant 7 : index
    %c0_23 = arith.constant 0 : index
    %38 = vector.load %arg16[%c1, %c7_22, %c0_23] : memref<18x32x4xf32, #tpu.memory_space<vmem>>, vector<16x1x4xf32>
    tpu.vector_store %arg16[%c1, %c7_22, %c0_23], %37 {strides = array<i32>} : memref<18x32x4xf32, #tpu.memory_space<vmem>>, vector<16x1x4xf32>,
    %c1_24 = arith.constant 1 : index
    %c24 = arith.constant 24 : index
    %c0_25 = arith.constant 0 : index
    %39 = vector.load %arg16[%c1_24, %c24, %c0_25] : memref<18x32x4xf32, #tpu.memory_space<vmem>>, vector<16x1x4xf32>
    tpu.vector_store %arg16[%c1_24, %c24, %c0_25], %37 {strides = array<i32>} : memref<18x32x4xf32, #tpu.memory_space<vmem>>, vector<16x1x4xf32>,
    %40 = vector.shape_cast %33 : vector<256x4xf32> to vector<16x16x4xf32>
    %c1_26 = arith.constant 1 : index
    %c8 = arith.constant 8 : index
    %c0_27 = arith.constant 0 : index
    %41 = vector.load %arg16[%c1_26, %c8, %c0_27] : memref<18x32x4xf32, #tpu.memory_space<vmem>>, vector<16x16x4xf32>
    tpu.vector_store %arg16[%c1_26, %c8, %c0_27], %40 {strides = array<i32>} : memref<18x32x4xf32, #tpu.memory_space<vmem>>, vector<16x16x4xf32>,
    %cst_28 = arith.constant 0.000000e+00 : f32
    %42 = vector.broadcast %cst_28 : f32 to vector<256x8xf32>
    %c0_29 = arith.constant 0 : index
    %c7_30 = arith.constant 7 : index
    %c0_31 = arith.constant 0 : index
    %43 = vector.load %arg16[%c0_29, %c7_30, %c0_31] : memref<18x32x4xf32, #tpu.memory_space<vmem>>, vector<16x16x4xf32>
    %44 = vector.shape_cast %43 : vector<16x16x4xf32> to vector<256x4xf32>
    %c0_32 = arith.constant 0 : index
    %c0_33 = arith.constant 0 : index
    %45 = vector.load %arg6[%c0_32, %c0_33] : memref<36x8xf32, #tpu.memory_space<vmem>>, vector<4x8xf32>
    %cst_34 = arith.constant dense<0.000000e+00> : vector<256x8xf32>
    %46 = tpu.matmul %44, %45, %cst_34 {dimension_numbers = #tpu.dot_dimension_numbers<[1], [0], [0], [1], [0, 0, 1, 1], [], []>} : vector<256x4xf32>, vector<4x8xf32>, vector<256x8xf32> -> vector<256x8xf32>
    %47 = arith.addf %42, %46 : vector<256x8xf32>
    %c0_35 = arith.constant 0 : index
    %c8_36 = arith.constant 8 : index
    %c0_37 = arith.constant 0 : index
    %48 = vector.load %arg16[%c0_35, %c8_36, %c0_37] : memref<18x32x4xf32, #tpu.memory_space<vmem>>, vector<16x16x4xf32>
    %49 = vector.shape_cast %48 : vector<16x16x4xf32> to vector<256x4xf32>
    %c4 = arith.constant 4 : index
    %c0_38 = arith.constant 0 : index
    %50 = vector.load %arg6[%c4, %c0_38] : memref<36x8xf32, #tpu.memory_space<vmem>>, vector<4x8xf32>
    %cst_39 = arith.constant dense<0.000000e+00> : vector<256x8xf32>
    %51 = tpu.matmul %49, %50, %cst_39 {dimension_numbers = #tpu.dot_dimension_numbers<[1], [0], [0], [1], [0, 0, 1, 1], [], []>} : vector<256x4xf32>, vector<4x8xf32>, vector<256x8xf32> -> vector<256x8xf32>
    %52 = arith.addf %47, %51 : vector<256x8xf32>
    %c0_40 = arith.constant 0 : index
    %c9 = arith.constant 9 : index
    %c0_41 = arith.constant 0 : index
    %53 = vector.load %arg16[%c0_40, %c9, %c0_41] : memref<18x32x4xf32, #tpu.memory_space<vmem>>, vector<16x16x4xf32>
    %54 = vector.shape_cast %53 : vector<16x16x4xf32> to vector<256x4xf32>
    %c8_42 = arith.constant 8 : index
    %c0_43 = arith.constant 0 : index
    %55 = vector.load %arg6[%c8_42, %c0_43] : memref<36x8xf32, #tpu.memory_space<vmem>>, vector<4x8xf32>
    %cst_44 = arith.constant dense<0.000000e+00> : vector<256x8xf32>
    %56 = tpu.matmul %54, %55, %cst_44 {dimension_numbers = #tpu.dot_dimension_numbers<[1], [0], [0], [1], [0, 0, 1, 1], [], []>} : vector<256x4xf32>, vector<4x8xf32>, vector<256x8xf32> -> vector<256x8xf32>
    %57 = arith.addf %52, %56 : vector<256x8xf32>
    %c1_45 = arith.constant 1 : index
    %c7_46 = arith.constant 7 : index
    %c0_47 = arith.constant 0 : index
    %58 = vector.load %arg16[%c1_45, %c7_46, %c0_47] : memref<18x32x4xf32, #tpu.memory_space<vmem>>, vector<16x16x4xf32>
    %59 = vector.shape_cast %58 : vector<16x16x4xf32> to vector<256x4xf32>
    %c12 = arith.constant 12 : index
    %c0_48 = arith.constant 0 : index
    %60 = vector.load %arg6[%c12, %c0_48] : memref<36x8xf32, #tpu.memory_space<vmem>>, vector<4x8xf32>
    %cst_49 = arith.constant dense<0.000000e+00> : vector<256x8xf32>
    %61 = tpu.matmul %59, %60, %cst_49 {dimension_numbers = #tpu.dot_dimension_numbers<[1], [0], [0], [1], [0, 0, 1, 1], [], []>} : vector<256x4xf32>, vector<4x8xf32>, vector<256x8xf32> -> vector<256x8xf32>
    %62 = arith.addf %57, %61 : vector<256x8xf32>
    %c1_50 = arith.constant 1 : index
    %c8_51 = arith.constant 8 : index
    %c0_52 = arith.constant 0 : index
    %63 = vector.load %arg16[%c1_50, %c8_51, %c0_52] : memref<18x32x4xf32, #tpu.memory_space<vmem>>, vector<16x16x4xf32>
    %64 = vector.shape_cast %63 : vector<16x16x4xf32> to vector<256x4xf32>
    %c16 = arith.constant 16 : index
    %c0_53 = arith.constant 0 : index
    %65 = vector.load %arg6[%c16, %c0_53] : memref<36x8xf32, #tpu.memory_space<vmem>>, vector<4x8xf32>
    %cst_54 = arith.constant dense<0.000000e+00> : vector<256x8xf32>
    %66 = tpu.matmul %64, %65, %cst_54 {dimension_numbers = #tpu.dot_dimension_numbers<[1], [0], [0], [1], [0, 0, 1, 1], [], []>} : vector<256x4xf32>, vector<4x8xf32>, vector<256x8xf32> -> vector<256x8xf32>
    %67 = arith.addf %62, %66 : vector<256x8xf32>
    %c1_55 = arith.constant 1 : index
    %c9_56 = arith.constant 9 : index
    %c0_57 = arith.constant 0 : index
    %68 = vector.load %arg16[%c1_55, %c9_56, %c0_57] : memref<18x32x4xf32, #tpu.memory_space<vmem>>, vector<16x16x4xf32>
    %69 = vector.shape_cast %68 : vector<16x16x4xf32> to vector<256x4xf32>
    %c20 = arith.constant 20 : index
    %c0_58 = arith.constant 0 : index
    %70 = vector.load %arg6[%c20, %c0_58] : memref<36x8xf32, #tpu.memory_space<vmem>>, vector<4x8xf32>
    %cst_59 = arith.constant dense<0.000000e+00> : vector<256x8xf32>
    %71 = tpu.matmul %69, %70, %cst_59 {dimension_numbers = #tpu.dot_dimension_numbers<[1], [0], [0], [1], [0, 0, 1, 1], [], []>} : vector<256x4xf32>, vector<4x8xf32>, vector<256x8xf32> -> vector<256x8xf32>
    %72 = arith.addf %67, %71 : vector<256x8xf32>
    %c2 = arith.constant 2 : index
    %c7_60 = arith.constant 7 : index
    %c0_61 = arith.constant 0 : index
    %73 = vector.load %arg16[%c2, %c7_60, %c0_61] : memref<18x32x4xf32, #tpu.memory_space<vmem>>, vector<16x16x4xf32>
    %74 = vector.shape_cast %73 : vector<16x16x4xf32> to vector<256x4xf32>
    %c24_62 = arith.constant 24 : index
    %c0_63 = arith.constant 0 : index
    %75 = vector.load %arg6[%c24_62, %c0_63] : memref<36x8xf32, #tpu.memory_space<vmem>>, vector<4x8xf32>
    %cst_64 = arith.constant dense<0.000000e+00> : vector<256x8xf32>
    %76 = tpu.matmul %74, %75, %cst_64 {dimension_numbers = #tpu.dot_dimension_numbers<[1], [0], [0], [1], [0, 0, 1, 1], [], []>} : vector<256x4xf32>, vector<4x8xf32>, vector<256x8xf32> -> vector<256x8xf32>
    %77 = arith.addf %72, %76 : vector<256x8xf32>
    %c2_65 = arith.constant 2 : index
    %c8_66 = arith.constant 8 : index
    %c0_67 = arith.constant 0 : index
    %78 = vector.load %arg16[%c2_65, %c8_66, %c0_67] : memref<18x32x4xf32, #tpu.memory_space<vmem>>, vector<16x16x4xf32>
    %79 = vector.shape_cast %78 : vector<16x16x4xf32> to vector<256x4xf32>
    %c28 = arith.constant 28 : index
    %c0_68 = arith.constant 0 : index
    %80 = vector.load %arg6[%c28, %c0_68] : memref<36x8xf32, #tpu.memory_space<vmem>>, vector<4x8xf32>
    %cst_69 = arith.constant dense<0.000000e+00> : vector<256x8xf32>
    %81 = tpu.matmul %79, %80, %cst_69 {dimension_numbers = #tpu.dot_dimension_numbers<[1], [0], [0], [1], [0, 0, 1, 1], [], []>} : vector<256x4xf32>, vector<4x8xf32>, vector<256x8xf32> -> vector<256x8xf32>
    %82 = arith.addf %77, %81 : vector<256x8xf32>
    %c2_70 = arith.constant 2 : index
    %c9_71 = arith.constant 9 : index
    %c0_72 = arith.constant 0 : index
    %83 = vector.load %arg16[%c2_70, %c9_71, %c0_72] : memref<18x32x4xf32, #tpu.memory_space<vmem>>, vector<16x16x4xf32>
    %84 = vector.shape_cast %83 : vector<16x16x4xf32> to vector<256x4xf32>
    %c32 = arith.constant 32 : index
    %c0_73 = arith.constant 0 : index
    %85 = vector.load %arg6[%c32, %c0_73] : memref<36x8xf32, #tpu.memory_space<vmem>>, vector<4x8xf32>
    %cst_74 = arith.constant dense<0.000000e+00> : vector<256x8xf32>
    %86 = tpu.matmul %84, %85, %cst_74 {dimension_numbers = #tpu.dot_dimension_numbers<[1], [0], [0], [1], [0, 0, 1, 1], [], []>} : vector<256x4xf32>, vector<4x8xf32>, vector<256x8xf32> -> vector<256x8xf32>
    %87 = arith.addf %82, %86 : vector<256x8xf32>
    %c0_75 = arith.constant 0 : index
    %c0_76 = arith.constant 0 : index
    %88 = vector.load %arg7[%c0_75, %c0_76] : memref<1x8xf32, #tpu.memory_space<vmem>>, vector<1x8xf32>
    %89 = vector.broadcast %88 : vector<1x8xf32> to vector<256x8xf32>
    %90 = arith.addf %87, %89 : vector<256x8xf32>
    %c0_77 = arith.constant 0 : index
    %c0_78 = arith.constant 0 : index
    %c0_79 = arith.constant 0 : index
    %91 = vector.load %arg2[%c0_77, %c0_78, %c0_79] : memref<1x1x8xf32, #tpu.memory_space<vmem>>, vector<1x1x8xf32>
    %92 = vector.shape_cast %91 : vector<1x1x8xf32> to vector<1x8xf32>
    %93 = vector.broadcast %92 : vector<1x8xf32> to vector<256x8xf32>
    %94 = arith.addf %90, %93 : vector<256x8xf32>
    %c0_80 = arith.constant 0 : index
    %c0_81 = arith.constant 0 : index
    %95 = vector.load %arg9[%c0_80, %c0_81] : memref<1x8xf32, #tpu.memory_space<vmem>>, vector<1x8xf32>
    %c0_82 = arith.constant 0 : index
    %c0_83 = arith.constant 0 : index
    %96 = vector.load %arg10[%c0_82, %c0_83] : memref<1x8xf32, #tpu.memory_space<vmem>>, vector<1x8xf32>
    %c0_84 = arith.constant 0 : index
    %c0_85 = arith.constant 0 : index
    %97 = vector.load %arg8[%c0_84, %c0_85] : memref<8x8xf32, #tpu.memory_space<vmem>>, vector<8x8xf32>
    %cst_86 = arith.constant dense<0.000000e+00> : vector<8xf32>
    %98 = vector.multi_reduction <add>, %94, %cst_86 [0] : vector<256x8xf32> to vector<8xf32>
    %99 = vector.shape_cast %98 : vector<8xf32> to vector<1x8xf32>
    %100 = arith.mulf %94, %94 : vector<256x8xf32>
    %cst_87 = arith.constant dense<0.000000e+00> : vector<8xf32>
    %101 = vector.multi_reduction <add>, %100, %cst_87 [0] : vector<256x8xf32> to vector<8xf32>
    %102 = vector.shape_cast %101 : vector<8xf32> to vector<1x8xf32>
    %cst_88 = arith.constant dense<0.000000e+00> : vector<1x8xf32>
    %103 = tpu.matmul %99, %97, %cst_88 {dimension_numbers = #tpu.dot_dimension_numbers<[1], [0], [0], [1], [0, 0, 1, 1], [], []>} : vector<1x8xf32>, vector<8x8xf32>, vector<1x8xf32> -> vector<1x8xf32>
    %cst_89 = arith.constant dense<0.000000e+00> : vector<1x8xf32>
    %104 = tpu.matmul %102, %97, %cst_89 {dimension_numbers = #tpu.dot_dimension_numbers<[1], [0], [0], [1], [0, 0, 1, 1], [], []>} : vector<1x8xf32>, vector<8x8xf32>, vector<1x8xf32> -> vector<1x8xf32>
    %105 = arith.mulf %103, %103 : vector<1x8xf32>
    %106 = arith.subf %104, %105 : vector<1x8xf32>
    %cst_90 = arith.constant 9.99999974E-6 : f32
    %107 = vector.broadcast %cst_90 : f32 to vector<1x8xf32>
    %108 = arith.addf %106, %107 : vector<1x8xf32>
    %109 = math.rsqrt %108 : vector<1x8xf32>
    %110 = vector.broadcast %103 : vector<1x8xf32> to vector<256x8xf32>
    %111 = arith.subf %94, %110 : vector<256x8xf32>
    %112 = vector.broadcast %109 : vector<1x8xf32> to vector<256x8xf32>
    %113 = arith.mulf %111, %112 : vector<256x8xf32>
    %114 = vector.broadcast %95 : vector<1x8xf32> to vector<256x8xf32>
    %115 = arith.mulf %113, %114 : vector<256x8xf32>
    %116 = vector.broadcast %96 : vector<1x8xf32> to vector<256x8xf32>
    %117 = arith.addf %115, %116 : vector<256x8xf32>
    %cst_91 = arith.constant 0.000000e+00 : f32
    %118 = vector.broadcast %cst_91 : f32 to vector<256x8xf32>
    %119 = arith.subf %118, %117 : vector<256x8xf32>
    %120 = math.exp %119 : vector<256x8xf32>
    %cst_92 = arith.constant 1.000000e+00 : f32
    %121 = vector.broadcast %cst_92 : f32 to vector<256x8xf32>
    %122 = arith.addf %121, %120 : vector<256x8xf32>
    %cst_93 = arith.constant 1.000000e+00 : f32
    %123 = vector.broadcast %cst_93 : f32 to vector<256x8xf32>
    %124 = arith.divf %123, %122 : vector<256x8xf32>
    %125 = arith.mulf %117, %124 : vector<256x8xf32>
    %cst_94 = arith.constant 0.000000e+00 : f32
    %126 = vector.broadcast %cst_94 : f32 to vector<1x18x8xf32>
    %c0_95 = arith.constant 0 : index
    %c7_96 = arith.constant 7 : index
    %c0_97 = arith.constant 0 : index
    %127 = vector.load %arg17[%c0_95, %c7_96, %c0_97] : memref<18x32x8xf32, #tpu.memory_space<vmem>>, vector<1x18x8xf32>
    tpu.vector_store %arg17[%c0_95, %c7_96, %c0_97], %126 {strides = array<i32>} : memref<18x32x8xf32, #tpu.memory_space<vmem>>, vector<1x18x8xf32>,
    %c17_98 = arith.constant 17 : index
    %c7_99 = arith.constant 7 : index
    %c0_100 = arith.constant 0 : index
    %128 = vector.load %arg17[%c17_98, %c7_99, %c0_100] : memref<18x32x8xf32, #tpu.memory_space<vmem>>, vector<1x18x8xf32>
    tpu.vector_store %arg17[%c17_98, %c7_99, %c0_100], %126 {strides = array<i32>} : memref<18x32x8xf32, #tpu.memory_space<vmem>>, vector<1x18x8xf32>,
    %cst_101 = arith.constant 0.000000e+00 : f32
    %129 = vector.broadcast %cst_101 : f32 to vector<16x1x8xf32>
    %c1_102 = arith.constant 1 : index
    %c7_103 = arith.constant 7 : index
    %c0_104 = arith.constant 0 : index
    %130 = vector.load %arg17[%c1_102, %c7_103, %c0_104] : memref<18x32x8xf32, #tpu.memory_space<vmem>>, vector<16x1x8xf32>
    tpu.vector_store %arg17[%c1_102, %c7_103, %c0_104], %129 {strides = array<i32>} : memref<18x32x8xf32, #tpu.memory_space<vmem>>, vector<16x1x8xf32>,
    %c1_105 = arith.constant 1 : index
    %c24_106 = arith.constant 24 : index
    %c0_107 = arith.constant 0 : index
    %131 = vector.load %arg17[%c1_105, %c24_106, %c0_107] : memref<18x32x8xf32, #tpu.memory_space<vmem>>, vector<16x1x8xf32>
    tpu.vector_store %arg17[%c1_105, %c24_106, %c0_107], %129 {strides = array<i32>} : memref<18x32x8xf32, #tpu.memory_space<vmem>>, vector<16x1x8xf32>,
    %132 = vector.shape_cast %125 : vector<256x8xf32> to vector<16x16x8xf32>
    %c1_108 = arith.constant 1 : index
    %c8_109 = arith.constant 8 : index
    %c0_110 = arith.constant 0 : index
    %133 = vector.load %arg17[%c1_108, %c8_109, %c0_110] : memref<18x32x8xf32, #tpu.memory_space<vmem>>, vector<16x16x8xf32>
    tpu.vector_store %arg17[%c1_108, %c8_109, %c0_110], %132 {strides = array<i32>} : memref<18x32x8xf32, #tpu.memory_space<vmem>>, vector<16x16x8xf32>,
    %cst_111 = arith.constant 0.000000e+00 : f32
    %134 = vector.broadcast %cst_111 : f32 to vector<256x8xf32>
    %c0_112 = arith.constant 0 : index
    %c7_113 = arith.constant 7 : index
    %c0_114 = arith.constant 0 : index
    %135 = vector.load %arg17[%c0_112, %c7_113, %c0_114] : memref<18x32x8xf32, #tpu.memory_space<vmem>>, vector<16x16x8xf32>
    %136 = vector.shape_cast %135 : vector<16x16x8xf32> to vector<256x8xf32>
    %c0_115 = arith.constant 0 : index
    %c0_116 = arith.constant 0 : index
    %137 = vector.load %arg11[%c0_115, %c0_116] : memref<72x8xf32, #tpu.memory_space<vmem>>, vector<8x8xf32>
    %cst_117 = arith.constant dense<0.000000e+00> : vector<256x8xf32>
    %138 = tpu.matmul %136, %137, %cst_117 {dimension_numbers = #tpu.dot_dimension_numbers<[1], [0], [0], [1], [0, 0, 1, 1], [], []>} : vector<256x8xf32>, vector<8x8xf32>, vector<256x8xf32> -> vector<256x8xf32>
    %139 = arith.addf %134, %138 : vector<256x8xf32>
    %c0_118 = arith.constant 0 : index
    %c8_119 = arith.constant 8 : index
    %c0_120 = arith.constant 0 : index
    %140 = vector.load %arg17[%c0_118, %c8_119, %c0_120] : memref<18x32x8xf32, #tpu.memory_space<vmem>>, vector<16x16x8xf32>
    %141 = vector.shape_cast %140 : vector<16x16x8xf32> to vector<256x8xf32>
    %c8_121 = arith.constant 8 : index
    %c0_122 = arith.constant 0 : index
    %142 = vector.load %arg11[%c8_121, %c0_122] : memref<72x8xf32, #tpu.memory_space<vmem>>, vector<8x8xf32>
    %cst_123 = arith.constant dense<0.000000e+00> : vector<256x8xf32>
    %143 = tpu.matmul %141, %142, %cst_123 {dimension_numbers = #tpu.dot_dimension_numbers<[1], [0], [0], [1], [0, 0, 1, 1], [], []>} : vector<256x8xf32>, vector<8x8xf32>, vector<256x8xf32> -> vector<256x8xf32>
    %144 = arith.addf %139, %143 : vector<256x8xf32>
    %c0_124 = arith.constant 0 : index
    %c9_125 = arith.constant 9 : index
    %c0_126 = arith.constant 0 : index
    %145 = vector.load %arg17[%c0_124, %c9_125, %c0_126] : memref<18x32x8xf32, #tpu.memory_space<vmem>>, vector<16x16x8xf32>
    %146 = vector.shape_cast %145 : vector<16x16x8xf32> to vector<256x8xf32>
    %c16_127 = arith.constant 16 : index
    %c0_128 = arith.constant 0 : index
    %147 = vector.load %arg11[%c16_127, %c0_128] : memref<72x8xf32, #tpu.memory_space<vmem>>, vector<8x8xf32>
    %cst_129 = arith.constant dense<0.000000e+00> : vector<256x8xf32>
    %148 = tpu.matmul %146, %147, %cst_129 {dimension_numbers = #tpu.dot_dimension_numbers<[1], [0], [0], [1], [0, 0, 1, 1], [], []>} : vector<256x8xf32>, vector<8x8xf32>, vector<256x8xf32> -> vector<256x8xf32>
    %149 = arith.addf %144, %148 : vector<256x8xf32>
    %c1_130 = arith.constant 1 : index
    %c7_131 = arith.constant 7 : index
    %c0_132 = arith.constant 0 : index
    %150 = vector.load %arg17[%c1_130, %c7_131, %c0_132] : memref<18x32x8xf32, #tpu.memory_space<vmem>>, vector<16x16x8xf32>
    %151 = vector.shape_cast %150 : vector<16x16x8xf32> to vector<256x8xf32>
    %c24_133 = arith.constant 24 : index
    %c0_134 = arith.constant 0 : index
    %152 = vector.load %arg11[%c24_133, %c0_134] : memref<72x8xf32, #tpu.memory_space<vmem>>, vector<8x8xf32>
    %cst_135 = arith.constant dense<0.000000e+00> : vector<256x8xf32>
    %153 = tpu.matmul %151, %152, %cst_135 {dimension_numbers = #tpu.dot_dimension_numbers<[1], [0], [0], [1], [0, 0, 1, 1], [], []>} : vector<256x8xf32>, vector<8x8xf32>, vector<256x8xf32> -> vector<256x8xf32>
    %154 = arith.addf %149, %153 : vector<256x8xf32>
    %c1_136 = arith.constant 1 : index
    %c8_137 = arith.constant 8 : index
    %c0_138 = arith.constant 0 : index
    %155 = vector.load %arg17[%c1_136, %c8_137, %c0_138] : memref<18x32x8xf32, #tpu.memory_space<vmem>>, vector<16x16x8xf32>
    %156 = vector.shape_cast %155 : vector<16x16x8xf32> to vector<256x8xf32>
    %c32_139 = arith.constant 32 : index
    %c0_140 = arith.constant 0 : index
    %157 = vector.load %arg11[%c32_139, %c0_140] : memref<72x8xf32, #tpu.memory_space<vmem>>, vector<8x8xf32>
    %cst_141 = arith.constant dense<0.000000e+00> : vector<256x8xf32>
    %158 = tpu.matmul %156, %157, %cst_141 {dimension_numbers = #tpu.dot_dimension_numbers<[1], [0], [0], [1], [0, 0, 1, 1], [], []>} : vector<256x8xf32>, vector<8x8xf32>, vector<256x8xf32> -> vector<256x8xf32>
    %159 = arith.addf %154, %158 : vector<256x8xf32>
    %c1_142 = arith.constant 1 : index
    %c9_143 = arith.constant 9 : index
    %c0_144 = arith.constant 0 : index
    %160 = vector.load %arg17[%c1_142, %c9_143, %c0_144] : memref<18x32x8xf32, #tpu.memory_space<vmem>>, vector<16x16x8xf32>
    %161 = vector.shape_cast %160 : vector<16x16x8xf32> to vector<256x8xf32>
    %c40 = arith.constant 40 : index
    %c0_145 = arith.constant 0 : index
    %162 = vector.load %arg11[%c40, %c0_145] : memref<72x8xf32, #tpu.memory_space<vmem>>, vector<8x8xf32>
    %cst_146 = arith.constant dense<0.000000e+00> : vector<256x8xf32>
    %163 = tpu.matmul %161, %162, %cst_146 {dimension_numbers = #tpu.dot_dimension_numbers<[1], [0], [0], [1], [0, 0, 1, 1], [], []>} : vector<256x8xf32>, vector<8x8xf32>, vector<256x8xf32> -> vector<256x8xf32>
    %164 = arith.addf %159, %163 : vector<256x8xf32>
    %c2_147 = arith.constant 2 : index
    %c7_148 = arith.constant 7 : index
    %c0_149 = arith.constant 0 : index
    %165 = vector.load %arg17[%c2_147, %c7_148, %c0_149] : memref<18x32x8xf32, #tpu.memory_space<vmem>>, vector<16x16x8xf32>
    %166 = vector.shape_cast %165 : vector<16x16x8xf32> to vector<256x8xf32>
    %c48 = arith.constant 48 : index
    %c0_150 = arith.constant 0 : index
    %167 = vector.load %arg11[%c48, %c0_150] : memref<72x8xf32, #tpu.memory_space<vmem>>, vector<8x8xf32>
    %cst_151 = arith.constant dense<0.000000e+00> : vector<256x8xf32>
    %168 = tpu.matmul %166, %167, %cst_151 {dimension_numbers = #tpu.dot_dimension_numbers<[1], [0], [0], [1], [0, 0, 1, 1], [], []>} : vector<256x8xf32>, vector<8x8xf32>, vector<256x8xf32> -> vector<256x8xf32>
    %169 = arith.addf %164, %168 : vector<256x8xf32>
    %c2_152 = arith.constant 2 : index
    %c8_153 = arith.constant 8 : index
    %c0_154 = arith.constant 0 : index
    %170 = vector.load %arg17[%c2_152, %c8_153, %c0_154] : memref<18x32x8xf32, #tpu.memory_space<vmem>>, vector<16x16x8xf32>
    %171 = vector.shape_cast %170 : vector<16x16x8xf32> to vector<256x8xf32>
    %c56 = arith.constant 56 : index
    %c0_155 = arith.constant 0 : index
    %172 = vector.load %arg11[%c56, %c0_155] : memref<72x8xf32, #tpu.memory_space<vmem>>, vector<8x8xf32>
    %cst_156 = arith.constant dense<0.000000e+00> : vector<256x8xf32>
    %173 = tpu.matmul %171, %172, %cst_156 {dimension_numbers = #tpu.dot_dimension_numbers<[1], [0], [0], [1], [0, 0, 1, 1], [], []>} : vector<256x8xf32>, vector<8x8xf32>, vector<256x8xf32> -> vector<256x8xf32>
    %174 = arith.addf %169, %173 : vector<256x8xf32>
    %c2_157 = arith.constant 2 : index
    %c9_158 = arith.constant 9 : index
    %c0_159 = arith.constant 0 : index
    %175 = vector.load %arg17[%c2_157, %c9_158, %c0_159] : memref<18x32x8xf32, #tpu.memory_space<vmem>>, vector<16x16x8xf32>
    %176 = vector.shape_cast %175 : vector<16x16x8xf32> to vector<256x8xf32>
    %c64 = arith.constant 64 : index
    %c0_160 = arith.constant 0 : index
    %177 = vector.load %arg11[%c64, %c0_160] : memref<72x8xf32, #tpu.memory_space<vmem>>, vector<8x8xf32>
    %cst_161 = arith.constant dense<0.000000e+00> : vector<256x8xf32>
    %178 = tpu.matmul %176, %177, %cst_161 {dimension_numbers = #tpu.dot_dimension_numbers<[1], [0], [0], [1], [0, 0, 1, 1], [], []>} : vector<256x8xf32>, vector<8x8xf32>, vector<256x8xf32> -> vector<256x8xf32>
    %179 = arith.addf %174, %178 : vector<256x8xf32>
    %c0_162 = arith.constant 0 : index
    %c0_163 = arith.constant 0 : index
    %180 = vector.load %arg12[%c0_162, %c0_163] : memref<1x8xf32, #tpu.memory_space<vmem>>, vector<1x8xf32>
    %181 = vector.broadcast %180 : vector<1x8xf32> to vector<256x8xf32>
    %182 = arith.addf %179, %181 : vector<256x8xf32>
    %c0_164 = arith.constant 0 : index
    %c0_165 = arith.constant 0 : index
    %183 = vector.load %arg13[%c0_164, %c0_165] : memref<4x8xf32, #tpu.memory_space<vmem>>, vector<4x8xf32>
    %cst_166 = arith.constant dense<0.000000e+00> : vector<256x8xf32>
    %184 = tpu.matmul %2, %183, %cst_166 {dimension_numbers = #tpu.dot_dimension_numbers<[1], [0], [0], [1], [0, 0, 1, 1], [], []>} : vector<256x4xf32>, vector<4x8xf32>, vector<256x8xf32> -> vector<256x8xf32>
    %c0_167 = arith.constant 0 : index
    %c0_168 = arith.constant 0 : index
    %185 = vector.load %arg14[%c0_167, %c0_168] : memref<1x8xf32, #tpu.memory_space<vmem>>, vector<1x8xf32>
    %186 = vector.broadcast %185 : vector<1x8xf32> to vector<256x8xf32>
    %187 = arith.addf %184, %186 : vector<256x8xf32>
    %188 = arith.addf %182, %187 : vector<256x8xf32>
    %189 = vector.shape_cast %188 : vector<256x8xf32> to vector<1x16x16x8xf32>
    %c0_169 = arith.constant 0 : index
    %c0_170 = arith.constant 0 : index
    %c0_171 = arith.constant 0 : index
    %c0_172 = arith.constant 0 : index
    %190 = vector.load %arg15[%c0_169, %c0_170, %c0_171, %c0_172] : memref<1x16x16x8xf32, #tpu.memory_space<vmem>>, vector<1x16x16x8xf32>
    tpu.vector_store %arg15[%c0_169, %c0_170, %c0_171, %c0_172], %189 {strides = array<i32>} : memref<1x16x16x8xf32, #tpu.memory_space<vmem>>, vector<1x16x16x8xf32>,
    return
  }
  func.func @transform_0(%arg0: i32) -> (i32, i32, i32, i32) {
    %c0_i32 = arith.constant 0 : i32
    %c0_i32_0 = arith.constant 0 : i32
    %c0_i32_1 = arith.constant 0 : i32
    %c0_i32_2 = arith.constant 0 : i32
    return %arg0, %c0_i32, %c0_i32_0, %c0_i32_1 : i32, i32, i32, i32
  }
  func.func @transform_1(%arg0: i32) -> (i32, i32, i32) {
    %c0_i32 = arith.constant 0 : i32
    %c0_i32_0 = arith.constant 0 : i32
    %c0_i32_1 = arith.constant 0 : i32
    return %arg0, %c0_i32, %c0_i32_0 : i32, i32, i32
  }
  func.func @transform_2(%arg0: i32) -> (i32, i32) {
    %c0_i32 = arith.constant 0 : i32
    %c0_i32_0 = arith.constant 0 : i32
    %c0_i32_1 = arith.constant 0 : i32
    return %c0_i32, %c0_i32_0 : i32, i32
  }
  func.func @transform_3(%arg0: i32) -> (i32, i32) {
    %c0_i32 = arith.constant 0 : i32
    %c0_i32_0 = arith.constant 0 : i32
    %c0_i32_1 = arith.constant 0 : i32
    return %c0_i32, %c0_i32_0 : i32, i32
  }
  func.func @transform_4(%arg0: i32) -> (i32, i32) {
    %c0_i32 = arith.constant 0 : i32
    %c0_i32_0 = arith.constant 0 : i32
    %c0_i32_1 = arith.constant 0 : i32
    return %c0_i32, %c0_i32_0 : i32, i32
  }
  func.func @transform_5(%arg0: i32) -> (i32, i32) {
    %c0_i32 = arith.constant 0 : i32
    %c0_i32_0 = arith.constant 0 : i32
    %c0_i32_1 = arith.constant 0 : i32
    return %c0_i32, %c0_i32_0 : i32, i32
  }
  func.func @transform_6(%arg0: i32) -> (i32, i32) {
    %c0_i32 = arith.constant 0 : i32
    %c0_i32_0 = arith.constant 0 : i32
    %c0_i32_1 = arith.constant 0 : i32
    return %c0_i32, %c0_i32_0 : i32, i32
  }
  func.func @transform_7(%arg0: i32) -> (i32, i32) {
    %c0_i32 = arith.constant 0 : i32
    %c0_i32_0 = arith.constant 0 : i32
    %c0_i32_1 = arith.constant 0 : i32
    return %c0_i32, %c0_i32_0 : i32, i32
  }
  func.func @transform_8(%arg0: i32) -> (i32, i32) {
    %c0_i32 = arith.constant 0 : i32
    %c0_i32_0 = arith.constant 0 : i32
    %c0_i32_1 = arith.constant 0 : i32
    return %c0_i32, %c0_i32_0 : i32, i32
  }
  func.func @transform_9(%arg0: i32) -> (i32, i32) {
    %c0_i32 = arith.constant 0 : i32
    %c0_i32_0 = arith.constant 0 : i32
    %c0_i32_1 = arith.constant 0 : i32
    return %c0_i32, %c0_i32_0 : i32, i32
  }
  func.func @transform_10(%arg0: i32) -> (i32, i32) {
    %c0_i32 = arith.constant 0 : i32
    %c0_i32_0 = arith.constant 0 : i32
    %c0_i32_1 = arith.constant 0 : i32
    return %c0_i32, %c0_i32_0 : i32, i32
  }
  func.func @transform_11(%arg0: i32) -> (i32, i32) {
    %c0_i32 = arith.constant 0 : i32
    %c0_i32_0 = arith.constant 0 : i32
    %c0_i32_1 = arith.constant 0 : i32
    return %c0_i32, %c0_i32_0 : i32, i32
  }
  func.func @transform_12(%arg0: i32) -> (i32, i32) {
    %c0_i32 = arith.constant 0 : i32
    %c0_i32_0 = arith.constant 0 : i32
    %c0_i32_1 = arith.constant 0 : i32
    return %c0_i32, %c0_i32_0 : i32, i32
  }
  func.func @transform_13(%arg0: i32) -> (i32, i32) {
    %c0_i32 = arith.constant 0 : i32
    %c0_i32_0 = arith.constant 0 : i32
    %c0_i32_1 = arith.constant 0 : i32
    return %c0_i32, %c0_i32_0 : i32, i32
  }
  func.func @transform_14(%arg0: i32) -> (i32, i32, i32, i32) {
    %c0_i32 = arith.constant 0 : i32
    %c0_i32_0 = arith.constant 0 : i32
    %c0_i32_1 = arith.constant 0 : i32
    %c0_i32_2 = arith.constant 0 : i32
    return %arg0, %c0_i32, %c0_i32_0, %c0_i32_1 : i32, i32, i32, i32
  }
}

</mosaic_0001>

<llo_original>
// kernel: tpu_custom_call.1
$region0: #{tpu_custom_call.1}
  #allocation0 [shape = 'u32[]', space=smem, size = 0x4, offset = 0x4, fixed_abs, tag = 'smem constant byte address 0x4 - core index']
  #allocation1 [shape = 'u32[72,128]{1,0:T(1,128)}', space=vmem, size = 0x9000, scoped, tag = 'internal scratch']
  #allocation2 [shape = 'f32[18,32,4]{2,1,0:T(8,128)}', space=vmem, size = 0x48000, scoped, tag = 'scratch operand']
  #allocation3 [shape = 'f32[18,32,8]{2,1,0:T(8,128)}', space=vmem, size = 0x48000, scoped, tag = 'scratch operand']
  %s0 = inlined_call_operand.vmem [shape: f32[2,16,16,4], index: 0, kind: input, shape index: {}]
  %s1 = inlined_call_operand.vmem [shape: f32[2,1,8], index: 1, kind: input, shape index: {}]
  %s2 = inlined_call_operand.vmem [shape: f32[4,4], index: 2, kind: input, shape index: {}]
  %s3 = inlined_call_operand.vmem [shape: f32[1,4], index: 3, kind: input, shape index: {}]
  %s4 = inlined_call_operand.vmem [shape: f32[1,4], index: 4, kind: input, shape index: {}]
  %s5 = inlined_call_operand.vmem [shape: f32[36,8], index: 5, kind: input, shape index: {}]
  %s6 = inlined_call_operand.vmem [shape: f32[1,8], index: 6, kind: input, shape index: {}]
  %s7 = inlined_call_operand.vmem [shape: f32[8,8], index: 7, kind: input, shape index: {}]
  %s8 = inlined_call_operand.vmem [shape: f32[1,8], index: 8, kind: input, shape index: {}]
  %s9 = inlined_call_operand.vmem [shape: f32[1,8], index: 9, kind: input, shape index: {}]
  %s10 = inlined_call_operand.vmem [shape: f32[72,8], index: 10, kind: input, shape index: {}]
  %s11 = inlined_call_operand.vmem [shape: f32[1,8], index: 11, kind: input, shape index: {}]
  %s12 = inlined_call_operand.vmem [shape: f32[4,8], index: 12, kind: input, shape index: {}]
  %s13 = inlined_call_operand.vmem [shape: f32[1,8], index: 13, kind: input, shape index: {}]
  %s14 = inlined_call_operand.vmem [shape: f32[2,16,16,8], index: 14, kind: output, shape index: {}]
  %s15 = sld [smem:[#allocation0]]
  $region89: #{tpu_custom_call.1} parent=0
    _
  %s17 = ssub.s32 1, %s15
  %s18 = scalar_select 0, %s17, %s15
  loop: start=0, step=1, limit=4
  $region2: #{tpu_custom_call.1} parent=0 // loop_pre_header
    _
  $region3: #{tpu_custom_call.1} parent=0 // loop_header
    %s20 = sphi 0, %s24
    %p21 = scmp.ge.s32.totalorder %s20, 4
    %s30 = sphi 0, %s32
    %s33 = sphi 0, %s30
    %s34 = sphi 0, %s33
    %s50 = sphi 0, %s34
    %s56 = sphi 0, %s58
    %s59 = sphi 0, %s56
    %s60 = sphi 0, %s59
    %s76 = sphi 0, %s60
    %s80 = sphi 0, %s80
    %s82 = sphi 0, %s80
    %s83 = sphi 0, %s82
    %s97 = sphi 0, %s83
    %s101 = sphi 0, %s101
    %s103 = sphi 0, %s101
    %s104 = sphi 0, %s103
    %s118 = sphi 0, %s104
    %s122 = sphi 0, %s122
    %s124 = sphi 0, %s122
    %s125 = sphi 0, %s124
    %s139 = sphi 0, %s125
    %s143 = sphi 0, %s143
    %s145 = sphi 0, %s143
    %s146 = sphi 0, %s145
    %s160 = sphi 0, %s146
    %s164 = sphi 0, %s164
    %s166 = sphi 0, %s164
    %s167 = sphi 0, %s166
    %s181 = sphi 0, %s167
    %s185 = sphi 0, %s185
    %s187 = sphi 0, %s185
    %s188 = sphi 0, %s187
    %s202 = sphi 0, %s188
    %s206 = sphi 0, %s206
    %s208 = sphi 0, %s206
    %s209 = sphi 0, %s208
    %s223 = sphi 0, %s209
    %s227 = sphi 0, %s227
    %s229 = sphi 0, %s227
    %s230 = sphi 0, %s229
    %s244 = sphi 0, %s230
    %s248 = sphi 0, %s248
    %s250 = sphi 0, %s248
    %s251 = sphi 0, %s250
    %s265 = sphi 0, %s251
    %s269 = sphi 0, %s269
    %s271 = sphi 0, %s269
    %s272 = sphi 0, %s271
    %s286 = sphi 0, %s272
    %s290 = sphi 0, %s290
    %s292 = sphi 0, %s290
    %s293 = sphi 0, %s292
    %s307 = sphi 0, %s293
    %s311 = sphi 0, %s311
    %s313 = sphi 0, %s311
    %s314 = sphi 0, %s313
    %s328 = sphi 0, %s314
    %s334 = sphi 0, %s336
    %s337 = sphi 0, %s334
    %s338 = sphi 0, %s337
    %s354 = sphi 0, %s338
  $region4: #{tpu_custom_call.1} parent=0 // loop_header_branch
    %23 = sbr.rel (%p21) target = $region8
  $region5: #{tpu_custom_call.1} parent=0 // loop_body
    %s25 = ssub.s32 %s20, 1
    %s26 = ssub.s32 %s20, 2
    %s27 = sadd.s32 %s20, 1
    %s28 = ssub.s32 %s20, %s27
    %p29 = scmp.eq.s32.totalorder %s28, 0
    %s31 = sadd.s32 %s30, 1
    %s32 = scalar_select %p29, %s30, %s31
    %p35 = pneg %p29
    %p36 = scmp.eq.s32.totalorder %s20, 1
    %p37 = por %p35, %p36
    %p38 = scmp.ne.s32.totalorder %s30, %s33
    %p39 = scmp.eq.s32.totalorder %s20, 0
    %p40 = por %p38, %p39
    %p41 = scmp.ne.s32.totalorder %s30, %s33
    %p42 = scmp.eq.s32.totalorder %s25, 1
    %p43 = por %p41, %p42
    %p44 = scmp.ne.s32.totalorder %s33, %s34
    %p45 = scmp.eq.s32.totalorder %s25, 0
    %p46 = por %p44, %p45
    %p47 = scmp.ne.s32.totalorder %s33, %s34
    %p48 = scmp.eq.s32.totalorder %s26, 1
    %p49 = por %p47, %p48
    %p51 = scmp.ne.s32.totalorder %s34, %s50
    %p52 = scmp.eq.s32.totalorder %s26, 0
    %p53 = por %p51, %p52
    %s54 = ssub.s32 %s20, %s27
    %p55 = scmp.eq.s32.totalorder %s54, 0
    %s57 = sadd.s32 %s56, 1
    %s58 = scalar_select %p55, %s56, %s57
    %p61 = pneg %p55
    %p62 = scmp.eq.s32.totalorder %s20, 1
    %p63 = por %p61, %p62
    %p64 = scmp.ne.s32.totalorder %s56, %s59
    %p65 = scmp.eq.s32.totalorder %s20, 0
    %p66 = por %p64, %p65
    %p67 = scmp.ne.s32.totalorder %s56, %s59
    %p68 = scmp.eq.s32.totalorder %s25, 1
    %p69 = por %p67, %p68
    %p70 = scmp.ne.s32.totalorder %s59, %s60
    %p71 = scmp.eq.s32.totalorder %s25, 0
    %p72 = por %p70, %p71
    %p73 = scmp.ne.s32.totalorder %s59, %s60
    %p74 = scmp.eq.s32.totalorder %s26, 1
    %p75 = por %p73, %p74
    %p77 = scmp.ne.s32.totalorder %s60, %s76
    %p78 = scmp.eq.s32.totalorder %s26, 0
    %p79 = por %p77, %p78
    %s81 = sadd.s32 %s80, 1
    %p84 = scmp.eq.s32.totalorder %s20, 1
    %p85 = scmp.ne.s32.totalorder %s80, %s82
    %p86 = scmp.eq.s32.totalorder %s20, 0
    %p87 = por %p85, %p86
    %p88 = scmp.ne.s32.totalorder %s80, %s82
    %p89 = scmp.eq.s32.totalorder %s25, 1
    %p90 = por %p88, %p89
    %p91 = scmp.ne.s32.totalorder %s82, %s83
    %p92 = scmp.eq.s32.totalorder %s25, 0
    %p93 = por %p91, %p92
    %p94 = scmp.ne.s32.totalorder %s82, %s83
    %p95 = scmp.eq.s32.totalorder %s26, 1
    %p96 = por %p94, %p95
    %p98 = scmp.ne.s32.totalorder %s83, %s97
    %p99 = scmp.eq.s32.totalorder %s26, 0
    %p100 = por %p98, %p99
    %s102 = sadd.s32 %s101, 1
    %p105 = scmp.eq.s32.totalorder %s20, 1
    %p106 = scmp.ne.s32.totalorder %s101, %s103
    %p107 = scmp.eq.s32.totalorder %s20, 0
    %p108 = por %p106, %p107
    %p109 = scmp.ne.s32.totalorder %s101, %s103
    %p110 = scmp.eq.s32.totalorder %s25, 1
    %p111 = por %p109, %p110
    %p112 = scmp.ne.s32.totalorder %s103, %s104
    %p113 = scmp.eq.s32.totalorder %s25, 0
    %p114 = por %p112, %p113
    %p115 = scmp.ne.s32.totalorder %s103, %s104
    %p116 = scmp.eq.s32.totalorder %s26, 1
    %p117 = por %p115, %p116
    %p119 = scmp.ne.s32.totalorder %s104, %s118
    %p120 = scmp.eq.s32.totalorder %s26, 0
    %p121 = por %p119, %p120
    %s123 = sadd.s32 %s122, 1
    %p126 = scmp.eq.s32.totalorder %s20, 1
    %p127 = scmp.ne.s32.totalorder %s122, %s124
    %p128 = scmp.eq.s32.totalorder %s20, 0
    %p129 = por %p127, %p128
    %p130 = scmp.ne.s32.totalorder %s122, %s124
    %p131 = scmp.eq.s32.totalorder %s25, 1
    %p132 = por %p130, %p131
    %p133 = scmp.ne.s32.totalorder %s124, %s125
    %p134 = scmp.eq.s32.totalorder %s25, 0
    %p135 = por %p133, %p134
    %p136 = scmp.ne.s32.totalorder %s124, %s125
    %p137 = scmp.eq.s32.totalorder %s26, 1
    %p138 = por %p136, %p137
    %p140 = scmp.ne.s32.totalorder %s125, %s139
    %p141 = scmp.eq.s32.totalorder %s26, 0
    %p142 = por %p140, %p141
    %s144 = sadd.s32 %s143, 1
    %p147 = scmp.eq.s32.totalorder %s20, 1
    %p148 = scmp.ne.s32.totalorder %s143, %s145
    %p149 = scmp.eq.s32.totalorder %s20, 0
    %p150 = por %p148, %p149
    %p151 = scmp.ne.s32.totalorder %s143, %s145
    %p152 = scmp.eq.s32.totalorder %s25, 1
    %p153 = por %p151, %p152
    %p154 = scmp.ne.s32.totalorder %s145, %s146
    %p155 = scmp.eq.s32.totalorder %s25, 0
    %p156 = por %p154, %p155
    %p157 = scmp.ne.s32.totalorder %s145, %s146
    %p158 = scmp.eq.s32.totalorder %s26, 1
    %p159 = por %p157, %p158
    %p161 = scmp.ne.s32.totalorder %s146, %s160
    %p162 = scmp.eq.s32.totalorder %s26, 0
    %p163 = por %p161, %p162
    %s165 = sadd.s32 %s164, 1
    %p168 = scmp.eq.s32.totalorder %s20, 1
    %p169 = scmp.ne.s32.totalorder %s164, %s166
    %p170 = scmp.eq.s32.totalorder %s20, 0
    %p171 = por %p169, %p170
    %p172 = scmp.ne.s32.totalorder %s164, %s166
    %p173 = scmp.eq.s32.totalorder %s25, 1
    %p174 = por %p172, %p173
    %p175 = scmp.ne.s32.totalorder %s166, %s167
    %p176 = scmp.eq.s32.totalorder %s25, 0
    %p177 = por %p175, %p176
    %p178 = scmp.ne.s32.totalorder %s166, %s167
    %p179 = scmp.eq.s32.totalorder %s26, 1
    %p180 = por %p178, %p179
    %p182 = scmp.ne.s32.totalorder %s167, %s181
    %p183 = scmp.eq.s32.totalorder %s26, 0
    %p184 = por %p182, %p183
    %s186 = sadd.s32 %s185, 1
    %p189 = scmp.eq.s32.totalorder %s20, 1
    %p190 = scmp.ne.s32.totalorder %s185, %s187
    %p191 = scmp.eq.s32.totalorder %s20, 0
    %p192 = por %p190, %p191
    %p193 = scmp.ne.s32.totalorder %s185, %s187
    %p194 = scmp.eq.s32.totalorder %s25, 1
    %p195 = por %p193, %p194
    %p196 = scmp.ne.s32.totalorder %s187, %s188
    %p197 = scmp.eq.s32.totalorder %s25, 0
    %p198 = por %p196, %p197
    %p199 = scmp.ne.s32.totalorder %s187, %s188
    %p200 = scmp.eq.s32.totalorder %s26, 1
    %p201 = por %p199, %p200
    %p203 = scmp.ne.s32.totalorder %s188, %s202
    %p204 = scmp.eq.s32.totalorder %s26, 0
    %p205 = por %p203, %p204
    %s207 = sadd.s32 %s206, 1
    %p210 = scmp.eq.s32.totalorder %s20, 1
    %p211 = scmp.ne.s32.totalorder %s206, %s208
    %p212 = scmp.eq.s32.totalorder %s20, 0
    %p213 = por %p211, %p212
    %p214 = scmp.ne.s32.totalorder %s206, %s208
    %p215 = scmp.eq.s32.totalorder %s25, 1
    %p216 = por %p214, %p215
    %p217 = scmp.ne.s32.totalorder %s208, %s209
    %p218 = scmp.eq.s32.totalorder %s25, 0
    %p219 = por %p217, %p218
    %p220 = scmp.ne.s32.totalorder %s208, %s209
    %p221 = scmp.eq.s32.totalorder %s26, 1
    %p222 = por %p220, %p221
    %p224 = scmp.ne.s32.totalorder %s209, %s223
    %p225 = scmp.eq.s32.totalorder %s26, 0
    %p226 = por %p224, %p225
    %s228 = sadd.s32 %s227, 1
    %p231 = scmp.eq.s32.totalorder %s20, 1
    %p232 = scmp.ne.s32.totalorder %s227, %s229
    %p233 = scmp.eq.s32.totalorder %s20, 0
    %p234 = por %p232, %p233
    %p235 = scmp.ne.s32.totalorder %s227, %s229
    %p236 = scmp.eq.s32.totalorder %s25, 1
    %p237 = por %p235, %p236
    %p238 = scmp.ne.s32.totalorder %s229, %s230
    %p239 = scmp.eq.s32.totalorder %s25, 0
    %p240 = por %p238, %p239
    %p241 = scmp.ne.s32.totalorder %s229, %s230
    %p242 = scmp.eq.s32.totalorder %s26, 1
    %p243 = por %p241, %p242
    %p245 = scmp.ne.s32.totalorder %s230, %s244
    %p246 = scmp.eq.s32.totalorder %s26, 0
    %p247 = por %p245, %p246
    %s249 = sadd.s32 %s248, 1
    %p252 = scmp.eq.s32.totalorder %s20, 1
    %p253 = scmp.ne.s32.totalorder %s248, %s250
    %p254 = scmp.eq.s32.totalorder %s20, 0
    %p255 = por %p253, %p254
    %p256 = scmp.ne.s32.totalorder %s248, %s250
    %p257 = scmp.eq.s32.totalorder %s25, 1
    %p258 = por %p256, %p257
    %p259 = scmp.ne.s32.totalorder %s250, %s251
    %p260 = scmp.eq.s32.totalorder %s25, 0
    %p261 = por %p259, %p260
    %p262 = scmp.ne.s32.totalorder %s250, %s251
    %p263 = scmp.eq.s32.totalorder %s26, 1
    %p264 = por %p262, %p263
    %p266 = scmp.ne.s32.totalorder %s251, %s265
    %p267 = scmp.eq.s32.totalorder %s26, 0
    %p268 = por %p266, %p267
    %s270 = sadd.s32 %s269, 1
    %p273 = scmp.eq.s32.totalorder %s20, 1
    %p274 = scmp.ne.s32.totalorder %s269, %s271
    %p275 = scmp.eq.s32.totalorder %s20, 0
    %p276 = por %p274, %p275
    %p277 = scmp.ne.s32.totalorder %s269, %s271
    %p278 = scmp.eq.s32.totalorder %s25, 1
    %p279 = por %p277, %p278
    %p280 = scmp.ne.s32.totalorder %s271, %s272
    %p281 = scmp.eq.s32.totalorder %s25, 0
    %p282 = por %p280, %p281
    %p283 = scmp.ne.s32.totalorder %s271, %s272
    %p284 = scmp.eq.s32.totalorder %s26, 1
    %p285 = por %p283, %p284
    %p287 = scmp.ne.s32.totalorder %s272, %s286
    %p288 = scmp.eq.s32.totalorder %s26, 0
    %p289 = por %p287, %p288
    %s291 = sadd.s32 %s290, 1
    %p294 = scmp.eq.s32.totalorder %s20, 1
    %p295 = scmp.ne.s32.totalorder %s290, %s292
    %p296 = scmp.eq.s32.totalorder %s20, 0
    %p297 = por %p295, %p296
    %p298 = scmp.ne.s32.totalorder %s290, %s292
    %p299 = scmp.eq.s32.totalorder %s25, 1
    %p300 = por %p298, %p299
    %p301 = scmp.ne.s32.totalorder %s292, %s293
    %p302 = scmp.eq.s32.totalorder %s25, 0
    %p303 = por %p301, %p302
    %p304 = scmp.ne.s32.totalorder %s292, %s293
    %p305 = scmp.eq.s32.totalorder %s26, 1
    %p306 = por %p304, %p305
    %p308 = scmp.ne.s32.totalorder %s293, %s307
    %p309 = scmp.eq.s32.totalorder %s26, 0
    %p310 = por %p308, %p309
    %s312 = sadd.s32 %s311, 1
    %p315 = scmp.eq.s32.totalorder %s20, 1
    %p316 = scmp.ne.s32.totalorder %s311, %s313
    %p317 = scmp.eq.s32.totalorder %s20, 0
    %p318 = por %p316, %p317
    %p319 = scmp.ne.s32.totalorder %s311, %s313
    %p320 = scmp.eq.s32.totalorder %s25, 1
    %p321 = por %p319, %p320
    %p322 = scmp.ne.s32.totalorder %s313, %s314
    %p323 = scmp.eq.s32.totalorder %s25, 0
    %p324 = por %p322, %p323
    %p325 = scmp.ne.s32.totalorder %s313, %s314
    %p326 = scmp.eq.s32.totalorder %s26, 1
    %p327 = por %p325, %p326
    %p329 = scmp.ne.s32.totalorder %s314, %s328
    %p330 = scmp.eq.s32.totalorder %s26, 0
    %p331 = por %p329, %p330
    %s332 = ssub.s32 %s20, %s27
    %p333 = scmp.eq.s32.totalorder %s332, 0
    %s335 = sadd.s32 %s334, 1
    %s336 = scalar_select %p333, %s334, %s335
    %p339 = pneg %p333
    %p340 = scmp.eq.s32.totalorder %s20, 1
    %p341 = por %p339, %p340
    %p342 = scmp.ne.s32.totalorder %s334, %s337
    %p343 = scmp.eq.s32.totalorder %s20, 0
    %p344 = por %p342, %p343
    %p345 = scmp.ne.s32.totalorder %s334, %s337
    %p346 = scmp.eq.s32.totalorder %s25, 1
    %p347 = por %p345, %p346
    %p348 = scmp.ne.s32.totalorder %s337, %s338
    %p349 = scmp.eq.s32.totalorder %s25, 0
    %p350 = por %p348, %p349
    %p351 = scmp.ne.s32.totalorder %s337, %s338
    %p352 = scmp.eq.s32.totalorder %s26, 1
    %p353 = por %p351, %p352
    %p355 = scmp.ne.s32.totalorder %s338, %s354
    %p356 = scmp.eq.s32.totalorder %s26, 0
    %p357 = por %p355, %p356
    %p358 = scmp.le.s32.totalorder 1, %s20
    %p359 = scmp.lt.s32.totalorder %s20, 3
    %p360 = pnand %p358, %p359
    %p361 = pneg %p360
    // Predicated region
    $region9: #{tpu_custom_call.1} parent=5 // pred_check
      _
    $region10: #{tpu_custom_call.1} parent=5 // pred_check_branch
      %363 = sbr.rel (%p360) target = $region12
    $region11: #{tpu_custom_call.1} parent=5 // pred_region
      %s364 = ssub.s32 %s20, 1
      // Predicated region
      $region13: #{tpu_custom_call.1} parent=11 // pred_check
        %p365 = pneg %p93
      $region14: #{tpu_custom_call.1} parent=11 // pred_check_branch
        %367 = sbr.rel (%p365) target = $region16
      $region15: #{tpu_custom_call.1} parent=11 // pred_region
        _
      $region16: #{tpu_custom_call.1} parent=11 // pred_fallthru
        _
      // Predicated region
      $region17: #{tpu_custom_call.1} parent=11 // pred_check
        %p368 = pneg %p114
      $region18: #{tpu_custom_call.1} parent=11 // pred_check_branch
        %370 = sbr.rel (%p368) target = $region20
      $region19: #{tpu_custom_call.1} parent=11 // pred_region
        _
      $region20: #{tpu_custom_call.1} parent=11 // pred_fallthru
        _
      // Predicated region
      $region21: #{tpu_custom_call.1} parent=11 // pred_check
        %p371 = pneg %p135
      $region22: #{tpu_custom_call.1} parent=11 // pred_check_branch
        %373 = sbr.rel (%p371) target = $region24
      $region23: #{tpu_custom_call.1} parent=11 // pred_region
        _
      $region24: #{tpu_custom_call.1} parent=11 // pred_fallthru
        _
      // Predicated region
      $region25: #{tpu_custom_call.1} parent=11 // pred_check
        %p374 = pneg %p156
      $region26: #{tpu_custom_call.1} parent=11 // pred_check_branch
        %376 = sbr.rel (%p374) target = $region28
      $region27: #{tpu_custom_call.1} parent=11 // pred_region
        _
      $region28: #{tpu_custom_call.1} parent=11 // pred_fallthru
        _
      // Predicated region
      $region29: #{tpu_custom_call.1} parent=11 // pred_check
        %p377 = pneg %p177
      $region30: #{tpu_custom_call.1} parent=11 // pred_check_branch
        %379 = sbr.rel (%p377) target = $region32
      $region31: #{tpu_custom_call.1} parent=11 // pred_region
        _
      $region32: #{tpu_custom_call.1} parent=11 // pred_fallthru
        _
      // Predicated region
      $region33: #{tpu_custom_call.1} parent=11 // pred_check
        %p380 = pneg %p198
      $region34: #{tpu_custom_call.1} parent=11 // pred_check_branch
        %382 = sbr.rel (%p380) target = $region36
      $region35: #{tpu_custom_call.1} parent=11 // pred_region
        _
      $region36: #{tpu_custom_call.1} parent=11 // pred_fallthru
        _
      // Predicated region
      $region37: #{tpu_custom_call.1} parent=11 // pred_check
        %p383 = pneg %p219
      $region38: #{tpu_custom_call.1} parent=11 // pred_check_branch
        %385 = sbr.rel (%p383) target = $region40
      $region39: #{tpu_custom_call.1} parent=11 // pred_region
        _
      $region40: #{tpu_custom_call.1} parent=11 // pred_fallthru
        _
      // Predicated region
      $region41: #{tpu_custom_call.1} parent=11 // pred_check
        %p386 = pneg %p240
      $region42: #{tpu_custom_call.1} parent=11 // pred_check_branch
        %388 = sbr.rel (%p386) target = $region44
      $region43: #{tpu_custom_call.1} parent=11 // pred_region
        _
      $region44: #{tpu_custom_call.1} parent=11 // pred_fallthru
        _
      // Predicated region
      $region45: #{tpu_custom_call.1} parent=11 // pred_check
        %p389 = pneg %p261
      $region46: #{tpu_custom_call.1} parent=11 // pred_check_branch
        %391 = sbr.rel (%p389) target = $region48
      $region47: #{tpu_custom_call.1} parent=11 // pred_region
        _
      $region48: #{tpu_custom_call.1} parent=11 // pred_fallthru
        _
      // Predicated region
      $region49: #{tpu_custom_call.1} parent=11 // pred_check
        %p392 = pneg %p282
      $region50: #{tpu_custom_call.1} parent=11 // pred_check_branch
        %394 = sbr.rel (%p392) target = $region52
      $region51: #{tpu_custom_call.1} parent=11 // pred_region
        _
      $region52: #{tpu_custom_call.1} parent=11 // pred_fallthru
        _
      // Predicated region
      $region53: #{tpu_custom_call.1} parent=11 // pred_check
        %p395 = pneg %p303
      $region54: #{tpu_custom_call.1} parent=11 // pred_check_branch
        %397 = sbr.rel (%p395) target = $region56
      $region55: #{tpu_custom_call.1} parent=11 // pred_region
        _
      $region56: #{tpu_custom_call.1} parent=11 // pred_fallthru
        _
      // Predicated region
      $region57: #{tpu_custom_call.1} parent=11 // pred_check
        %p398 = pneg %p324
      $region58: #{tpu_custom_call.1} parent=11 // pred_check_branch
        %400 = sbr.rel (%p398) target = $region60
      $region59: #{tpu_custom_call.1} parent=11 // pred_region
        _
      $region60: #{tpu_custom_call.1} parent=11 // pred_fallthru
        _
    $region12: #{tpu_custom_call.1} parent=5 // pred_fallthru
      _
    %p401 = scmp.lt.s32.totalorder %s20, 2
    // Predicated region
    $region61: #{tpu_custom_call.1} parent=5 // pred_check
      %p402 = pneg %p401
    $region62: #{tpu_custom_call.1} parent=5 // pred_check_branch
      %404 = sbr.rel (%p402) target = $region64
    $region63: #{tpu_custom_call.1} parent=5 // pred_region
      // Predicated region
      $region65: #{tpu_custom_call.1} parent=63 // pred_check
        %p405 = pneg %p40
      $region66: #{tpu_custom_call.1} parent=63 // pred_check_branch
        %407 = sbr.rel (%p405) target = $region68
      $region67: #{tpu_custom_call.1} parent=63 // pred_region
        %p408 = scmp.lt.s32.totalorder %s20, 1
        %s409 = scalar_select %p408, %s20, 1
        %s410 = smul.addr %s409, 32
        %s411 = smul.addr %s410, 8
        %s412 = scalar_lea.vmem %s0, %s411
      $region68: #{tpu_custom_call.1} parent=63 // pred_fallthru
        _
      // Predicated region
      $region69: #{tpu_custom_call.1} parent=63 // pred_check
        %p413 = pneg %p66
      $region70: #{tpu_custom_call.1} parent=63 // pred_check_branch
        %415 = sbr.rel (%p413) target = $region72
      $region71: #{tpu_custom_call.1} parent=63 // pred_region
        %p416 = scmp.lt.s32.totalorder %s20, 1
        %s417 = scalar_select %p416, %s20, 1
        %s418 = scalar_lea.vmem %s1, %s417
      $region72: #{tpu_custom_call.1} parent=63 // pred_fallthru
        _
    $region64: #{tpu_custom_call.1} parent=5 // pred_fallthru
      _
    %p419 = scmp.le.s32.totalorder 1, %s20
    %p420 = scmp.lt.s32.totalorder %s20, 3
    %p421 = pnand %p419, %p420
    %p422 = pneg %p421
    // Predicated region
    $region73: #{tpu_custom_call.1} parent=5 // pred_check
      _
    $region74: #{tpu_custom_call.1} parent=5 // pred_check_branch
      %424 = sbr.rel (%p421) target = $region76
    $region75: #{tpu_custom_call.1} parent=5 // pred_region
      %s425 = ssub.s32 %s20, 1
      %p426 = scmp.lt.s32.totalorder %s25, 1
      %s427 = scalar_select %p426, %s25, 1
      %s428 = smul.addr %s427, 32
      %s429 = smul.addr %s428, 8
      %s430 = scalar_lea.vmem %s0, %s429
      %p431 = pneg %p46
      %p432 = pneg %p43
      %p433 = scmp.lt.s32.totalorder %s25, 1
      %s434 = scalar_select %p433, %s25, 1
      %s435 = scalar_lea.vmem %s1, %s434
      %p436 = pneg %p72
      %p437 = pneg %p69
      %p438 = pneg %p93
      %p439 = pneg %p90
      %p440 = pneg %p114
      %p441 = pneg %p111
      %p442 = pneg %p135
      %p443 = pneg %p132
      %p444 = pneg %p156
      %p445 = pneg %p153
      %p446 = pneg %p177
      %p447 = pneg %p174
      %p448 = pneg %p198
      %p449 = pneg %p195
      %p450 = pneg %p219
      %p451 = pneg %p216
      %p452 = pneg %p240
      %p453 = pneg %p237
      %p454 = pneg %p261
      %p455 = pneg %p258
      %p456 = pneg %p282
      %p457 = pneg %p279
      %p458 = pneg %p303
      %p459 = pneg %p300
      %p460 = pneg %p324
      %p461 = pneg %p321
      %p462 = pneg %p350
      %p463 = pneg %p347
      %p464 = scmp.lt.s32.totalorder %s25, 1
      %s465 = scalar_select %p464, %s25, 1
      %s466 = smul.addr %s465, 32
      %s467 = smul.addr %s466, 8
      %s468 = scalar_lea.vmem %s14, %s467
      %p469 = scmp.lt.s32.totalorder %s25, 1
      %s470 = scalar_select %p469, %s25, 1
      %s471 = smul.addr %s470, 32
      %s472 = smul.addr %s471, 8
      %s473 = scalar_lea.vmem %s0, %s472
      %p474 = scmp.lt.s32.totalorder %s25, 1
      %s475 = scalar_select %p474, %s25, 1
      %s476 = scalar_lea.vmem %s1, %s475
      %p477 = scmp.lt.s32.totalorder %s25, 1
      %s478 = scalar_select %p477, %s25, 1
      %s479 = smul.addr %s478, 32
      %s480 = smul.addr %s479, 8
      %s481 = scalar_lea.vmem %s14, %s480
      %v482 = vld [vmem:[%s473] sm:$0xff]
      %v483 = vld [vmem:[%s473 + $0x8] sm:$0xff]
      %v484 = vld [vmem:[%s473 + $0x10] sm:$0xff]
      %v485 = vld [vmem:[%s473 + $0x18] sm:$0xff]
      %v486 = vld [vmem:[%s473 + $0x20] sm:$0xff]
      %v487 = vld [vmem:[%s473 + $0x28] sm:$0xff]
      %v488 = vld [vmem:[%s473 + $0x30] sm:$0xff]
      %v489 = vld [vmem:[%s473 + $0x38] sm:$0xff]
      %v490 = vld [vmem:[%s473 + $0x40] sm:$0xff]
      %v491 = vld [vmem:[%s473 + $0x48] sm:$0xff]
      %v492 = vld [vmem:[%s473 + $0x50] sm:$0xff]
      %v493 = vld [vmem:[%s473 + $0x58] sm:$0xff]
      %v494 = vld [vmem:[%s473 + $0x60] sm:$0xff]
      %v495 = vld [vmem:[%s473 + $0x68] sm:$0xff]
      %v496 = vld [vmem:[%s473 + $0x70] sm:$0xff]
      %v497 = vld [vmem:[%s473 + $0x78] sm:$0xff]
      %v498 = vld [vmem:[%s473 + $0x80] sm:$0xff]
      %v499 = vld [vmem:[%s473 + $0x88] sm:$0xff]
      %v500 = vld [vmem:[%s473 + $0x90] sm:$0xff]
      %v501 = vld [vmem:[%s473 + $0x98] sm:$0xff]
      %v502 = vld [vmem:[%s473 + $0xa0] sm:$0xff]
      %v503 = vld [vmem:[%s473 + $0xa8] sm:$0xff]
      %v504 = vld [vmem:[%s473 + $0xb0] sm:$0xff]
      %v505 = vld [vmem:[%s473 + $0xb8] sm:$0xff]
      %v506 = vld [vmem:[%s473 + $0xc0] sm:$0xff]
      %v507 = vld [vmem:[%s473 + $0xc8] sm:$0xff]
      %v508 = vld [vmem:[%s473 + $0xd0] sm:$0xff]
      %v509 = vld [vmem:[%s473 + $0xd8] sm:$0xff]
      %v510 = vld [vmem:[%s473 + $0xe0] sm:$0xff]
      %v511 = vld [vmem:[%s473 + $0xe8] sm:$0xff]
      %v512 = vld [vmem:[%s473 + $0xf0] sm:$0xff]
      %v513 = vld [vmem:[%s473 + $0xf8] sm:$0xff]
      %v514 = vld [vmem:[%s3] sm:$0x1]
      %v515 = vld [vmem:[%s4] sm:$0x1]
      %v516 = vld [vmem:[%s2] sm:$0xf]
      %vm517 = vcmask 31744
      %v518 = vsel %vm517, %v482, 0.0
      %v519 = vsel %vm517, %v483, 0.0
      %v520 = vadd.f32 %v518, %v519
      %v521 = vsel %vm517, %v484, 0.0
      %v522 = vadd.f32 %v520, %v521
      %v523 = vsel %vm517, %v485, 0.0
      %v524 = vadd.f32 %v522, %v523
      %v525 = vsel %vm517, %v486, 0.0
      %v526 = vadd.f32 %v524, %v525
      %v527 = vsel %vm517, %v487, 0.0
      %v528 = vadd.f32 %v526, %v527
      %v529 = vsel %vm517, %v488, 0.0
      %v530 = vadd.f32 %v528, %v529
      %v531 = vsel %vm517, %v489, 0.0
      %v532 = vadd.f32 %v530, %v531
      %v533 = vsel %vm517, %v490, 0.0
      %v534 = vadd.f32 %v532, %v533
      %v535 = vsel %vm517, %v491, 0.0
      %v536 = vadd.f32 %v534, %v535
      %v537 = vsel %vm517, %v492, 0.0
      %v538 = vadd.f32 %v536, %v537
      %v539 = vsel %vm517, %v493, 0.0
      %v540 = vadd.f32 %v538, %v539
      %v541 = vsel %vm517, %v494, 0.0
      %v542 = vadd.f32 %v540, %v541
      %v543 = vsel %vm517, %v495, 0.0
      %v544 = vadd.f32 %v542, %v543
      %v545 = vsel %vm517, %v496, 0.0
      %v546 = vadd.f32 %v544, %v545
      %v547 = vsel %vm517, %v497, 0.0
      %v548 = vadd.f32 %v546, %v547
      %v549 = vsel %vm517, %v498, 0.0
      %v550 = vadd.f32 %v548, %v549
      %v551 = vsel %vm517, %v499, 0.0
      %v552 = vadd.f32 %v550, %v551
      %v553 = vsel %vm517, %v500, 0.0
      %v554 = vadd.f32 %v552, %v553
      %v555 = vsel %vm517, %v501, 0.0
      %v556 = vadd.f32 %v554, %v555
      %v557 = vsel %vm517, %v502, 0.0
      %v558 = vadd.f32 %v556, %v557
      %v559 = vsel %vm517, %v503, 0.0
      %v560 = vadd.f32 %v558, %v559
      %v561 = vsel %vm517, %v504, 0.0
      %v562 = vadd.f32 %v560, %v561
      %v563 = vsel %vm517, %v505, 0.0
      %v564 = vadd.f32 %v562, %v563
      %v565 = vsel %vm517, %v506, 0.0
      %v566 = vadd.f32 %v564, %v565
      %v567 = vsel %vm517, %v507, 0.0
      %v568 = vadd.f32 %v566, %v567
      %v569 = vsel %vm517, %v508, 0.0
      %v570 = vadd.f32 %v568, %v569
      %v571 = vsel %vm517, %v509, 0.0
      %v572 = vadd.f32 %v570, %v571
      %v573 = vsel %vm517, %v510, 0.0
      %v574 = vadd.f32 %v572, %v573
      %v575 = vsel %vm517, %v511, 0.0
      %v576 = vadd.f32 %v574, %v575
      %v577 = vsel %vm517, %v512, 0.0
      %v578 = vadd.f32 %v576, %v577
      %v579 = vsel %vm517, %v513, 0.0
      %v580 = vadd.f32 %v578, %v579
      %v581 = vrot.slane %v580, 4
      %v582 = vadd.f32 %v580, %v581
      %v583 = vrot.slane %v582, 2
      %v584 = vadd.f32 %v582, %v583
      %v585 = vrot.slane %v584, 1
      %v586 = vadd.f32 %v584, %v585
      %v587 = vmul.f32 %v482, %v482
      %v588 = vmul.f32 %v483, %v483
      %v589 = vmul.f32 %v484, %v484
      %v590 = vmul.f32 %v485, %v485
      %v591 = vmul.f32 %v486, %v486
      %v592 = vmul.f32 %v487, %v487
      %v593 = vmul.f32 %v488, %v488
      %v594 = vmul.f32 %v489, %v489
      %v595 = vmul.f32 %v490, %v490
      %v596 = vmul.f32 %v491, %v491
      %v597 = vmul.f32 %v492, %v492
      %v598 = vmul.f32 %v493, %v493
      %v599 = vmul.f32 %v494, %v494
      %v600 = vmul.f32 %v495, %v495
      %v601 = vmul.f32 %v496, %v496
      %v602 = vmul.f32 %v497, %v497
      %v603 = vmul.f32 %v498, %v498
      %v604 = vmul.f32 %v499, %v499
      %v605 = vmul.f32 %v500, %v500
      %v606 = vmul.f32 %v501, %v501
      %v607 = vmul.f32 %v502, %v502
      %v608 = vmul.f32 %v503, %v503
      %v609 = vmul.f32 %v504, %v504
      %v610 = vmul.f32 %v505, %v505
      %v611 = vmul.f32 %v506, %v506
      %v612 = vmul.f32 %v507, %v507
      %v613 = vmul.f32 %v508, %v508
      %v614 = vmul.f32 %v509, %v509
      %v615 = vmul.f32 %v510, %v510
      %v616 = vmul.f32 %v511, %v511
      %v617 = vmul.f32 %v512, %v512
      %v618 = vmul.f32 %v513, %v513
      %v619 = vsel %vm517, %v587, 0.0
      %v620 = vsel %vm517, %v588, 0.0
      %v621 = vadd.f32 %v619, %v620
      %v622 = vsel %vm517, %v589, 0.0
      %v623 = vadd.f32 %v621, %v622
      %v624 = vsel %vm517, %v590, 0.0
      %v625 = vadd.f32 %v623, %v624
      %v626 = vsel %vm517, %v591, 0.0
      %v627 = vadd.f32 %v625, %v626
      %v628 = vsel %vm517, %v592, 0.0
      %v629 = vadd.f32 %v627, %v628
      %v630 = vsel %vm517, %v593, 0.0
      %v631 = vadd.f32 %v629, %v630
      %v632 = vsel %vm517, %v594, 0.0
      %v633 = vadd.f32 %v631, %v632
      %v634 = vsel %vm517, %v595, 0.0
      %v635 = vadd.f32 %v633, %v634
      %v636 = vsel %vm517, %v596, 0.0
      %v637 = vadd.f32 %v635, %v636
      %v638 = vsel %vm517, %v597, 0.0
      %v639 = vadd.f32 %v637, %v638
      %v640 = vsel %vm517, %v598, 0.0
      %v641 = vadd.f32 %v639, %v640
      %v642 = vsel %vm517, %v599, 0.0
      %v643 = vadd.f32 %v641, %v642
      %v644 = vsel %vm517, %v600, 0.0
      %v645 = vadd.f32 %v643, %v644
      %v646 = vsel %vm517, %v601, 0.0
      %v647 = vadd.f32 %v645, %v646
      %v648 = vsel %vm517, %v602, 0.0
      %v649 = vadd.f32 %v647, %v648
      %v650 = vsel %vm517, %v603, 0.0
      %v651 = vadd.f32 %v649, %v650
      %v652 = vsel %vm517, %v604, 0.0
      %v653 = vadd.f32 %v651, %v652
      %v654 = vsel %vm517, %v605, 0.0
      %v655 = vadd.f32 %v653, %v654
      %v656 = vsel %vm517, %v606, 0.0
      %v657 = vadd.f32 %v655, %v656
      %v658 = vsel %vm517, %v607, 0.0
      %v659 = vadd.f32 %v657, %v658
      %v660 = vsel %vm517, %v608, 0.0
      %v661 = vadd.f32 %v659, %v660
      %v662 = vsel %vm517, %v609, 0.0
      %v663 = vadd.f32 %v661, %v662
      %v664 = vsel %vm517, %v610, 0.0
      %v665 = vadd.f32 %v663, %v664
      %v666 = vsel %vm517, %v611, 0.0
      %v667 = vadd.f32 %v665, %v666
      %v668 = vsel %vm517, %v612, 0.0
      %v669 = vadd.f32 %v667, %v668
      %v670 = vsel %vm517, %v613, 0.0
      %v671 = vadd.f32 %v669, %v670
      %v672 = vsel %vm517, %v614, 0.0
      %v673 = vadd.f32 %v671, %v672
      %v674 = vsel %vm517, %v615, 0.0
      %v675 = vadd.f32 %v673, %v674
      %v676 = vsel %vm517, %v616, 0.0
      %v677 = vadd.f32 %v675, %v676
      %v678 = vsel %vm517, %v617, 0.0
      %v679 = vadd.f32 %v677, %v678
      %v680 = vsel %vm517, %v618, 0.0
      %v681 = vadd.f32 %v679, %v680
      %v682 = vrot.slane %v681, 4
      %v683 = vadd.f32 %v681, %v682
      %v684 = vrot.slane %v683, 2
      %v685 = vadd.f32 %v683, %v684
      %v686 = vrot.slane %v685, 1
      %v687 = vadd.f32 %v685, %v686
      %v689 = vsel %vm517, %v586, 0
      %vm691 = vcmask 1043456
      %v693 = vsel %vm691, %v516, 0
      %695 = vmatpush.msra.mxu0 0.0
      %696 = vmatpush.msra.mxu0 0.0
      %697 = vmatpush.msra.mxu0 0.0
      %698 = vmatpush.msra.mxu0 0.0
      %699 = vmatpush.msra.mxu0 0.0
      %700 = vmatpush.msra.mxu0 0.0
      %701 = vmatpush.msra.mxu0 0.0
      %702 = vmatpush.msra.mxu0 0.0
      %703 = vmatpush.msra.mxu0 0.0
      %704 = vmatpush.msra.mxu0 0.0
      %705 = vmatpush.msra.mxu0 0.0
      %706 = vmatpush.msra.mxu0 0.0
      %707 = vmatpush.msra.mxu0 0.0
      %708 = vmatpush.msra.mxu0 0.0
      %709 = vmatpush.msra.mxu0 0.0
      %710 = vmatpush.msra.mxu0 %v693
      %711 = vmatmul.f32.gmra.mxu0 %v689
      %v712 = vpop.f32.mrf.mxu0
      %v713 = vadd.f32 0.0, %v712
      %714 = vdwg.mxu0
      %v716 = vsel %vm517, %v687, 0
      %718 = vmatpush.msra.mxu0 0.0
      %719 = vmatpush.msra.mxu0 0.0
      %720 = vmatpush.msra.mxu0 0.0
      %721 = vmatpush.msra.mxu0 0.0
      %722 = vmatpush.msra.mxu0 0.0
      %723 = vmatpush.msra.mxu0 0.0
      %724 = vmatpush.msra.mxu0 0.0
      %725 = vmatpush.msra.mxu0 0.0
      %726 = vmatpush.msra.mxu0 0.0
      %727 = vmatpush.msra.mxu0 0.0
      %728 = vmatpush.msra.mxu0 0.0
      %729 = vmatpush.msra.mxu0 0.0
      %730 = vmatpush.msra.mxu0 0.0
      %731 = vmatpush.msra.mxu0 0.0
      %732 = vmatpush.msra.mxu0 0.0
      %733 = vmatpush.msra.mxu0 %v693
      %734 = vmatmul.f32.gmra.mxu0 %v716
      %v735 = vpop.f32.mrf.mxu0
      %v736 = vadd.f32 0.0, %v735
      %737 = vdwg.mxu0
      %v738 = vmul.f32 %v713, %v713
      %v739 = vsub.f32 %v736, %v738
      %v740 = vadd.f32 %v739, 1e-05
      %v741 = vrsqrt.pop %v740
      %v742 = vmul.f32 %v741, %v740
      %v743 = vmul.f32 %v742, %v741
      %v744 = vmul.f32 0.5, %v743
      %v745 = vsub.f32 1.5, %v744
      %v746 = vmul.f32 %v741, %v745
      %vm747 = vweird.f32 %v740
      %vm748 = vweird.f32 %v741
      %vm749 = vmor %vm747, %vm748
      %v750 = vsel %vm749, %v741, %v746
      %v751 = vperm.slane %v713, 0
      %v752 = vsub.f32 %v482, %v751
      %v753 = vsub.f32 %v483, %v751
      %v754 = vsub.f32 %v484, %v751
      %v755 = vsub.f32 %v485, %v751
      %v756 = vsub.f32 %v486, %v751
      %v757 = vsub.f32 %v487, %v751
      %v758 = vsub.f32 %v488, %v751
      %v759 = vsub.f32 %v489, %v751
      %v760 = vsub.f32 %v490, %v751
      %v761 = vsub.f32 %v491, %v751
      %v762 = vsub.f32 %v492, %v751
      %v763 = vsub.f32 %v493, %v751
      %v764 = vsub.f32 %v494, %v751
      %v765 = vsub.f32 %v495, %v751
      %v766 = vsub.f32 %v496, %v751
      %v767 = vsub.f32 %v497, %v751
      %v768 = vsub.f32 %v498, %v751
      %v769 = vsub.f32 %v499, %v751
      %v770 = vsub.f32 %v500, %v751
      %v771 = vsub.f32 %v501, %v751
      %v772 = vsub.f32 %v502, %v751
      %v773 = vsub.f32 %v503, %v751
      %v774 = vsub.f32 %v504, %v751
      %v775 = vsub.f32 %v505, %v751
      %v776 = vsub.f32 %v506, %v751
      %v777 = vsub.f32 %v507, %v751
      %v778 = vsub.f32 %v508, %v751
      %v779 = vsub.f32 %v509, %v751
      %v780 = vsub.f32 %v510, %v751
      %v781 = vsub.f32 %v511, %v751
      %v782 = vsub.f32 %v512, %v751
      %v783 = vsub.f32 %v513, %v751
      %v784 = vperm.slane %v750, 0
      %v785 = vmul.f32 %v752, %v784
      %v786 = vmul.f32 %v753, %v784
      %v787 = vmul.f32 %v754, %v784
      %v788 = vmul.f32 %v755, %v784
      %v789 = vmul.f32 %v756, %v784
      %v790 = vmul.f32 %v757, %v784
      %v791 = vmul.f32 %v758, %v784
      %v792 = vmul.f32 %v759, %v784
      %v793 = vmul.f32 %v760, %v784
      %v794 = vmul.f32 %v761, %v784
      %v795 = vmul.f32 %v762, %v784
      %v796 = vmul.f32 %v763, %v784
      %v797 = vmul.f32 %v764, %v784
      %v798 = vmul.f32 %v765, %v784
      %v799 = vmul.f32 %v766, %v784
      %v800 = vmul.f32 %v767, %v784
      %v801 = vmul.f32 %v768, %v784
      %v802 = vmul.f32 %v769, %v784
      %v803 = vmul.f32 %v770, %v784
      %v804 = vmul.f32 %v771, %v784
      %v805 = vmul.f32 %v772, %v784
      %v806 = vmul.f32 %v773, %v784
      %v807 = vmul.f32 %v774, %v784
      %v808 = vmul.f32 %v775, %v784
      %v809 = vmul.f32 %v776, %v784
      %v810 = vmul.f32 %v777, %v784
      %v811 = vmul.f32 %v778, %v784
      %v812 = vmul.f32 %v779, %v784
      %v813 = vmul.f32 %v780, %v784
      %v814 = vmul.f32 %v781, %v784
      %v815 = vmul.f32 %v782, %v784
      %v816 = vmul.f32 %v783, %v784
      %v818 = vperm.slane %v514, 0
      %v820 = vmul.f32 %v785, %v818
      %v821 = vmul.f32 %v786, %v818
      %v822 = vmul.f32 %v787, %v818
      %v823 = vmul.f32 %v788, %v818
      %v824 = vmul.f32 %v789, %v818
      %v825 = vmul.f32 %v790, %v818
      %v826 = vmul.f32 %v791, %v818
      %v827 = vmul.f32 %v792, %v818
      %v828 = vmul.f32 %v793, %v818
      %v829 = vmul.f32 %v794, %v818
      %v830 = vmul.f32 %v795, %v818
      %v831 = vmul.f32 %v796, %v818
      %v832 = vmul.f32 %v797, %v818
      %v833 = vmul.f32 %v798, %v818
      %v834 = vmul.f32 %v799, %v818
      %v835 = vmul.f32 %v800, %v818
      %v836 = vmul.f32 %v801, %v818
      %v837 = vmul.f32 %v802, %v818
      %v838 = vmul.f32 %v803, %v818
      %v839 = vmul.f32 %v804, %v818
      %v840 = vmul.f32 %v805, %v818
      %v841 = vmul.f32 %v806, %v818
      %v842 = vmul.f32 %v807, %v818
      %v843 = vmul.f32 %v808, %v818
      %v844 = vmul.f32 %v809, %v818
      %v845 = vmul.f32 %v810, %v818
      %v846 = vmul.f32 %v811, %v818
      %v847 = vmul.f32 %v812, %v818
      %v848 = vmul.f32 %v813, %v818
      %v849 = vmul.f32 %v814, %v818
      %v850 = vmul.f32 %v815, %v818
      %v851 = vmul.f32 %v816, %v818
      %v853 = vperm.slane %v515, 0
      %v855 = vadd.f32 %v820, %v853
      %v856 = vadd.f32 %v821, %v853
      %v857 = vadd.f32 %v822, %v853
      %v858 = vadd.f32 %v823, %v853
      %v859 = vadd.f32 %v824, %v853
      %v860 = vadd.f32 %v825, %v853
      %v861 = vadd.f32 %v826, %v853
      %v862 = vadd.f32 %v827, %v853
      %v863 = vadd.f32 %v828, %v853
      %v864 = vadd.f32 %v829, %v853
      %v865 = vadd.f32 %v830, %v853
      %v866 = vadd.f32 %v831, %v853
      %v867 = vadd.f32 %v832, %v853
      %v868 = vadd.f32 %v833, %v853
      %v869 = vadd.f32 %v834, %v853
      %v870 = vadd.f32 %v835, %v853
      %v871 = vadd.f32 %v836, %v853
      %v872 = vadd.f32 %v837, %v853
      %v873 = vadd.f32 %v838, %v853
      %v874 = vadd.f32 %v839, %v853
      %v875 = vadd.f32 %v840, %v853
      %v876 = vadd.f32 %v841, %v853
      %v877 = vadd.f32 %v842, %v853
      %v878 = vadd.f32 %v843, %v853
      %v879 = vadd.f32 %v844, %v853
      %v880 = vadd.f32 %v845, %v853
      %v881 = vadd.f32 %v846, %v853
      %v882 = vadd.f32 %v847, %v853
      %v883 = vadd.f32 %v848, %v853
      %v884 = vadd.f32 %v849, %v853
      %v885 = vadd.f32 %v850, %v853
      %v886 = vadd.f32 %v851, %v853
      %v887 = vsub.f32 0.0, %v855
      %v888 = vsub.f32 0.0, %v856
      %v889 = vsub.f32 0.0, %v857
      %v890 = vsub.f32 0.0, %v858
      %v891 = vsub.f32 0.0, %v859
      %v892 = vsub.f32 0.0, %v860
      %v893 = vsub.f32 0.0, %v861
      %v894 = vsub.f32 0.0, %v862
      %v895 = vsub.f32 0.0, %v863
      %v896 = vsub.f32 0.0, %v864
      %v897 = vsub.f32 0.0, %v865
      %v898 = vsub.f32 0.0, %v866
      %v899 = vsub.f32 0.0, %v867
      %v900 = vsub.f32 0.0, %v868
      %v901 = vsub.f32 0.0, %v869
      %v902 = vsub.f32 0.0, %v870
      %v903 = vsub.f32 0.0, %v871
      %v904 = vsub.f32 0.0, %v872
      %v905 = vsub.f32 0.0, %v873
      %v906 = vsub.f32 0.0, %v874
      %v907 = vsub.f32 0.0, %v875
      %v908 = vsub.f32 0.0, %v876
      %v909 = vsub.f32 0.0, %v877
      %v910 = vsub.f32 0.0, %v878
      %v911 = vsub.f32 0.0, %v879
      %v912 = vsub.f32 0.0, %v880
      %v913 = vsub.f32 0.0, %v881
      %v914 = vsub.f32 0.0, %v882
      %v915 = vsub.f32 0.0, %v883
      %v916 = vsub.f32 0.0, %v884
      %v917 = vsub.f32 0.0, %v885
      %v918 = vsub.f32 0.0, %v886
      %v919 = vmul.f32 %v887, 1.442695
      %v920 = vpow.pop %v919
      %v921 = vmul.f32 %v888, 1.442695
      %v922 = vpow.pop %v921
      %v923 = vmul.f32 %v889, 1.442695
      %v924 = vpow.pop %v923
      %v925 = vmul.f32 %v890, 1.442695
      %v926 = vpow.pop %v925
      %v927 = vmul.f32 %v891, 1.442695
      %v928 = vpow.pop %v927
      %v929 = vmul.f32 %v892, 1.442695
      %v930 = vpow.pop %v929
      %v931 = vmul.f32 %v893, 1.442695
      %v932 = vpow.pop %v931
      %v933 = vmul.f32 %v894, 1.442695
      %v934 = vpow.pop %v933
      %v935 = vmul.f32 %v895, 1.442695
      %v936 = vpow.pop %v935
      %v937 = vmul.f32 %v896, 1.442695
      %v938 = vpow.pop %v937
      %v939 = vmul.f32 %v897, 1.442695
      %v940 = vpow.pop %v939
      %v941 = vmul.f32 %v898, 1.442695
      %v942 = vpow.pop %v941
      %v943 = vmul.f32 %v899, 1.442695
      %v944 = vpow.pop %v943
      %v945 = vmul.f32 %v900, 1.442695
      %v946 = vpow.pop %v945
      %v947 = vmul.f32 %v901, 1.442695
      %v948 = vpow.pop %v947
      %v949 = vmul.f32 %v902, 1.442695
      %v950 = vpow.pop %v949
      %v951 = vmul.f32 %v903, 1.442695
      %v952 = vpow.pop %v951
      %v953 = vmul.f32 %v904, 1.442695
      %v954 = vpow.pop %v953
      %v955 = vmul.f32 %v905, 1.442695
      %v956 = vpow.pop %v955
      %v957 = vmul.f32 %v906, 1.442695
      %v958 = vpow.pop %v957
      %v959 = vmul.f32 %v907, 1.442695
      %v960 = vpow.pop %v959
      %v961 = vmul.f32 %v908, 1.442695
      %v962 = vpow.pop %v961
      %v963 = vmul.f32 %v909, 1.442695
      %v964 = vpow.pop %v963
      %v965 = vmul.f32 %v910, 1.442695
      %v966 = vpow.pop %v965
      %v967 = vmul.f32 %v911, 1.442695
      %v968 = vpow.pop %v967
      %v969 = vmul.f32 %v912, 1.442695
      %v970 = vpow.pop %v969
      %v971 = vmul.f32 %v913, 1.442695
      %v972 = vpow.pop %v971
      %v973 = vmul.f32 %v914, 1.442695
      %v974 = vpow.pop %v973
      %v975 = vmul.f32 %v915, 1.442695
      %v976 = vpow.pop %v975
      %v977 = vmul.f32 %v916, 1.442695
      %v978 = vpow.pop %v977
      %v979 = vmul.f32 %v917, 1.442695
      %v980 = vpow.pop %v979
      %v981 = vmul.f32 %v918, 1.442695
      %v982 = vpow.pop %v981
      %v983 = vadd.f32 %v920, 1.0
      %v984 = vadd.f32 %v922, 1.0
      %v985 = vadd.f32 %v924, 1.0
      %v986 = vadd.f32 %v926, 1.0
      %v987 = vadd.f32 %v928, 1.0
      %v988 = vadd.f32 %v930, 1.0
      %v989 = vadd.f32 %v932, 1.0
      %v990 = vadd.f32 %v934, 1.0
      %v991 = vadd.f32 %v936, 1.0
      %v992 = vadd.f32 %v938, 1.0
      %v993 = vadd.f32 %v940, 1.0
      %v994 = vadd.f32 %v942, 1.0
      %v995 = vadd.f32 %v944, 1.0
      %v996 = vadd.f32 %v946, 1.0
      %v997 = vadd.f32 %v948, 1.0
      %v998 = vadd.f32 %v950, 1.0
      %v999 = vadd.f32 %v952, 1.0
      %v1000 = vadd.f32 %v954, 1.0
      %v1001 = vadd.f32 %v956, 1.0
      %v1002 = vadd.f32 %v958, 1.0
      %v1003 = vadd.f32 %v960, 1.0
      %v1004 = vadd.f32 %v962, 1.0
      %v1005 = vadd.f32 %v964, 1.0
      %v1006 = vadd.f32 %v966, 1.0
      %v1007 = vadd.f32 %v968, 1.0
      %v1008 = vadd.f32 %v970, 1.0
      %v1009 = vadd.f32 %v972, 1.0
      %v1010 = vadd.f32 %v974, 1.0
      %v1011 = vadd.f32 %v976, 1.0
      %v1012 = vadd.f32 %v978, 1.0
      %v1013 = vadd.f32 %v980, 1.0
      %v1014 = vadd.f32 %v982, 1.0
      %v1015 = vrcp.pop %v983
      %v1016 = vmul.f32 %v983, %v1015
      %v1017 = vsub.f32 1.0, %v1016
      %v1018 = vmul.f32 %v1015, %v1017
      %v1019 = vadd.f32 %v1015, %v1018
      %vm1020 = vweird.f32 %v983
      %vm1021 = vweird.f32 %v1015
      %vm1022 = vmor %vm1020, %vm1021
      %v1023 = vsel %vm1022, %v1015, %v1019
      %v1024 = vand.u32 2147483647, %v983
      %vm1025 = vcmp.eq.f32.partialorder %v1024, 8.507059e+37
      %v1026 = vand.u32 %v983, 2147483648
      %v1027 = vor.u32 1.1754944e-38, %v1026
      %v1028 = vsel %vm1025, %v1027, %v1023
      %v1029 = vmul.f32 1.0, %v1028
      %v1030 = vrcp.pop %v984
      %v1031 = vmul.f32 %v984, %v1030
      %v1032 = vsub.f32 1.0, %v1031
      %v1033 = vmul.f32 %v1030, %v1032
      %v1034 = vadd.f32 %v1030, %v1033
      %vm1035 = vweird.f32 %v984
      %vm1036 = vweird.f32 %v1030
      %vm1037 = vmor %vm1035, %vm1036
      %v1038 = vsel %vm1037, %v1030, %v1034
      %v1039 = vand.u32 2147483647, %v984
      %vm1040 = vcmp.eq.f32.partialorder %v1039, 8.507059e+37
      %v1041 = vand.u32 %v984, 2147483648
      %v1042 = vor.u32 1.1754944e-38, %v1041
      %v1043 = vsel %vm1040, %v1042, %v1038
      %v1044 = vmul.f32 1.0, %v1043
      %v1045 = vrcp.pop %v985
      %v1046 = vmul.f32 %v985, %v1045
      %v1047 = vsub.f32 1.0, %v1046
      %v1048 = vmul.f32 %v1045, %v1047
      %v1049 = vadd.f32 %v1045, %v1048
      %vm1050 = vweird.f32 %v985
      %vm1051 = vweird.f32 %v1045
      %vm1052 = vmor %vm1050, %vm1051
      %v1053 = vsel %vm1052, %v1045, %v1049
      %v1054 = vand.u32 2147483647, %v985
      %vm1055 = vcmp.eq.f32.partialorder %v1054, 8.507059e+37
      %v1056 = vand.u32 %v985, 2147483648
      %v1057 = vor.u32 1.1754944e-38, %v1056
      %v1058 = vsel %vm1055, %v1057, %v1053
      %v1059 = vmul.f32 1.0, %v1058
      %v1060 = vrcp.pop %v986
      %v1061 = vmul.f32 %v986, %v1060
      %v1062 = vsub.f32 1.0, %v1061
      %v1063 = vmul.f32 %v1060, %v1062
      %v1064 = vadd.f32 %v1060, %v1063
      %vm1065 = vweird.f32 %v986
      %vm1066 = vweird.f32 %v1060
      %vm1067 = vmor %vm1065, %vm1066
      %v1068 = vsel %vm1067, %v1060, %v1064
      %v1069 = vand.u32 2147483647, %v986
      %vm1070 = vcmp.eq.f32.partialorder %v1069, 8.507059e+37
      %v1071 = vand.u32 %v986, 2147483648
      %v1072 = vor.u32 1.1754944e-38, %v1071
      %v1073 = vsel %vm1070, %v1072, %v1068
      %v1074 = vmul.f32 1.0, %v1073
      %v1075 = vrcp.pop %v987
      %v1076 = vmul.f32 %v987, %v1075
      %v1077 = vsub.f32 1.0, %v1076
      %v1078 = vmul.f32 %v1075, %v1077
      %v1079 = vadd.f32 %v1075, %v1078
      %vm1080 = vweird.f32 %v987
      %vm1081 = vweird.f32 %v1075
      %vm1082 = vmor %vm1080, %vm1081
      %v1083 = vsel %vm1082, %v1075, %v1079
      %v1084 = vand.u32 2147483647, %v987
      %vm1085 = vcmp.eq.f32.partialorder %v1084, 8.507059e+37
      %v1086 = vand.u32 %v987, 2147483648
      %v1087 = vor.u32 1.1754944e-38, %v1086
      %v1088 = vsel %vm1085, %v1087, %v1083
      %v1089 = vmul.f32 1.0, %v1088
      %v1090 = vrcp.pop %v988
      %v1091 = vmul.f32 %v988, %v1090
      %v1092 = vsub.f32 1.0, %v1091
      %v1093 = vmul.f32 %v1090, %v1092
      %v1094 = vadd.f32 %v1090, %v1093
      %vm1095 = vweird.f32 %v988
      %vm1096 = vweird.f32 %v1090
      %vm1097 = vmor %vm1095, %vm1096
      %v1098 = vsel %vm1097, %v1090, %v1094
      %v1099 = vand.u32 2147483647, %v988
      %vm1100 = vcmp.eq.f32.partialorder %v1099, 8.507059e+37
      %v1101 = vand.u32 %v988, 2147483648
      %v1102 = vor.u32 1.1754944e-38, %v1101
      %v1103 = vsel %vm1100, %v1102, %v1098
      %v1104 = vmul.f32 1.0, %v1103
      %v1105 = vrcp.pop %v989
      %v1106 = vmul.f32 %v989, %v1105
      %v1107 = vsub.f32 1.0, %v1106
      %v1108 = vmul.f32 %v1105, %v1107
      %v1109 = vadd.f32 %v1105, %v1108
      %vm1110 = vweird.f32 %v989
      %vm1111 = vweird.f32 %v1105
      %vm1112 = vmor %vm1110, %vm1111
      %v1113 = vsel %vm1112, %v1105, %v1109
      %v1114 = vand.u32 2147483647, %v989
      %vm1115 = vcmp.eq.f32.partialorder %v1114, 8.507059e+37
      %v1116 = vand.u32 %v989, 2147483648
      %v1117 = vor.u32 1.1754944e-38, %v1116
      %v1118 = vsel %vm1115, %v1117, %v1113
      %v1119 = vmul.f32 1.0, %v1118
      %v1120 = vrcp.pop %v990
      %v1121 = vmul.f32 %v990, %v1120
      %v1122 = vsub.f32 1.0, %v1121
      %v1123 = vmul.f32 %v1120, %v1122
      %v1124 = vadd.f32 %v1120, %v1123
      %vm1125 = vweird.f32 %v990
      %vm1126 = vweird.f32 %v1120
      %vm1127 = vmor %vm1125, %vm1126
      %v1128 = vsel %vm1127, %v1120, %v1124
      %v1129 = vand.u32 2147483647, %v990
      %vm1130 = vcmp.eq.f32.partialorder %v1129, 8.507059e+37
      %v1131 = vand.u32 %v990, 2147483648
      %v1132 = vor.u32 1.1754944e-38, %v1131
      %v1133 = vsel %vm1130, %v1132, %v1128
      %v1134 = vmul.f32 1.0, %v1133
      %v1135 = vrcp.pop %v991
      %v1136 = vmul.f32 %v991, %v1135
      %v1137 = vsub.f32 1.0, %v1136
      %v1138 = vmul.f32 %v1135, %v1137
      %v1139 = vadd.f32 %v1135, %v1138
      %vm1140 = vweird.f32 %v991
      %vm1141 = vweird.f32 %v1135
      %vm1142 = vmor %vm1140, %vm1141
      %v1143 = vsel %vm1142, %v1135, %v1139
      %v1144 = vand.u32 2147483647, %v991
      %vm1145 = vcmp.eq.f32.partialorder %v1144, 8.507059e+37
      %v1146 = vand.u32 %v991, 2147483648
      %v1147 = vor.u32 1.1754944e-38, %v1146
      %v1148 = vsel %vm1145, %v1147, %v1143
      %v1149 = vmul.f32 1.0, %v1148
      %v1150 = vrcp.pop %v992
      %v1151 = vmul.f32 %v992, %v1150
      %v1152 = vsub.f32 1.0, %v1151
      %v1153 = vmul.f32 %v1150, %v1152
      %v1154 = vadd.f32 %v1150, %v1153
      %vm1155 = vweird.f32 %v992
      %vm1156 = vweird.f32 %v1150
      %vm1157 = vmor %vm1155, %vm1156
      %v1158 = vsel %vm1157, %v1150, %v1154
      %v1159 = vand.u32 2147483647, %v992
      %vm1160 = vcmp.eq.f32.partialorder %v1159, 8.507059e+37
      %v1161 = vand.u32 %v992, 2147483648
      %v1162 = vor.u32 1.1754944e-38, %v1161
      %v1163 = vsel %vm1160, %v1162, %v1158
      %v1164 = vmul.f32 1.0, %v1163
      %v1165 = vrcp.pop %v993
      %v1166 = vmul.f32 %v993, %v1165
      %v1167 = vsub.f32 1.0, %v1166
      %v1168 = vmul.f32 %v1165, %v1167
      %v1169 = vadd.f32 %v1165, %v1168
      %vm1170 = vweird.f32 %v993
      %vm1171 = vweird.f32 %v1165
      %vm1172 = vmor %vm1170, %vm1171
      %v1173 = vsel %vm1172, %v1165, %v1169
      %v1174 = vand.u32 2147483647, %v993
      %vm1175 = vcmp.eq.f32.partialorder %v1174, 8.507059e+37
      %v1176 = vand.u32 %v993, 2147483648
      %v1177 = vor.u32 1.1754944e-38, %v1176
      %v1178 = vsel %vm1175, %v1177, %v1173
      %v1179 = vmul.f32 1.0, %v1178
      %v1180 = vrcp.pop %v994
      %v1181 = vmul.f32 %v994, %v1180
      %v1182 = vsub.f32 1.0, %v1181
      %v1183 = vmul.f32 %v1180, %v1182
      %v1184 = vadd.f32 %v1180, %v1183
      %vm1185 = vweird.f32 %v994
      %vm1186 = vweird.f32 %v1180
      %vm1187 = vmor %vm1185, %vm1186
      %v1188 = vsel %vm1187, %v1180, %v1184
      %v1189 = vand.u32 2147483647, %v994
      %vm1190 = vcmp.eq.f32.partialorder %v1189, 8.507059e+37
      %v1191 = vand.u32 %v994, 2147483648
      %v1192 = vor.u32 1.1754944e-38, %v1191
      %v1193 = vsel %vm1190, %v1192, %v1188
      %v1194 = vmul.f32 1.0, %v1193
      %v1195 = vrcp.pop %v995
      %v1196 = vmul.f32 %v995, %v1195
      %v1197 = vsub.f32 1.0, %v1196
      %v1198 = vmul.f32 %v1195, %v1197
      %v1199 = vadd.f32 %v1195, %v1198
      %vm1200 = vweird.f32 %v995
      %vm1201 = vweird.f32 %v1195
      %vm1202 = vmor %vm1200, %vm1201
      %v1203 = vsel %vm1202, %v1195, %v1199
      %v1204 = vand.u32 2147483647, %v995
      %vm1205 = vcmp.eq.f32.partialorder %v1204, 8.507059e+37
      %v1206 = vand.u32 %v995, 2147483648
      %v1207 = vor.u32 1.1754944e-38, %v1206
      %v1208 = vsel %vm1205, %v1207, %v1203
      %v1209 = vmul.f32 1.0, %v1208
      %v1210 = vrcp.pop %v996
      %v1211 = vmul.f32 %v996, %v1210
      %v1212 = vsub.f32 1.0, %v1211
      %v1213 = vmul.f32 %v1210, %v1212
      %v1214 = vadd.f32 %v1210, %v1213
      %vm1215 = vweird.f32 %v996
      %vm1216 = vweird.f32 %v1210
      %vm1217 = vmor %vm1215, %vm1216
      %v1218 = vsel %vm1217, %v1210, %v1214
      %v1219 = vand.u32 2147483647, %v996
      %vm1220 = vcmp.eq.f32.partialorder %v1219, 8.507059e+37
      %v1221 = vand.u32 %v996, 2147483648
      %v1222 = vor.u32 1.1754944e-38, %v1221
      %v1223 = vsel %vm1220, %v1222, %v1218
      %v1224 = vmul.f32 1.0, %v1223
      %v1225 = vrcp.pop %v997
      %v1226 = vmul.f32 %v997, %v1225
      %v1227 = vsub.f32 1.0, %v1226
      %v1228 = vmul.f32 %v1225, %v1227
      %v1229 = vadd.f32 %v1225, %v1228
      %vm1230 = vweird.f32 %v997
      %vm1231 = vweird.f32 %v1225
      %vm1232 = vmor %vm1230, %vm1231
      %v1233 = vsel %vm1232, %v1225, %v1229
      %v1234 = vand.u32 2147483647, %v997
      %vm1235 = vcmp.eq.f32.partialorder %v1234, 8.507059e+37
      %v1236 = vand.u32 %v997, 2147483648
      %v1237 = vor.u32 1.1754944e-38, %v1236
      %v1238 = vsel %vm1235, %v1237, %v1233
      %v1239 = vmul.f32 1.0, %v1238
      %v1240 = vrcp.pop %v998
      %v1241 = vmul.f32 %v998, %v1240
      %v1242 = vsub.f32 1.0, %v1241
      %v1243 = vmul.f32 %v1240, %v1242
      %v1244 = vadd.f32 %v1240, %v1243
      %vm1245 = vweird.f32 %v998
      %vm1246 = vweird.f32 %v1240
      %vm1247 = vmor %vm1245, %vm1246
      %v1248 = vsel %vm1247, %v1240, %v1244
      %v1249 = vand.u32 2147483647, %v998
      %vm1250 = vcmp.eq.f32.partialorder %v1249, 8.507059e+37
      %v1251 = vand.u32 %v998, 2147483648
      %v1252 = vor.u32 1.1754944e-38, %v1251
      %v1253 = vsel %vm1250, %v1252, %v1248
      %v1254 = vmul.f32 1.0, %v1253
      %v1255 = vrcp.pop %v999
      %v1256 = vmul.f32 %v999, %v1255
      %v1257 = vsub.f32 1.0, %v1256
      %v1258 = vmul.f32 %v1255, %v1257
      %v1259 = vadd.f32 %v1255, %v1258
      %vm1260 = vweird.f32 %v999
      %vm1261 = vweird.f32 %v1255
      %vm1262 = vmor %vm1260, %vm1261
      %v1263 = vsel %vm1262, %v1255, %v1259
      %v1264 = vand.u32 2147483647, %v999
      %vm1265 = vcmp.eq.f32.partialorder %v1264, 8.507059e+37
      %v1266 = vand.u32 %v999, 2147483648
      %v1267 = vor.u32 1.1754944e-38, %v1266
      %v1268 = vsel %vm1265, %v1267, %v1263
      %v1269 = vmul.f32 1.0, %v1268
      %v1270 = vrcp.pop %v1000
      %v1271 = vmul.f32 %v1000, %v1270
      %v1272 = vsub.f32 1.0, %v1271
      %v1273 = vmul.f32 %v1270, %v1272
      %v1274 = vadd.f32 %v1270, %v1273
      %vm1275 = vweird.f32 %v1000
      %vm1276 = vweird.f32 %v1270
      %vm1277 = vmor %vm1275, %vm1276
      %v1278 = vsel %vm1277, %v1270, %v1274
      %v1279 = vand.u32 2147483647, %v1000
      %vm1280 = vcmp.eq.f32.partialorder %v1279, 8.507059e+37
      %v1281 = vand.u32 %v1000, 2147483648
      %v1282 = vor.u32 1.1754944e-38, %v1281
      %v1283 = vsel %vm1280, %v1282, %v1278
      %v1284 = vmul.f32 1.0, %v1283
      %v1285 = vrcp.pop %v1001
      %v1286 = vmul.f32 %v1001, %v1285
      %v1287 = vsub.f32 1.0, %v1286
      %v1288 = vmul.f32 %v1285, %v1287
      %v1289 = vadd.f32 %v1285, %v1288
      %vm1290 = vweird.f32 %v1001
      %vm1291 = vweird.f32 %v1285
      %vm1292 = vmor %vm1290, %vm1291
      %v1293 = vsel %vm1292, %v1285, %v1289
      %v1294 = vand.u32 2147483647, %v1001
      %vm1295 = vcmp.eq.f32.partialorder %v1294, 8.507059e+37
      %v1296 = vand.u32 %v1001, 2147483648
      %v1297 = vor.u32 1.1754944e-38, %v1296
      %v1298 = vsel %vm1295, %v1297, %v1293
      %v1299 = vmul.f32 1.0, %v1298
      %v1300 = vrcp.pop %v1002
      %v1301 = vmul.f32 %v1002, %v1300
      %v1302 = vsub.f32 1.0, %v1301
      %v1303 = vmul.f32 %v1300, %v1302
      %v1304 = vadd.f32 %v1300, %v1303
      %vm1305 = vweird.f32 %v1002
      %vm1306 = vweird.f32 %v1300
      %vm1307 = vmor %vm1305, %vm1306
      %v1308 = vsel %vm1307, %v1300, %v1304
      %v1309 = vand.u32 2147483647, %v1002
      %vm1310 = vcmp.eq.f32.partialorder %v1309, 8.507059e+37
      %v1311 = vand.u32 %v1002, 2147483648
      %v1312 = vor.u32 1.1754944e-38, %v1311
      %v1313 = vsel %vm1310, %v1312, %v1308
      %v1314 = vmul.f32 1.0, %v1313
      %v1315 = vrcp.pop %v1003
      %v1316 = vmul.f32 %v1003, %v1315
      %v1317 = vsub.f32 1.0, %v1316
      %v1318 = vmul.f32 %v1315, %v1317
      %v1319 = vadd.f32 %v1315, %v1318
      %vm1320 = vweird.f32 %v1003
      %vm1321 = vweird.f32 %v1315
      %vm1322 = vmor %vm1320, %vm1321
      %v1323 = vsel %vm1322, %v1315, %v1319
      %v1324 = vand.u32 2147483647, %v1003
      %vm1325 = vcmp.eq.f32.partialorder %v1324, 8.507059e+37
      %v1326 = vand.u32 %v1003, 2147483648
      %v1327 = vor.u32 1.1754944e-38, %v1326
      %v1328 = vsel %vm1325, %v1327, %v1323
      %v1329 = vmul.f32 1.0, %v1328
      %v1330 = vrcp.pop %v1004
      %v1331 = vmul.f32 %v1004, %v1330
      %v1332 = vsub.f32 1.0, %v1331
      %v1333 = vmul.f32 %v1330, %v1332
      %v1334 = vadd.f32 %v1330, %v1333
      %vm1335 = vweird.f32 %v1004
      %vm1336 = vweird.f32 %v1330
      %vm1337 = vmor %vm1335, %vm1336
      %v1338 = vsel %vm1337, %v1330, %v1334
      %v1339 = vand.u32 2147483647, %v1004
      %vm1340 = vcmp.eq.f32.partialorder %v1339, 8.507059e+37
      %v1341 = vand.u32 %v1004, 2147483648
      %v1342 = vor.u32 1.1754944e-38, %v1341
      %v1343 = vsel %vm1340, %v1342, %v1338
      %v1344 = vmul.f32 1.0, %v1343
      %v1345 = vrcp.pop %v1005
      %v1346 = vmul.f32 %v1005, %v1345
      %v1347 = vsub.f32 1.0, %v1346
      %v1348 = vmul.f32 %v1345, %v1347
      %v1349 = vadd.f32 %v1345, %v1348
      %vm1350 = vweird.f32 %v1005
      %vm1351 = vweird.f32 %v1345
      %vm1352 = vmor %vm1350, %vm1351
      %v1353 = vsel %vm1352, %v1345, %v1349
      %v1354 = vand.u32 2147483647, %v1005
      %vm1355 = vcmp.eq.f32.partialorder %v1354, 8.507059e+37
      %v1356 = vand.u32 %v1005, 2147483648
      %v1357 = vor.u32 1.1754944e-38, %v1356
      %v1358 = vsel %vm1355, %v1357, %v1353
      %v1359 = vmul.f32 1.0, %v1358
      %v1360 = vrcp.pop %v1006
      %v1361 = vmul.f32 %v1006, %v1360
      %v1362 = vsub.f32 1.0, %v1361
      %v1363 = vmul.f32 %v1360, %v1362
      %v1364 = vadd.f32 %v1360, %v1363
      %vm1365 = vweird.f32 %v1006
      %vm1366 = vweird.f32 %v1360
      %vm1367 = vmor %vm1365, %vm1366
      %v1368 = vsel %vm1367, %v1360, %v1364
      %v1369 = vand.u32 2147483647, %v1006
      %vm1370 = vcmp.eq.f32.partialorder %v1369, 8.507059e+37
      %v1371 = vand.u32 %v1006, 2147483648
      %v1372 = vor.u32 1.1754944e-38, %v1371
      %v1373 = vsel %vm1370, %v1372, %v1368
      %v1374 = vmul.f32 1.0, %v1373
      %v1375 = vrcp.pop %v1007
      %v1376 = vmul.f32 %v1007, %v1375
      %v1377 = vsub.f32 1.0, %v1376
      %v1378 = vmul.f32 %v1375, %v1377
      %v1379 = vadd.f32 %v1375, %v1378
      %vm1380 = vweird.f32 %v1007
      %vm1381 = vweird.f32 %v1375
      %vm1382 = vmor %vm1380, %vm1381
      %v1383 = vsel %vm1382, %v1375, %v1379
      %v1384 = vand.u32 2147483647, %v1007
      %vm1385 = vcmp.eq.f32.partialorder %v1384, 8.507059e+37
      %v1386 = vand.u32 %v1007, 2147483648
      %v1387 = vor.u32 1.1754944e-38, %v1386
      %v1388 = vsel %vm1385, %v1387, %v1383
      %v1389 = vmul.f32 1.0, %v1388
      %v1390 = vrcp.pop %v1008
      %v1391 = vmul.f32 %v1008, %v1390
      %v1392 = vsub.f32 1.0, %v1391
      %v1393 = vmul.f32 %v1390, %v1392
      %v1394 = vadd.f32 %v1390, %v1393
      %vm1395 = vweird.f32 %v1008
      %vm1396 = vweird.f32 %v1390
      %vm1397 = vmor %vm1395, %vm1396
      %v1398 = vsel %vm1397, %v1390, %v1394
      %v1399 = vand.u32 2147483647, %v1008
      %vm1400 = vcmp.eq.f32.partialorder %v1399, 8.507059e+37
      %v1401 = vand.u32 %v1008, 2147483648
      %v1402 = vor.u32 1.1754944e-38, %v1401
      %v1403 = vsel %vm1400, %v1402, %v1398
      %v1404 = vmul.f32 1.0, %v1403
      %v1405 = vrcp.pop %v1009
      %v1406 = vmul.f32 %v1009, %v1405
      %v1407 = vsub.f32 1.0, %v1406
      %v1408 = vmul.f32 %v1405, %v1407
      %v1409 = vadd.f32 %v1405, %v1408
      %vm1410 = vweird.f32 %v1009
      %vm1411 = vweird.f32 %v1405
      %vm1412 = vmor %vm1410, %vm1411
      %v1413 = vsel %vm1412, %v1405, %v1409
      %v1414 = vand.u32 2147483647, %v1009
      %vm1415 = vcmp.eq.f32.partialorder %v1414, 8.507059e+37
      %v1416 = vand.u32 %v1009, 2147483648
      %v1417 = vor.u32 1.1754944e-38, %v1416
      %v1418 = vsel %vm1415, %v1417, %v1413
      %v1419 = vmul.f32 1.0, %v1418
      %v1420 = vrcp.pop %v1010
      %v1421 = vmul.f32 %v1010, %v1420
      %v1422 = vsub.f32 1.0, %v1421
      %v1423 = vmul.f32 %v1420, %v1422
      %v1424 = vadd.f32 %v1420, %v1423
      %vm1425 = vweird.f32 %v1010
      %vm1426 = vweird.f32 %v1420
      %vm1427 = vmor %vm1425, %vm1426
      %v1428 = vsel %vm1427, %v1420, %v1424
      %v1429 = vand.u32 2147483647, %v1010
      %vm1430 = vcmp.eq.f32.partialorder %v1429, 8.507059e+37
      %v1431 = vand.u32 %v1010, 2147483648
      %v1432 = vor.u32 1.1754944e-38, %v1431
      %v1433 = vsel %vm1430, %v1432, %v1428
      %v1434 = vmul.f32 1.0, %v1433
      %v1435 = vrcp.pop %v1011
      %v1436 = vmul.f32 %v1011, %v1435
      %v1437 = vsub.f32 1.0, %v1436
      %v1438 = vmul.f32 %v1435, %v1437
      %v1439 = vadd.f32 %v1435, %v1438
      %vm1440 = vweird.f32 %v1011
      %vm1441 = vweird.f32 %v1435
      %vm1442 = vmor %vm1440, %vm1441
      %v1443 = vsel %vm1442, %v1435, %v1439
      %v1444 = vand.u32 2147483647, %v1011
      %vm1445 = vcmp.eq.f32.partialorder %v1444, 8.507059e+37
      %v1446 = vand.u32 %v1011, 2147483648
      %v1447 = vor.u32 1.1754944e-38, %v1446
      %v1448 = vsel %vm1445, %v1447, %v1443
      %v1449 = vmul.f32 1.0, %v1448
      %v1450 = vrcp.pop %v1012
      %v1451 = vmul.f32 %v1012, %v1450
      %v1452 = vsub.f32 1.0, %v1451
      %v1453 = vmul.f32 %v1450, %v1452
      %v1454 = vadd.f32 %v1450, %v1453
      %vm1455 = vweird.f32 %v1012
      %vm1456 = vweird.f32 %v1450
      %vm1457 = vmor %vm1455, %vm1456
      %v1458 = vsel %vm1457, %v1450, %v1454
      %v1459 = vand.u32 2147483647, %v1012
      %vm1460 = vcmp.eq.f32.partialorder %v1459, 8.507059e+37
      %v1461 = vand.u32 %v1012, 2147483648
      %v1462 = vor.u32 1.1754944e-38, %v1461
      %v1463 = vsel %vm1460, %v1462, %v1458
      %v1464 = vmul.f32 1.0, %v1463
      %v1465 = vrcp.pop %v1013
      %v1466 = vmul.f32 %v1013, %v1465
      %v1467 = vsub.f32 1.0, %v1466
      %v1468 = vmul.f32 %v1465, %v1467
      %v1469 = vadd.f32 %v1465, %v1468
      %vm1470 = vweird.f32 %v1013
      %vm1471 = vweird.f32 %v1465
      %vm1472 = vmor %vm1470, %vm1471
      %v1473 = vsel %vm1472, %v1465, %v1469
      %v1474 = vand.u32 2147483647, %v1013
      %vm1475 = vcmp.eq.f32.partialorder %v1474, 8.507059e+37
      %v1476 = vand.u32 %v1013, 2147483648
      %v1477 = vor.u32 1.1754944e-38, %v1476
      %v1478 = vsel %vm1475, %v1477, %v1473
      %v1479 = vmul.f32 1.0, %v1478
      %v1480 = vrcp.pop %v1014
      %v1481 = vmul.f32 %v1014, %v1480
      %v1482 = vsub.f32 1.0, %v1481
      %v1483 = vmul.f32 %v1480, %v1482
      %v1484 = vadd.f32 %v1480, %v1483
      %vm1485 = vweird.f32 %v1014
      %vm1486 = vweird.f32 %v1480
      %vm1487 = vmor %vm1485, %vm1486
      %v1488 = vsel %vm1487, %v1480, %v1484
      %v1489 = vand.u32 2147483647, %v1014
      %vm1490 = vcmp.eq.f32.partialorder %v1489, 8.507059e+37
      %v1491 = vand.u32 %v1014, 2147483648
      %v1492 = vor.u32 1.1754944e-38, %v1491
      %v1493 = vsel %vm1490, %v1492, %v1488
      %v1494 = vmul.f32 1.0, %v1493
      %v1495 = vmul.f32 %v855, %v1029
      %v1496 = vmul.f32 %v856, %v1044
      %v1497 = vmul.f32 %v857, %v1059
      %v1498 = vmul.f32 %v858, %v1074
      %v1499 = vmul.f32 %v859, %v1089
      %v1500 = vmul.f32 %v860, %v1104
      %v1501 = vmul.f32 %v861, %v1119
      %v1502 = vmul.f32 %v862, %v1134
      %v1503 = vmul.f32 %v863, %v1149
      %v1504 = vmul.f32 %v864, %v1164
      %v1505 = vmul.f32 %v865, %v1179
      %v1506 = vmul.f32 %v866, %v1194
      %v1507 = vmul.f32 %v867, %v1209
      %v1508 = vmul.f32 %v868, %v1224
      %v1509 = vmul.f32 %v869, %v1239
      %v1510 = vmul.f32 %v870, %v1254
      %v1511 = vmul.f32 %v871, %v1269
      %v1512 = vmul.f32 %v872, %v1284
      %v1513 = vmul.f32 %v873, %v1299
      %v1514 = vmul.f32 %v874, %v1314
      %v1515 = vmul.f32 %v875, %v1329
      %v1516 = vmul.f32 %v876, %v1344
      %v1517 = vmul.f32 %v877, %v1359
      %v1518 = vmul.f32 %v878, %v1374
      %v1519 = vmul.f32 %v879, %v1389
      %v1520 = vmul.f32 %v880, %v1404
      %v1521 = vmul.f32 %v881, %v1419
      %v1522 = vmul.f32 %v882, %v1434
      %v1523 = vmul.f32 %v883, %v1449
      %v1524 = vmul.f32 %v884, %v1464
      %v1525 = vmul.f32 %v885, %v1479
      %v1526 = vmul.f32 %v886, %v1494
      %1527 = vst.msk [vmem:[#allocation2 + $0x7] sm:$0xff] %vm517, 0.0
      %1528 = vst.msk [vmem:[#allocation2 + $0xf] sm:$0xff] %vm517, 0.0
      %vm1529 = vcmask 25600
      %1530 = vst.msk [vmem:[#allocation2 + $0x17] sm:$0x3] %vm1529, 0.0
      %s1531 = scalar_lea.vmem [#allocation2], 544
      %1532 = vst.msk [vmem:[%s1531 + $0x7] sm:$0xff] %vm517, 0.0
      %1533 = vst.msk [vmem:[%s1531 + $0xf] sm:$0xff] %vm517, 0.0
      %1534 = vst.msk [vmem:[%s1531 + $0x17] sm:$0x3] %vm1529, 0.0
      %s1535 = scalar_lea.vmem [#allocation2], 32
      %vm1536 = vcmask 24576
      %1537 = vst.msk [vmem:[%s1535 + $0x7] sm:$0x1] %vm1536, 0.0
      %1538 = vst.msk [vmem:[%s1535 + $0x27] sm:$0x1] %vm1536, 0.0
      %1539 = vst.msk [vmem:[%s1535 + $0x47] sm:$0x1] %vm1536, 0.0
      %1540 = vst.msk [vmem:[%s1535 + $0x67] sm:$0x1] %vm1536, 0.0
      %1541 = vst.msk [vmem:[%s1535 + $0x87] sm:$0x1] %vm1536, 0.0
      %1542 = vst.msk [vmem:[%s1535 + $0xa7] sm:$0x1] %vm1536, 0.0
      %1543 = vst.msk [vmem:[%s1535 + $0xc7] sm:$0x1] %vm1536, 0.0
      %1544 = vst.msk [vmem:[%s1535 + $0xe7] sm:$0x1] %vm1536, 0.0
      %1545 = vst.msk [vmem:[%s1535 + $0x107] sm:$0x1] %vm1536, 0.0
      %1546 = vst.msk [vmem:[%s1535 + $0x127] sm:$0x1] %vm1536, 0.0
      %1547 = vst.msk [vmem:[%s1535 + $0x147] sm:$0x1] %vm1536, 0.0
      %1548 = vst.msk [vmem:[%s1535 + $0x167] sm:$0x1] %vm1536, 0.0
      %1549 = vst.msk [vmem:[%s1535 + $0x187] sm:$0x1] %vm1536, 0.0
      %1550 = vst.msk [vmem:[%s1535 + $0x1a7] sm:$0x1] %vm1536, 0.0
      %1551 = vst.msk [vmem:[%s1535 + $0x1c7] sm:$0x1] %vm1536, 0.0
      %1552 = vst.msk [vmem:[%s1535 + $0x1e7] sm:$0x1] %vm1536, 0.0
      %1553 = vst.msk [vmem:[%s1535 + $0x18] sm:$0x1] %vm1536, 0.0
      %1554 = vst.msk [vmem:[%s1535 + $0x38] sm:$0x1] %vm1536, 0.0
      %1555 = vst.msk [vmem:[%s1535 + $0x58] sm:$0x1] %vm1536, 0.0
      %1556 = vst.msk [vmem:[%s1535 + $0x78] sm:$0x1] %vm1536, 0.0
      %1557 = vst.msk [vmem:[%s1535 + $0x98] sm:$0x1] %vm1536, 0.0
      %1558 = vst.msk [vmem:[%s1535 + $0xb8] sm:$0x1] %vm1536, 0.0
      %1559 = vst.msk [vmem:[%s1535 + $0xd8] sm:$0x1] %vm1536, 0.0
      %1560 = vst.msk [vmem:[%s1535 + $0xf8] sm:$0x1] %vm1536, 0.0
      %1561 = vst.msk [vmem:[%s1535 + $0x118] sm:$0x1] %vm1536, 0.0
      %1562 = vst.msk [vmem:[%s1535 + $0x138] sm:$0x1] %vm1536, 0.0
      %1563 = vst.msk [vmem:[%s1535 + $0x158] sm:$0x1] %vm1536, 0.0
      %1564 = vst.msk [vmem:[%s1535 + $0x178] sm:$0x1] %vm1536, 0.0
      %1565 = vst.msk [vmem:[%s1535 + $0x198] sm:$0x1] %vm1536, 0.0
      %1566 = vst.msk [vmem:[%s1535 + $0x1b8] sm:$0x1] %vm1536, 0.0
      %1567 = vst.msk [vmem:[%s1535 + $0x1d8] sm:$0x1] %vm1536, 0.0
      %1568 = vst.msk [vmem:[%s1535 + $0x1f8] sm:$0x1] %vm1536, 0.0
      %1569 = vst.msk [vmem:[%s1535 + $0x8] sm:$0xff] %vm517, %v1495
      %1570 = vst.msk [vmem:[%s1535 + $0x10] sm:$0xff] %vm517, %v1496
      %1571 = vst.msk [vmem:[%s1535 + $0x28] sm:$0xff] %vm517, %v1497
      %1572 = vst.msk [vmem:[%s1535 + $0x30] sm:$0xff] %vm517, %v1498
      %1573 = vst.msk [vmem:[%s1535 + $0x48] sm:$0xff] %vm517, %v1499
      %1574 = vst.msk [vmem:[%s1535 + $0x50] sm:$0xff] %vm517, %v1500
      %1575 = vst.msk [vmem:[%s1535 + $0x68] sm:$0xff] %vm517, %v1501
      %1576 = vst.msk [vmem:[%s1535 + $0x70] sm:$0xff] %vm517, %v1502
      %1577 = vst.msk [vmem:[%s1535 + $0x88] sm:$0xff] %vm517, %v1503
      %1578 = vst.msk [vmem:[%s1535 + $0x90] sm:$0xff] %vm517, %v1504
      %1579 = vst.msk [vmem:[%s1535 + $0xa8] sm:$0xff] %vm517, %v1505
      %1580 = vst.msk [vmem:[%s1535 + $0xb0] sm:$0xff] %vm517, %v1506
      %1581 = vst.msk [vmem:[%s1535 + $0xc8] sm:$0xff] %vm517, %v1507
      %1582 = vst.msk [vmem:[%s1535 + $0xd0] sm:$0xff] %vm517, %v1508
      %1583 = vst.msk [vmem:[%s1535 + $0xe8] sm:$0xff] %vm517, %v1509
      %1584 = vst.msk [vmem:[%s1535 + $0xf0] sm:$0xff] %vm517, %v1510
      %1585 = vst.msk [vmem:[%s1535 + $0x108] sm:$0xff] %vm517, %v1511
      %1586 = vst.msk [vmem:[%s1535 + $0x110] sm:$0xff] %vm517, %v1512
      %1587 = vst.msk [vmem:[%s1535 + $0x128] sm:$0xff] %vm517, %v1513
      %1588 = vst.msk [vmem:[%s1535 + $0x130] sm:$0xff] %vm517, %v1514
      %1589 = vst.msk [vmem:[%s1535 + $0x148] sm:$0xff] %vm517, %v1515
      %1590 = vst.msk [vmem:[%s1535 + $0x150] sm:$0xff] %vm517, %v1516
      %1591 = vst.msk [vmem:[%s1535 + $0x168] sm:$0xff] %vm517, %v1517
      %1592 = vst.msk [vmem:[%s1535 + $0x170] sm:$0xff] %vm517, %v1518
      %1593 = vst.msk [vmem:[%s1535 + $0x188] sm:$0xff] %vm517, %v1519
      %1594 = vst.msk [vmem:[%s1535 + $0x190] sm:$0xff] %vm517, %v1520
      %1595 = vst.msk [vmem:[%s1535 + $0x1a8] sm:$0xff] %vm517, %v1521
      %1596 = vst.msk [vmem:[%s1535 + $0x1b0] sm:$0xff] %vm517, %v1522
      %1597 = vst.msk [vmem:[%s1535 + $0x1c8] sm:$0xff] %vm517, %v1523
      %1598 = vst.msk [vmem:[%s1535 + $0x1d0] sm:$0xff] %vm517, %v1524
      %1599 = vst.msk [vmem:[%s1535 + $0x1e8] sm:$0xff] %vm517, %v1525
      %1600 = vst.msk [vmem:[%s1535 + $0x1f0] sm:$0xff] %vm517, %v1526
      %v1601 = vld [vmem:[#allocation2 + $0x7] sm:$0xff]
      %v1602 = vld [vmem:[#allocation2 + $0xf] sm:$0xff]
      %v1603 = vld [vmem:[#allocation2 + $0x27] sm:$0xff]
      %v1604 = vld [vmem:[#allocation2 + $0x2f] sm:$0xff]
      %v1605 = vld [vmem:[#allocation2 + $0x47] sm:$0xff]
      %v1606 = vld [vmem:[#allocation2 + $0x4f] sm:$0xff]
      %v1607 = vld [vmem:[#allocation2 + $0x67] sm:$0xff]
      %v1608 = vld [vmem:[#allocation2 + $0x6f] sm:$0xff]
      %v1609 = vld [vmem:[#allocation2 + $0x87] sm:$0xff]
      %v1610 = vld [vmem:[#allocation2 + $0x8f] sm:$0xff]
      %v1611 = vld [vmem:[#allocation2 + $0xa7] sm:$0xff]
      %v1612 = vld [vmem:[#allocation2 + $0xaf] sm:$0xff]
      %v1613 = vld [vmem:[#allocation2 + $0xc7] sm:$0xff]
      %v1614 = vld [vmem:[#allocation2 + $0xcf] sm:$0xff]
      %v1615 = vld [vmem:[#allocation2 + $0xe7] sm:$0xff]
      %v1616 = vld [vmem:[#allocation2 + $0xef] sm:$0xff]
      %v1617 = vld [vmem:[#allocation2 + $0x107] sm:$0xff]
      %v1618 = vld [vmem:[#allocation2 + $0x10f] sm:$0xff]
      %v1619 = vld [vmem:[#allocation2 + $0x127] sm:$0xff]
      %v1620 = vld [vmem:[#allocation2 + $0x12f] sm:$0xff]
      %v1621 = vld [vmem:[#allocation2 + $0x147] sm:$0xff]
      %v1622 = vld [vmem:[#allocation2 + $0x14f] sm:$0xff]
      %v1623 = vld [vmem:[#allocation2 + $0x167] sm:$0xff]
      %v1624 = vld [vmem:[#allocation2 + $0x16f] sm:$0xff]
      %v1625 = vld [vmem:[#allocation2 + $0x187] sm:$0xff]
      %v1626 = vld [vmem:[#allocation2 + $0x18f] sm:$0xff]
      %v1627 = vld [vmem:[#allocation2 + $0x1a7] sm:$0xff]
      %v1628 = vld [vmem:[#allocation2 + $0x1af] sm:$0xff]
      %v1629 = vld [vmem:[#allocation2 + $0x1c7] sm:$0xff]
      %v1630 = vld [vmem:[#allocation2 + $0x1cf] sm:$0xff]
      %v1631 = vld [vmem:[#allocation2 + $0x1e7] sm:$0xff]
      %v1632 = vld [vmem:[#allocation2 + $0x1ef] sm:$0xff]
      %v1633 = vld [vmem:[%s5] sm:$0xf]
      %v1634 = vld [vmem:[#allocation2 + $0x8] sm:$0xff]
      %v1635 = vld [vmem:[#allocation2 + $0x10] sm:$0xff]
      %v1636 = vld [vmem:[#allocation2 + $0x28] sm:$0xff]
      %v1637 = vld [vmem:[#allocation2 + $0x30] sm:$0xff]
      %v1638 = vld [vmem:[#allocation2 + $0x48] sm:$0xff]
      %v1639 = vld [vmem:[#allocation2 + $0x50] sm:$0xff]
      %v1640 = vld [vmem:[#allocation2 + $0x68] sm:$0xff]
      %v1641 = vld [vmem:[#allocation2 + $0x70] sm:$0xff]
      %v1642 = vld [vmem:[#allocation2 + $0x88] sm:$0xff]
      %v1643 = vld [vmem:[#allocation2 + $0x90] sm:$0xff]
      %v1644 = vld [vmem:[#allocation2 + $0xa8] sm:$0xff]
      %v1645 = vld [vmem:[#allocation2 + $0xb0] sm:$0xff]
      %v1646 = vld [vmem:[#allocation2 + $0xc8] sm:$0xff]
      %v1647 = vld [vmem:[#allocation2 + $0xd0] sm:$0xff]
      %v1648 = vld [vmem:[#allocation2 + $0xe8] sm:$0xff]
      %v1649 = vld [vmem:[#allocation2 + $0xf0] sm:$0xff]
      %v1650 = vld [vmem:[#allocation2 + $0x108] sm:$0xff]
      %v1651 = vld [vmem:[#allocation2 + $0x110] sm:$0xff]
      %v1652 = vld [vmem:[#allocation2 + $0x128] sm:$0xff]
      %v1653 = vld [vmem:[#allocation2 + $0x130] sm:$0xff]
      %v1654 = vld [vmem:[#allocation2 + $0x148] sm:$0xff]
      %v1655 = vld [vmem:[#allocation2 + $0x150] sm:$0xff]
      %v1656 = vld [vmem:[#allocation2 + $0x168] sm:$0xff]
      %v1657 = vld [vmem:[#allocation2 + $0x170] sm:$0xff]
      %v1658 = vld [vmem:[#allocation2 + $0x188] sm:$0xff]
      %v1659 = vld [vmem:[#allocation2 + $0x190] sm:$0xff]
      %v1660 = vld [vmem:[#allocation2 + $0x1a8] sm:$0xff]
      %v1661 = vld [vmem:[#allocation2 + $0x1b0] sm:$0xff]
      %v1662 = vld [vmem:[#allocation2 + $0x1c8] sm:$0xff]
      %v1663 = vld [vmem:[#allocation2 + $0x1d0] sm:$0xff]
      %v1664 = vld [vmem:[#allocation2 + $0x1e8] sm:$0xff]
      %v1665 = vld [vmem:[#allocation2 + $0x1f0] sm:$0xff]
      %v1666 = vld [vmem:[%s5 + $0x4] sm:$0xf]
      %v1668 = vsel %vm517, %v1634, 0
      %v1671 = vsel %vm517, %v1635, 0
      %v1674 = vsel %vm517, %v1636, 0
      %v1677 = vsel %vm517, %v1637, 0
      %v1680 = vsel %vm517, %v1638, 0
      %v1683 = vsel %vm517, %v1639, 0
      %v1686 = vsel %vm517, %v1640, 0
      %v1689 = vsel %vm517, %v1641, 0
      %v1692 = vsel %vm517, %v1642, 0
      %v1695 = vsel %vm517, %v1643, 0
      %v1698 = vsel %vm517, %v1644, 0
      %v1701 = vsel %vm517, %v1645, 0
      %v1704 = vsel %vm517, %v1646, 0
      %v1707 = vsel %vm517, %v1647, 0
      %v1710 = vsel %vm517, %v1648, 0
      %v1713 = vsel %vm517, %v1649, 0
      %v1716 = vsel %vm517, %v1650, 0
      %v1719 = vsel %vm517, %v1651, 0
      %v1722 = vsel %vm517, %v1652, 0
      %v1725 = vsel %vm517, %v1653, 0
      %v1728 = vsel %vm517, %v1654, 0
      %v1731 = vsel %vm517, %v1655, 0
      %v1734 = vsel %vm517, %v1656, 0
      %v1737 = vsel %vm517, %v1657, 0
      %v1740 = vsel %vm517, %v1658, 0
      %v1743 = vsel %vm517, %v1659, 0
      %v1746 = vsel %vm517, %v1660, 0
      %v1749 = vsel %vm517, %v1661, 0
      %v1752 = vsel %vm517, %v1662, 0
      %v1755 = vsel %vm517, %v1663, 0
      %v1758 = vsel %vm517, %v1664, 0
      %v1761 = vsel %vm517, %v1665, 0
      %v1764 = vsel %vm691, %v1666, 0
      %1766 = vmatpush.msra.mxu0 0.0
      %1767 = vmatpush.msra.mxu0 0.0
      %1768 = vmatpush.msra.mxu0 0.0
      %1769 = vmatpush.msra.mxu0 0.0
      %1770 = vmatpush.msra.mxu0 0.0
      %1771 = vmatpush.msra.mxu0 0.0
      %1772 = vmatpush.msra.mxu0 0.0
      %1773 = vmatpush.msra.mxu0 0.0
      %1774 = vmatpush.msra.mxu0 0.0
      %1775 = vmatpush.msra.mxu0 0.0
      %1776 = vmatpush.msra.mxu0 0.0
      %1777 = vmatpush.msra.mxu0 0.0
      %1778 = vmatpush.msra.mxu0 0.0
      %1779 = vmatpush.msra.mxu0 0.0
      %1780 = vmatpush.msra.mxu0 0.0
      %1781 = vmatpush.msra.mxu0 %v1764
      %1782 = vmatmul.f32.gmra.mxu0 %v1668
      %v1783 = vpop.f32.mrf.mxu0
      %v1784 = vadd.f32 0.0, %v1783
      %1785 = vmatmul.f32.gmra.mxu0 %v1671
      %v1786 = vpop.f32.mrf.mxu0
      %v1787 = vadd.f32 0.0, %v1786
      %1788 = vmatmul.f32.gmra.mxu0 %v1674
      %v1789 = vpop.f32.mrf.mxu0
      %v1790 = vadd.f32 0.0, %v1789
      %1791 = vmatmul.f32.gmra.mxu0 %v1677
      %v1792 = vpop.f32.mrf.mxu0
      %v1793 = vadd.f32 0.0, %v1792
      %1794 = vmatmul.f32.gmra.mxu0 %v1680
      %v1795 = vpop.f32.mrf.mxu0
      %v1796 = vadd.f32 0.0, %v1795
      %1797 = vmatmul.f32.gmra.mxu0 %v1683
      %v1798 = vpop.f32.mrf.mxu0
      %v1799 = vadd.f32 0.0, %v1798
      %1800 = vmatmul.f32.gmra.mxu0 %v1686
      %v1801 = vpop.f32.mrf.mxu0
      %v1802 = vadd.f32 0.0, %v1801
      %1803 = vmatmul.f32.gmra.mxu0 %v1689
      %v1804 = vpop.f32.mrf.mxu0
      %v1805 = vadd.f32 0.0, %v1804
      %1806 = vmatmul.f32.gmra.mxu0 %v1692
      %v1807 = vpop.f32.mrf.mxu0
      %v1808 = vadd.f32 0.0, %v1807
      %1809 = vmatmul.f32.gmra.mxu0 %v1695
      %v1810 = vpop.f32.mrf.mxu0
      %v1811 = vadd.f32 0.0, %v1810
      %1812 = vmatmul.f32.gmra.mxu0 %v1698
      %v1813 = vpop.f32.mrf.mxu0
      %v1814 = vadd.f32 0.0, %v1813
      %1815 = vmatmul.f32.gmra.mxu0 %v1701
      %v1816 = vpop.f32.mrf.mxu0
      %v1817 = vadd.f32 0.0, %v1816
      %1818 = vmatmul.f32.gmra.mxu0 %v1704
      %v1819 = vpop.f32.mrf.mxu0
      %v1820 = vadd.f32 0.0, %v1819
      %1821 = vmatmul.f32.gmra.mxu0 %v1707
      %v1822 = vpop.f32.mrf.mxu0
      %v1823 = vadd.f32 0.0, %v1822
      %1824 = vmatmul.f32.gmra.mxu0 %v1710
      %v1825 = vpop.f32.mrf.mxu0
      %v1826 = vadd.f32 0.0, %v1825
      %1827 = vmatmul.f32.gmra.mxu0 %v1713
      %v1828 = vpop.f32.mrf.mxu0
      %v1829 = vadd.f32 0.0, %v1828
      %1830 = vmatmul.f32.gmra.mxu0 %v1716
      %v1831 = vpop.f32.mrf.mxu0
      %v1832 = vadd.f32 0.0, %v1831
      %1833 = vmatmul.f32.gmra.mxu0 %v1719
      %v1834 = vpop.f32.mrf.mxu0
      %v1835 = vadd.f32 0.0, %v1834
      %1836 = vmatmul.f32.gmra.mxu0 %v1722
      %v1837 = vpop.f32.mrf.mxu0
      %v1838 = vadd.f32 0.0, %v1837
      %1839 = vmatmul.f32.gmra.mxu0 %v1725
      %v1840 = vpop.f32.mrf.mxu0
      %v1841 = vadd.f32 0.0, %v1840
      %1842 = vmatmul.f32.gmra.mxu0 %v1728
      %v1843 = vpop.f32.mrf.mxu0
      %v1844 = vadd.f32 0.0, %v1843
      %1845 = vmatmul.f32.gmra.mxu0 %v1731
      %v1846 = vpop.f32.mrf.mxu0
      %v1847 = vadd.f32 0.0, %v1846
      %1848 = vmatmul.f32.gmra.mxu0 %v1734
      %v1849 = vpop.f32.mrf.mxu0
      %v1850 = vadd.f32 0.0, %v1849
      %1851 = vmatmul.f32.gmra.mxu0 %v1737
      %v1852 = vpop.f32.mrf.mxu0
      %v1853 = vadd.f32 0.0, %v1852
      %1854 = vmatmul.f32.gmra.mxu0 %v1740
      %v1855 = vpop.f32.mrf.mxu0
      %v1856 = vadd.f32 0.0, %v1855
      %1857 = vmatmul.f32.gmra.mxu0 %v1743
      %v1858 = vpop.f32.mrf.mxu0
      %v1859 = vadd.f32 0.0, %v1858
      %1860 = vmatmul.f32.gmra.mxu0 %v1746
      %v1861 = vpop.f32.mrf.mxu0
      %v1862 = vadd.f32 0.0, %v1861
      %1863 = vmatmul.f32.gmra.mxu0 %v1749
      %v1864 = vpop.f32.mrf.mxu0
      %v1865 = vadd.f32 0.0, %v1864
      %1866 = vmatmul.f32.gmra.mxu0 %v1752
      %v1867 = vpop.f32.mrf.mxu0
      %v1868 = vadd.f32 0.0, %v1867
      %1869 = vmatmul.f32.gmra.mxu0 %v1755
      %v1870 = vpop.f32.mrf.mxu0
      %v1871 = vadd.f32 0.0, %v1870
      %1872 = vmatmul.f32.gmra.mxu0 %v1758
      %v1873 = vpop.f32.mrf.mxu0
      %v1874 = vadd.f32 0.0, %v1873
      %1875 = vmatmul.f32.gmra.mxu0 %v1761
      %v1876 = vpop.f32.mrf.mxu0
      %v1877 = vadd.f32 0.0, %v1876
      %1878 = vdwg.mxu0
      %v1880 = vsel %vm517, %v1601, 0
      %v1883 = vsel %vm517, %v1602, 0
      %v1886 = vsel %vm517, %v1603, 0
      %v1889 = vsel %vm517, %v1604, 0
      %v1892 = vsel %vm517, %v1605, 0
      %v1895 = vsel %vm517, %v1606, 0
      %v1898 = vsel %vm517, %v1607, 0
      %v1901 = vsel %vm517, %v1608, 0
      %v1904 = vsel %vm517, %v1609, 0
      %v1907 = vsel %vm517, %v1610, 0
      %v1910 = vsel %vm517, %v1611, 0
      %v1913 = vsel %vm517, %v1612, 0
      %v1916 = vsel %vm517, %v1613, 0
      %v1919 = vsel %vm517, %v1614, 0
      %v1922 = vsel %vm517, %v1615, 0
      %v1925 = vsel %vm517, %v1616, 0
      %v1928 = vsel %vm517, %v1617, 0
      %v1931 = vsel %vm517, %v1618, 0
      %v1934 = vsel %vm517, %v1619, 0
      %v1937 = vsel %vm517, %v1620, 0
      %v1940 = vsel %vm517, %v1621, 0
      %v1943 = vsel %vm517, %v1622, 0
      %v1946 = vsel %vm517, %v1623, 0
      %v1949 = vsel %vm517, %v1624, 0
      %v1952 = vsel %vm517, %v1625, 0
      %v1955 = vsel %vm517, %v1626, 0
      %v1958 = vsel %vm517, %v1627, 0
      %v1961 = vsel %vm517, %v1628, 0
      %v1964 = vsel %vm517, %v1629, 0
      %v1967 = vsel %vm517, %v1630, 0
      %v1970 = vsel %vm517, %v1631, 0
      %v1973 = vsel %vm517, %v1632, 0
      %v1976 = vsel %vm691, %v1633, 0
      %1978 = vmatpush.msra.mxu0 0.0
      %1979 = vmatpush.msra.mxu0 0.0
      %1980 = vmatpush.msra.mxu0 0.0
      %1981 = vmatpush.msra.mxu0 0.0
      %1982 = vmatpush.msra.mxu0 0.0
      %1983 = vmatpush.msra.mxu0 0.0
      %1984 = vmatpush.msra.mxu0 0.0
      %1985 = vmatpush.msra.mxu0 0.0
      %1986 = vmatpush.msra.mxu0 0.0
      %1987 = vmatpush.msra.mxu0 0.0
      %1988 = vmatpush.msra.mxu0 0.0
      %1989 = vmatpush.msra.mxu0 0.0
      %1990 = vmatpush.msra.mxu0 0.0
      %1991 = vmatpush.msra.mxu0 0.0
      %1992 = vmatpush.msra.mxu0 0.0
      %1993 = vmatpush.msra.mxu0 %v1976
      %1994 = vmatmul.f32.gmra.mxu0 %v1880
      %v1995 = vpop.f32.mrf.mxu0
      %v1996 = vadd.f32 %v1784, %v1995
      %1997 = vmatmul.f32.gmra.mxu0 %v1883
      %v1998 = vpop.f32.mrf.mxu0
      %v1999 = vadd.f32 %v1787, %v1998
      %2000 = vmatmul.f32.gmra.mxu0 %v1886
      %v2001 = vpop.f32.mrf.mxu0
      %v2002 = vadd.f32 %v1790, %v2001
      %2003 = vmatmul.f32.gmra.mxu0 %v1889
      %v2004 = vpop.f32.mrf.mxu0
      %v2005 = vadd.f32 %v1793, %v2004
      %2006 = vmatmul.f32.gmra.mxu0 %v1892
      %v2007 = vpop.f32.mrf.mxu0
      %v2008 = vadd.f32 %v1796, %v2007
      %2009 = vmatmul.f32.gmra.mxu0 %v1895
      %v2010 = vpop.f32.mrf.mxu0
      %v2011 = vadd.f32 %v1799, %v2010
      %2012 = vmatmul.f32.gmra.mxu0 %v1898
      %v2013 = vpop.f32.mrf.mxu0
      %v2014 = vadd.f32 %v1802, %v2013
      %2015 = vmatmul.f32.gmra.mxu0 %v1901
      %v2016 = vpop.f32.mrf.mxu0
      %v2017 = vadd.f32 %v1805, %v2016
      %2018 = vmatmul.f32.gmra.mxu0 %v1904
      %v2019 = vpop.f32.mrf.mxu0
      %v2020 = vadd.f32 %v1808, %v2019
      %2021 = vmatmul.f32.gmra.mxu0 %v1907
      %v2022 = vpop.f32.mrf.mxu0
      %v2023 = vadd.f32 %v1811, %v2022
      %2024 = vmatmul.f32.gmra.mxu0 %v1910
      %v2025 = vpop.f32.mrf.mxu0
      %v2026 = vadd.f32 %v1814, %v2025
      %2027 = vmatmul.f32.gmra.mxu0 %v1913
      %v2028 = vpop.f32.mrf.mxu0
      %v2029 = vadd.f32 %v1817, %v2028
      %2030 = vmatmul.f32.gmra.mxu0 %v1916
      %v2031 = vpop.f32.mrf.mxu0
      %v2032 = vadd.f32 %v1820, %v2031
      %2033 = vmatmul.f32.gmra.mxu0 %v1919
      %v2034 = vpop.f32.mrf.mxu0
      %v2035 = vadd.f32 %v1823, %v2034
      %2036 = vmatmul.f32.gmra.mxu0 %v1922
      %v2037 = vpop.f32.mrf.mxu0
      %v2038 = vadd.f32 %v1826, %v2037
      %2039 = vmatmul.f32.gmra.mxu0 %v1925
      %v2040 = vpop.f32.mrf.mxu0
      %v2041 = vadd.f32 %v1829, %v2040
      %2042 = vmatmul.f32.gmra.mxu0 %v1928
      %v2043 = vpop.f32.mrf.mxu0
      %v2044 = vadd.f32 %v1832, %v2043
      %2045 = vmatmul.f32.gmra.mxu0 %v1931
      %v2046 = vpop.f32.mrf.mxu0
      %v2047 = vadd.f32 %v1835, %v2046
      %2048 = vmatmul.f32.gmra.mxu0 %v1934
      %v2049 = vpop.f32.mrf.mxu0
      %v2050 = vadd.f32 %v1838, %v2049
      %2051 = vmatmul.f32.gmra.mxu0 %v1937
      %v2052 = vpop.f32.mrf.mxu0
      %v2053 = vadd.f32 %v1841, %v2052
      %2054 = vmatmul.f32.gmra.mxu0 %v1940
      %v2055 = vpop.f32.mrf.mxu0
      %v2056 = vadd.f32 %v1844, %v2055
      %2057 = vmatmul.f32.gmra.mxu0 %v1943
      %v2058 = vpop.f32.mrf.mxu0
      %v2059 = vadd.f32 %v1847, %v2058
      %2060 = vmatmul.f32.gmra.mxu0 %v1946
      %v2061 = vpop.f32.mrf.mxu0
      %v2062 = vadd.f32 %v1850, %v2061
      %2063 = vmatmul.f32.gmra.mxu0 %v1949
      %v2064 = vpop.f32.mrf.mxu0
      %v2065 = vadd.f32 %v1853, %v2064
      %2066 = vmatmul.f32.gmra.mxu0 %v1952
      %v2067 = vpop.f32.mrf.mxu0
      %v2068 = vadd.f32 %v1856, %v2067
      %2069 = vmatmul.f32.gmra.mxu0 %v1955
      %v2070 = vpop.f32.mrf.mxu0
      %v2071 = vadd.f32 %v1859, %v2070
      %2072 = vmatmul.f32.gmra.mxu0 %v1958
      %v2073 = vpop.f32.mrf.mxu0
      %v2074 = vadd.f32 %v1862, %v2073
      %2075 = vmatmul.f32.gmra.mxu0 %v1961
      %v2076 = vpop.f32.mrf.mxu0
      %v2077 = vadd.f32 %v1865, %v2076
      %2078 = vmatmul.f32.gmra.mxu0 %v1964
      %v2079 = vpop.f32.mrf.mxu0
      %v2080 = vadd.f32 %v1868, %v2079
      %2081 = vmatmul.f32.gmra.mxu0 %v1967
      %v2082 = vpop.f32.mrf.mxu0
      %v2083 = vadd.f32 %v1871, %v2082
      %2084 = vmatmul.f32.gmra.mxu0 %v1970
      %v2085 = vpop.f32.mrf.mxu0
      %v2086 = vadd.f32 %v1874, %v2085
      %2087 = vmatmul.f32.gmra.mxu0 %v1973
      %v2088 = vpop.f32.mrf.mxu0
      %v2089 = vadd.f32 %v1877, %v2088
      %2090 = vdwg.mxu0
      %v2091 = vld [vmem:[#allocation2 + $0x9] sm:$0xff]
      %v2092 = vld [vmem:[#allocation2 + $0x11] sm:$0xff]
      %v2093 = vld [vmem:[#allocation2 + $0x29] sm:$0xff]
      %v2094 = vld [vmem:[#allocation2 + $0x31] sm:$0xff]
      %v2095 = vld [vmem:[#allocation2 + $0x49] sm:$0xff]
      %v2096 = vld [vmem:[#allocation2 + $0x51] sm:$0xff]
      %v2097 = vld [vmem:[#allocation2 + $0x69] sm:$0xff]
      %v2098 = vld [vmem:[#allocation2 + $0x71] sm:$0xff]
      %v2099 = vld [vmem:[#allocation2 + $0x89] sm:$0xff]
      %v2100 = vld [vmem:[#allocation2 + $0x91] sm:$0xff]
      %v2101 = vld [vmem:[#allocation2 + $0xa9] sm:$0xff]
      %v2102 = vld [vmem:[#allocation2 + $0xb1] sm:$0xff]
      %v2103 = vld [vmem:[#allocation2 + $0xc9] sm:$0xff]
      %v2104 = vld [vmem:[#allocation2 + $0xd1] sm:$0xff]
      %v2105 = vld [vmem:[#allocation2 + $0xe9] sm:$0xff]
      %v2106 = vld [vmem:[#allocation2 + $0xf1] sm:$0xff]
      %v2107 = vld [vmem:[#allocation2 + $0x109] sm:$0xff]
      %v2108 = vld [vmem:[#allocation2 + $0x111] sm:$0xff]
      %v2109 = vld [vmem:[#allocation2 + $0x129] sm:$0xff]
      %v2110 = vld [vmem:[#allocation2 + $0x131] sm:$0xff]
      %v2111 = vld [vmem:[#allocation2 + $0x149] sm:$0xff]
      %v2112 = vld [vmem:[#allocation2 + $0x151] sm:$0xff]
      %v2113 = vld [vmem:[#allocation2 + $0x169] sm:$0xff]
      %v2114 = vld [vmem:[#allocation2 + $0x171] sm:$0xff]
      %v2115 = vld [vmem:[#allocation2 + $0x189] sm:$0xff]
      %v2116 = vld [vmem:[#allocation2 + $0x191] sm:$0xff]
      %v2117 = vld [vmem:[#allocation2 + $0x1a9] sm:$0xff]
      %v2118 = vld [vmem:[#allocation2 + $0x1b1] sm:$0xff]
      %v2119 = vld [vmem:[#allocation2 + $0x1c9] sm:$0xff]
      %v2120 = vld [vmem:[#allocation2 + $0x1d1] sm:$0xff]
      %v2121 = vld [vmem:[#allocation2 + $0x1e9] sm:$0xff]
      %v2122 = vld [vmem:[#allocation2 + $0x1f1] sm:$0xff]
      %v2123 = vld [vmem:[%s5 + $0x8] sm:$0xf]
      %v2125 = vsel %vm517, %v2091, 0
      %v2128 = vsel %vm517, %v2092, 0
      %v2131 = vsel %vm517, %v2093, 0
      %v2134 = vsel %vm517, %v2094, 0
      %v2137 = vsel %vm517, %v2095, 0
      %v2140 = vsel %vm517, %v2096, 0
      %v2143 = vsel %vm517, %v2097, 0
      %v2146 = vsel %vm517, %v2098, 0
      %v2149 = vsel %vm517, %v2099, 0
      %v2152 = vsel %vm517, %v2100, 0
      %v2155 = vsel %vm517, %v2101, 0
      %v2158 = vsel %vm517, %v2102, 0
      %v2161 = vsel %vm517, %v2103, 0
      %v2164 = vsel %vm517, %v2104, 0
      %v2167 = vsel %vm517, %v2105, 0
      %v2170 = vsel %vm517, %v2106, 0
      %v2173 = vsel %vm517, %v2107, 0
      %v2176 = vsel %vm517, %v2108, 0
      %v2179 = vsel %vm517, %v2109, 0
      %v2182 = vsel %vm517, %v2110, 0
      %v2185 = vsel %vm517, %v2111, 0
      %v2188 = vsel %vm517, %v2112, 0
      %v2191 = vsel %vm517, %v2113, 0
      %v2194 = vsel %vm517, %v2114, 0
      %v2197 = vsel %vm517, %v2115, 0
      %v2200 = vsel %vm517, %v2116, 0
      %v2203 = vsel %vm517, %v2117, 0
      %v2206 = vsel %vm517, %v2118, 0
      %v2209 = vsel %vm517, %v2119, 0
      %v2212 = vsel %vm517, %v2120, 0
      %v2215 = vsel %vm517, %v2121, 0
      %v2218 = vsel %vm517, %v2122, 0
      %v2221 = vsel %vm691, %v2123, 0
      %2223 = vmatpush.msra.mxu0 0.0
      %2224 = vmatpush.msra.mxu0 0.0
      %2225 = vmatpush.msra.mxu0 0.0
      %2226 = vmatpush.msra.mxu0 0.0
      %2227 = vmatpush.msra.mxu0 0.0
      %2228 = vmatpush.msra.mxu0 0.0
      %2229 = vmatpush.msra.mxu0 0.0
      %2230 = vmatpush.msra.mxu0 0.0
      %2231 = vmatpush.msra.mxu0 0.0
      %2232 = vmatpush.msra.mxu0 0.0
      %2233 = vmatpush.msra.mxu0 0.0
      %2234 = vmatpush.msra.mxu0 0.0
      %2235 = vmatpush.msra.mxu0 0.0
      %2236 = vmatpush.msra.mxu0 0.0
      %2237 = vmatpush.msra.mxu0 0.0
      %2238 = vmatpush.msra.mxu0 %v2221
      %2239 = vmatmul.f32.gmra.mxu0 %v2125
      %v2240 = vpop.f32.mrf.mxu0
      %v2241 = vadd.f32 0.0, %v2240
      %2242 = vmatmul.f32.gmra.mxu0 %v2128
      %v2243 = vpop.f32.mrf.mxu0
      %v2244 = vadd.f32 0.0, %v2243
      %2245 = vmatmul.f32.gmra.mxu0 %v2131
      %v2246 = vpop.f32.mrf.mxu0
      %v2247 = vadd.f32 0.0, %v2246
      %2248 = vmatmul.f32.gmra.mxu0 %v2134
      %v2249 = vpop.f32.mrf.mxu0
      %v2250 = vadd.f32 0.0, %v2249
      %2251 = vmatmul.f32.gmra.mxu0 %v2137
      %v2252 = vpop.f32.mrf.mxu0
      %v2253 = vadd.f32 0.0, %v2252
      %2254 = vmatmul.f32.gmra.mxu0 %v2140
      %v2255 = vpop.f32.mrf.mxu0
      %v2256 = vadd.f32 0.0, %v2255
      %2257 = vmatmul.f32.gmra.mxu0 %v2143
      %v2258 = vpop.f32.mrf.mxu0
      %v2259 = vadd.f32 0.0, %v2258
      %2260 = vmatmul.f32.gmra.mxu0 %v2146
      %v2261 = vpop.f32.mrf.mxu0
      %v2262 = vadd.f32 0.0, %v2261
      %2263 = vmatmul.f32.gmra.mxu0 %v2149
      %v2264 = vpop.f32.mrf.mxu0
      %v2265 = vadd.f32 0.0, %v2264
      %2266 = vmatmul.f32.gmra.mxu0 %v2152
      %v2267 = vpop.f32.mrf.mxu0
      %v2268 = vadd.f32 0.0, %v2267
      %2269 = vmatmul.f32.gmra.mxu0 %v2155
      %v2270 = vpop.f32.mrf.mxu0
      %v2271 = vadd.f32 0.0, %v2270
      %2272 = vmatmul.f32.gmra.mxu0 %v2158
      %v2273 = vpop.f32.mrf.mxu0
      %v2274 = vadd.f32 0.0, %v2273
      %2275 = vmatmul.f32.gmra.mxu0 %v2161
      %v2276 = vpop.f32.mrf.mxu0
      %v2277 = vadd.f32 0.0, %v2276
      %2278 = vmatmul.f32.gmra.mxu0 %v2164
      %v2279 = vpop.f32.mrf.mxu0
      %v2280 = vadd.f32 0.0, %v2279
      %2281 = vmatmul.f32.gmra.mxu0 %v2167
      %v2282 = vpop.f32.mrf.mxu0
      %v2283 = vadd.f32 0.0, %v2282
      %2284 = vmatmul.f32.gmra.mxu0 %v2170
      %v2285 = vpop.f32.mrf.mxu0
      %v2286 = vadd.f32 0.0, %v2285
      %2287 = vmatmul.f32.gmra.mxu0 %v2173
      %v2288 = vpop.f32.mrf.mxu0
      %v2289 = vadd.f32 0.0, %v2288
      %2290 = vmatmul.f32.gmra.mxu0 %v2176
      %v2291 = vpop.f32.mrf.mxu0
      %v2292 = vadd.f32 0.0, %v2291
      %2293 = vmatmul.f32.gmra.mxu0 %v2179
      %v2294 = vpop.f32.mrf.mxu0
      %v2295 = vadd.f32 0.0, %v2294
      %2296 = vmatmul.f32.gmra.mxu0 %v2182
      %v2297 = vpop.f32.mrf.mxu0
      %v2298 = vadd.f32 0.0, %v2297
      %2299 = vmatmul.f32.gmra.mxu0 %v2185
      %v2300 = vpop.f32.mrf.mxu0
      %v2301 = vadd.f32 0.0, %v2300
      %2302 = vmatmul.f32.gmra.mxu0 %v2188
      %v2303 = vpop.f32.mrf.mxu0
      %v2304 = vadd.f32 0.0, %v2303
      %2305 = vmatmul.f32.gmra.mxu0 %v2191
      %v2306 = vpop.f32.mrf.mxu0
      %v2307 = vadd.f32 0.0, %v2306
      %2308 = vmatmul.f32.gmra.mxu0 %v2194
      %v2309 = vpop.f32.mrf.mxu0
      %v2310 = vadd.f32 0.0, %v2309
      %2311 = vmatmul.f32.gmra.mxu0 %v2197
      %v2312 = vpop.f32.mrf.mxu0
      %v2313 = vadd.f32 0.0, %v2312
      %2314 = vmatmul.f32.gmra.mxu0 %v2200
      %v2315 = vpop.f32.mrf.mxu0
      %v2316 = vadd.f32 0.0, %v2315
      %2317 = vmatmul.f32.gmra.mxu0 %v2203
      %v2318 = vpop.f32.mrf.mxu0
      %v2319 = vadd.f32 0.0, %v2318
      %2320 = vmatmul.f32.gmra.mxu0 %v2206
      %v2321 = vpop.f32.mrf.mxu0
      %v2322 = vadd.f32 0.0, %v2321
      %2323 = vmatmul.f32.gmra.mxu0 %v2209
      %v2324 = vpop.f32.mrf.mxu0
      %v2325 = vadd.f32 0.0, %v2324
      %2326 = vmatmul.f32.gmra.mxu0 %v2212
      %v2327 = vpop.f32.mrf.mxu0
      %v2328 = vadd.f32 0.0, %v2327
      %2329 = vmatmul.f32.gmra.mxu0 %v2215
      %v2330 = vpop.f32.mrf.mxu0
      %v2331 = vadd.f32 0.0, %v2330
      %2332 = vmatmul.f32.gmra.mxu0 %v2218
      %v2333 = vpop.f32.mrf.mxu0
      %v2334 = vadd.f32 0.0, %v2333
      %2335 = vdwg.mxu0
      %v2336 = vadd.f32 %v1996, %v2241
      %v2337 = vadd.f32 %v1999, %v2244
      %v2338 = vadd.f32 %v2002, %v2247
      %v2339 = vadd.f32 %v2005, %v2250
      %v2340 = vadd.f32 %v2008, %v2253
      %v2341 = vadd.f32 %v2011, %v2256
      %v2342 = vadd.f32 %v2014, %v2259
      %v2343 = vadd.f32 %v2017, %v2262
      %v2344 = vadd.f32 %v2020, %v2265
      %v2345 = vadd.f32 %v2023, %v2268
      %v2346 = vadd.f32 %v2026, %v2271
      %v2347 = vadd.f32 %v2029, %v2274
      %v2348 = vadd.f32 %v2032, %v2277
      %v2349 = vadd.f32 %v2035, %v2280
      %v2350 = vadd.f32 %v2038, %v2283
      %v2351 = vadd.f32 %v2041, %v2286
      %v2352 = vadd.f32 %v2044, %v2289
      %v2353 = vadd.f32 %v2047, %v2292
      %v2354 = vadd.f32 %v2050, %v2295
      %v2355 = vadd.f32 %v2053, %v2298
      %v2356 = vadd.f32 %v2056, %v2301
      %v2357 = vadd.f32 %v2059, %v2304
      %v2358 = vadd.f32 %v2062, %v2307
      %v2359 = vadd.f32 %v2065, %v2310
      %v2360 = vadd.f32 %v2068, %v2313
      %v2361 = vadd.f32 %v2071, %v2316
      %v2362 = vadd.f32 %v2074, %v2319
      %v2363 = vadd.f32 %v2077, %v2322
      %v2364 = vadd.f32 %v2080, %v2325
      %v2365 = vadd.f32 %v2083, %v2328
      %v2366 = vadd.f32 %v2086, %v2331
      %v2367 = vadd.f32 %v2089, %v2334
      %v2368 = vld [vmem:[%s1535 + $0x7] sm:$0xff]
      %v2369 = vld [vmem:[%s1535 + $0xf] sm:$0xff]
      %v2370 = vld [vmem:[%s1535 + $0x27] sm:$0xff]
      %v2371 = vld [vmem:[%s1535 + $0x2f] sm:$0xff]
      %v2372 = vld [vmem:[%s1535 + $0x47] sm:$0xff]
      %v2373 = vld [vmem:[%s1535 + $0x4f] sm:$0xff]
      %v2374 = vld [vmem:[%s1535 + $0x67] sm:$0xff]
      %v2375 = vld [vmem:[%s1535 + $0x6f] sm:$0xff]
      %v2376 = vld [vmem:[%s1535 + $0x87] sm:$0xff]
      %v2377 = vld [vmem:[%s1535 + $0x8f] sm:$0xff]
      %v2378 = vld [vmem:[%s1535 + $0xa7] sm:$0xff]
      %v2379 = vld [vmem:[%s1535 + $0xaf] sm:$0xff]
      %v2380 = vld [vmem:[%s1535 + $0xc7] sm:$0xff]
      %v2381 = vld [vmem:[%s1535 + $0xcf] sm:$0xff]
      %v2382 = vld [vmem:[%s1535 + $0xe7] sm:$0xff]
      %v2383 = vld [vmem:[%s1535 + $0xef] sm:$0xff]
      %v2384 = vld [vmem:[%s1535 + $0x107] sm:$0xff]
      %v2385 = vld [vmem:[%s1535 + $0x10f] sm:$0xff]
      %v2386 = vld [vmem:[%s1535 + $0x127] sm:$0xff]
      %v2387 = vld [vmem:[%s1535 + $0x12f] sm:$0xff]
      %v2388 = vld [vmem:[%s1535 + $0x147] sm:$0xff]
      %v2389 = vld [vmem:[%s1535 + $0x14f] sm:$0xff]
      %v2390 = vld [vmem:[%s1535 + $0x167] sm:$0xff]
      %v2391 = vld [vmem:[%s1535 + $0x16f] sm:$0xff]
      %v2392 = vld [vmem:[%s1535 + $0x187] sm:$0xff]
      %v2393 = vld [vmem:[%s1535 + $0x18f] sm:$0xff]
      %v2394 = vld [vmem:[%s1535 + $0x1a7] sm:$0xff]
      %v2395 = vld [vmem:[%s1535 + $0x1af] sm:$0xff]
      %v2396 = vld [vmem:[%s1535 + $0x1c7] sm:$0xff]
      %v2397 = vld [vmem:[%s1535 + $0x1cf] sm:$0xff]
      %v2398 = vld [vmem:[%s1535 + $0x1e7] sm:$0xff]
      %v2399 = vld [vmem:[%s1535 + $0x1ef] sm:$0xff]
      %v2400 = vld [vmem:[%s5 + $0xc] sm:$0xf]
      %v2402 = vsel %vm517, %v2368, 0
      %v2405 = vsel %vm517, %v2369, 0
      %v2408 = vsel %vm517, %v2370, 0
      %v2411 = vsel %vm517, %v2371, 0
      %v2414 = vsel %vm517, %v2372, 0
      %v2417 = vsel %vm517, %v2373, 0
      %v2420 = vsel %vm517, %v2374, 0
      %v2423 = vsel %vm517, %v2375, 0
      %v2426 = vsel %vm517, %v2376, 0
      %v2429 = vsel %vm517, %v2377, 0
      %v2432 = vsel %vm517, %v2378, 0
      %v2435 = vsel %vm517, %v2379, 0
      %v2438 = vsel %vm517, %v2380, 0
      %v2441 = vsel %vm517, %v2381, 0
      %v2444 = vsel %vm517, %v2382, 0
      %v2447 = vsel %vm517, %v2383, 0
      %v2450 = vsel %vm517, %v2384, 0
      %v2453 = vsel %vm517, %v2385, 0
      %v2456 = vsel %vm517, %v2386, 0
      %v2459 = vsel %vm517, %v2387, 0
      %v2462 = vsel %vm517, %v2388, 0
      %v2465 = vsel %vm517, %v2389, 0
      %v2468 = vsel %vm517, %v2390, 0
      %v2471 = vsel %vm517, %v2391, 0
      %v2474 = vsel %vm517, %v2392, 0
      %v2477 = vsel %vm517, %v2393, 0
      %v2480 = vsel %vm517, %v2394, 0
      %v2483 = vsel %vm517, %v2395, 0
      %v2486 = vsel %vm517, %v2396, 0
      %v2489 = vsel %vm517, %v2397, 0
      %v2492 = vsel %vm517, %v2398, 0
      %v2495 = vsel %vm517, %v2399, 0
      %v2498 = vsel %vm691, %v2400, 0
      %2500 = vmatpush.msra.mxu0 0.0
      %2501 = vmatpush.msra.mxu0 0.0
      %2502 = vmatpush.msra.mxu0 0.0
      %2503 = vmatpush.msra.mxu0 0.0
      %2504 = vmatpush.msra.mxu0 0.0
      %2505 = vmatpush.msra.mxu0 0.0
      %2506 = vmatpush.msra.mxu0 0.0
      %2507 = vmatpush.msra.mxu0 0.0
      %2508 = vmatpush.msra.mxu0 0.0
      %2509 = vmatpush.msra.mxu0 0.0
      %2510 = vmatpush.msra.mxu0 0.0
      %2511 = vmatpush.msra.mxu0 0.0
      %2512 = vmatpush.msra.mxu0 0.0
      %2513 = vmatpush.msra.mxu0 0.0
      %2514 = vmatpush.msra.mxu0 0.0
      %2515 = vmatpush.msra.mxu0 %v2498
      %2516 = vmatmul.f32.gmra.mxu0 %v2402
      %v2517 = vpop.f32.mrf.mxu0
      %v2518 = vadd.f32 0.0, %v2517
      %2519 = vmatmul.f32.gmra.mxu0 %v2405
      %v2520 = vpop.f32.mrf.mxu0
      %v2521 = vadd.f32 0.0, %v2520
      %2522 = vmatmul.f32.gmra.mxu0 %v2408
      %v2523 = vpop.f32.mrf.mxu0
      %v2524 = vadd.f32 0.0, %v2523
      %2525 = vmatmul.f32.gmra.mxu0 %v2411
      %v2526 = vpop.f32.mrf.mxu0
      %v2527 = vadd.f32 0.0, %v2526
      %2528 = vmatmul.f32.gmra.mxu0 %v2414
      %v2529 = vpop.f32.mrf.mxu0
      %v2530 = vadd.f32 0.0, %v2529
      %2531 = vmatmul.f32.gmra.mxu0 %v2417
      %v2532 = vpop.f32.mrf.mxu0
      %v2533 = vadd.f32 0.0, %v2532
      %2534 = vmatmul.f32.gmra.mxu0 %v2420
      %v2535 = vpop.f32.mrf.mxu0
      %v2536 = vadd.f32 0.0, %v2535
      %2537 = vmatmul.f32.gmra.mxu0 %v2423
      %v2538 = vpop.f32.mrf.mxu0
      %v2539 = vadd.f32 0.0, %v2538
      %2540 = vmatmul.f32.gmra.mxu0 %v2426
      %v2541 = vpop.f32.mrf.mxu0
      %v2542 = vadd.f32 0.0, %v2541
      %2543 = vmatmul.f32.gmra.mxu0 %v2429
      %v2544 = vpop.f32.mrf.mxu0
      %v2545 = vadd.f32 0.0, %v2544
      %2546 = vmatmul.f32.gmra.mxu0 %v2432
      %v2547 = vpop.f32.mrf.mxu0
      %v2548 = vadd.f32 0.0, %v2547
      %2549 = vmatmul.f32.gmra.mxu0 %v2435
      %v2550 = vpop.f32.mrf.mxu0
      %v2551 = vadd.f32 0.0, %v2550
      %2552 = vmatmul.f32.gmra.mxu0 %v2438
      %v2553 = vpop.f32.mrf.mxu0
      %v2554 = vadd.f32 0.0, %v2553
      %2555 = vmatmul.f32.gmra.mxu0 %v2441
      %v2556 = vpop.f32.mrf.mxu0
      %v2557 = vadd.f32 0.0, %v2556
      %2558 = vmatmul.f32.gmra.mxu0 %v2444
      %v2559 = vpop.f32.mrf.mxu0
      %v2560 = vadd.f32 0.0, %v2559
      %2561 = vmatmul.f32.gmra.mxu0 %v2447
      %v2562 = vpop.f32.mrf.mxu0
      %v2563 = vadd.f32 0.0, %v2562
      %2564 = vmatmul.f32.gmra.mxu0 %v2450
      %v2565 = vpop.f32.mrf.mxu0
      %v2566 = vadd.f32 0.0, %v2565
      %2567 = vmatmul.f32.gmra.mxu0 %v2453
      %v2568 = vpop.f32.mrf.mxu0
      %v2569 = vadd.f32 0.0, %v2568
      %2570 = vmatmul.f32.gmra.mxu0 %v2456
      %v2571 = vpop.f32.mrf.mxu0
      %v2572 = vadd.f32 0.0, %v2571
      %2573 = vmatmul.f32.gmra.mxu0 %v2459
      %v2574 = vpop.f32.mrf.mxu0
      %v2575 = vadd.f32 0.0, %v2574
      %2576 = vmatmul.f32.gmra.mxu0 %v2462
      %v2577 = vpop.f32.mrf.mxu0
      %v2578 = vadd.f32 0.0, %v2577
      %2579 = vmatmul.f32.gmra.mxu0 %v2465
      %v2580 = vpop.f32.mrf.mxu0
      %v2581 = vadd.f32 0.0, %v2580
      %2582 = vmatmul.f32.gmra.mxu0 %v2468
      %v2583 = vpop.f32.mrf.mxu0
      %v2584 = vadd.f32 0.0, %v2583
      %2585 = vmatmul.f32.gmra.mxu0 %v2471
      %v2586 = vpop.f32.mrf.mxu0
      %v2587 = vadd.f32 0.0, %v2586
      %2588 = vmatmul.f32.gmra.mxu0 %v2474
      %v2589 = vpop.f32.mrf.mxu0
      %v2590 = vadd.f32 0.0, %v2589
      %2591 = vmatmul.f32.gmra.mxu0 %v2477
      %v2592 = vpop.f32.mrf.mxu0
      %v2593 = vadd.f32 0.0, %v2592
      %2594 = vmatmul.f32.gmra.mxu0 %v2480
      %v2595 = vpop.f32.mrf.mxu0
      %v2596 = vadd.f32 0.0, %v2595
      %2597 = vmatmul.f32.gmra.mxu0 %v2483
      %v2598 = vpop.f32.mrf.mxu0
      %v2599 = vadd.f32 0.0, %v2598
      %2600 = vmatmul.f32.gmra.mxu0 %v2486
      %v2601 = vpop.f32.mrf.mxu0
      %v2602 = vadd.f32 0.0, %v2601
      %2603 = vmatmul.f32.gmra.mxu0 %v2489
      %v2604 = vpop.f32.mrf.mxu0
      %v2605 = vadd.f32 0.0, %v2604
      %2606 = vmatmul.f32.gmra.mxu0 %v2492
      %v2607 = vpop.f32.mrf.mxu0
      %v2608 = vadd.f32 0.0, %v2607
      %2609 = vmatmul.f32.gmra.mxu0 %v2495
      %v2610 = vpop.f32.mrf.mxu0
      %v2611 = vadd.f32 0.0, %v2610
      %2612 = vdwg.mxu0
      %v2613 = vadd.f32 %v2336, %v2518
      %v2614 = vadd.f32 %v2337, %v2521
      %v2615 = vadd.f32 %v2338, %v2524
      %v2616 = vadd.f32 %v2339, %v2527
      %v2617 = vadd.f32 %v2340, %v2530
      %v2618 = vadd.f32 %v2341, %v2533
      %v2619 = vadd.f32 %v2342, %v2536
      %v2620 = vadd.f32 %v2343, %v2539
      %v2621 = vadd.f32 %v2344, %v2542
      %v2622 = vadd.f32 %v2345, %v2545
      %v2623 = vadd.f32 %v2346, %v2548
      %v2624 = vadd.f32 %v2347, %v2551
      %v2625 = vadd.f32 %v2348, %v2554
      %v2626 = vadd.f32 %v2349, %v2557
      %v2627 = vadd.f32 %v2350, %v2560
      %v2628 = vadd.f32 %v2351, %v2563
      %v2629 = vadd.f32 %v2352, %v2566
      %v2630 = vadd.f32 %v2353, %v2569
      %v2631 = vadd.f32 %v2354, %v2572
      %v2632 = vadd.f32 %v2355, %v2575
      %v2633 = vadd.f32 %v2356, %v2578
      %v2634 = vadd.f32 %v2357, %v2581
      %v2635 = vadd.f32 %v2358, %v2584
      %v2636 = vadd.f32 %v2359, %v2587
      %v2637 = vadd.f32 %v2360, %v2590
      %v2638 = vadd.f32 %v2361, %v2593
      %v2639 = vadd.f32 %v2362, %v2596
      %v2640 = vadd.f32 %v2363, %v2599
      %v2641 = vadd.f32 %v2364, %v2602
      %v2642 = vadd.f32 %v2365, %v2605
      %v2643 = vadd.f32 %v2366, %v2608
      %v2644 = vadd.f32 %v2367, %v2611
      %v2645 = vld [vmem:[%s1535 + $0x8] sm:$0xff]
      %v2646 = vld [vmem:[%s1535 + $0x10] sm:$0xff]
      %v2647 = vld [vmem:[%s1535 + $0x28] sm:$0xff]
      %v2648 = vld [vmem:[%s1535 + $0x30] sm:$0xff]
      %v2649 = vld [vmem:[%s1535 + $0x48] sm:$0xff]
      %v2650 = vld [vmem:[%s1535 + $0x50] sm:$0xff]
      %v2651 = vld [vmem:[%s1535 + $0x68] sm:$0xff]
      %v2652 = vld [vmem:[%s1535 + $0x70] sm:$0xff]
      %v2653 = vld [vmem:[%s1535 + $0x88] sm:$0xff]
      %v2654 = vld [vmem:[%s1535 + $0x90] sm:$0xff]
      %v2655 = vld [vmem:[%s1535 + $0xa8] sm:$0xff]
      %v2656 = vld [vmem:[%s1535 + $0xb0] sm:$0xff]
      %v2657 = vld [vmem:[%s1535 + $0xc8] sm:$0xff]
      %v2658 = vld [vmem:[%s1535 + $0xd0] sm:$0xff]
      %v2659 = vld [vmem:[%s1535 + $0xe8] sm:$0xff]
      %v2660 = vld [vmem:[%s1535 + $0xf0] sm:$0xff]
      %v2661 = vld [vmem:[%s1535 + $0x108] sm:$0xff]
      %v2662 = vld [vmem:[%s1535 + $0x110] sm:$0xff]
      %v2663 = vld [vmem:[%s1535 + $0x128] sm:$0xff]
      %v2664 = vld [vmem:[%s1535 + $0x130] sm:$0xff]
      %v2665 = vld [vmem:[%s1535 + $0x148] sm:$0xff]
      %v2666 = vld [vmem:[%s1535 + $0x150] sm:$0xff]
      %v2667 = vld [vmem:[%s1535 + $0x168] sm:$0xff]
      %v2668 = vld [vmem:[%s1535 + $0x170] sm:$0xff]
      %v2669 = vld [vmem:[%s1535 + $0x188] sm:$0xff]
      %v2670 = vld [vmem:[%s1535 + $0x190] sm:$0xff]
      %v2671 = vld [vmem:[%s1535 + $0x1a8] sm:$0xff]
      %v2672 = vld [vmem:[%s1535 + $0x1b0] sm:$0xff]
      %v2673 = vld [vmem:[%s1535 + $0x1c8] sm:$0xff]
      %v2674 = vld [vmem:[%s1535 + $0x1d0] sm:$0xff]
      %v2675 = vld [vmem:[%s1535 + $0x1e8] sm:$0xff]
      %v2676 = vld [vmem:[%s1535 + $0x1f0] sm:$0xff]
      %v2677 = vld [vmem:[%s5 + $0x10] sm:$0xf]
      %v2679 = vsel %vm517, %v2645, 0
      %v2682 = vsel %vm517, %v2646, 0
      %v2685 = vsel %vm517, %v2647, 0
      %v2688 = vsel %vm517, %v2648, 0
      %v2691 = vsel %vm517, %v2649, 0
      %v2694 = vsel %vm517, %v2650, 0
      %v2697 = vsel %vm517, %v2651, 0
      %v2700 = vsel %vm517, %v2652, 0
      %v2703 = vsel %vm517, %v2653, 0
      %v2706 = vsel %vm517, %v2654, 0
      %v2709 = vsel %vm517, %v2655, 0
      %v2712 = vsel %vm517, %v2656, 0
      %v2715 = vsel %vm517, %v2657, 0
      %v2718 = vsel %vm517, %v2658, 0
      %v2721 = vsel %vm517, %v2659, 0
      %v2724 = vsel %vm517, %v2660, 0
      %v2727 = vsel %vm517, %v2661, 0
      %v2730 = vsel %vm517, %v2662, 0
      %v2733 = vsel %vm517, %v2663, 0
      %v2736 = vsel %vm517, %v2664, 0
      %v2739 = vsel %vm517, %v2665, 0
      %v2742 = vsel %vm517, %v2666, 0
      %v2745 = vsel %vm517, %v2667, 0
      %v2748 = vsel %vm517, %v2668, 0
      %v2751 = vsel %vm517, %v2669, 0
      %v2754 = vsel %vm517, %v2670, 0
      %v2757 = vsel %vm517, %v2671, 0
      %v2760 = vsel %vm517, %v2672, 0
      %v2763 = vsel %vm517, %v2673, 0
      %v2766 = vsel %vm517, %v2674, 0
      %v2769 = vsel %vm517, %v2675, 0
      %v2772 = vsel %vm517, %v2676, 0
      %v2775 = vsel %vm691, %v2677, 0
      %2777 = vmatpush.msra.mxu0 0.0
      %2778 = vmatpush.msra.mxu0 0.0
      %2779 = vmatpush.msra.mxu0 0.0
      %2780 = vmatpush.msra.mxu0 0.0
      %2781 = vmatpush.msra.mxu0 0.0
      %2782 = vmatpush.msra.mxu0 0.0
      %2783 = vmatpush.msra.mxu0 0.0
      %2784 = vmatpush.msra.mxu0 0.0
      %2785 = vmatpush.msra.mxu0 0.0
      %2786 = vmatpush.msra.mxu0 0.0
      %2787 = vmatpush.msra.mxu0 0.0
      %2788 = vmatpush.msra.mxu0 0.0
      %2789 = vmatpush.msra.mxu0 0.0
      %2790 = vmatpush.msra.mxu0 0.0
      %2791 = vmatpush.msra.mxu0 0.0
      %2792 = vmatpush.msra.mxu0 %v2775
      %2793 = vmatmul.f32.gmra.mxu0 %v2679
      %v2794 = vpop.f32.mrf.mxu0
      %v2795 = vadd.f32 0.0, %v2794
      %2796 = vmatmul.f32.gmra.mxu0 %v2682
      %v2797 = vpop.f32.mrf.mxu0
      %v2798 = vadd.f32 0.0, %v2797
      %2799 = vmatmul.f32.gmra.mxu0 %v2685
      %v2800 = vpop.f32.mrf.mxu0
      %v2801 = vadd.f32 0.0, %v2800
      %2802 = vmatmul.f32.gmra.mxu0 %v2688
      %v2803 = vpop.f32.mrf.mxu0
      %v2804 = vadd.f32 0.0, %v2803
      %2805 = vmatmul.f32.gmra.mxu0 %v2691
      %v2806 = vpop.f32.mrf.mxu0
      %v2807 = vadd.f32 0.0, %v2806
      %2808 = vmatmul.f32.gmra.mxu0 %v2694
      %v2809 = vpop.f32.mrf.mxu0
      %v2810 = vadd.f32 0.0, %v2809
      %2811 = vmatmul.f32.gmra.mxu0 %v2697
      %v2812 = vpop.f32.mrf.mxu0
      %v2813 = vadd.f32 0.0, %v2812
      %2814 = vmatmul.f32.gmra.mxu0 %v2700
      %v2815 = vpop.f32.mrf.mxu0
      %v2816 = vadd.f32 0.0, %v2815
      %2817 = vmatmul.f32.gmra.mxu0 %v2703
      %v2818 = vpop.f32.mrf.mxu0
      %v2819 = vadd.f32 0.0, %v2818
      %2820 = vmatmul.f32.gmra.mxu0 %v2706
      %v2821 = vpop.f32.mrf.mxu0
      %v2822 = vadd.f32 0.0, %v2821
      %2823 = vmatmul.f32.gmra.mxu0 %v2709
      %v2824 = vpop.f32.mrf.mxu0
      %v2825 = vadd.f32 0.0, %v2824
      %2826 = vmatmul.f32.gmra.mxu0 %v2712
      %v2827 = vpop.f32.mrf.mxu0
      %v2828 = vadd.f32 0.0, %v2827
      %2829 = vmatmul.f32.gmra.mxu0 %v2715
      %v2830 = vpop.f32.mrf.mxu0
      %v2831 = vadd.f32 0.0, %v2830
      %2832 = vmatmul.f32.gmra.mxu0 %v2718
      %v2833 = vpop.f32.mrf.mxu0
      %v2834 = vadd.f32 0.0, %v2833
      %2835 = vmatmul.f32.gmra.mxu0 %v2721
      %v2836 = vpop.f32.mrf.mxu0
      %v2837 = vadd.f32 0.0, %v2836
      %2838 = vmatmul.f32.gmra.mxu0 %v2724
      %v2839 = vpop.f32.mrf.mxu0
      %v2840 = vadd.f32 0.0, %v2839
      %2841 = vmatmul.f32.gmra.mxu0 %v2727
      %v2842 = vpop.f32.mrf.mxu0
      %v2843 = vadd.f32 0.0, %v2842
      %2844 = vmatmul.f32.gmra.mxu0 %v2730
      %v2845 = vpop.f32.mrf.mxu0
      %v2846 = vadd.f32 0.0, %v2845
      %2847 = vmatmul.f32.gmra.mxu0 %v2733
      %v2848 = vpop.f32.mrf.mxu0
      %v2849 = vadd.f32 0.0, %v2848
      %2850 = vmatmul.f32.gmra.mxu0 %v2736
      %v2851 = vpop.f32.mrf.mxu0
      %v2852 = vadd.f32 0.0, %v2851
      %2853 = vmatmul.f32.gmra.mxu0 %v2739
      %v2854 = vpop.f32.mrf.mxu0
      %v2855 = vadd.f32 0.0, %v2854
      %2856 = vmatmul.f32.gmra.mxu0 %v2742
      %v2857 = vpop.f32.mrf.mxu0
      %v2858 = vadd.f32 0.0, %v2857
      %2859 = vmatmul.f32.gmra.mxu0 %v2745
      %v2860 = vpop.f32.mrf.mxu0
      %v2861 = vadd.f32 0.0, %v2860
      %2862 = vmatmul.f32.gmra.mxu0 %v2748
      %v2863 = vpop.f32.mrf.mxu0
      %v2864 = vadd.f32 0.0, %v2863
      %2865 = vmatmul.f32.gmra.mxu0 %v2751
      %v2866 = vpop.f32.mrf.mxu0
      %v2867 = vadd.f32 0.0, %v2866
      %2868 = vmatmul.f32.gmra.mxu0 %v2754
      %v2869 = vpop.f32.mrf.mxu0
      %v2870 = vadd.f32 0.0, %v2869
      %2871 = vmatmul.f32.gmra.mxu0 %v2757
      %v2872 = vpop.f32.mrf.mxu0
      %v2873 = vadd.f32 0.0, %v2872
      %2874 = vmatmul.f32.gmra.mxu0 %v2760
      %v2875 = vpop.f32.mrf.mxu0
      %v2876 = vadd.f32 0.0, %v2875
      %2877 = vmatmul.f32.gmra.mxu0 %v2763
      %v2878 = vpop.f32.mrf.mxu0
      %v2879 = vadd.f32 0.0, %v2878
      %2880 = vmatmul.f32.gmra.mxu0 %v2766
      %v2881 = vpop.f32.mrf.mxu0
      %v2882 = vadd.f32 0.0, %v2881
      %2883 = vmatmul.f32.gmra.mxu0 %v2769
      %v2884 = vpop.f32.mrf.mxu0
      %v2885 = vadd.f32 0.0, %v2884
      %2886 = vmatmul.f32.gmra.mxu0 %v2772
      %v2887 = vpop.f32.mrf.mxu0
      %v2888 = vadd.f32 0.0, %v2887
      %2889 = vdwg.mxu0
      %v2890 = vadd.f32 %v2613, %v2795
      %v2891 = vadd.f32 %v2614, %v2798
      %v2892 = vadd.f32 %v2615, %v2801
      %v2893 = vadd.f32 %v2616, %v2804
      %v2894 = vadd.f32 %v2617, %v2807
      %v2895 = vadd.f32 %v2618, %v2810
      %v2896 = vadd.f32 %v2619, %v2813
      %v2897 = vadd.f32 %v2620, %v2816
      %v2898 = vadd.f32 %v2621, %v2819
      %v2899 = vadd.f32 %v2622, %v2822
      %v2900 = vadd.f32 %v2623, %v2825
      %v2901 = vadd.f32 %v2624, %v2828
      %v2902 = vadd.f32 %v2625, %v2831
      %v2903 = vadd.f32 %v2626, %v2834
      %v2904 = vadd.f32 %v2627, %v2837
      %v2905 = vadd.f32 %v2628, %v2840
      %v2906 = vadd.f32 %v2629, %v2843
      %v2907 = vadd.f32 %v2630, %v2846
      %v2908 = vadd.f32 %v2631, %v2849
      %v2909 = vadd.f32 %v2632, %v2852
      %v2910 = vadd.f32 %v2633, %v2855
      %v2911 = vadd.f32 %v2634, %v2858
      %v2912 = vadd.f32 %v2635, %v2861
      %v2913 = vadd.f32 %v2636, %v2864
      %v2914 = vadd.f32 %v2637, %v2867
      %v2915 = vadd.f32 %v2638, %v2870
      %v2916 = vadd.f32 %v2639, %v2873
      %v2917 = vadd.f32 %v2640, %v2876
      %v2918 = vadd.f32 %v2641, %v2879
      %v2919 = vadd.f32 %v2642, %v2882
      %v2920 = vadd.f32 %v2643, %v2885
      %v2921 = vadd.f32 %v2644, %v2888
      %v2922 = vld [vmem:[%s1535 + $0x9] sm:$0xff]
      %v2923 = vld [vmem:[%s1535 + $0x11] sm:$0xff]
      %v2924 = vld [vmem:[%s1535 + $0x29] sm:$0xff]
      %v2925 = vld [vmem:[%s1535 + $0x31] sm:$0xff]
      %v2926 = vld [vmem:[%s1535 + $0x49] sm:$0xff]
      %v2927 = vld [vmem:[%s1535 + $0x51] sm:$0xff]
      %v2928 = vld [vmem:[%s1535 + $0x69] sm:$0xff]
      %v2929 = vld [vmem:[%s1535 + $0x71] sm:$0xff]
      %v2930 = vld [vmem:[%s1535 + $0x89] sm:$0xff]
      %v2931 = vld [vmem:[%s1535 + $0x91] sm:$0xff]
      %v2932 = vld [vmem:[%s1535 + $0xa9] sm:$0xff]
      %v2933 = vld [vmem:[%s1535 + $0xb1] sm:$0xff]
      %v2934 = vld [vmem:[%s1535 + $0xc9] sm:$0xff]
      %v2935 = vld [vmem:[%s1535 + $0xd1] sm:$0xff]
      %v2936 = vld [vmem:[%s1535 + $0xe9] sm:$0xff]
      %v2937 = vld [vmem:[%s1535 + $0xf1] sm:$0xff]
      %v2938 = vld [vmem:[%s1535 + $0x109] sm:$0xff]
      %v2939 = vld [vmem:[%s1535 + $0x111] sm:$0xff]
      %v2940 = vld [vmem:[%s1535 + $0x129] sm:$0xff]
      %v2941 = vld [vmem:[%s1535 + $0x131] sm:$0xff]
      %v2942 = vld [vmem:[%s1535 + $0x149] sm:$0xff]
      %v2943 = vld [vmem:[%s1535 + $0x151] sm:$0xff]
      %v2944 = vld [vmem:[%s1535 + $0x169] sm:$0xff]
      %v2945 = vld [vmem:[%s1535 + $0x171] sm:$0xff]
      %v2946 = vld [vmem:[%s1535 + $0x189] sm:$0xff]
      %v2947 = vld [vmem:[%s1535 + $0x191] sm:$0xff]
      %v2948 = vld [vmem:[%s1535 + $0x1a9] sm:$0xff]
      %v2949 = vld [vmem:[%s1535 + $0x1b1] sm:$0xff]
      %v2950 = vld [vmem:[%s1535 + $0x1c9] sm:$0xff]
      %v2951 = vld [vmem:[%s1535 + $0x1d1] sm:$0xff]
      %v2952 = vld [vmem:[%s1535 + $0x1e9] sm:$0xff]
      %v2953 = vld [vmem:[%s1535 + $0x1f1] sm:$0xff]
      %v2954 = vld [vmem:[%s5 + $0x14] sm:$0xf]
      %v2956 = vsel %vm517, %v2922, 0
      %v2959 = vsel %vm517, %v2923, 0
      %v2962 = vsel %vm517, %v2924, 0
      %v2965 = vsel %vm517, %v2925, 0
      %v2968 = vsel %vm517, %v2926, 0
      %v2971 = vsel %vm517, %v2927, 0
      %v2974 = vsel %vm517, %v2928, 0
      %v2977 = vsel %vm517, %v2929, 0
      %v2980 = vsel %vm517, %v2930, 0
      %v2983 = vsel %vm517, %v2931, 0
      %v2986 = vsel %vm517, %v2932, 0
      %v2989 = vsel %vm517, %v2933, 0
      %v2992 = vsel %vm517, %v2934, 0
      %v2995 = vsel %vm517, %v2935, 0
      %v2998 = vsel %vm517, %v2936, 0
      %v3001 = vsel %vm517, %v2937, 0
      %v3004 = vsel %vm517, %v2938, 0
      %v3007 = vsel %vm517, %v2939, 0
      %v3010 = vsel %vm517, %v2940, 0
      %v3013 = vsel %vm517, %v2941, 0
      %v3016 = vsel %vm517, %v2942, 0
      %v3019 = vsel %vm517, %v2943, 0
      %v3022 = vsel %vm517, %v2944, 0
      %v3025 = vsel %vm517, %v2945, 0
      %v3028 = vsel %vm517, %v2946, 0
      %v3031 = vsel %vm517, %v2947, 0
      %v3034 = vsel %vm517, %v2948, 0
      %v3037 = vsel %vm517, %v2949, 0
      %v3040 = vsel %vm517, %v2950, 0
      %v3043 = vsel %vm517, %v2951, 0
      %v3046 = vsel %vm517, %v2952, 0
      %v3049 = vsel %vm517, %v2953, 0
      %v3052 = vsel %vm691, %v2954, 0
      %3054 = vmatpush.msra.mxu0 0.0
      %3055 = vmatpush.msra.mxu0 0.0
      %3056 = vmatpush.msra.mxu0 0.0
      %3057 = vmatpush.msra.mxu0 0.0
      %3058 = vmatpush.msra.mxu0 0.0
      %3059 = vmatpush.msra.mxu0 0.0
      %3060 = vmatpush.msra.mxu0 0.0
      %3061 = vmatpush.msra.mxu0 0.0
      %3062 = vmatpush.msra.mxu0 0.0
      %3063 = vmatpush.msra.mxu0 0.0
      %3064 = vmatpush.msra.mxu0 0.0
      %3065 = vmatpush.msra.mxu0 0.0
      %3066 = vmatpush.msra.mxu0 0.0
      %3067 = vmatpush.msra.mxu0 0.0
      %3068 = vmatpush.msra.mxu0 0.0
      %3069 = vmatpush.msra.mxu0 %v3052
      %3070 = vmatmul.f32.gmra.mxu0 %v2956
      %v3071 = vpop.f32.mrf.mxu0
      %v3072 = vadd.f32 0.0, %v3071
      %3073 = vmatmul.f32.gmra.mxu0 %v2959
      %v3074 = vpop.f32.mrf.mxu0
      %v3075 = vadd.f32 0.0, %v3074
      %3076 = vmatmul.f32.gmra.mxu0 %v2962
      %v3077 = vpop.f32.mrf.mxu0
      %v3078 = vadd.f32 0.0, %v3077
      %3079 = vmatmul.f32.gmra.mxu0 %v2965
      %v3080 = vpop.f32.mrf.mxu0
      %v3081 = vadd.f32 0.0, %v3080
      %3082 = vmatmul.f32.gmra.mxu0 %v2968
      %v3083 = vpop.f32.mrf.mxu0
      %v3084 = vadd.f32 0.0, %v3083
      %3085 = vmatmul.f32.gmra.mxu0 %v2971
      %v3086 = vpop.f32.mrf.mxu0
      %v3087 = vadd.f32 0.0, %v3086
      %3088 = vmatmul.f32.gmra.mxu0 %v2974
      %v3089 = vpop.f32.mrf.mxu0
      %v3090 = vadd.f32 0.0, %v3089
      %3091 = vmatmul.f32.gmra.mxu0 %v2977
      %v3092 = vpop.f32.mrf.mxu0
      %v3093 = vadd.f32 0.0, %v3092
      %3094 = vmatmul.f32.gmra.mxu0 %v2980
      %v3095 = vpop.f32.mrf.mxu0
      %v3096 = vadd.f32 0.0, %v3095
      %3097 = vmatmul.f32.gmra.mxu0 %v2983
      %v3098 = vpop.f32.mrf.mxu0
      %v3099 = vadd.f32 0.0, %v3098
      %3100 = vmatmul.f32.gmra.mxu0 %v2986
      %v3101 = vpop.f32.mrf.mxu0
      %v3102 = vadd.f32 0.0, %v3101
      %3103 = vmatmul.f32.gmra.mxu0 %v2989
      %v3104 = vpop.f32.mrf.mxu0
      %v3105 = vadd.f32 0.0, %v3104
      %3106 = vmatmul.f32.gmra.mxu0 %v2992
      %v3107 = vpop.f32.mrf.mxu0
      %v3108 = vadd.f32 0.0, %v3107
      %3109 = vmatmul.f32.gmra.mxu0 %v2995
      %v3110 = vpop.f32.mrf.mxu0
      %v3111 = vadd.f32 0.0, %v3110
      %3112 = vmatmul.f32.gmra.mxu0 %v2998
      %v3113 = vpop.f32.mrf.mxu0
      %v3114 = vadd.f32 0.0, %v3113
      %3115 = vmatmul.f32.gmra.mxu0 %v3001
      %v3116 = vpop.f32.mrf.mxu0
      %v3117 = vadd.f32 0.0, %v3116
      %3118 = vmatmul.f32.gmra.mxu0 %v3004
      %v3119 = vpop.f32.mrf.mxu0
      %v3120 = vadd.f32 0.0, %v3119
      %3121 = vmatmul.f32.gmra.mxu0 %v3007
      %v3122 = vpop.f32.mrf.mxu0
      %v3123 = vadd.f32 0.0, %v3122
      %3124 = vmatmul.f32.gmra.mxu0 %v3010
      %v3125 = vpop.f32.mrf.mxu0
      %v3126 = vadd.f32 0.0, %v3125
      %3127 = vmatmul.f32.gmra.mxu0 %v3013
      %v3128 = vpop.f32.mrf.mxu0
      %v3129 = vadd.f32 0.0, %v3128
      %3130 = vmatmul.f32.gmra.mxu0 %v3016
      %v3131 = vpop.f32.mrf.mxu0
      %v3132 = vadd.f32 0.0, %v3131
      %3133 = vmatmul.f32.gmra.mxu0 %v3019
      %v3134 = vpop.f32.mrf.mxu0
      %v3135 = vadd.f32 0.0, %v3134
      %3136 = vmatmul.f32.gmra.mxu0 %v3022
      %v3137 = vpop.f32.mrf.mxu0
      %v3138 = vadd.f32 0.0, %v3137
      %3139 = vmatmul.f32.gmra.mxu0 %v3025
      %v3140 = vpop.f32.mrf.mxu0
      %v3141 = vadd.f32 0.0, %v3140
      %3142 = vmatmul.f32.gmra.mxu0 %v3028
      %v3143 = vpop.f32.mrf.mxu0
      %v3144 = vadd.f32 0.0, %v3143
      %3145 = vmatmul.f32.gmra.mxu0 %v3031
      %v3146 = vpop.f32.mrf.mxu0
      %v3147 = vadd.f32 0.0, %v3146
      %3148 = vmatmul.f32.gmra.mxu0 %v3034
      %v3149 = vpop.f32.mrf.mxu0
      %v3150 = vadd.f32 0.0, %v3149
      %3151 = vmatmul.f32.gmra.mxu0 %v3037
      %v3152 = vpop.f32.mrf.mxu0
      %v3153 = vadd.f32 0.0, %v3152
      %3154 = vmatmul.f32.gmra.mxu0 %v3040
      %v3155 = vpop.f32.mrf.mxu0
      %v3156 = vadd.f32 0.0, %v3155
      %3157 = vmatmul.f32.gmra.mxu0 %v3043
      %v3158 = vpop.f32.mrf.mxu0
      %v3159 = vadd.f32 0.0, %v3158
      %3160 = vmatmul.f32.gmra.mxu0 %v3046
      %v3161 = vpop.f32.mrf.mxu0
      %v3162 = vadd.f32 0.0, %v3161
      %3163 = vmatmul.f32.gmra.mxu0 %v3049
      %v3164 = vpop.f32.mrf.mxu0
      %v3165 = vadd.f32 0.0, %v3164
      %3166 = vdwg.mxu0
      %v3167 = vadd.f32 %v2890, %v3072
      %v3168 = vadd.f32 %v2891, %v3075
      %v3169 = vadd.f32 %v2892, %v3078
      %v3170 = vadd.f32 %v2893, %v3081
      %v3171 = vadd.f32 %v2894, %v3084
      %v3172 = vadd.f32 %v2895, %v3087
      %v3173 = vadd.f32 %v2896, %v3090
      %v3174 = vadd.f32 %v2897, %v3093
      %v3175 = vadd.f32 %v2898, %v3096
      %v3176 = vadd.f32 %v2899, %v3099
      %v3177 = vadd.f32 %v2900, %v3102
      %v3178 = vadd.f32 %v2901, %v3105
      %v3179 = vadd.f32 %v2902, %v3108
      %v3180 = vadd.f32 %v2903, %v3111
      %v3181 = vadd.f32 %v2904, %v3114
      %v3182 = vadd.f32 %v2905, %v3117
      %v3183 = vadd.f32 %v2906, %v3120
      %v3184 = vadd.f32 %v2907, %v3123
      %v3185 = vadd.f32 %v2908, %v3126
      %v3186 = vadd.f32 %v2909, %v3129
      %v3187 = vadd.f32 %v2910, %v3132
      %v3188 = vadd.f32 %v2911, %v3135
      %v3189 = vadd.f32 %v2912, %v3138
      %v3190 = vadd.f32 %v2913, %v3141
      %v3191 = vadd.f32 %v2914, %v3144
      %v3192 = vadd.f32 %v2915, %v3147
      %v3193 = vadd.f32 %v2916, %v3150
      %v3194 = vadd.f32 %v2917, %v3153
      %v3195 = vadd.f32 %v2918, %v3156
      %v3196 = vadd.f32 %v2919, %v3159
      %v3197 = vadd.f32 %v2920, %v3162
      %v3198 = vadd.f32 %v2921, %v3165
      %s3199 = scalar_lea.vmem [#allocation2], 64
      %v3200 = vld [vmem:[%s3199 + $0x7] sm:$0xff]
      %v3201 = vld [vmem:[%s3199 + $0xf] sm:$0xff]
      %v3202 = vld [vmem:[%s3199 + $0x27] sm:$0xff]
      %v3203 = vld [vmem:[%s3199 + $0x2f] sm:$0xff]
      %v3204 = vld [vmem:[%s3199 + $0x47] sm:$0xff]
      %v3205 = vld [vmem:[%s3199 + $0x4f] sm:$0xff]
      %v3206 = vld [vmem:[%s3199 + $0x67] sm:$0xff]
      %v3207 = vld [vmem:[%s3199 + $0x6f] sm:$0xff]
      %v3208 = vld [vmem:[%s3199 + $0x87] sm:$0xff]
      %v3209 = vld [vmem:[%s3199 + $0x8f] sm:$0xff]
      %v3210 = vld [vmem:[%s3199 + $0xa7] sm:$0xff]
      %v3211 = vld [vmem:[%s3199 + $0xaf] sm:$0xff]
      %v3212 = vld [vmem:[%s3199 + $0xc7] sm:$0xff]
      %v3213 = vld [vmem:[%s3199 + $0xcf] sm:$0xff]
      %v3214 = vld [vmem:[%s3199 + $0xe7] sm:$0xff]
      %v3215 = vld [vmem:[%s3199 + $0xef] sm:$0xff]
      %v3216 = vld [vmem:[%s3199 + $0x107] sm:$0xff]
      %v3217 = vld [vmem:[%s3199 + $0x10f] sm:$0xff]
      %v3218 = vld [vmem:[%s3199 + $0x127] sm:$0xff]
      %v3219 = vld [vmem:[%s3199 + $0x12f] sm:$0xff]
      %v3220 = vld [vmem:[%s3199 + $0x147] sm:$0xff]
      %v3221 = vld [vmem:[%s3199 + $0x14f] sm:$0xff]
      %v3222 = vld [vmem:[%s3199 + $0x167] sm:$0xff]
      %v3223 = vld [vmem:[%s3199 + $0x16f] sm:$0xff]
      %v3224 = vld [vmem:[%s3199 + $0x187] sm:$0xff]
      %v3225 = vld [vmem:[%s3199 + $0x18f] sm:$0xff]
      %v3226 = vld [vmem:[%s3199 + $0x1a7] sm:$0xff]
      %v3227 = vld [vmem:[%s3199 + $0x1af] sm:$0xff]
      %v3228 = vld [vmem:[%s3199 + $0x1c7] sm:$0xff]
      %v3229 = vld [vmem:[%s3199 + $0x1cf] sm:$0xff]
      %v3230 = vld [vmem:[%s3199 + $0x1e7] sm:$0xff]
      %v3231 = vld [vmem:[%s3199 + $0x1ef] sm:$0xff]
      %v3232 = vld [vmem:[%s5 + $0x18] sm:$0xf]
      %v3234 = vsel %vm517, %v3200, 0
      %v3237 = vsel %vm517, %v3201, 0
      %v3240 = vsel %vm517, %v3202, 0
      %v3243 = vsel %vm517, %v3203, 0
      %v3246 = vsel %vm517, %v3204, 0
      %v3249 = vsel %vm517, %v3205, 0
      %v3252 = vsel %vm517, %v3206, 0
      %v3255 = vsel %vm517, %v3207, 0
      %v3258 = vsel %vm517, %v3208, 0
      %v3261 = vsel %vm517, %v3209, 0
      %v3264 = vsel %vm517, %v3210, 0
      %v3267 = vsel %vm517, %v3211, 0
      %v3270 = vsel %vm517, %v3212, 0
      %v3273 = vsel %vm517, %v3213, 0
      %v3276 = vsel %vm517, %v3214, 0
      %v3279 = vsel %vm517, %v3215, 0
      %v3282 = vsel %vm517, %v3216, 0
      %v3285 = vsel %vm517, %v3217, 0
      %v3288 = vsel %vm517, %v3218, 0
      %v3291 = vsel %vm517, %v3219, 0
      %v3294 = vsel %vm517, %v3220, 0
      %v3297 = vsel %vm517, %v3221, 0
      %v3300 = vsel %vm517, %v3222, 0
      %v3303 = vsel %vm517, %v3223, 0
      %v3306 = vsel %vm517, %v3224, 0
      %v3309 = vsel %vm517, %v3225, 0
      %v3312 = vsel %vm517, %v3226, 0
      %v3315 = vsel %vm517, %v3227, 0
      %v3318 = vsel %vm517, %v3228, 0
      %v3321 = vsel %vm517, %v3229, 0
      %v3324 = vsel %vm517, %v3230, 0
      %v3327 = vsel %vm517, %v3231, 0
      %v3330 = vsel %vm691, %v3232, 0
      %3332 = vmatpush.msra.mxu0 0.0
      %3333 = vmatpush.msra.mxu0 0.0
      %3334 = vmatpush.msra.mxu0 0.0
      %3335 = vmatpush.msra.mxu0 0.0
      %3336 = vmatpush.msra.mxu0 0.0
      %3337 = vmatpush.msra.mxu0 0.0
      %3338 = vmatpush.msra.mxu0 0.0
      %3339 = vmatpush.msra.mxu0 0.0
      %3340 = vmatpush.msra.mxu0 0.0
      %3341 = vmatpush.msra.mxu0 0.0
      %3342 = vmatpush.msra.mxu0 0.0
      %3343 = vmatpush.msra.mxu0 0.0
      %3344 = vmatpush.msra.mxu0 0.0
      %3345 = vmatpush.msra.mxu0 0.0
      %3346 = vmatpush.msra.mxu0 0.0
      %3347 = vmatpush.msra.mxu0 %v3330
      %3348 = vmatmul.f32.gmra.mxu0 %v3234
      %v3349 = vpop.f32.mrf.mxu0
      %v3350 = vadd.f32 0.0, %v3349
      %3351 = vmatmul.f32.gmra.mxu0 %v3237
      %v3352 = vpop.f32.mrf.mxu0
      %v3353 = vadd.f32 0.0, %v3352
      %3354 = vmatmul.f32.gmra.mxu0 %v3240
      %v3355 = vpop.f32.mrf.mxu0
      %v3356 = vadd.f32 0.0, %v3355
      %3357 = vmatmul.f32.gmra.mxu0 %v3243
      %v3358 = vpop.f32.mrf.mxu0
      %v3359 = vadd.f32 0.0, %v3358
      %3360 = vmatmul.f32.gmra.mxu0 %v3246
      %v3361 = vpop.f32.mrf.mxu0
      %v3362 = vadd.f32 0.0, %v3361
      %3363 = vmatmul.f32.gmra.mxu0 %v3249
      %v3364 = vpop.f32.mrf.mxu0
      %v3365 = vadd.f32 0.0, %v3364
      %3366 = vmatmul.f32.gmra.mxu0 %v3252
      %v3367 = vpop.f32.mrf.mxu0
      %v3368 = vadd.f32 0.0, %v3367
      %3369 = vmatmul.f32.gmra.mxu0 %v3255
      %v3370 = vpop.f32.mrf.mxu0
      %v3371 = vadd.f32 0.0, %v3370
      %3372 = vmatmul.f32.gmra.mxu0 %v3258
      %v3373 = vpop.f32.mrf.mxu0
      %v3374 = vadd.f32 0.0, %v3373
      %3375 = vmatmul.f32.gmra.mxu0 %v3261
      %v3376 = vpop.f32.mrf.mxu0
      %v3377 = vadd.f32 0.0, %v3376
      %3378 = vmatmul.f32.gmra.mxu0 %v3264
      %v3379 = vpop.f32.mrf.mxu0
      %v3380 = vadd.f32 0.0, %v3379
      %3381 = vmatmul.f32.gmra.mxu0 %v3267
      %v3382 = vpop.f32.mrf.mxu0
      %v3383 = vadd.f32 0.0, %v3382
      %3384 = vmatmul.f32.gmra.mxu0 %v3270
      %v3385 = vpop.f32.mrf.mxu0
      %v3386 = vadd.f32 0.0, %v3385
      %3387 = vmatmul.f32.gmra.mxu0 %v3273
      %v3388 = vpop.f32.mrf.mxu0
      %v3389 = vadd.f32 0.0, %v3388
      %3390 = vmatmul.f32.gmra.mxu0 %v3276
      %v3391 = vpop.f32.mrf.mxu0
      %v3392 = vadd.f32 0.0, %v3391
      %3393 = vmatmul.f32.gmra.mxu0 %v3279
      %v3394 = vpop.f32.mrf.mxu0
      %v3395 = vadd.f32 0.0, %v3394
      %3396 = vmatmul.f32.gmra.mxu0 %v3282
      %v3397 = vpop.f32.mrf.mxu0
      %v3398 = vadd.f32 0.0, %v3397
      %3399 = vmatmul.f32.gmra.mxu0 %v3285
      %v3400 = vpop.f32.mrf.mxu0
      %v3401 = vadd.f32 0.0, %v3400
      %3402 = vmatmul.f32.gmra.mxu0 %v3288
      %v3403 = vpop.f32.mrf.mxu0
      %v3404 = vadd.f32 0.0, %v3403
      %3405 = vmatmul.f32.gmra.mxu0 %v3291
      %v3406 = vpop.f32.mrf.mxu0
      %v3407 = vadd.f32 0.0, %v3406
      %3408 = vmatmul.f32.gmra.mxu0 %v3294
      %v3409 = vpop.f32.mrf.mxu0
      %v3410 = vadd.f32 0.0, %v3409
      %3411 = vmatmul.f32.gmra.mxu0 %v3297
      %v3412 = vpop.f32.mrf.mxu0
      %v3413 = vadd.f32 0.0, %v3412
      %3414 = vmatmul.f32.gmra.mxu0 %v3300
      %v3415 = vpop.f32.mrf.mxu0
      %v3416 = vadd.f32 0.0, %v3415
      %3417 = vmatmul.f32.gmra.mxu0 %v3303
      %v3418 = vpop.f32.mrf.mxu0
      %v3419 = vadd.f32 0.0, %v3418
      %3420 = vmatmul.f32.gmra.mxu0 %v3306
      %v3421 = vpop.f32.mrf.mxu0
      %v3422 = vadd.f32 0.0, %v3421
      %3423 = vmatmul.f32.gmra.mxu0 %v3309
      %v3424 = vpop.f32.mrf.mxu0
      %v3425 = vadd.f32 0.0, %v3424
      %3426 = vmatmul.f32.gmra.mxu0 %v3312
      %v3427 = vpop.f32.mrf.mxu0
      %v3428 = vadd.f32 0.0, %v3427
      %3429 = vmatmul.f32.gmra.mxu0 %v3315
      %v3430 = vpop.f32.mrf.mxu0
      %v3431 = vadd.f32 0.0, %v3430
      %3432 = vmatmul.f32.gmra.mxu0 %v3318
      %v3433 = vpop.f32.mrf.mxu0
      %v3434 = vadd.f32 0.0, %v3433
      %3435 = vmatmul.f32.gmra.mxu0 %v3321
      %v3436 = vpop.f32.mrf.mxu0
      %v3437 = vadd.f32 0.0, %v3436
      %3438 = vmatmul.f32.gmra.mxu0 %v3324
      %v3439 = vpop.f32.mrf.mxu0
      %v3440 = vadd.f32 0.0, %v3439
      %3441 = vmatmul.f32.gmra.mxu0 %v3327
      %v3442 = vpop.f32.mrf.mxu0
      %v3443 = vadd.f32 0.0, %v3442
      %3444 = vdwg.mxu0
      %v3445 = vadd.f32 %v3167, %v3350
      %v3446 = vadd.f32 %v3168, %v3353
      %v3447 = vadd.f32 %v3169, %v3356
      %v3448 = vadd.f32 %v3170, %v3359
      %v3449 = vadd.f32 %v3171, %v3362
      %v3450 = vadd.f32 %v3172, %v3365
      %v3451 = vadd.f32 %v3173, %v3368
      %v3452 = vadd.f32 %v3174, %v3371
      %v3453 = vadd.f32 %v3175, %v3374
      %v3454 = vadd.f32 %v3176, %v3377
      %v3455 = vadd.f32 %v3177, %v3380
      %v3456 = vadd.f32 %v3178, %v3383
      %v3457 = vadd.f32 %v3179, %v3386
      %v3458 = vadd.f32 %v3180, %v3389
      %v3459 = vadd.f32 %v3181, %v3392
      %v3460 = vadd.f32 %v3182, %v3395
      %v3461 = vadd.f32 %v3183, %v3398
      %v3462 = vadd.f32 %v3184, %v3401
      %v3463 = vadd.f32 %v3185, %v3404
      %v3464 = vadd.f32 %v3186, %v3407
      %v3465 = vadd.f32 %v3187, %v3410
      %v3466 = vadd.f32 %v3188, %v3413
      %v3467 = vadd.f32 %v3189, %v3416
      %v3468 = vadd.f32 %v3190, %v3419
      %v3469 = vadd.f32 %v3191, %v3422
      %v3470 = vadd.f32 %v3192, %v3425
      %v3471 = vadd.f32 %v3193, %v3428
      %v3472 = vadd.f32 %v3194, %v3431
      %v3473 = vadd.f32 %v3195, %v3434
      %v3474 = vadd.f32 %v3196, %v3437
      %v3475 = vadd.f32 %v3197, %v3440
      %v3476 = vadd.f32 %v3198, %v3443
      %v3477 = vld [vmem:[%s3199 + $0x8] sm:$0xff]
      %v3478 = vld [vmem:[%s3199 + $0x10] sm:$0xff]
      %v3479 = vld [vmem:[%s3199 + $0x28] sm:$0xff]
      %v3480 = vld [vmem:[%s3199 + $0x30] sm:$0xff]
      %v3481 = vld [vmem:[%s3199 + $0x48] sm:$0xff]
      %v3482 = vld [vmem:[%s3199 + $0x50] sm:$0xff]
      %v3483 = vld [vmem:[%s3199 + $0x68] sm:$0xff]
      %v3484 = vld [vmem:[%s3199 + $0x70] sm:$0xff]
      %v3485 = vld [vmem:[%s3199 + $0x88] sm:$0xff]
      %v3486 = vld [vmem:[%s3199 + $0x90] sm:$0xff]
      %v3487 = vld [vmem:[%s3199 + $0xa8] sm:$0xff]
      %v3488 = vld [vmem:[%s3199 + $0xb0] sm:$0xff]
      %v3489 = vld [vmem:[%s3199 + $0xc8] sm:$0xff]
      %v3490 = vld [vmem:[%s3199 + $0xd0] sm:$0xff]
      %v3491 = vld [vmem:[%s3199 + $0xe8] sm:$0xff]
      %v3492 = vld [vmem:[%s3199 + $0xf0] sm:$0xff]
      %v3493 = vld [vmem:[%s3199 + $0x108] sm:$0xff]
      %v3494 = vld [vmem:[%s3199 + $0x110] sm:$0xff]
      %v3495 = vld [vmem:[%s3199 + $0x128] sm:$0xff]
      %v3496 = vld [vmem:[%s3199 + $0x130] sm:$0xff]
      %v3497 = vld [vmem:[%s3199 + $0x148] sm:$0xff]
      %v3498 = vld [vmem:[%s3199 + $0x150] sm:$0xff]
      %v3499 = vld [vmem:[%s3199 + $0x168] sm:$0xff]
      %v3500 = vld [vmem:[%s3199 + $0x170] sm:$0xff]
      %v3501 = vld [vmem:[%s3199 + $0x188] sm:$0xff]
      %v3502 = vld [vmem:[%s3199 + $0x190] sm:$0xff]
      %v3503 = vld [vmem:[%s3199 + $0x1a8] sm:$0xff]
      %v3504 = vld [vmem:[%s3199 + $0x1b0] sm:$0xff]
      %v3505 = vld [vmem:[%s3199 + $0x1c8] sm:$0xff]
      %v3506 = vld [vmem:[%s3199 + $0x1d0] sm:$0xff]
      %v3507 = vld [vmem:[%s3199 + $0x1e8] sm:$0xff]
      %v3508 = vld [vmem:[%s3199 + $0x1f0] sm:$0xff]
      %v3509 = vld [vmem:[%s5 + $0x1c] sm:$0xf]
      %v3511 = vsel %vm517, %v3477, 0
      %v3514 = vsel %vm517, %v3478, 0
      %v3517 = vsel %vm517, %v3479, 0
      %v3520 = vsel %vm517, %v3480, 0
      %v3523 = vsel %vm517, %v3481, 0
      %v3526 = vsel %vm517, %v3482, 0
      %v3529 = vsel %vm517, %v3483, 0
      %v3532 = vsel %vm517, %v3484, 0
      %v3535 = vsel %vm517, %v3485, 0
      %v3538 = vsel %vm517, %v3486, 0
      %v3541 = vsel %vm517, %v3487, 0
      %v3544 = vsel %vm517, %v3488, 0
      %v3547 = vsel %vm517, %v3489, 0
      %v3550 = vsel %vm517, %v3490, 0
      %v3553 = vsel %vm517, %v3491, 0
      %v3556 = vsel %vm517, %v3492, 0
      %v3559 = vsel %vm517, %v3493, 0
      %v3562 = vsel %vm517, %v3494, 0
      %v3565 = vsel %vm517, %v3495, 0
      %v3568 = vsel %vm517, %v3496, 0
      %v3571 = vsel %vm517, %v3497, 0
      %v3574 = vsel %vm517, %v3498, 0
      %v3577 = vsel %vm517, %v3499, 0
      %v3580 = vsel %vm517, %v3500, 0
      %v3583 = vsel %vm517, %v3501, 0
      %v3586 = vsel %vm517, %v3502, 0
      %v3589 = vsel %vm517, %v3503, 0
      %v3592 = vsel %vm517, %v3504, 0
      %v3595 = vsel %vm517, %v3505, 0
      %v3598 = vsel %vm517, %v3506, 0
      %v3601 = vsel %vm517, %v3507, 0
      %v3604 = vsel %vm517, %v3508, 0
      %v3607 = vsel %vm691, %v3509, 0
      %3609 = vmatpush.msra.mxu0 0.0
      %3610 = vmatpush.msra.mxu0 0.0
      %3611 = vmatpush.msra.mxu0 0.0
      %3612 = vmatpush.msra.mxu0 0.0
      %3613 = vmatpush.msra.mxu0 0.0
      %3614 = vmatpush.msra.mxu0 0.0
      %3615 = vmatpush.msra.mxu0 0.0
      %3616 = vmatpush.msra.mxu0 0.0
      %3617 = vmatpush.msra.mxu0 0.0
      %3618 = vmatpush.msra.mxu0 0.0
      %3619 = vmatpush.msra.mxu0 0.0
      %3620 = vmatpush.msra.mxu0 0.0
      %3621 = vmatpush.msra.mxu0 0.0
      %3622 = vmatpush.msra.mxu0 0.0
      %3623 = vmatpush.msra.mxu0 0.0
      %3624 = vmatpush.msra.mxu0 %v3607
      %3625 = vmatmul.f32.gmra.mxu0 %v3511
      %v3626 = vpop.f32.mrf.mxu0
      %v3627 = vadd.f32 0.0, %v3626
      %3628 = vmatmul.f32.gmra.mxu0 %v3514
      %v3629 = vpop.f32.mrf.mxu0
      %v3630 = vadd.f32 0.0, %v3629
      %3631 = vmatmul.f32.gmra.mxu0 %v3517
      %v3632 = vpop.f32.mrf.mxu0
      %v3633 = vadd.f32 0.0, %v3632
      %3634 = vmatmul.f32.gmra.mxu0 %v3520
      %v3635 = vpop.f32.mrf.mxu0
      %v3636 = vadd.f32 0.0, %v3635
      %3637 = vmatmul.f32.gmra.mxu0 %v3523
      %v3638 = vpop.f32.mrf.mxu0
      %v3639 = vadd.f32 0.0, %v3638
      %3640 = vmatmul.f32.gmra.mxu0 %v3526
      %v3641 = vpop.f32.mrf.mxu0
      %v3642 = vadd.f32 0.0, %v3641
      %3643 = vmatmul.f32.gmra.mxu0 %v3529
      %v3644 = vpop.f32.mrf.mxu0
      %v3645 = vadd.f32 0.0, %v3644
      %3646 = vmatmul.f32.gmra.mxu0 %v3532
      %v3647 = vpop.f32.mrf.mxu0
      %v3648 = vadd.f32 0.0, %v3647
      %3649 = vmatmul.f32.gmra.mxu0 %v3535
      %v3650 = vpop.f32.mrf.mxu0
      %v3651 = vadd.f32 0.0, %v3650
      %3652 = vmatmul.f32.gmra.mxu0 %v3538
      %v3653 = vpop.f32.mrf.mxu0
      %v3654 = vadd.f32 0.0, %v3653
      %3655 = vmatmul.f32.gmra.mxu0 %v3541
      %v3656 = vpop.f32.mrf.mxu0
      %v3657 = vadd.f32 0.0, %v3656
      %3658 = vmatmul.f32.gmra.mxu0 %v3544
      %v3659 = vpop.f32.mrf.mxu0
      %v3660 = vadd.f32 0.0, %v3659
      %3661 = vmatmul.f32.gmra.mxu0 %v3547
      %v3662 = vpop.f32.mrf.mxu0
      %v3663 = vadd.f32 0.0, %v3662
      %3664 = vmatmul.f32.gmra.mxu0 %v3550
      %v3665 = vpop.f32.mrf.mxu0
      %v3666 = vadd.f32 0.0, %v3665
      %3667 = vmatmul.f32.gmra.mxu0 %v3553
      %v3668 = vpop.f32.mrf.mxu0
      %v3669 = vadd.f32 0.0, %v3668
      %3670 = vmatmul.f32.gmra.mxu0 %v3556
      %v3671 = vpop.f32.mrf.mxu0
      %v3672 = vadd.f32 0.0, %v3671
      %3673 = vmatmul.f32.gmra.mxu0 %v3559
      %v3674 = vpop.f32.mrf.mxu0
      %v3675 = vadd.f32 0.0, %v3674
      %3676 = vmatmul.f32.gmra.mxu0 %v3562
      %v3677 = vpop.f32.mrf.mxu0
      %v3678 = vadd.f32 0.0, %v3677
      %3679 = vmatmul.f32.gmra.mxu0 %v3565
      %v3680 = vpop.f32.mrf.mxu0
      %v3681 = vadd.f32 0.0, %v3680
      %3682 = vmatmul.f32.gmra.mxu0 %v3568
      %v3683 = vpop.f32.mrf.mxu0
      %v3684 = vadd.f32 0.0, %v3683
      %3685 = vmatmul.f32.gmra.mxu0 %v3571
      %v3686 = vpop.f32.mrf.mxu0
      %v3687 = vadd.f32 0.0, %v3686
      %3688 = vmatmul.f32.gmra.mxu0 %v3574
      %v3689 = vpop.f32.mrf.mxu0
      %v3690 = vadd.f32 0.0, %v3689
      %3691 = vmatmul.f32.gmra.mxu0 %v3577
      %v3692 = vpop.f32.mrf.mxu0
      %v3693 = vadd.f32 0.0, %v3692
      %3694 = vmatmul.f32.gmra.mxu0 %v3580
      %v3695 = vpop.f32.mrf.mxu0
      %v3696 = vadd.f32 0.0, %v3695
      %3697 = vmatmul.f32.gmra.mxu0 %v3583
      %v3698 = vpop.f32.mrf.mxu0
      %v3699 = vadd.f32 0.0, %v3698
      %3700 = vmatmul.f32.gmra.mxu0 %v3586
      %v3701 = vpop.f32.mrf.mxu0
      %v3702 = vadd.f32 0.0, %v3701
      %3703 = vmatmul.f32.gmra.mxu0 %v3589
      %v3704 = vpop.f32.mrf.mxu0
      %v3705 = vadd.f32 0.0, %v3704
      %3706 = vmatmul.f32.gmra.mxu0 %v3592
      %v3707 = vpop.f32.mrf.mxu0
      %v3708 = vadd.f32 0.0, %v3707
      %3709 = vmatmul.f32.gmra.mxu0 %v3595
      %v3710 = vpop.f32.mrf.mxu0
      %v3711 = vadd.f32 0.0, %v3710
      %3712 = vmatmul.f32.gmra.mxu0 %v3598
      %v3713 = vpop.f32.mrf.mxu0
      %v3714 = vadd.f32 0.0, %v3713
      %3715 = vmatmul.f32.gmra.mxu0 %v3601
      %v3716 = vpop.f32.mrf.mxu0
      %v3717 = vadd.f32 0.0, %v3716
      %3718 = vmatmul.f32.gmra.mxu0 %v3604
      %v3719 = vpop.f32.mrf.mxu0
      %v3720 = vadd.f32 0.0, %v3719
      %3721 = vdwg.mxu0
      %v3722 = vadd.f32 %v3445, %v3627
      %v3723 = vadd.f32 %v3446, %v3630
      %v3724 = vadd.f32 %v3447, %v3633
      %v3725 = vadd.f32 %v3448, %v3636
      %v3726 = vadd.f32 %v3449, %v3639
      %v3727 = vadd.f32 %v3450, %v3642
      %v3728 = vadd.f32 %v3451, %v3645
      %v3729 = vadd.f32 %v3452, %v3648
      %v3730 = vadd.f32 %v3453, %v3651
      %v3731 = vadd.f32 %v3454, %v3654
      %v3732 = vadd.f32 %v3455, %v3657
      %v3733 = vadd.f32 %v3456, %v3660
      %v3734 = vadd.f32 %v3457, %v3663
      %v3735 = vadd.f32 %v3458, %v3666
      %v3736 = vadd.f32 %v3459, %v3669
      %v3737 = vadd.f32 %v3460, %v3672
      %v3738 = vadd.f32 %v3461, %v3675
      %v3739 = vadd.f32 %v3462, %v3678
      %v3740 = vadd.f32 %v3463, %v3681
      %v3741 = vadd.f32 %v3464, %v3684
      %v3742 = vadd.f32 %v3465, %v3687
      %v3743 = vadd.f32 %v3466, %v3690
      %v3744 = vadd.f32 %v3467, %v3693
      %v3745 = vadd.f32 %v3468, %v3696
      %v3746 = vadd.f32 %v3469, %v3699
      %v3747 = vadd.f32 %v3470, %v3702
      %v3748 = vadd.f32 %v3471, %v3705
      %v3749 = vadd.f32 %v3472, %v3708
      %v3750 = vadd.f32 %v3473, %v3711
      %v3751 = vadd.f32 %v3474, %v3714
      %v3752 = vadd.f32 %v3475, %v3717
      %v3753 = vadd.f32 %v3476, %v3720
      %v3754 = vld [vmem:[%s3199 + $0x9] sm:$0xff]
      %v3755 = vld [vmem:[%s3199 + $0x11] sm:$0xff]
      %v3756 = vld [vmem:[%s3199 + $0x29] sm:$0xff]
      %v3757 = vld [vmem:[%s3199 + $0x31] sm:$0xff]
      %v3758 = vld [vmem:[%s3199 + $0x49] sm:$0xff]
      %v3759 = vld [vmem:[%s3199 + $0x51] sm:$0xff]
      %v3760 = vld [vmem:[%s3199 + $0x69] sm:$0xff]
      %v3761 = vld [vmem:[%s3199 + $0x71] sm:$0xff]
      %v3762 = vld [vmem:[%s3199 + $0x89] sm:$0xff]
      %v3763 = vld [vmem:[%s3199 + $0x91] sm:$0xff]
      %v3764 = vld [vmem:[%s3199 + $0xa9] sm:$0xff]
      %v3765 = vld [vmem:[%s3199 + $0xb1] sm:$0xff]
      %v3766 = vld [vmem:[%s3199 + $0xc9] sm:$0xff]
      %v3767 = vld [vmem:[%s3199 + $0xd1] sm:$0xff]
      %v3768 = vld [vmem:[%s3199 + $0xe9] sm:$0xff]
      %v3769 = vld [vmem:[%s3199 + $0xf1] sm:$0xff]
      %v3770 = vld [vmem:[%s3199 + $0x109] sm:$0xff]
      %v3771 = vld [vmem:[%s3199 + $0x111] sm:$0xff]
      %v3772 = vld [vmem:[%s3199 + $0x129] sm:$0xff]
      %v3773 = vld [vmem:[%s3199 + $0x131] sm:$0xff]
      %v3774 = vld [vmem:[%s3199 + $0x149] sm:$0xff]
      %v3775 = vld [vmem:[%s3199 + $0x151] sm:$0xff]
      %v3776 = vld [vmem:[%s3199 + $0x169] sm:$0xff]
      %v3777 = vld [vmem:[%s3199 + $0x171] sm:$0xff]
      %v3778 = vld [vmem:[%s3199 + $0x189] sm:$0xff]
      %v3779 = vld [vmem:[%s3199 + $0x191] sm:$0xff]
      %v3780 = vld [vmem:[%s3199 + $0x1a9] sm:$0xff]
      %v3781 = vld [vmem:[%s3199 + $0x1b1] sm:$0xff]
      %v3782 = vld [vmem:[%s3199 + $0x1c9] sm:$0xff]
      %v3783 = vld [vmem:[%s3199 + $0x1d1] sm:$0xff]
      %v3784 = vld [vmem:[%s3199 + $0x1e9] sm:$0xff]
      %v3785 = vld [vmem:[%s3199 + $0x1f1] sm:$0xff]
      %v3786 = vld [vmem:[%s5 + $0x20] sm:$0xf]
      %v3788 = vsel %vm517, %v3754, 0
      %v3791 = vsel %vm517, %v3755, 0
      %v3794 = vsel %vm517, %v3756, 0
      %v3797 = vsel %vm517, %v3757, 0
      %v3800 = vsel %vm517, %v3758, 0
      %v3803 = vsel %vm517, %v3759, 0
      %v3806 = vsel %vm517, %v3760, 0
      %v3809 = vsel %vm517, %v3761, 0
      %v3812 = vsel %vm517, %v3762, 0
      %v3815 = vsel %vm517, %v3763, 0
      %v3818 = vsel %vm517, %v3764, 0
      %v3821 = vsel %vm517, %v3765, 0
      %v3824 = vsel %vm517, %v3766, 0
      %v3827 = vsel %vm517, %v3767, 0
      %v3830 = vsel %vm517, %v3768, 0
      %v3833 = vsel %vm517, %v3769, 0
      %v3836 = vsel %vm517, %v3770, 0
      %v3839 = vsel %vm517, %v3771, 0
      %v3842 = vsel %vm517, %v3772, 0
      %v3845 = vsel %vm517, %v3773, 0
      %v3848 = vsel %vm517, %v3774, 0
      %v3851 = vsel %vm517, %v3775, 0
      %v3854 = vsel %vm517, %v3776, 0
      %v3857 = vsel %vm517, %v3777, 0
      %v3860 = vsel %vm517, %v3778, 0
      %v3863 = vsel %vm517, %v3779, 0
      %v3866 = vsel %vm517, %v3780, 0
      %v3869 = vsel %vm517, %v3781, 0
      %v3872 = vsel %vm517, %v3782, 0
      %v3875 = vsel %vm517, %v3783, 0
      %v3878 = vsel %vm517, %v3784, 0
      %v3881 = vsel %vm517, %v3785, 0
      %v3884 = vsel %vm691, %v3786, 0
      %3886 = vmatpush.msra.mxu0 0.0
      %3887 = vmatpush.msra.mxu0 0.0
      %3888 = vmatpush.msra.mxu0 0.0
      %3889 = vmatpush.msra.mxu0 0.0
      %3890 = vmatpush.msra.mxu0 0.0
      %3891 = vmatpush.msra.mxu0 0.0
      %3892 = vmatpush.msra.mxu0 0.0
      %3893 = vmatpush.msra.mxu0 0.0
      %3894 = vmatpush.msra.mxu0 0.0
      %3895 = vmatpush.msra.mxu0 0.0
      %3896 = vmatpush.msra.mxu0 0.0
      %3897 = vmatpush.msra.mxu0 0.0
      %3898 = vmatpush.msra.mxu0 0.0
      %3899 = vmatpush.msra.mxu0 0.0
      %3900 = vmatpush.msra.mxu0 0.0
      %3901 = vmatpush.msra.mxu0 %v3884
      %3902 = vmatmul.f32.gmra.mxu0 %v3788
      %v3903 = vpop.f32.mrf.mxu0
      %v3904 = vadd.f32 0.0, %v3903
      %3905 = vmatmul.f32.gmra.mxu0 %v3791
      %v3906 = vpop.f32.mrf.mxu0
      %v3907 = vadd.f32 0.0, %v3906
      %3908 = vmatmul.f32.gmra.mxu0 %v3794
      %v3909 = vpop.f32.mrf.mxu0
      %v3910 = vadd.f32 0.0, %v3909
      %3911 = vmatmul.f32.gmra.mxu0 %v3797
      %v3912 = vpop.f32.mrf.mxu0
      %v3913 = vadd.f32 0.0, %v3912
      %3914 = vmatmul.f32.gmra.mxu0 %v3800
      %v3915 = vpop.f32.mrf.mxu0
      %v3916 = vadd.f32 0.0, %v3915
      %3917 = vmatmul.f32.gmra.mxu0 %v3803
      %v3918 = vpop.f32.mrf.mxu0
      %v3919 = vadd.f32 0.0, %v3918
      %3920 = vmatmul.f32.gmra.mxu0 %v3806
      %v3921 = vpop.f32.mrf.mxu0
      %v3922 = vadd.f32 0.0, %v3921
      %3923 = vmatmul.f32.gmra.mxu0 %v3809
      %v3924 = vpop.f32.mrf.mxu0
      %v3925 = vadd.f32 0.0, %v3924
      %3926 = vmatmul.f32.gmra.mxu0 %v3812
      %v3927 = vpop.f32.mrf.mxu0
      %v3928 = vadd.f32 0.0, %v3927
      %3929 = vmatmul.f32.gmra.mxu0 %v3815
      %v3930 = vpop.f32.mrf.mxu0
      %v3931 = vadd.f32 0.0, %v3930
      %3932 = vmatmul.f32.gmra.mxu0 %v3818
      %v3933 = vpop.f32.mrf.mxu0
      %v3934 = vadd.f32 0.0, %v3933
      %3935 = vmatmul.f32.gmra.mxu0 %v3821
      %v3936 = vpop.f32.mrf.mxu0
      %v3937 = vadd.f32 0.0, %v3936
      %3938 = vmatmul.f32.gmra.mxu0 %v3824
      %v3939 = vpop.f32.mrf.mxu0
      %v3940 = vadd.f32 0.0, %v3939
      %3941 = vmatmul.f32.gmra.mxu0 %v3827
      %v3942 = vpop.f32.mrf.mxu0
      %v3943 = vadd.f32 0.0, %v3942
      %3944 = vmatmul.f32.gmra.mxu0 %v3830
      %v3945 = vpop.f32.mrf.mxu0
      %v3946 = vadd.f32 0.0, %v3945
      %3947 = vmatmul.f32.gmra.mxu0 %v3833
      %v3948 = vpop.f32.mrf.mxu0
      %v3949 = vadd.f32 0.0, %v3948
      %3950 = vmatmul.f32.gmra.mxu0 %v3836
      %v3951 = vpop.f32.mrf.mxu0
      %v3952 = vadd.f32 0.0, %v3951
      %3953 = vmatmul.f32.gmra.mxu0 %v3839
      %v3954 = vpop.f32.mrf.mxu0
      %v3955 = vadd.f32 0.0, %v3954
      %3956 = vmatmul.f32.gmra.mxu0 %v3842
      %v3957 = vpop.f32.mrf.mxu0
      %v3958 = vadd.f32 0.0, %v3957
      %3959 = vmatmul.f32.gmra.mxu0 %v3845
      %v3960 = vpop.f32.mrf.mxu0
      %v3961 = vadd.f32 0.0, %v3960
      %3962 = vmatmul.f32.gmra.mxu0 %v3848
      %v3963 = vpop.f32.mrf.mxu0
      %v3964 = vadd.f32 0.0, %v3963
      %3965 = vmatmul.f32.gmra.mxu0 %v3851
      %v3966 = vpop.f32.mrf.mxu0
      %v3967 = vadd.f32 0.0, %v3966
      %3968 = vmatmul.f32.gmra.mxu0 %v3854
      %v3969 = vpop.f32.mrf.mxu0
      %v3970 = vadd.f32 0.0, %v3969
      %3971 = vmatmul.f32.gmra.mxu0 %v3857
      %v3972 = vpop.f32.mrf.mxu0
      %v3973 = vadd.f32 0.0, %v3972
      %3974 = vmatmul.f32.gmra.mxu0 %v3860
      %v3975 = vpop.f32.mrf.mxu0
      %v3976 = vadd.f32 0.0, %v3975
      %3977 = vmatmul.f32.gmra.mxu0 %v3863
      %v3978 = vpop.f32.mrf.mxu0
      %v3979 = vadd.f32 0.0, %v3978
      %3980 = vmatmul.f32.gmra.mxu0 %v3866
      %v3981 = vpop.f32.mrf.mxu0
      %v3982 = vadd.f32 0.0, %v3981
      %3983 = vmatmul.f32.gmra.mxu0 %v3869
      %v3984 = vpop.f32.mrf.mxu0
      %v3985 = vadd.f32 0.0, %v3984
      %3986 = vmatmul.f32.gmra.mxu0 %v3872
      %v3987 = vpop.f32.mrf.mxu0
      %v3988 = vadd.f32 0.0, %v3987
      %3989 = vmatmul.f32.gmra.mxu0 %v3875
      %v3990 = vpop.f32.mrf.mxu0
      %v3991 = vadd.f32 0.0, %v3990
      %3992 = vmatmul.f32.gmra.mxu0 %v3878
      %v3993 = vpop.f32.mrf.mxu0
      %v3994 = vadd.f32 0.0, %v3993
      %3995 = vmatmul.f32.gmra.mxu0 %v3881
      %v3996 = vpop.f32.mrf.mxu0
      %v3997 = vadd.f32 0.0, %v3996
      %3998 = vdwg.mxu0
      %v3999 = vadd.f32 %v3722, %v3904
      %v4000 = vadd.f32 %v3723, %v3907
      %v4001 = vadd.f32 %v3724, %v3910
      %v4002 = vadd.f32 %v3725, %v3913
      %v4003 = vadd.f32 %v3726, %v3916
      %v4004 = vadd.f32 %v3727, %v3919
      %v4005 = vadd.f32 %v3728, %v3922
      %v4006 = vadd.f32 %v3729, %v3925
      %v4007 = vadd.f32 %v3730, %v3928
      %v4008 = vadd.f32 %v3731, %v3931
      %v4009 = vadd.f32 %v3732, %v3934
      %v4010 = vadd.f32 %v3733, %v3937
      %v4011 = vadd.f32 %v3734, %v3940
      %v4012 = vadd.f32 %v3735, %v3943
      %v4013 = vadd.f32 %v3736, %v3946
      %v4014 = vadd.f32 %v3737, %v3949
      %v4015 = vadd.f32 %v3738, %v3952
      %v4016 = vadd.f32 %v3739, %v3955
      %v4017 = vadd.f32 %v3740, %v3958
      %v4018 = vadd.f32 %v3741, %v3961
      %v4019 = vadd.f32 %v3742, %v3964
      %v4020 = vadd.f32 %v3743, %v3967
      %v4021 = vadd.f32 %v3744, %v3970
      %v4022 = vadd.f32 %v3745, %v3973
      %v4023 = vadd.f32 %v3746, %v3976
      %v4024 = vadd.f32 %v3747, %v3979
      %v4025 = vadd.f32 %v3748, %v3982
      %v4026 = vadd.f32 %v3749, %v3985
      %v4027 = vadd.f32 %v3750, %v3988
      %v4028 = vadd.f32 %v3751, %v3991
      %v4029 = vadd.f32 %v3752, %v3994
      %v4030 = vadd.f32 %v3753, %v3997
      %v4031 = vld [vmem:[%s6] sm:$0x1]
      %v4033 = vperm.slane %v4031, 0
      %v4035 = vadd.f32 %v3999, %v4033
      %v4036 = vadd.f32 %v4000, %v4033
      %v4037 = vadd.f32 %v4001, %v4033
      %v4038 = vadd.f32 %v4002, %v4033
      %v4039 = vadd.f32 %v4003, %v4033
      %v4040 = vadd.f32 %v4004, %v4033
      %v4041 = vadd.f32 %v4005, %v4033
      %v4042 = vadd.f32 %v4006, %v4033
      %v4043 = vadd.f32 %v4007, %v4033
      %v4044 = vadd.f32 %v4008, %v4033
      %v4045 = vadd.f32 %v4009, %v4033
      %v4046 = vadd.f32 %v4010, %v4033
      %v4047 = vadd.f32 %v4011, %v4033
      %v4048 = vadd.f32 %v4012, %v4033
      %v4049 = vadd.f32 %v4013, %v4033
      %v4050 = vadd.f32 %v4014, %v4033
      %v4051 = vadd.f32 %v4015, %v4033
      %v4052 = vadd.f32 %v4016, %v4033
      %v4053 = vadd.f32 %v4017, %v4033
      %v4054 = vadd.f32 %v4018, %v4033
      %v4055 = vadd.f32 %v4019, %v4033
      %v4056 = vadd.f32 %v4020, %v4033
      %v4057 = vadd.f32 %v4021, %v4033
      %v4058 = vadd.f32 %v4022, %v4033
      %v4059 = vadd.f32 %v4023, %v4033
      %v4060 = vadd.f32 %v4024, %v4033
      %v4061 = vadd.f32 %v4025, %v4033
      %v4062 = vadd.f32 %v4026, %v4033
      %v4063 = vadd.f32 %v4027, %v4033
      %v4064 = vadd.f32 %v4028, %v4033
      %v4065 = vadd.f32 %v4029, %v4033
      %v4066 = vadd.f32 %v4030, %v4033
      %v4067 = vld [vmem:[%s476] sm:$0x1]
      %v4069 = vperm.slane %v4067, 0
      %v4071 = vadd.f32 %v4035, %v4069
      %v4072 = vadd.f32 %v4036, %v4069
      %v4073 = vadd.f32 %v4037, %v4069
      %v4074 = vadd.f32 %v4038, %v4069
      %v4075 = vadd.f32 %v4039, %v4069
      %v4076 = vadd.f32 %v4040, %v4069
      %v4077 = vadd.f32 %v4041, %v4069
      %v4078 = vadd.f32 %v4042, %v4069
      %v4079 = vadd.f32 %v4043, %v4069
      %v4080 = vadd.f32 %v4044, %v4069
      %v4081 = vadd.f32 %v4045, %v4069
      %v4082 = vadd.f32 %v4046, %v4069
      %v4083 = vadd.f32 %v4047, %v4069
      %v4084 = vadd.f32 %v4048, %v4069
      %v4085 = vadd.f32 %v4049, %v4069
      %v4086 = vadd.f32 %v4050, %v4069
      %v4087 = vadd.f32 %v4051, %v4069
      %v4088 = vadd.f32 %v4052, %v4069
      %v4089 = vadd.f32 %v4053, %v4069
      %v4090 = vadd.f32 %v4054, %v4069
      %v4091 = vadd.f32 %v4055, %v4069
      %v4092 = vadd.f32 %v4056, %v4069
      %v4093 = vadd.f32 %v4057, %v4069
      %v4094 = vadd.f32 %v4058, %v4069
      %v4095 = vadd.f32 %v4059, %v4069
      %v4096 = vadd.f32 %v4060, %v4069
      %v4097 = vadd.f32 %v4061, %v4069
      %v4098 = vadd.f32 %v4062, %v4069
      %v4099 = vadd.f32 %v4063, %v4069
      %v4100 = vadd.f32 %v4064, %v4069
      %v4101 = vadd.f32 %v4065, %v4069
      %v4102 = vadd.f32 %v4066, %v4069
      %v4103 = vld [vmem:[%s8] sm:$0x1]
      %v4104 = vld [vmem:[%s9] sm:$0x1]
      %v4105 = vld [vmem:[%s7] sm:$0xff]
      %vm4106 = vcmask 64512
      %v4107 = vsel %vm4106, %v4071, 0.0
      %v4108 = vsel %vm4106, %v4072, 0.0
      %v4109 = vadd.f32 %v4107, %v4108
      %v4110 = vsel %vm4106, %v4073, 0.0
      %v4111 = vadd.f32 %v4109, %v4110
      %v4112 = vsel %vm4106, %v4074, 0.0
      %v4113 = vadd.f32 %v4111, %v4112
      %v4114 = vsel %vm4106, %v4075, 0.0
      %v4115 = vadd.f32 %v4113, %v4114
      %v4116 = vsel %vm4106, %v4076, 0.0
      %v4117 = vadd.f32 %v4115, %v4116
      %v4118 = vsel %vm4106, %v4077, 0.0
      %v4119 = vadd.f32 %v4117, %v4118
      %v4120 = vsel %vm4106, %v4078, 0.0
      %v4121 = vadd.f32 %v4119, %v4120
      %v4122 = vsel %vm4106, %v4079, 0.0
      %v4123 = vadd.f32 %v4121, %v4122
      %v4124 = vsel %vm4106, %v4080, 0.0
      %v4125 = vadd.f32 %v4123, %v4124
      %v4126 = vsel %vm4106, %v4081, 0.0
      %v4127 = vadd.f32 %v4125, %v4126
      %v4128 = vsel %vm4106, %v4082, 0.0
      %v4129 = vadd.f32 %v4127, %v4128
      %v4130 = vsel %vm4106, %v4083, 0.0
      %v4131 = vadd.f32 %v4129, %v4130
      %v4132 = vsel %vm4106, %v4084, 0.0
      %v4133 = vadd.f32 %v4131, %v4132
      %v4134 = vsel %vm4106, %v4085, 0.0
      %v4135 = vadd.f32 %v4133, %v4134
      %v4136 = vsel %vm4106, %v4086, 0.0
      %v4137 = vadd.f32 %v4135, %v4136
      %v4138 = vsel %vm4106, %v4087, 0.0
      %v4139 = vadd.f32 %v4137, %v4138
      %v4140 = vsel %vm4106, %v4088, 0.0
      %v4141 = vadd.f32 %v4139, %v4140
      %v4142 = vsel %vm4106, %v4089, 0.0
      %v4143 = vadd.f32 %v4141, %v4142
      %v4144 = vsel %vm4106, %v4090, 0.0
      %v4145 = vadd.f32 %v4143, %v4144
      %v4146 = vsel %vm4106, %v4091, 0.0
      %v4147 = vadd.f32 %v4145, %v4146
      %v4148 = vsel %vm4106, %v4092, 0.0
      %v4149 = vadd.f32 %v4147, %v4148
      %v4150 = vsel %vm4106, %v4093, 0.0
      %v4151 = vadd.f32 %v4149, %v4150
      %v4152 = vsel %vm4106, %v4094, 0.0
      %v4153 = vadd.f32 %v4151, %v4152
      %v4154 = vsel %vm4106, %v4095, 0.0
      %v4155 = vadd.f32 %v4153, %v4154
      %v4156 = vsel %vm4106, %v4096, 0.0
      %v4157 = vadd.f32 %v4155, %v4156
      %v4158 = vsel %vm4106, %v4097, 0.0
      %v4159 = vadd.f32 %v4157, %v4158
      %v4160 = vsel %vm4106, %v4098, 0.0
      %v4161 = vadd.f32 %v4159, %v4160
      %v4162 = vsel %vm4106, %v4099, 0.0
      %v4163 = vadd.f32 %v4161, %v4162
      %v4164 = vsel %vm4106, %v4100, 0.0
      %v4165 = vadd.f32 %v4163, %v4164
      %v4166 = vsel %vm4106, %v4101, 0.0
      %v4167 = vadd.f32 %v4165, %v4166
      %v4168 = vsel %vm4106, %v4102, 0.0
      %v4169 = vadd.f32 %v4167, %v4168
      %v4170 = vrot.slane %v4169, 4
      %v4171 = vadd.f32 %v4169, %v4170
      %v4172 = vrot.slane %v4171, 2
      %v4173 = vadd.f32 %v4171, %v4172
      %v4174 = vrot.slane %v4173, 1
      %v4175 = vadd.f32 %v4173, %v4174
      %v4176 = vmul.f32 %v4071, %v4071
      %v4177 = vmul.f32 %v4072, %v4072
      %v4178 = vmul.f32 %v4073, %v4073
      %v4179 = vmul.f32 %v4074, %v4074
      %v4180 = vmul.f32 %v4075, %v4075
      %v4181 = vmul.f32 %v4076, %v4076
      %v4182 = vmul.f32 %v4077, %v4077
      %v4183 = vmul.f32 %v4078, %v4078
      %v4184 = vmul.f32 %v4079, %v4079
      %v4185 = vmul.f32 %v4080, %v4080
      %v4186 = vmul.f32 %v4081, %v4081
      %v4187 = vmul.f32 %v4082, %v4082
      %v4188 = vmul.f32 %v4083, %v4083
      %v4189 = vmul.f32 %v4084, %v4084
      %v4190 = vmul.f32 %v4085, %v4085
      %v4191 = vmul.f32 %v4086, %v4086
      %v4192 = vmul.f32 %v4087, %v4087
      %v4193 = vmul.f32 %v4088, %v4088
      %v4194 = vmul.f32 %v4089, %v4089
      %v4195 = vmul.f32 %v4090, %v4090
      %v4196 = vmul.f32 %v4091, %v4091
      %v4197 = vmul.f32 %v4092, %v4092
      %v4198 = vmul.f32 %v4093, %v4093
      %v4199 = vmul.f32 %v4094, %v4094
      %v4200 = vmul.f32 %v4095, %v4095
      %v4201 = vmul.f32 %v4096, %v4096
      %v4202 = vmul.f32 %v4097, %v4097
      %v4203 = vmul.f32 %v4098, %v4098
      %v4204 = vmul.f32 %v4099, %v4099
      %v4205 = vmul.f32 %v4100, %v4100
      %v4206 = vmul.f32 %v4101, %v4101
      %v4207 = vmul.f32 %v4102, %v4102
      %v4208 = vsel %vm4106, %v4176, 0.0
      %v4209 = vsel %vm4106, %v4177, 0.0
      %v4210 = vadd.f32 %v4208, %v4209
      %v4211 = vsel %vm4106, %v4178, 0.0
      %v4212 = vadd.f32 %v4210, %v4211
      %v4213 = vsel %vm4106, %v4179, 0.0
      %v4214 = vadd.f32 %v4212, %v4213
      %v4215 = vsel %vm4106, %v4180, 0.0
      %v4216 = vadd.f32 %v4214, %v4215
      %v4217 = vsel %vm4106, %v4181, 0.0
      %v4218 = vadd.f32 %v4216, %v4217
      %v4219 = vsel %vm4106, %v4182, 0.0
      %v4220 = vadd.f32 %v4218, %v4219
      %v4221 = vsel %vm4106, %v4183, 0.0
      %v4222 = vadd.f32 %v4220, %v4221
      %v4223 = vsel %vm4106, %v4184, 0.0
      %v4224 = vadd.f32 %v4222, %v4223
      %v4225 = vsel %vm4106, %v4185, 0.0
      %v4226 = vadd.f32 %v4224, %v4225
      %v4227 = vsel %vm4106, %v4186, 0.0
      %v4228 = vadd.f32 %v4226, %v4227
      %v4229 = vsel %vm4106, %v4187, 0.0
      %v4230 = vadd.f32 %v4228, %v4229
      %v4231 = vsel %vm4106, %v4188, 0.0
      %v4232 = vadd.f32 %v4230, %v4231
      %v4233 = vsel %vm4106, %v4189, 0.0
      %v4234 = vadd.f32 %v4232, %v4233
      %v4235 = vsel %vm4106, %v4190, 0.0
      %v4236 = vadd.f32 %v4234, %v4235
      %v4237 = vsel %vm4106, %v4191, 0.0
      %v4238 = vadd.f32 %v4236, %v4237
      %v4239 = vsel %vm4106, %v4192, 0.0
      %v4240 = vadd.f32 %v4238, %v4239
      %v4241 = vsel %vm4106, %v4193, 0.0
      %v4242 = vadd.f32 %v4240, %v4241
      %v4243 = vsel %vm4106, %v4194, 0.0
      %v4244 = vadd.f32 %v4242, %v4243
      %v4245 = vsel %vm4106, %v4195, 0.0
      %v4246 = vadd.f32 %v4244, %v4245
      %v4247 = vsel %vm4106, %v4196, 0.0
      %v4248 = vadd.f32 %v4246, %v4247
      %v4249 = vsel %vm4106, %v4197, 0.0
      %v4250 = vadd.f32 %v4248, %v4249
      %v4251 = vsel %vm4106, %v4198, 0.0
      %v4252 = vadd.f32 %v4250, %v4251
      %v4253 = vsel %vm4106, %v4199, 0.0
      %v4254 = vadd.f32 %v4252, %v4253
      %v4255 = vsel %vm4106, %v4200, 0.0
      %v4256 = vadd.f32 %v4254, %v4255
      %v4257 = vsel %vm4106, %v4201, 0.0
      %v4258 = vadd.f32 %v4256, %v4257
      %v4259 = vsel %vm4106, %v4202, 0.0
      %v4260 = vadd.f32 %v4258, %v4259
      %v4261 = vsel %vm4106, %v4203, 0.0
      %v4262 = vadd.f32 %v4260, %v4261
      %v4263 = vsel %vm4106, %v4204, 0.0
      %v4264 = vadd.f32 %v4262, %v4263
      %v4265 = vsel %vm4106, %v4205, 0.0
      %v4266 = vadd.f32 %v4264, %v4265
      %v4267 = vsel %vm4106, %v4206, 0.0
      %v4268 = vadd.f32 %v4266, %v4267
      %v4269 = vsel %vm4106, %v4207, 0.0
      %v4270 = vadd.f32 %v4268, %v4269
      %v4271 = vrot.slane %v4270, 4
      %v4272 = vadd.f32 %v4270, %v4271
      %v4273 = vrot.slane %v4272, 2
      %v4274 = vadd.f32 %v4272, %v4273
      %v4275 = vrot.slane %v4274, 1
      %v4276 = vadd.f32 %v4274, %v4275
      %v4278 = vsel %vm4106, %v4175, 0
      %4280 = vmatpush.msra.mxu0 0.0
      %4281 = vmatpush.msra.mxu0 0.0
      %4282 = vmatpush.msra.mxu0 0.0
      %4283 = vmatpush.msra.mxu0 0.0
      %4284 = vmatpush.msra.mxu0 0.0
      %4285 = vmatpush.msra.mxu0 0.0
      %4286 = vmatpush.msra.mxu0 0.0
      %4287 = vmatpush.msra.mxu0 0.0
      %4288 = vmatpush.msra.mxu0 0.0
      %4289 = vmatpush.msra.mxu0 0.0
      %4290 = vmatpush.msra.mxu0 0.0
      %4291 = vmatpush.msra.mxu0 0.0
      %4292 = vmatpush.msra.mxu0 0.0
      %4293 = vmatpush.msra.mxu0 0.0
      %4294 = vmatpush.msra.mxu0 0.0
      %4295 = vmatpush.msra.mxu0 %v4105
      %4296 = vmatmul.f32.gmra.mxu0 %v4278
      %v4297 = vpop.f32.mrf.mxu0
      %v4298 = vadd.f32 0.0, %v4297
      %4299 = vdwg.mxu0
      %v4301 = vsel %vm4106, %v4276, 0
      %4303 = vmatpush.msra.mxu0 0.0
      %4304 = vmatpush.msra.mxu0 0.0
      %4305 = vmatpush.msra.mxu0 0.0
      %4306 = vmatpush.msra.mxu0 0.0
      %4307 = vmatpush.msra.mxu0 0.0
      %4308 = vmatpush.msra.mxu0 0.0
      %4309 = vmatpush.msra.mxu0 0.0
      %4310 = vmatpush.msra.mxu0 0.0
      %4311 = vmatpush.msra.mxu0 0.0
      %4312 = vmatpush.msra.mxu0 0.0
      %4313 = vmatpush.msra.mxu0 0.0
      %4314 = vmatpush.msra.mxu0 0.0
      %4315 = vmatpush.msra.mxu0 0.0
      %4316 = vmatpush.msra.mxu0 0.0
      %4317 = vmatpush.msra.mxu0 0.0
      %4318 = vmatpush.msra.mxu0 %v4105
      %4319 = vmatmul.f32.gmra.mxu0 %v4301
      %v4320 = vpop.f32.mrf.mxu0
      %v4321 = vadd.f32 0.0, %v4320
      %4322 = vdwg.mxu0
      %v4323 = vmul.f32 %v4298, %v4298
      %v4324 = vsub.f32 %v4321, %v4323
      %v4325 = vadd.f32 %v4324, 1e-05
      %v4326 = vrsqrt.pop %v4325
      %v4327 = vmul.f32 %v4326, %v4325
      %v4328 = vmul.f32 %v4327, %v4326
      %v4329 = vmul.f32 0.5, %v4328
      %v4330 = vsub.f32 1.5, %v4329
      %v4331 = vmul.f32 %v4326, %v4330
      %vm4332 = vweird.f32 %v4325
      %vm4333 = vweird.f32 %v4326
      %vm4334 = vmor %vm4332, %vm4333
      %v4335 = vsel %vm4334, %v4326, %v4331
      %v4336 = vperm.slane %v4298, 0
      %v4337 = vsub.f32 %v4071, %v4336
      %v4338 = vsub.f32 %v4072, %v4336
      %v4339 = vsub.f32 %v4073, %v4336
      %v4340 = vsub.f32 %v4074, %v4336
      %v4341 = vsub.f32 %v4075, %v4336
      %v4342 = vsub.f32 %v4076, %v4336
      %v4343 = vsub.f32 %v4077, %v4336
      %v4344 = vsub.f32 %v4078, %v4336
      %v4345 = vsub.f32 %v4079, %v4336
      %v4346 = vsub.f32 %v4080, %v4336
      %v4347 = vsub.f32 %v4081, %v4336
      %v4348 = vsub.f32 %v4082, %v4336
      %v4349 = vsub.f32 %v4083, %v4336
      %v4350 = vsub.f32 %v4084, %v4336
      %v4351 = vsub.f32 %v4085, %v4336
      %v4352 = vsub.f32 %v4086, %v4336
      %v4353 = vsub.f32 %v4087, %v4336
      %v4354 = vsub.f32 %v4088, %v4336
      %v4355 = vsub.f32 %v4089, %v4336
      %v4356 = vsub.f32 %v4090, %v4336
      %v4357 = vsub.f32 %v4091, %v4336
      %v4358 = vsub.f32 %v4092, %v4336
      %v4359 = vsub.f32 %v4093, %v4336
      %v4360 = vsub.f32 %v4094, %v4336
      %v4361 = vsub.f32 %v4095, %v4336
      %v4362 = vsub.f32 %v4096, %v4336
      %v4363 = vsub.f32 %v4097, %v4336
      %v4364 = vsub.f32 %v4098, %v4336
      %v4365 = vsub.f32 %v4099, %v4336
      %v4366 = vsub.f32 %v4100, %v4336
      %v4367 = vsub.f32 %v4101, %v4336
      %v4368 = vsub.f32 %v4102, %v4336
      %v4369 = vperm.slane %v4335, 0
      %v4370 = vmul.f32 %v4337, %v4369
      %v4371 = vmul.f32 %v4338, %v4369
      %v4372 = vmul.f32 %v4339, %v4369
      %v4373 = vmul.f32 %v4340, %v4369
      %v4374 = vmul.f32 %v4341, %v4369
      %v4375 = vmul.f32 %v4342, %v4369
      %v4376 = vmul.f32 %v4343, %v4369
      %v4377 = vmul.f32 %v4344, %v4369
      %v4378 = vmul.f32 %v4345, %v4369
      %v4379 = vmul.f32 %v4346, %v4369
      %v4380 = vmul.f32 %v4347, %v4369
      %v4381 = vmul.f32 %v4348, %v4369
      %v4382 = vmul.f32 %v4349, %v4369
      %v4383 = vmul.f32 %v4350, %v4369
      %v4384 = vmul.f32 %v4351, %v4369
      %v4385 = vmul.f32 %v4352, %v4369
      %v4386 = vmul.f32 %v4353, %v4369
      %v4387 = vmul.f32 %v4354, %v4369
      %v4388 = vmul.f32 %v4355, %v4369
      %v4389 = vmul.f32 %v4356, %v4369
      %v4390 = vmul.f32 %v4357, %v4369
      %v4391 = vmul.f32 %v4358, %v4369
      %v4392 = vmul.f32 %v4359, %v4369
      %v4393 = vmul.f32 %v4360, %v4369
      %v4394 = vmul.f32 %v4361, %v4369
      %v4395 = vmul.f32 %v4362, %v4369
      %v4396 = vmul.f32 %v4363, %v4369
      %v4397 = vmul.f32 %v4364, %v4369
      %v4398 = vmul.f32 %v4365, %v4369
      %v4399 = vmul.f32 %v4366, %v4369
      %v4400 = vmul.f32 %v4367, %v4369
      %v4401 = vmul.f32 %v4368, %v4369
      %v4403 = vperm.slane %v4103, 0
      %v4405 = vmul.f32 %v4370, %v4403
      %v4406 = vmul.f32 %v4371, %v4403
      %v4407 = vmul.f32 %v4372, %v4403
      %v4408 = vmul.f32 %v4373, %v4403
      %v4409 = vmul.f32 %v4374, %v4403
      %v4410 = vmul.f32 %v4375, %v4403
      %v4411 = vmul.f32 %v4376, %v4403
      %v4412 = vmul.f32 %v4377, %v4403
      %v4413 = vmul.f32 %v4378, %v4403
      %v4414 = vmul.f32 %v4379, %v4403
      %v4415 = vmul.f32 %v4380, %v4403
      %v4416 = vmul.f32 %v4381, %v4403
      %v4417 = vmul.f32 %v4382, %v4403
      %v4418 = vmul.f32 %v4383, %v4403
      %v4419 = vmul.f32 %v4384, %v4403
      %v4420 = vmul.f32 %v4385, %v4403
      %v4421 = vmul.f32 %v4386, %v4403
      %v4422 = vmul.f32 %v4387, %v4403
      %v4423 = vmul.f32 %v4388, %v4403
      %v4424 = vmul.f32 %v4389, %v4403
      %v4425 = vmul.f32 %v4390, %v4403
      %v4426 = vmul.f32 %v4391, %v4403
      %v4427 = vmul.f32 %v4392, %v4403
      %v4428 = vmul.f32 %v4393, %v4403
      %v4429 = vmul.f32 %v4394, %v4403
      %v4430 = vmul.f32 %v4395, %v4403
      %v4431 = vmul.f32 %v4396, %v4403
      %v4432 = vmul.f32 %v4397, %v4403
      %v4433 = vmul.f32 %v4398, %v4403
      %v4434 = vmul.f32 %v4399, %v4403
      %v4435 = vmul.f32 %v4400, %v4403
      %v4436 = vmul.f32 %v4401, %v4403
      %v4438 = vperm.slane %v4104, 0
      %v4440 = vadd.f32 %v4405, %v4438
      %v4441 = vadd.f32 %v4406, %v4438
      %v4442 = vadd.f32 %v4407, %v4438
      %v4443 = vadd.f32 %v4408, %v4438
      %v4444 = vadd.f32 %v4409, %v4438
      %v4445 = vadd.f32 %v4410, %v4438
      %v4446 = vadd.f32 %v4411, %v4438
      %v4447 = vadd.f32 %v4412, %v4438
      %v4448 = vadd.f32 %v4413, %v4438
      %v4449 = vadd.f32 %v4414, %v4438
      %v4450 = vadd.f32 %v4415, %v4438
      %v4451 = vadd.f32 %v4416, %v4438
      %v4452 = vadd.f32 %v4417, %v4438
      %v4453 = vadd.f32 %v4418, %v4438
      %v4454 = vadd.f32 %v4419, %v4438
      %v4455 = vadd.f32 %v4420, %v4438
      %v4456 = vadd.f32 %v4421, %v4438
      %v4457 = vadd.f32 %v4422, %v4438
      %v4458 = vadd.f32 %v4423, %v4438
      %v4459 = vadd.f32 %v4424, %v4438
      %v4460 = vadd.f32 %v4425, %v4438
      %v4461 = vadd.f32 %v4426, %v4438
      %v4462 = vadd.f32 %v4427, %v4438
      %v4463 = vadd.f32 %v4428, %v4438
      %v4464 = vadd.f32 %v4429, %v4438
      %v4465 = vadd.f32 %v4430, %v4438
      %v4466 = vadd.f32 %v4431, %v4438
      %v4467 = vadd.f32 %v4432, %v4438
      %v4468 = vadd.f32 %v4433, %v4438
      %v4469 = vadd.f32 %v4434, %v4438
      %v4470 = vadd.f32 %v4435, %v4438
      %v4471 = vadd.f32 %v4436, %v4438
      %v4472 = vsub.f32 0.0, %v4440
      %v4473 = vsub.f32 0.0, %v4441
      %v4474 = vsub.f32 0.0, %v4442
      %v4475 = vsub.f32 0.0, %v4443
      %v4476 = vsub.f32 0.0, %v4444
      %v4477 = vsub.f32 0.0, %v4445
      %v4478 = vsub.f32 0.0, %v4446
      %v4479 = vsub.f32 0.0, %v4447
      %v4480 = vsub.f32 0.0, %v4448
      %v4481 = vsub.f32 0.0, %v4449
      %v4482 = vsub.f32 0.0, %v4450
      %v4483 = vsub.f32 0.0, %v4451
      %v4484 = vsub.f32 0.0, %v4452
      %v4485 = vsub.f32 0.0, %v4453
      %v4486 = vsub.f32 0.0, %v4454
      %v4487 = vsub.f32 0.0, %v4455
      %v4488 = vsub.f32 0.0, %v4456
      %v4489 = vsub.f32 0.0, %v4457
      %v4490 = vsub.f32 0.0, %v4458
      %v4491 = vsub.f32 0.0, %v4459
      %v4492 = vsub.f32 0.0, %v4460
      %v4493 = vsub.f32 0.0, %v4461
      %v4494 = vsub.f32 0.0, %v4462
      %v4495 = vsub.f32 0.0, %v4463
      %v4496 = vsub.f32 0.0, %v4464
      %v4497 = vsub.f32 0.0, %v4465
      %v4498 = vsub.f32 0.0, %v4466
      %v4499 = vsub.f32 0.0, %v4467
      %v4500 = vsub.f32 0.0, %v4468
      %v4501 = vsub.f32 0.0, %v4469
      %v4502 = vsub.f32 0.0, %v4470
      %v4503 = vsub.f32 0.0, %v4471
      %v4504 = vmul.f32 %v4472, 1.442695
      %v4505 = vpow.pop %v4504
      %v4506 = vmul.f32 %v4473, 1.442695
      %v4507 = vpow.pop %v4506
      %v4508 = vmul.f32 %v4474, 1.442695
      %v4509 = vpow.pop %v4508
      %v4510 = vmul.f32 %v4475, 1.442695
      %v4511 = vpow.pop %v4510
      %v4512 = vmul.f32 %v4476, 1.442695
      %v4513 = vpow.pop %v4512
      %v4514 = vmul.f32 %v4477, 1.442695
      %v4515 = vpow.pop %v4514
      %v4516 = vmul.f32 %v4478, 1.442695
      %v4517 = vpow.pop %v4516
      %v4518 = vmul.f32 %v4479, 1.442695
      %v4519 = vpow.pop %v4518
      %v4520 = vmul.f32 %v4480, 1.442695
      %v4521 = vpow.pop %v4520
      %v4522 = vmul.f32 %v4481, 1.442695
      %v4523 = vpow.pop %v4522
      %v4524 = vmul.f32 %v4482, 1.442695
      %v4525 = vpow.pop %v4524
      %v4526 = vmul.f32 %v4483, 1.442695
      %v4527 = vpow.pop %v4526
      %v4528 = vmul.f32 %v4484, 1.442695
      %v4529 = vpow.pop %v4528
      %v4530 = vmul.f32 %v4485, 1.442695
      %v4531 = vpow.pop %v4530
      %v4532 = vmul.f32 %v4486, 1.442695
      %v4533 = vpow.pop %v4532
      %v4534 = vmul.f32 %v4487, 1.442695
      %v4535 = vpow.pop %v4534
      %v4536 = vmul.f32 %v4488, 1.442695
      %v4537 = vpow.pop %v4536
      %v4538 = vmul.f32 %v4489, 1.442695
      %v4539 = vpow.pop %v4538
      %v4540 = vmul.f32 %v4490, 1.442695
      %v4541 = vpow.pop %v4540
      %v4542 = vmul.f32 %v4491, 1.442695
      %v4543 = vpow.pop %v4542
      %v4544 = vmul.f32 %v4492, 1.442695
      %v4545 = vpow.pop %v4544
      %v4546 = vmul.f32 %v4493, 1.442695
      %v4547 = vpow.pop %v4546
      %v4548 = vmul.f32 %v4494, 1.442695
      %v4549 = vpow.pop %v4548
      %v4550 = vmul.f32 %v4495, 1.442695
      %v4551 = vpow.pop %v4550
      %v4552 = vmul.f32 %v4496, 1.442695
      %v4553 = vpow.pop %v4552
      %v4554 = vmul.f32 %v4497, 1.442695
      %v4555 = vpow.pop %v4554
      %v4556 = vmul.f32 %v4498, 1.442695
      %v4557 = vpow.pop %v4556
      %v4558 = vmul.f32 %v4499, 1.442695
      %v4559 = vpow.pop %v4558
      %v4560 = vmul.f32 %v4500, 1.442695
      %v4561 = vpow.pop %v4560
      %v4562 = vmul.f32 %v4501, 1.442695
      %v4563 = vpow.pop %v4562
      %v4564 = vmul.f32 %v4502, 1.442695
      %v4565 = vpow.pop %v4564
      %v4566 = vmul.f32 %v4503, 1.442695
      %v4567 = vpow.pop %v4566
      %v4568 = vadd.f32 %v4505, 1.0
      %v4569 = vadd.f32 %v4507, 1.0
      %v4570 = vadd.f32 %v4509, 1.0
      %v4571 = vadd.f32 %v4511, 1.0
      %v4572 = vadd.f32 %v4513, 1.0
      %v4573 = vadd.f32 %v4515, 1.0
      %v4574 = vadd.f32 %v4517, 1.0
      %v4575 = vadd.f32 %v4519, 1.0
      %v4576 = vadd.f32 %v4521, 1.0
      %v4577 = vadd.f32 %v4523, 1.0
      %v4578 = vadd.f32 %v4525, 1.0
      %v4579 = vadd.f32 %v4527, 1.0
      %v4580 = vadd.f32 %v4529, 1.0
      %v4581 = vadd.f32 %v4531, 1.0
      %v4582 = vadd.f32 %v4533, 1.0
      %v4583 = vadd.f32 %v4535, 1.0
      %v4584 = vadd.f32 %v4537, 1.0
      %v4585 = vadd.f32 %v4539, 1.0
      %v4586 = vadd.f32 %v4541, 1.0
      %v4587 = vadd.f32 %v4543, 1.0
      %v4588 = vadd.f32 %v4545, 1.0
      %v4589 = vadd.f32 %v4547, 1.0
      %v4590 = vadd.f32 %v4549, 1.0
      %v4591 = vadd.f32 %v4551, 1.0
      %v4592 = vadd.f32 %v4553, 1.0
      %v4593 = vadd.f32 %v4555, 1.0
      %v4594 = vadd.f32 %v4557, 1.0
      %v4595 = vadd.f32 %v4559, 1.0
      %v4596 = vadd.f32 %v4561, 1.0
      %v4597 = vadd.f32 %v4563, 1.0
      %v4598 = vadd.f32 %v4565, 1.0
      %v4599 = vadd.f32 %v4567, 1.0
      %v4600 = vrcp.pop %v4568
      %v4601 = vmul.f32 %v4568, %v4600
      %v4602 = vsub.f32 1.0, %v4601
      %v4603 = vmul.f32 %v4600, %v4602
      %v4604 = vadd.f32 %v4600, %v4603
      %vm4605 = vweird.f32 %v4568
      %vm4606 = vweird.f32 %v4600
      %vm4607 = vmor %vm4605, %vm4606
      %v4608 = vsel %vm4607, %v4600, %v4604
      %v4609 = vand.u32 2147483647, %v4568
      %vm4610 = vcmp.eq.f32.partialorder %v4609, 8.507059e+37
      %v4611 = vand.u32 %v4568, 2147483648
      %v4612 = vor.u32 1.1754944e-38, %v4611
      %v4613 = vsel %vm4610, %v4612, %v4608
      %v4614 = vmul.f32 1.0, %v4613
      %v4615 = vrcp.pop %v4569
      %v4616 = vmul.f32 %v4569, %v4615
      %v4617 = vsub.f32 1.0, %v4616
      %v4618 = vmul.f32 %v4615, %v4617
      %v4619 = vadd.f32 %v4615, %v4618
      %vm4620 = vweird.f32 %v4569
      %vm4621 = vweird.f32 %v4615
      %vm4622 = vmor %vm4620, %vm4621
      %v4623 = vsel %vm4622, %v4615, %v4619
      %v4624 = vand.u32 2147483647, %v4569
      %vm4625 = vcmp.eq.f32.partialorder %v4624, 8.507059e+37
      %v4626 = vand.u32 %v4569, 2147483648
      %v4627 = vor.u32 1.1754944e-38, %v4626
      %v4628 = vsel %vm4625, %v4627, %v4623
      %v4629 = vmul.f32 1.0, %v4628
      %v4630 = vrcp.pop %v4570
      %v4631 = vmul.f32 %v4570, %v4630
      %v4632 = vsub.f32 1.0, %v4631
      %v4633 = vmul.f32 %v4630, %v4632
      %v4634 = vadd.f32 %v4630, %v4633
      %vm4635 = vweird.f32 %v4570
      %vm4636 = vweird.f32 %v4630
      %vm4637 = vmor %vm4635, %vm4636
      %v4638 = vsel %vm4637, %v4630, %v4634
      %v4639 = vand.u32 2147483647, %v4570
      %vm4640 = vcmp.eq.f32.partialorder %v4639, 8.507059e+37
      %v4641 = vand.u32 %v4570, 2147483648
      %v4642 = vor.u32 1.1754944e-38, %v4641
      %v4643 = vsel %vm4640, %v4642, %v4638
      %v4644 = vmul.f32 1.0, %v4643
      %v4645 = vrcp.pop %v4571
      %v4646 = vmul.f32 %v4571, %v4645
      %v4647 = vsub.f32 1.0, %v4646
      %v4648 = vmul.f32 %v4645, %v4647
      %v4649 = vadd.f32 %v4645, %v4648
      %vm4650 = vweird.f32 %v4571
      %vm4651 = vweird.f32 %v4645
      %vm4652 = vmor %vm4650, %vm4651
      %v4653 = vsel %vm4652, %v4645, %v4649
      %v4654 = vand.u32 2147483647, %v4571
      %vm4655 = vcmp.eq.f32.partialorder %v4654, 8.507059e+37
      %v4656 = vand.u32 %v4571, 2147483648
      %v4657 = vor.u32 1.1754944e-38, %v4656
      %v4658 = vsel %vm4655, %v4657, %v4653
      %v4659 = vmul.f32 1.0, %v4658
      %v4660 = vrcp.pop %v4572
      %v4661 = vmul.f32 %v4572, %v4660
      %v4662 = vsub.f32 1.0, %v4661
      %v4663 = vmul.f32 %v4660, %v4662
      %v4664 = vadd.f32 %v4660, %v4663
      %vm4665 = vweird.f32 %v4572
      %vm4666 = vweird.f32 %v4660
      %vm4667 = vmor %vm4665, %vm4666
      %v4668 = vsel %vm4667, %v4660, %v4664
      %v4669 = vand.u32 2147483647, %v4572
      %vm4670 = vcmp.eq.f32.partialorder %v4669, 8.507059e+37
      %v4671 = vand.u32 %v4572, 2147483648
      %v4672 = vor.u32 1.1754944e-38, %v4671
      %v4673 = vsel %vm4670, %v4672, %v4668
      %v4674 = vmul.f32 1.0, %v4673
      %v4675 = vrcp.pop %v4573
      %v4676 = vmul.f32 %v4573, %v4675
      %v4677 = vsub.f32 1.0, %v4676
      %v4678 = vmul.f32 %v4675, %v4677
      %v4679 = vadd.f32 %v4675, %v4678
      %vm4680 = vweird.f32 %v4573
      %vm4681 = vweird.f32 %v4675
      %vm4682 = vmor %vm4680, %vm4681
      %v4683 = vsel %vm4682, %v4675, %v4679
      %v4684 = vand.u32 2147483647, %v4573
      %vm4685 = vcmp.eq.f32.partialorder %v4684, 8.507059e+37
      %v4686 = vand.u32 %v4573, 2147483648
      %v4687 = vor.u32 1.1754944e-38, %v4686
      %v4688 = vsel %vm4685, %v4687, %v4683
      %v4689 = vmul.f32 1.0, %v4688
      %v4690 = vrcp.pop %v4574
      %v4691 = vmul.f32 %v4574, %v4690
      %v4692 = vsub.f32 1.0, %v4691
      %v4693 = vmul.f32 %v4690, %v4692
      %v4694 = vadd.f32 %v4690, %v4693
      %vm4695 = vweird.f32 %v4574
      %vm4696 = vweird.f32 %v4690
      %vm4697 = vmor %vm4695, %vm4696
      %v4698 = vsel %vm4697, %v4690, %v4694
      %v4699 = vand.u32 2147483647, %v4574
      %vm4700 = vcmp.eq.f32.partialorder %v4699, 8.507059e+37
      %v4701 = vand.u32 %v4574, 2147483648
      %v4702 = vor.u32 1.1754944e-38, %v4701
      %v4703 = vsel %vm4700, %v4702, %v4698
      %v4704 = vmul.f32 1.0, %v4703
      %v4705 = vrcp.pop %v4575
      %v4706 = vmul.f32 %v4575, %v4705
      %v4707 = vsub.f32 1.0, %v4706
      %v4708 = vmul.f32 %v4705, %v4707
      %v4709 = vadd.f32 %v4705, %v4708
      %vm4710 = vweird.f32 %v4575
      %vm4711 = vweird.f32 %v4705
      %vm4712 = vmor %vm4710, %vm4711
      %v4713 = vsel %vm4712, %v4705, %v4709
      %v4714 = vand.u32 2147483647, %v4575
      %vm4715 = vcmp.eq.f32.partialorder %v4714, 8.507059e+37
      %v4716 = vand.u32 %v4575, 2147483648
      %v4717 = vor.u32 1.1754944e-38, %v4716
      %v4718 = vsel %vm4715, %v4717, %v4713
      %v4719 = vmul.f32 1.0, %v4718
      %v4720 = vrcp.pop %v4576
      %v4721 = vmul.f32 %v4576, %v4720
      %v4722 = vsub.f32 1.0, %v4721
      %v4723 = vmul.f32 %v4720, %v4722
      %v4724 = vadd.f32 %v4720, %v4723
      %vm4725 = vweird.f32 %v4576
      %vm4726 = vweird.f32 %v4720
      %vm4727 = vmor %vm4725, %vm4726
      %v4728 = vsel %vm4727, %v4720, %v4724
      %v4729 = vand.u32 2147483647, %v4576
      %vm4730 = vcmp.eq.f32.partialorder %v4729, 8.507059e+37
      %v4731 = vand.u32 %v4576, 2147483648
      %v4732 = vor.u32 1.1754944e-38, %v4731
      %v4733 = vsel %vm4730, %v4732, %v4728
      %v4734 = vmul.f32 1.0, %v4733
      %v4735 = vrcp.pop %v4577
      %v4736 = vmul.f32 %v4577, %v4735
      %v4737 = vsub.f32 1.0, %v4736
      %v4738 = vmul.f32 %v4735, %v4737
      %v4739 = vadd.f32 %v4735, %v4738
      %vm4740 = vweird.f32 %v4577
      %vm4741 = vweird.f32 %v4735
      %vm4742 = vmor %vm4740, %vm4741
      %v4743 = vsel %vm4742, %v4735, %v4739
      %v4744 = vand.u32 2147483647, %v4577
      %vm4745 = vcmp.eq.f32.partialorder %v4744, 8.507059e+37
      %v4746 = vand.u32 %v4577, 2147483648
      %v4747 = vor.u32 1.1754944e-38, %v4746
      %v4748 = vsel %vm4745, %v4747, %v4743
      %v4749 = vmul.f32 1.0, %v4748
      %v4750 = vrcp.pop %v4578
      %v4751 = vmul.f32 %v4578, %v4750
      %v4752 = vsub.f32 1.0, %v4751
      %v4753 = vmul.f32 %v4750, %v4752
      %v4754 = vadd.f32 %v4750, %v4753
      %vm4755 = vweird.f32 %v4578
      %vm4756 = vweird.f32 %v4750
      %vm4757 = vmor %vm4755, %vm4756
      %v4758 = vsel %vm4757, %v4750, %v4754
      %v4759 = vand.u32 2147483647, %v4578
      %vm4760 = vcmp.eq.f32.partialorder %v4759, 8.507059e+37
      %v4761 = vand.u32 %v4578, 2147483648
      %v4762 = vor.u32 1.1754944e-38, %v4761
      %v4763 = vsel %vm4760, %v4762, %v4758
      %v4764 = vmul.f32 1.0, %v4763
      %v4765 = vrcp.pop %v4579
      %v4766 = vmul.f32 %v4579, %v4765
      %v4767 = vsub.f32 1.0, %v4766
      %v4768 = vmul.f32 %v4765, %v4767
      %v4769 = vadd.f32 %v4765, %v4768
      %vm4770 = vweird.f32 %v4579
      %vm4771 = vweird.f32 %v4765
      %vm4772 = vmor %vm4770, %vm4771
      %v4773 = vsel %vm4772, %v4765, %v4769
      %v4774 = vand.u32 2147483647, %v4579
      %vm4775 = vcmp.eq.f32.partialorder %v4774, 8.507059e+37
      %v4776 = vand.u32 %v4579, 2147483648
      %v4777 = vor.u32 1.1754944e-38, %v4776
      %v4778 = vsel %vm4775, %v4777, %v4773
      %v4779 = vmul.f32 1.0, %v4778
      %v4780 = vrcp.pop %v4580
      %v4781 = vmul.f32 %v4580, %v4780
      %v4782 = vsub.f32 1.0, %v4781
      %v4783 = vmul.f32 %v4780, %v4782
      %v4784 = vadd.f32 %v4780, %v4783
      %vm4785 = vweird.f32 %v4580
      %vm4786 = vweird.f32 %v4780
      %vm4787 = vmor %vm4785, %vm4786
      %v4788 = vsel %vm4787, %v4780, %v4784
      %v4789 = vand.u32 2147483647, %v4580
      %vm4790 = vcmp.eq.f32.partialorder %v4789, 8.507059e+37
      %v4791 = vand.u32 %v4580, 2147483648
      %v4792 = vor.u32 1.1754944e-38, %v4791
      %v4793 = vsel %vm4790, %v4792, %v4788
      %v4794 = vmul.f32 1.0, %v4793
      %v4795 = vrcp.pop %v4581
      %v4796 = vmul.f32 %v4581, %v4795
      %v4797 = vsub.f32 1.0, %v4796
      %v4798 = vmul.f32 %v4795, %v4797
      %v4799 = vadd.f32 %v4795, %v4798
      %vm4800 = vweird.f32 %v4581
      %vm4801 = vweird.f32 %v4795
      %vm4802 = vmor %vm4800, %vm4801
      %v4803 = vsel %vm4802, %v4795, %v4799
      %v4804 = vand.u32 2147483647, %v4581
      %vm4805 = vcmp.eq.f32.partialorder %v4804, 8.507059e+37
      %v4806 = vand.u32 %v4581, 2147483648
      %v4807 = vor.u32 1.1754944e-38, %v4806
      %v4808 = vsel %vm4805, %v4807, %v4803
      %v4809 = vmul.f32 1.0, %v4808
      %v4810 = vrcp.pop %v4582
      %v4811 = vmul.f32 %v4582, %v4810
      %v4812 = vsub.f32 1.0, %v4811
      %v4813 = vmul.f32 %v4810, %v4812
      %v4814 = vadd.f32 %v4810, %v4813
      %vm4815 = vweird.f32 %v4582
      %vm4816 = vweird.f32 %v4810
      %vm4817 = vmor %vm4815, %vm4816
      %v4818 = vsel %vm4817, %v4810, %v4814
      %v4819 = vand.u32 2147483647, %v4582
      %vm4820 = vcmp.eq.f32.partialorder %v4819, 8.507059e+37
      %v4821 = vand.u32 %v4582, 2147483648
      %v4822 = vor.u32 1.1754944e-38, %v4821
      %v4823 = vsel %vm4820, %v4822, %v4818
      %v4824 = vmul.f32 1.0, %v4823
      %v4825 = vrcp.pop %v4583
      %v4826 = vmul.f32 %v4583, %v4825
      %v4827 = vsub.f32 1.0, %v4826
      %v4828 = vmul.f32 %v4825, %v4827
      %v4829 = vadd.f32 %v4825, %v4828
      %vm4830 = vweird.f32 %v4583
      %vm4831 = vweird.f32 %v4825
      %vm4832 = vmor %vm4830, %vm4831
      %v4833 = vsel %vm4832, %v4825, %v4829
      %v4834 = vand.u32 2147483647, %v4583
      %vm4835 = vcmp.eq.f32.partialorder %v4834, 8.507059e+37
      %v4836 = vand.u32 %v4583, 2147483648
      %v4837 = vor.u32 1.1754944e-38, %v4836
      %v4838 = vsel %vm4835, %v4837, %v4833
      %v4839 = vmul.f32 1.0, %v4838
      %v4840 = vrcp.pop %v4584
      %v4841 = vmul.f32 %v4584, %v4840
      %v4842 = vsub.f32 1.0, %v4841
      %v4843 = vmul.f32 %v4840, %v4842
      %v4844 = vadd.f32 %v4840, %v4843
      %vm4845 = vweird.f32 %v4584
      %vm4846 = vweird.f32 %v4840
      %vm4847 = vmor %vm4845, %vm4846
      %v4848 = vsel %vm4847, %v4840, %v4844
      %v4849 = vand.u32 2147483647, %v4584
      %vm4850 = vcmp.eq.f32.partialorder %v4849, 8.507059e+37
      %v4851 = vand.u32 %v4584, 2147483648
      %v4852 = vor.u32 1.1754944e-38, %v4851
      %v4853 = vsel %vm4850, %v4852, %v4848
      %v4854 = vmul.f32 1.0, %v4853
      %v4855 = vrcp.pop %v4585
      %v4856 = vmul.f32 %v4585, %v4855
      %v4857 = vsub.f32 1.0, %v4856
      %v4858 = vmul.f32 %v4855, %v4857
      %v4859 = vadd.f32 %v4855, %v4858
      %vm4860 = vweird.f32 %v4585
      %vm4861 = vweird.f32 %v4855
      %vm4862 = vmor %vm4860, %vm4861
      %v4863 = vsel %vm4862, %v4855, %v4859
      %v4864 = vand.u32 2147483647, %v4585
      %vm4865 = vcmp.eq.f32.partialorder %v4864, 8.507059e+37
      %v4866 = vand.u32 %v4585, 2147483648
      %v4867 = vor.u32 1.1754944e-38, %v4866
      %v4868 = vsel %vm4865, %v4867, %v4863
      %v4869 = vmul.f32 1.0, %v4868
      %v4870 = vrcp.pop %v4586
      %v4871 = vmul.f32 %v4586, %v4870
      %v4872 = vsub.f32 1.0, %v4871
      %v4873 = vmul.f32 %v4870, %v4872
      %v4874 = vadd.f32 %v4870, %v4873
      %vm4875 = vweird.f32 %v4586
      %vm4876 = vweird.f32 %v4870
      %vm4877 = vmor %vm4875, %vm4876
      %v4878 = vsel %vm4877, %v4870, %v4874
      %v4879 = vand.u32 2147483647, %v4586
      %vm4880 = vcmp.eq.f32.partialorder %v4879, 8.507059e+37
      %v4881 = vand.u32 %v4586, 2147483648
      %v4882 = vor.u32 1.1754944e-38, %v4881
      %v4883 = vsel %vm4880, %v4882, %v4878
      %v4884 = vmul.f32 1.0, %v4883
      %v4885 = vrcp.pop %v4587
      %v4886 = vmul.f32 %v4587, %v4885
      %v4887 = vsub.f32 1.0, %v4886
      %v4888 = vmul.f32 %v4885, %v4887
      %v4889 = vadd.f32 %v4885, %v4888
      %vm4890 = vweird.f32 %v4587
      %vm4891 = vweird.f32 %v4885
      %vm4892 = vmor %vm4890, %vm4891
      %v4893 = vsel %vm4892, %v4885, %v4889
      %v4894 = vand.u32 2147483647, %v4587
      %vm4895 = vcmp.eq.f32.partialorder %v4894, 8.507059e+37
      %v4896 = vand.u32 %v4587, 2147483648
      %v4897 = vor.u32 1.1754944e-38, %v4896
      %v4898 = vsel %vm4895, %v4897, %v4893
      %v4899 = vmul.f32 1.0, %v4898
      %v4900 = vrcp.pop %v4588
      %v4901 = vmul.f32 %v4588, %v4900
      %v4902 = vsub.f32 1.0, %v4901
      %v4903 = vmul.f32 %v4900, %v4902
      %v4904 = vadd.f32 %v4900, %v4903
      %vm4905 = vweird.f32 %v4588
      %vm4906 = vweird.f32 %v4900
      %vm4907 = vmor %vm4905, %vm4906
      %v4908 = vsel %vm4907, %v4900, %v4904
      %v4909 = vand.u32 2147483647, %v4588
      %vm4910 = vcmp.eq.f32.partialorder %v4909, 8.507059e+37
      %v4911 = vand.u32 %v4588, 2147483648
      %v4912 = vor.u32 1.1754944e-38, %v4911
      %v4913 = vsel %vm4910, %v4912, %v4908
      %v4914 = vmul.f32 1.0, %v4913
      %v4915 = vrcp.pop %v4589
      %v4916 = vmul.f32 %v4589, %v4915
      %v4917 = vsub.f32 1.0, %v4916
      %v4918 = vmul.f32 %v4915, %v4917
      %v4919 = vadd.f32 %v4915, %v4918
      %vm4920 = vweird.f32 %v4589
      %vm4921 = vweird.f32 %v4915
      %vm4922 = vmor %vm4920, %vm4921
      %v4923 = vsel %vm4922, %v4915, %v4919
      %v4924 = vand.u32 2147483647, %v4589
      %vm4925 = vcmp.eq.f32.partialorder %v4924, 8.507059e+37
      %v4926 = vand.u32 %v4589, 2147483648
      %v4927 = vor.u32 1.1754944e-38, %v4926
      %v4928 = vsel %vm4925, %v4927, %v4923
      %v4929 = vmul.f32 1.0, %v4928
      %v4930 = vrcp.pop %v4590
      %v4931 = vmul.f32 %v4590, %v4930
      %v4932 = vsub.f32 1.0, %v4931
      %v4933 = vmul.f32 %v4930, %v4932
      %v4934 = vadd.f32 %v4930, %v4933
      %vm4935 = vweird.f32 %v4590
      %vm4936 = vweird.f32 %v4930
      %vm4937 = vmor %vm4935, %vm4936
      %v4938 = vsel %vm4937, %v4930, %v4934
      %v4939 = vand.u32 2147483647, %v4590
      %vm4940 = vcmp.eq.f32.partialorder %v4939, 8.507059e+37
      %v4941 = vand.u32 %v4590, 2147483648
      %v4942 = vor.u32 1.1754944e-38, %v4941
      %v4943 = vsel %vm4940, %v4942, %v4938
      %v4944 = vmul.f32 1.0, %v4943
      %v4945 = vrcp.pop %v4591
      %v4946 = vmul.f32 %v4591, %v4945
      %v4947 = vsub.f32 1.0, %v4946
      %v4948 = vmul.f32 %v4945, %v4947
      %v4949 = vadd.f32 %v4945, %v4948
      %vm4950 = vweird.f32 %v4591
      %vm4951 = vweird.f32 %v4945
      %vm4952 = vmor %vm4950, %vm4951
      %v4953 = vsel %vm4952, %v4945, %v4949
      %v4954 = vand.u32 2147483647, %v4591
      %vm4955 = vcmp.eq.f32.partialorder %v4954, 8.507059e+37
      %v4956 = vand.u32 %v4591, 2147483648
      %v4957 = vor.u32 1.1754944e-38, %v4956
      %v4958 = vsel %vm4955, %v4957, %v4953
      %v4959 = vmul.f32 1.0, %v4958
      %v4960 = vrcp.pop %v4592
      %v4961 = vmul.f32 %v4592, %v4960
      %v4962 = vsub.f32 1.0, %v4961
      %v4963 = vmul.f32 %v4960, %v4962
      %v4964 = vadd.f32 %v4960, %v4963
      %vm4965 = vweird.f32 %v4592
      %vm4966 = vweird.f32 %v4960
      %vm4967 = vmor %vm4965, %vm4966
      %v4968 = vsel %vm4967, %v4960, %v4964
      %v4969 = vand.u32 2147483647, %v4592
      %vm4970 = vcmp.eq.f32.partialorder %v4969, 8.507059e+37
      %v4971 = vand.u32 %v4592, 2147483648
      %v4972 = vor.u32 1.1754944e-38, %v4971
      %v4973 = vsel %vm4970, %v4972, %v4968
      %v4974 = vmul.f32 1.0, %v4973
      %v4975 = vrcp.pop %v4593
      %v4976 = vmul.f32 %v4593, %v4975
      %v4977 = vsub.f32 1.0, %v4976
      %v4978 = vmul.f32 %v4975, %v4977
      %v4979 = vadd.f32 %v4975, %v4978
      %vm4980 = vweird.f32 %v4593
      %vm4981 = vweird.f32 %v4975
      %vm4982 = vmor %vm4980, %vm4981
      %v4983 = vsel %vm4982, %v4975, %v4979
      %v4984 = vand.u32 2147483647, %v4593
      %vm4985 = vcmp.eq.f32.partialorder %v4984, 8.507059e+37
      %v4986 = vand.u32 %v4593, 2147483648
      %v4987 = vor.u32 1.1754944e-38, %v4986
      %v4988 = vsel %vm4985, %v4987, %v4983
      %v4989 = vmul.f32 1.0, %v4988
      %v4990 = vrcp.pop %v4594
      %v4991 = vmul.f32 %v4594, %v4990
      %v4992 = vsub.f32 1.0, %v4991
      %v4993 = vmul.f32 %v4990, %v4992
      %v4994 = vadd.f32 %v4990, %v4993
      %vm4995 = vweird.f32 %v4594
      %vm4996 = vweird.f32 %v4990
      %vm4997 = vmor %vm4995, %vm4996
      %v4998 = vsel %vm4997, %v4990, %v4994
      %v4999 = vand.u32 2147483647, %v4594
      %vm5000 = vcmp.eq.f32.partialorder %v4999, 8.507059e+37
      %v5001 = vand.u32 %v4594, 2147483648
      %v5002 = vor.u32 1.1754944e-38, %v5001
      %v5003 = vsel %vm5000, %v5002, %v4998
      %v5004 = vmul.f32 1.0, %v5003
      %v5005 = vrcp.pop %v4595
      %v5006 = vmul.f32 %v4595, %v5005
      %v5007 = vsub.f32 1.0, %v5006
      %v5008 = vmul.f32 %v5005, %v5007
      %v5009 = vadd.f32 %v5005, %v5008
      %vm5010 = vweird.f32 %v4595
      %vm5011 = vweird.f32 %v5005
      %vm5012 = vmor %vm5010, %vm5011
      %v5013 = vsel %vm5012, %v5005, %v5009
      %v5014 = vand.u32 2147483647, %v4595
      %vm5015 = vcmp.eq.f32.partialorder %v5014, 8.507059e+37
      %v5016 = vand.u32 %v4595, 2147483648
      %v5017 = vor.u32 1.1754944e-38, %v5016
      %v5018 = vsel %vm5015, %v5017, %v5013
      %v5019 = vmul.f32 1.0, %v5018
      %v5020 = vrcp.pop %v4596
      %v5021 = vmul.f32 %v4596, %v5020
      %v5022 = vsub.f32 1.0, %v5021
      %v5023 = vmul.f32 %v5020, %v5022
      %v5024 = vadd.f32 %v5020, %v5023
      %vm5025 = vweird.f32 %v4596
      %vm5026 = vweird.f32 %v5020
      %vm5027 = vmor %vm5025, %vm5026
      %v5028 = vsel %vm5027, %v5020, %v5024
      %v5029 = vand.u32 2147483647, %v4596
      %vm5030 = vcmp.eq.f32.partialorder %v5029, 8.507059e+37
      %v5031 = vand.u32 %v4596, 2147483648
      %v5032 = vor.u32 1.1754944e-38, %v5031
      %v5033 = vsel %vm5030, %v5032, %v5028
      %v5034 = vmul.f32 1.0, %v5033
      %v5035 = vrcp.pop %v4597
      %v5036 = vmul.f32 %v4597, %v5035
      %v5037 = vsub.f32 1.0, %v5036
      %v5038 = vmul.f32 %v5035, %v5037
      %v5039 = vadd.f32 %v5035, %v5038
      %vm5040 = vweird.f32 %v4597
      %vm5041 = vweird.f32 %v5035
      %vm5042 = vmor %vm5040, %vm5041
      %v5043 = vsel %vm5042, %v5035, %v5039
      %v5044 = vand.u32 2147483647, %v4597
      %vm5045 = vcmp.eq.f32.partialorder %v5044, 8.507059e+37
      %v5046 = vand.u32 %v4597, 2147483648
      %v5047 = vor.u32 1.1754944e-38, %v5046
      %v5048 = vsel %vm5045, %v5047, %v5043
      %v5049 = vmul.f32 1.0, %v5048
      %v5050 = vrcp.pop %v4598
      %v5051 = vmul.f32 %v4598, %v5050
      %v5052 = vsub.f32 1.0, %v5051
      %v5053 = vmul.f32 %v5050, %v5052
      %v5054 = vadd.f32 %v5050, %v5053
      %vm5055 = vweird.f32 %v4598
      %vm5056 = vweird.f32 %v5050
      %vm5057 = vmor %vm5055, %vm5056
      %v5058 = vsel %vm5057, %v5050, %v5054
      %v5059 = vand.u32 2147483647, %v4598
      %vm5060 = vcmp.eq.f32.partialorder %v5059, 8.507059e+37
      %v5061 = vand.u32 %v4598, 2147483648
      %v5062 = vor.u32 1.1754944e-38, %v5061
      %v5063 = vsel %vm5060, %v5062, %v5058
      %v5064 = vmul.f32 1.0, %v5063
      %v5065 = vrcp.pop %v4599
      %v5066 = vmul.f32 %v4599, %v5065
      %v5067 = vsub.f32 1.0, %v5066
      %v5068 = vmul.f32 %v5065, %v5067
      %v5069 = vadd.f32 %v5065, %v5068
      %vm5070 = vweird.f32 %v4599
      %vm5071 = vweird.f32 %v5065
      %vm5072 = vmor %vm5070, %vm5071
      %v5073 = vsel %vm5072, %v5065, %v5069
      %v5074 = vand.u32 2147483647, %v4599
      %vm5075 = vcmp.eq.f32.partialorder %v5074, 8.507059e+37
      %v5076 = vand.u32 %v4599, 2147483648
      %v5077 = vor.u32 1.1754944e-38, %v5076
      %v5078 = vsel %vm5075, %v5077, %v5073
      %v5079 = vmul.f32 1.0, %v5078
      %v5080 = vmul.f32 %v4440, %v4614
      %v5081 = vmul.f32 %v4441, %v4629
      %v5082 = vmul.f32 %v4442, %v4644
      %v5083 = vmul.f32 %v4443, %v4659
      %v5084 = vmul.f32 %v4444, %v4674
      %v5085 = vmul.f32 %v4445, %v4689
      %v5086 = vmul.f32 %v4446, %v4704
      %v5087 = vmul.f32 %v4447, %v4719
      %v5088 = vmul.f32 %v4448, %v4734
      %v5089 = vmul.f32 %v4449, %v4749
      %v5090 = vmul.f32 %v4450, %v4764
      %v5091 = vmul.f32 %v4451, %v4779
      %v5092 = vmul.f32 %v4452, %v4794
      %v5093 = vmul.f32 %v4453, %v4809
      %v5094 = vmul.f32 %v4454, %v4824
      %v5095 = vmul.f32 %v4455, %v4839
      %v5096 = vmul.f32 %v4456, %v4854
      %v5097 = vmul.f32 %v4457, %v4869
      %v5098 = vmul.f32 %v4458, %v4884
      %v5099 = vmul.f32 %v4459, %v4899
      %v5100 = vmul.f32 %v4460, %v4914
      %v5101 = vmul.f32 %v4461, %v4929
      %v5102 = vmul.f32 %v4462, %v4944
      %v5103 = vmul.f32 %v4463, %v4959
      %v5104 = vmul.f32 %v4464, %v4974
      %v5105 = vmul.f32 %v4465, %v4989
      %v5106 = vmul.f32 %v4466, %v5004
      %v5107 = vmul.f32 %v4467, %v5019
      %v5108 = vmul.f32 %v4468, %v5034
      %v5109 = vmul.f32 %v4469, %v5049
      %v5110 = vmul.f32 %v4470, %v5064
      %v5111 = vmul.f32 %v4471, %v5079
      %5112 = vst.msk [vmem:[#allocation3 + $0x7] sm:$0xff] %vm4106, 0.0
      %5113 = vst.msk [vmem:[#allocation3 + $0xf] sm:$0xff] %vm4106, 0.0
      %vm5114 = vcmask 58368
      %5115 = vst.msk [vmem:[#allocation3 + $0x17] sm:$0x3] %vm5114, 0.0
      %s5116 = scalar_lea.vmem [#allocation3], 544
      %5117 = vst.msk [vmem:[%s5116 + $0x7] sm:$0xff] %vm4106, 0.0
      %5118 = vst.msk [vmem:[%s5116 + $0xf] sm:$0xff] %vm4106, 0.0
      %5119 = vst.msk [vmem:[%s5116 + $0x17] sm:$0x3] %vm5114, 0.0
      %s5120 = scalar_lea.vmem [#allocation3], 32
      %vm5121 = vcmask 57344
      %5122 = vst.msk [vmem:[%s5120 + $0x7] sm:$0x1] %vm5121, 0.0
      %5123 = vst.msk [vmem:[%s5120 + $0x27] sm:$0x1] %vm5121, 0.0
      %5124 = vst.msk [vmem:[%s5120 + $0x47] sm:$0x1] %vm5121, 0.0
      %5125 = vst.msk [vmem:[%s5120 + $0x67] sm:$0x1] %vm5121, 0.0
      %5126 = vst.msk [vmem:[%s5120 + $0x87] sm:$0x1] %vm5121, 0.0
      %5127 = vst.msk [vmem:[%s5120 + $0xa7] sm:$0x1] %vm5121, 0.0
      %5128 = vst.msk [vmem:[%s5120 + $0xc7] sm:$0x1] %vm5121, 0.0
      %5129 = vst.msk [vmem:[%s5120 + $0xe7] sm:$0x1] %vm5121, 0.0
      %5130 = vst.msk [vmem:[%s5120 + $0x107] sm:$0x1] %vm5121, 0.0
      %5131 = vst.msk [vmem:[%s5120 + $0x127] sm:$0x1] %vm5121, 0.0
      %5132 = vst.msk [vmem:[%s5120 + $0x147] sm:$0x1] %vm5121, 0.0
      %5133 = vst.msk [vmem:[%s5120 + $0x167] sm:$0x1] %vm5121, 0.0
      %5134 = vst.msk [vmem:[%s5120 + $0x187] sm:$0x1] %vm5121, 0.0
      %5135 = vst.msk [vmem:[%s5120 + $0x1a7] sm:$0x1] %vm5121, 0.0
      %5136 = vst.msk [vmem:[%s5120 + $0x1c7] sm:$0x1] %vm5121, 0.0
      %5137 = vst.msk [vmem:[%s5120 + $0x1e7] sm:$0x1] %vm5121, 0.0
      %5138 = vst.msk [vmem:[%s5120 + $0x18] sm:$0x1] %vm5121, 0.0
      %5139 = vst.msk [vmem:[%s5120 + $0x38] sm:$0x1] %vm5121, 0.0
      %5140 = vst.msk [vmem:[%s5120 + $0x58] sm:$0x1] %vm5121, 0.0
      %5141 = vst.msk [vmem:[%s5120 + $0x78] sm:$0x1] %vm5121, 0.0
      %5142 = vst.msk [vmem:[%s5120 + $0x98] sm:$0x1] %vm5121, 0.0
      %5143 = vst.msk [vmem:[%s5120 + $0xb8] sm:$0x1] %vm5121, 0.0
      %5144 = vst.msk [vmem:[%s5120 + $0xd8] sm:$0x1] %vm5121, 0.0
      %5145 = vst.msk [vmem:[%s5120 + $0xf8] sm:$0x1] %vm5121, 0.0
      %5146 = vst.msk [vmem:[%s5120 + $0x118] sm:$0x1] %vm5121, 0.0
      %5147 = vst.msk [vmem:[%s5120 + $0x138] sm:$0x1] %vm5121, 0.0
      %5148 = vst.msk [vmem:[%s5120 + $0x158] sm:$0x1] %vm5121, 0.0
      %5149 = vst.msk [vmem:[%s5120 + $0x178] sm:$0x1] %vm5121, 0.0
      %5150 = vst.msk [vmem:[%s5120 + $0x198] sm:$0x1] %vm5121, 0.0
      %5151 = vst.msk [vmem:[%s5120 + $0x1b8] sm:$0x1] %vm5121, 0.0
      %5152 = vst.msk [vmem:[%s5120 + $0x1d8] sm:$0x1] %vm5121, 0.0
      %5153 = vst.msk [vmem:[%s5120 + $0x1f8] sm:$0x1] %vm5121, 0.0
      %5154 = vst.msk [vmem:[%s5120 + $0x8] sm:$0xff] %vm4106, %v5080
      %5155 = vst.msk [vmem:[%s5120 + $0x10] sm:$0xff] %vm4106, %v5081
      %5156 = vst.msk [vmem:[%s5120 + $0x28] sm:$0xff] %vm4106, %v5082
      %5157 = vst.msk [vmem:[%s5120 + $0x30] sm:$0xff] %vm4106, %v5083
      %5158 = vst.msk [vmem:[%s5120 + $0x48] sm:$0xff] %vm4106, %v5084
      %5159 = vst.msk [vmem:[%s5120 + $0x50] sm:$0xff] %vm4106, %v5085
      %5160 = vst.msk [vmem:[%s5120 + $0x68] sm:$0xff] %vm4106, %v5086
      %5161 = vst.msk [vmem:[%s5120 + $0x70] sm:$0xff] %vm4106, %v5087
      %5162 = vst.msk [vmem:[%s5120 + $0x88] sm:$0xff] %vm4106, %v5088
      %5163 = vst.msk [vmem:[%s5120 + $0x90] sm:$0xff] %vm4106, %v5089
      %5164 = vst.msk [vmem:[%s5120 + $0xa8] sm:$0xff] %vm4106, %v5090
      %5165 = vst.msk [vmem:[%s5120 + $0xb0] sm:$0xff] %vm4106, %v5091
      %5166 = vst.msk [vmem:[%s5120 + $0xc8] sm:$0xff] %vm4106, %v5092
      %5167 = vst.msk [vmem:[%s5120 + $0xd0] sm:$0xff] %vm4106, %v5093
      %5168 = vst.msk [vmem:[%s5120 + $0xe8] sm:$0xff] %vm4106, %v5094
      %5169 = vst.msk [vmem:[%s5120 + $0xf0] sm:$0xff] %vm4106, %v5095
      %5170 = vst.msk [vmem:[%s5120 + $0x108] sm:$0xff] %vm4106, %v5096
      %5171 = vst.msk [vmem:[%s5120 + $0x110] sm:$0xff] %vm4106, %v5097
      %5172 = vst.msk [vmem:[%s5120 + $0x128] sm:$0xff] %vm4106, %v5098
      %5173 = vst.msk [vmem:[%s5120 + $0x130] sm:$0xff] %vm4106, %v5099
      %5174 = vst.msk [vmem:[%s5120 + $0x148] sm:$0xff] %vm4106, %v5100
      %5175 = vst.msk [vmem:[%s5120 + $0x150] sm:$0xff] %vm4106, %v5101
      %5176 = vst.msk [vmem:[%s5120 + $0x168] sm:$0xff] %vm4106, %v5102
      %5177 = vst.msk [vmem:[%s5120 + $0x170] sm:$0xff] %vm4106, %v5103
      %5178 = vst.msk [vmem:[%s5120 + $0x188] sm:$0xff] %vm4106, %v5104
      %5179 = vst.msk [vmem:[%s5120 + $0x190] sm:$0xff] %vm4106, %v5105
      %5180 = vst.msk [vmem:[%s5120 + $0x1a8] sm:$0xff] %vm4106, %v5106
      %5181 = vst.msk [vmem:[%s5120 + $0x1b0] sm:$0xff] %vm4106, %v5107
      %5182 = vst.msk [vmem:[%s5120 + $0x1c8] sm:$0xff] %vm4106, %v5108
      %5183 = vst.msk [vmem:[%s5120 + $0x1d0] sm:$0xff] %vm4106, %v5109
      %5184 = vst.msk [vmem:[%s5120 + $0x1e8] sm:$0xff] %vm4106, %v5110
      %5185 = vst.msk [vmem:[%s5120 + $0x1f0] sm:$0xff] %vm4106, %v5111
      %v5186 = vld [vmem:[#allocation3 + $0x7] sm:$0xff]
      %v5187 = vld [vmem:[#allocation3 + $0xf] sm:$0xff]
      %v5188 = vld [vmem:[#allocation3 + $0x27] sm:$0xff]
      %v5189 = vld [vmem:[#allocation3 + $0x2f] sm:$0xff]
      %v5190 = vld [vmem:[#allocation3 + $0x47] sm:$0xff]
      %v5191 = vld [vmem:[#allocation3 + $0x4f] sm:$0xff]
      %v5192 = vld [vmem:[#allocation3 + $0x67] sm:$0xff]
      %v5193 = vld [vmem:[#allocation3 + $0x6f] sm:$0xff]
      %v5194 = vld [vmem:[#allocation3 + $0x87] sm:$0xff]
      %v5195 = vld [vmem:[#allocation3 + $0x8f] sm:$0xff]
      %v5196 = vld [vmem:[#allocation3 + $0xa7] sm:$0xff]
      %v5197 = vld [vmem:[#allocation3 + $0xaf] sm:$0xff]
      %v5198 = vld [vmem:[#allocation3 + $0xc7] sm:$0xff]
      %v5199 = vld [vmem:[#allocation3 + $0xcf] sm:$0xff]
      %v5200 = vld [vmem:[#allocation3 + $0xe7] sm:$0xff]
      %v5201 = vld [vmem:[#allocation3 + $0xef] sm:$0xff]
      %v5202 = vld [vmem:[#allocation3 + $0x107] sm:$0xff]
      %v5203 = vld [vmem:[#allocation3 + $0x10f] sm:$0xff]
      %v5204 = vld [vmem:[#allocation3 + $0x127] sm:$0xff]
      %v5205 = vld [vmem:[#allocation3 + $0x12f] sm:$0xff]
      %v5206 = vld [vmem:[#allocation3 + $0x147] sm:$0xff]
      %v5207 = vld [vmem:[#allocation3 + $0x14f] sm:$0xff]
      %v5208 = vld [vmem:[#allocation3 + $0x167] sm:$0xff]
      %v5209 = vld [vmem:[#allocation3 + $0x16f] sm:$0xff]
      %v5210 = vld [vmem:[#allocation3 + $0x187] sm:$0xff]
      %v5211 = vld [vmem:[#allocation3 + $0x18f] sm:$0xff]
      %v5212 = vld [vmem:[#allocation3 + $0x1a7] sm:$0xff]
      %v5213 = vld [vmem:[#allocation3 + $0x1af] sm:$0xff]
      %v5214 = vld [vmem:[#allocation3 + $0x1c7] sm:$0xff]
      %v5215 = vld [vmem:[#allocation3 + $0x1cf] sm:$0xff]
      %v5216 = vld [vmem:[#allocation3 + $0x1e7] sm:$0xff]
      %v5217 = vld [vmem:[#allocation3 + $0x1ef] sm:$0xff]
      %v5218 = vld [vmem:[%s10] sm:$0xff]
      %v5219 = vld [vmem:[#allocation3 + $0x8] sm:$0xff]
      %v5220 = vld [vmem:[#allocation3 + $0x10] sm:$0xff]
      %v5221 = vld [vmem:[#allocation3 + $0x28] sm:$0xff]
      %v5222 = vld [vmem:[#allocation3 + $0x30] sm:$0xff]
      %v5223 = vld [vmem:[#allocation3 + $0x48] sm:$0xff]
      %v5224 = vld [vmem:[#allocation3 + $0x50] sm:$0xff]
      %v5225 = vld [vmem:[#allocation3 + $0x68] sm:$0xff]
      %v5226 = vld [vmem:[#allocation3 + $0x70] sm:$0xff]
      %v5227 = vld [vmem:[#allocation3 + $0x88] sm:$0xff]
      %v5228 = vld [vmem:[#allocation3 + $0x90] sm:$0xff]
      %v5229 = vld [vmem:[#allocation3 + $0xa8] sm:$0xff]
      %v5230 = vld [vmem:[#allocation3 + $0xb0] sm:$0xff]
      %v5231 = vld [vmem:[#allocation3 + $0xc8] sm:$0xff]
      %v5232 = vld [vmem:[#allocation3 + $0xd0] sm:$0xff]
      %v5233 = vld [vmem:[#allocation3 + $0xe8] sm:$0xff]
      %v5234 = vld [vmem:[#allocation3 + $0xf0] sm:$0xff]
      %v5235 = vld [vmem:[#allocation3 + $0x108] sm:$0xff]
      %v5236 = vld [vmem:[#allocation3 + $0x110] sm:$0xff]
      %v5237 = vld [vmem:[#allocation3 + $0x128] sm:$0xff]
      %v5238 = vld [vmem:[#allocation3 + $0x130] sm:$0xff]
      %v5239 = vld [vmem:[#allocation3 + $0x148] sm:$0xff]
      %v5240 = vld [vmem:[#allocation3 + $0x150] sm:$0xff]
      %v5241 = vld [vmem:[#allocation3 + $0x168] sm:$0xff]
      %v5242 = vld [vmem:[#allocation3 + $0x170] sm:$0xff]
      %v5243 = vld [vmem:[#allocation3 + $0x188] sm:$0xff]
      %v5244 = vld [vmem:[#allocation3 + $0x190] sm:$0xff]
      %v5245 = vld [vmem:[#allocation3 + $0x1a8] sm:$0xff]
      %v5246 = vld [vmem:[#allocation3 + $0x1b0] sm:$0xff]
      %v5247 = vld [vmem:[#allocation3 + $0x1c8] sm:$0xff]
      %v5248 = vld [vmem:[#allocation3 + $0x1d0] sm:$0xff]
      %v5249 = vld [vmem:[#allocation3 + $0x1e8] sm:$0xff]
      %v5250 = vld [vmem:[#allocation3 + $0x1f0] sm:$0xff]
      %v5251 = vld [vmem:[%s10 + $0x8] sm:$0xff]
      %v5253 = vsel %vm4106, %v5219, 0
      %v5256 = vsel %vm4106, %v5220, 0
      %v5259 = vsel %vm4106, %v5221, 0
      %v5262 = vsel %vm4106, %v5222, 0
      %v5265 = vsel %vm4106, %v5223, 0
      %v5268 = vsel %vm4106, %v5224, 0
      %v5271 = vsel %vm4106, %v5225, 0
      %v5274 = vsel %vm4106, %v5226, 0
      %v5277 = vsel %vm4106, %v5227, 0
      %v5280 = vsel %vm4106, %v5228, 0
      %v5283 = vsel %vm4106, %v5229, 0
      %v5286 = vsel %vm4106, %v5230, 0
      %v5289 = vsel %vm4106, %v5231, 0
      %v5292 = vsel %vm4106, %v5232, 0
      %v5295 = vsel %vm4106, %v5233, 0
      %v5298 = vsel %vm4106, %v5234, 0
      %v5301 = vsel %vm4106, %v5235, 0
      %v5304 = vsel %vm4106, %v5236, 0
      %v5307 = vsel %vm4106, %v5237, 0
      %v5310 = vsel %vm4106, %v5238, 0
      %v5313 = vsel %vm4106, %v5239, 0
      %v5316 = vsel %vm4106, %v5240, 0
      %v5319 = vsel %vm4106, %v5241, 0
      %v5322 = vsel %vm4106, %v5242, 0
      %v5325 = vsel %vm4106, %v5243, 0
      %v5328 = vsel %vm4106, %v5244, 0
      %v5331 = vsel %vm4106, %v5245, 0
      %v5334 = vsel %vm4106, %v5246, 0
      %v5337 = vsel %vm4106, %v5247, 0
      %v5340 = vsel %vm4106, %v5248, 0
      %v5343 = vsel %vm4106, %v5249, 0
      %v5346 = vsel %vm4106, %v5250, 0
      %5348 = vmatpush.msra.mxu0 0.0
      %5349 = vmatpush.msra.mxu0 0.0
      %5350 = vmatpush.msra.mxu0 0.0
      %5351 = vmatpush.msra.mxu0 0.0
      %5352 = vmatpush.msra.mxu0 0.0
      %5353 = vmatpush.msra.mxu0 0.0
      %5354 = vmatpush.msra.mxu0 0.0
      %5355 = vmatpush.msra.mxu0 0.0
      %5356 = vmatpush.msra.mxu0 0.0
      %5357 = vmatpush.msra.mxu0 0.0
      %5358 = vmatpush.msra.mxu0 0.0
      %5359 = vmatpush.msra.mxu0 0.0
      %5360 = vmatpush.msra.mxu0 0.0
      %5361 = vmatpush.msra.mxu0 0.0
      %5362 = vmatpush.msra.mxu0 0.0
      %5363 = vmatpush.msra.mxu0 %v5251
      %5364 = vmatmul.f32.gmra.mxu0 %v5253
      %v5365 = vpop.f32.mrf.mxu0
      %v5366 = vadd.f32 0.0, %v5365
      %5367 = vmatmul.f32.gmra.mxu0 %v5256
      %v5368 = vpop.f32.mrf.mxu0
      %v5369 = vadd.f32 0.0, %v5368
      %5370 = vmatmul.f32.gmra.mxu0 %v5259
      %v5371 = vpop.f32.mrf.mxu0
      %v5372 = vadd.f32 0.0, %v5371
      %5373 = vmatmul.f32.gmra.mxu0 %v5262
      %v5374 = vpop.f32.mrf.mxu0
      %v5375 = vadd.f32 0.0, %v5374
      %5376 = vmatmul.f32.gmra.mxu0 %v5265
      %v5377 = vpop.f32.mrf.mxu0
      %v5378 = vadd.f32 0.0, %v5377
      %5379 = vmatmul.f32.gmra.mxu0 %v5268
      %v5380 = vpop.f32.mrf.mxu0
      %v5381 = vadd.f32 0.0, %v5380
      %5382 = vmatmul.f32.gmra.mxu0 %v5271
      %v5383 = vpop.f32.mrf.mxu0
      %v5384 = vadd.f32 0.0, %v5383
      %5385 = vmatmul.f32.gmra.mxu0 %v5274
      %v5386 = vpop.f32.mrf.mxu0
      %v5387 = vadd.f32 0.0, %v5386
      %5388 = vmatmul.f32.gmra.mxu0 %v5277
      %v5389 = vpop.f32.mrf.mxu0
      %v5390 = vadd.f32 0.0, %v5389
      %5391 = vmatmul.f32.gmra.mxu0 %v5280
      %v5392 = vpop.f32.mrf.mxu0
      %v5393 = vadd.f32 0.0, %v5392
      %5394 = vmatmul.f32.gmra.mxu0 %v5283
      %v5395 = vpop.f32.mrf.mxu0
      %v5396 = vadd.f32 0.0, %v5395
      %5397 = vmatmul.f32.gmra.mxu0 %v5286
      %v5398 = vpop.f32.mrf.mxu0
      %v5399 = vadd.f32 0.0, %v5398
      %5400 = vmatmul.f32.gmra.mxu0 %v5289
      %v5401 = vpop.f32.mrf.mxu0
      %v5402 = vadd.f32 0.0, %v5401
      %5403 = vmatmul.f32.gmra.mxu0 %v5292
      %v5404 = vpop.f32.mrf.mxu0
      %v5405 = vadd.f32 0.0, %v5404
      %5406 = vmatmul.f32.gmra.mxu0 %v5295
      %v5407 = vpop.f32.mrf.mxu0
      %v5408 = vadd.f32 0.0, %v5407
      %5409 = vmatmul.f32.gmra.mxu0 %v5298
      %v5410 = vpop.f32.mrf.mxu0
      %v5411 = vadd.f32 0.0, %v5410
      %5412 = vmatmul.f32.gmra.mxu0 %v5301
      %v5413 = vpop.f32.mrf.mxu0
      %v5414 = vadd.f32 0.0, %v5413
      %5415 = vmatmul.f32.gmra.mxu0 %v5304
      %v5416 = vpop.f32.mrf.mxu0
      %v5417 = vadd.f32 0.0, %v5416
      %5418 = vmatmul.f32.gmra.mxu0 %v5307
      %v5419 = vpop.f32.mrf.mxu0
      %v5420 = vadd.f32 0.0, %v5419
      %5421 = vmatmul.f32.gmra.mxu0 %v5310
      %v5422 = vpop.f32.mrf.mxu0
      %v5423 = vadd.f32 0.0, %v5422
      %5424 = vmatmul.f32.gmra.mxu0 %v5313
      %v5425 = vpop.f32.mrf.mxu0
      %v5426 = vadd.f32 0.0, %v5425
      %5427 = vmatmul.f32.gmra.mxu0 %v5316
      %v5428 = vpop.f32.mrf.mxu0
      %v5429 = vadd.f32 0.0, %v5428
      %5430 = vmatmul.f32.gmra.mxu0 %v5319
      %v5431 = vpop.f32.mrf.mxu0
      %v5432 = vadd.f32 0.0, %v5431
      %5433 = vmatmul.f32.gmra.mxu0 %v5322
      %v5434 = vpop.f32.mrf.mxu0
      %v5435 = vadd.f32 0.0, %v5434
      %5436 = vmatmul.f32.gmra.mxu0 %v5325
      %v5437 = vpop.f32.mrf.mxu0
      %v5438 = vadd.f32 0.0, %v5437
      %5439 = vmatmul.f32.gmra.mxu0 %v5328
      %v5440 = vpop.f32.mrf.mxu0
      %v5441 = vadd.f32 0.0, %v5440
      %5442 = vmatmul.f32.gmra.mxu0 %v5331
      %v5443 = vpop.f32.mrf.mxu0
      %v5444 = vadd.f32 0.0, %v5443
      %5445 = vmatmul.f32.gmra.mxu0 %v5334
      %v5446 = vpop.f32.mrf.mxu0
      %v5447 = vadd.f32 0.0, %v5446
      %5448 = vmatmul.f32.gmra.mxu0 %v5337
      %v5449 = vpop.f32.mrf.mxu0
      %v5450 = vadd.f32 0.0, %v5449
      %5451 = vmatmul.f32.gmra.mxu0 %v5340
      %v5452 = vpop.f32.mrf.mxu0
      %v5453 = vadd.f32 0.0, %v5452
      %5454 = vmatmul.f32.gmra.mxu0 %v5343
      %v5455 = vpop.f32.mrf.mxu0
      %v5456 = vadd.f32 0.0, %v5455
      %5457 = vmatmul.f32.gmra.mxu0 %v5346
      %v5458 = vpop.f32.mrf.mxu0
      %v5459 = vadd.f32 0.0, %v5458
      %5460 = vdwg.mxu0
      %v5462 = vsel %vm4106, %v5186, 0
      %v5465 = vsel %vm4106, %v5187, 0
      %v5468 = vsel %vm4106, %v5188, 0
      %v5471 = vsel %vm4106, %v5189, 0
      %v5474 = vsel %vm4106, %v5190, 0
      %v5477 = vsel %vm4106, %v5191, 0
      %v5480 = vsel %vm4106, %v5192, 0
      %v5483 = vsel %vm4106, %v5193, 0
      %v5486 = vsel %vm4106, %v5194, 0
      %v5489 = vsel %vm4106, %v5195, 0
      %v5492 = vsel %vm4106, %v5196, 0
      %v5495 = vsel %vm4106, %v5197, 0
      %v5498 = vsel %vm4106, %v5198, 0
      %v5501 = vsel %vm4106, %v5199, 0
      %v5504 = vsel %vm4106, %v5200, 0
      %v5507 = vsel %vm4106, %v5201, 0
      %v5510 = vsel %vm4106, %v5202, 0
      %v5513 = vsel %vm4106, %v5203, 0
      %v5516 = vsel %vm4106, %v5204, 0
      %v5519 = vsel %vm4106, %v5205, 0
      %v5522 = vsel %vm4106, %v5206, 0
      %v5525 = vsel %vm4106, %v5207, 0
      %v5528 = vsel %vm4106, %v5208, 0
      %v5531 = vsel %vm4106, %v5209, 0
      %v5534 = vsel %vm4106, %v5210, 0
      %v5537 = vsel %vm4106, %v5211, 0
      %v5540 = vsel %vm4106, %v5212, 0
      %v5543 = vsel %vm4106, %v5213, 0
      %v5546 = vsel %vm4106, %v5214, 0
      %v5549 = vsel %vm4106, %v5215, 0
      %v5552 = vsel %vm4106, %v5216, 0
      %v5555 = vsel %vm4106, %v5217, 0
      %5557 = vmatpush.msra.mxu0 0.0
      %5558 = vmatpush.msra.mxu0 0.0
      %5559 = vmatpush.msra.mxu0 0.0
      %5560 = vmatpush.msra.mxu0 0.0
      %5561 = vmatpush.msra.mxu0 0.0
      %5562 = vmatpush.msra.mxu0 0.0
      %5563 = vmatpush.msra.mxu0 0.0
      %5564 = vmatpush.msra.mxu0 0.0
      %5565 = vmatpush.msra.mxu0 0.0
      %5566 = vmatpush.msra.mxu0 0.0
      %5567 = vmatpush.msra.mxu0 0.0
      %5568 = vmatpush.msra.mxu0 0.0
      %5569 = vmatpush.msra.mxu0 0.0
      %5570 = vmatpush.msra.mxu0 0.0
      %5571 = vmatpush.msra.mxu0 0.0
      %5572 = vmatpush.msra.mxu0 %v5218
      %5573 = vmatmul.f32.gmra.mxu0 %v5462
      %v5574 = vpop.f32.mrf.mxu0
      %v5575 = vadd.f32 %v5366, %v5574
      %5576 = vmatmul.f32.gmra.mxu0 %v5465
      %v5577 = vpop.f32.mrf.mxu0
      %v5578 = vadd.f32 %v5369, %v5577
      %5579 = vmatmul.f32.gmra.mxu0 %v5468
      %v5580 = vpop.f32.mrf.mxu0
      %v5581 = vadd.f32 %v5372, %v5580
      %5582 = vmatmul.f32.gmra.mxu0 %v5471
      %v5583 = vpop.f32.mrf.mxu0
      %v5584 = vadd.f32 %v5375, %v5583
      %5585 = vmatmul.f32.gmra.mxu0 %v5474
      %v5586 = vpop.f32.mrf.mxu0
      %v5587 = vadd.f32 %v5378, %v5586
      %5588 = vmatmul.f32.gmra.mxu0 %v5477
      %v5589 = vpop.f32.mrf.mxu0
      %v5590 = vadd.f32 %v5381, %v5589
      %5591 = vmatmul.f32.gmra.mxu0 %v5480
      %v5592 = vpop.f32.mrf.mxu0
      %v5593 = vadd.f32 %v5384, %v5592
      %5594 = vmatmul.f32.gmra.mxu0 %v5483
      %v5595 = vpop.f32.mrf.mxu0
      %v5596 = vadd.f32 %v5387, %v5595
      %5597 = vmatmul.f32.gmra.mxu0 %v5486
      %v5598 = vpop.f32.mrf.mxu0
      %v5599 = vadd.f32 %v5390, %v5598
      %5600 = vmatmul.f32.gmra.mxu0 %v5489
      %v5601 = vpop.f32.mrf.mxu0
      %v5602 = vadd.f32 %v5393, %v5601
      %5603 = vmatmul.f32.gmra.mxu0 %v5492
      %v5604 = vpop.f32.mrf.mxu0
      %v5605 = vadd.f32 %v5396, %v5604
      %5606 = vmatmul.f32.gmra.mxu0 %v5495
      %v5607 = vpop.f32.mrf.mxu0
      %v5608 = vadd.f32 %v5399, %v5607
      %5609 = vmatmul.f32.gmra.mxu0 %v5498
      %v5610 = vpop.f32.mrf.mxu0
      %v5611 = vadd.f32 %v5402, %v5610
      %5612 = vmatmul.f32.gmra.mxu0 %v5501
      %v5613 = vpop.f32.mrf.mxu0
      %v5614 = vadd.f32 %v5405, %v5613
      %5615 = vmatmul.f32.gmra.mxu0 %v5504
      %v5616 = vpop.f32.mrf.mxu0
      %v5617 = vadd.f32 %v5408, %v5616
      %5618 = vmatmul.f32.gmra.mxu0 %v5507
      %v5619 = vpop.f32.mrf.mxu0
      %v5620 = vadd.f32 %v5411, %v5619
      %5621 = vmatmul.f32.gmra.mxu0 %v5510
      %v5622 = vpop.f32.mrf.mxu0
      %v5623 = vadd.f32 %v5414, %v5622
      %5624 = vmatmul.f32.gmra.mxu0 %v5513
      %v5625 = vpop.f32.mrf.mxu0
      %v5626 = vadd.f32 %v5417, %v5625
      %5627 = vmatmul.f32.gmra.mxu0 %v5516
      %v5628 = vpop.f32.mrf.mxu0
      %v5629 = vadd.f32 %v5420, %v5628
      %5630 = vmatmul.f32.gmra.mxu0 %v5519
      %v5631 = vpop.f32.mrf.mxu0
      %v5632 = vadd.f32 %v5423, %v5631
      %5633 = vmatmul.f32.gmra.mxu0 %v5522
      %v5634 = vpop.f32.mrf.mxu0
      %v5635 = vadd.f32 %v5426, %v5634
      %5636 = vmatmul.f32.gmra.mxu0 %v5525
      %v5637 = vpop.f32.mrf.mxu0
      %v5638 = vadd.f32 %v5429, %v5637
      %5639 = vmatmul.f32.gmra.mxu0 %v5528
      %v5640 = vpop.f32.mrf.mxu0
      %v5641 = vadd.f32 %v5432, %v5640
      %5642 = vmatmul.f32.gmra.mxu0 %v5531
      %v5643 = vpop.f32.mrf.mxu0
      %v5644 = vadd.f32 %v5435, %v5643
      %5645 = vmatmul.f32.gmra.mxu0 %v5534
      %v5646 = vpop.f32.mrf.mxu0
      %v5647 = vadd.f32 %v5438, %v5646
      %5648 = vmatmul.f32.gmra.mxu0 %v5537
      %v5649 = vpop.f32.mrf.mxu0
      %v5650 = vadd.f32 %v5441, %v5649
      %5651 = vmatmul.f32.gmra.mxu0 %v5540
      %v5652 = vpop.f32.mrf.mxu0
      %v5653 = vadd.f32 %v5444, %v5652
      %5654 = vmatmul.f32.gmra.mxu0 %v5543
      %v5655 = vpop.f32.mrf.mxu0
      %v5656 = vadd.f32 %v5447, %v5655
      %5657 = vmatmul.f32.gmra.mxu0 %v5546
      %v5658 = vpop.f32.mrf.mxu0
      %v5659 = vadd.f32 %v5450, %v5658
      %5660 = vmatmul.f32.gmra.mxu0 %v5549
      %v5661 = vpop.f32.mrf.mxu0
      %v5662 = vadd.f32 %v5453, %v5661
      %5663 = vmatmul.f32.gmra.mxu0 %v5552
      %v5664 = vpop.f32.mrf.mxu0
      %v5665 = vadd.f32 %v5456, %v5664
      %5666 = vmatmul.f32.gmra.mxu0 %v5555
      %v5667 = vpop.f32.mrf.mxu0
      %v5668 = vadd.f32 %v5459, %v5667
      %5669 = vdwg.mxu0
      %v5670 = vld [vmem:[#allocation3 + $0x9] sm:$0xff]
      %v5671 = vld [vmem:[#allocation3 + $0x11] sm:$0xff]
      %v5672 = vld [vmem:[#allocation3 + $0x29] sm:$0xff]
      %v5673 = vld [vmem:[#allocation3 + $0x31] sm:$0xff]
      %v5674 = vld [vmem:[#allocation3 + $0x49] sm:$0xff]
      %v5675 = vld [vmem:[#allocation3 + $0x51] sm:$0xff]
      %v5676 = vld [vmem:[#allocation3 + $0x69] sm:$0xff]
      %v5677 = vld [vmem:[#allocation3 + $0x71] sm:$0xff]
      %v5678 = vld [vmem:[#allocation3 + $0x89] sm:$0xff]
      %v5679 = vld [vmem:[#allocation3 + $0x91] sm:$0xff]
      %v5680 = vld [vmem:[#allocation3 + $0xa9] sm:$0xff]
      %v5681 = vld [vmem:[#allocation3 + $0xb1] sm:$0xff]
      %v5682 = vld [vmem:[#allocation3 + $0xc9] sm:$0xff]
      %v5683 = vld [vmem:[#allocation3 + $0xd1] sm:$0xff]
      %v5684 = vld [vmem:[#allocation3 + $0xe9] sm:$0xff]
      %v5685 = vld [vmem:[#allocation3 + $0xf1] sm:$0xff]
      %v5686 = vld [vmem:[#allocation3 + $0x109] sm:$0xff]
      %v5687 = vld [vmem:[#allocation3 + $0x111] sm:$0xff]
      %v5688 = vld [vmem:[#allocation3 + $0x129] sm:$0xff]
      %v5689 = vld [vmem:[#allocation3 + $0x131] sm:$0xff]
      %v5690 = vld [vmem:[#allocation3 + $0x149] sm:$0xff]
      %v5691 = vld [vmem:[#allocation3 + $0x151] sm:$0xff]
      %v5692 = vld [vmem:[#allocation3 + $0x169] sm:$0xff]
      %v5693 = vld [vmem:[#allocation3 + $0x171] sm:$0xff]
      %v5694 = vld [vmem:[#allocation3 + $0x189] sm:$0xff]
      %v5695 = vld [vmem:[#allocation3 + $0x191] sm:$0xff]
      %v5696 = vld [vmem:[#allocation3 + $0x1a9] sm:$0xff]
      %v5697 = vld [vmem:[#allocation3 + $0x1b1] sm:$0xff]
      %v5698 = vld [vmem:[#allocation3 + $0x1c9] sm:$0xff]
      %v5699 = vld [vmem:[#allocation3 + $0x1d1] sm:$0xff]
      %v5700 = vld [vmem:[#allocation3 + $0x1e9] sm:$0xff]
      %v5701 = vld [vmem:[#allocation3 + $0x1f1] sm:$0xff]
      %v5702 = vld [vmem:[%s10 + $0x10] sm:$0xff]
      %v5704 = vsel %vm4106, %v5670, 0
      %v5707 = vsel %vm4106, %v5671, 0
      %v5710 = vsel %vm4106, %v5672, 0
      %v5713 = vsel %vm4106, %v5673, 0
      %v5716 = vsel %vm4106, %v5674, 0
      %v5719 = vsel %vm4106, %v5675, 0
      %v5722 = vsel %vm4106, %v5676, 0
      %v5725 = vsel %vm4106, %v5677, 0
      %v5728 = vsel %vm4106, %v5678, 0
      %v5731 = vsel %vm4106, %v5679, 0
      %v5734 = vsel %vm4106, %v5680, 0
      %v5737 = vsel %vm4106, %v5681, 0
      %v5740 = vsel %vm4106, %v5682, 0
      %v5743 = vsel %vm4106, %v5683, 0
      %v5746 = vsel %vm4106, %v5684, 0
      %v5749 = vsel %vm4106, %v5685, 0
      %v5752 = vsel %vm4106, %v5686, 0
      %v5755 = vsel %vm4106, %v5687, 0
      %v5758 = vsel %vm4106, %v5688, 0
      %v5761 = vsel %vm4106, %v5689, 0
      %v5764 = vsel %vm4106, %v5690, 0
      %v5767 = vsel %vm4106, %v5691, 0
      %v5770 = vsel %vm4106, %v5692, 0
      %v5773 = vsel %vm4106, %v5693, 0
      %v5776 = vsel %vm4106, %v5694, 0
      %v5779 = vsel %vm4106, %v5695, 0
      %v5782 = vsel %vm4106, %v5696, 0
      %v5785 = vsel %vm4106, %v5697, 0
      %v5788 = vsel %vm4106, %v5698, 0
      %v5791 = vsel %vm4106, %v5699, 0
      %v5794 = vsel %vm4106, %v5700, 0
      %v5797 = vsel %vm4106, %v5701, 0
      %5799 = vmatpush.msra.mxu0 0.0
      %5800 = vmatpush.msra.mxu0 0.0
      %5801 = vmatpush.msra.mxu0 0.0
      %5802 = vmatpush.msra.mxu0 0.0
      %5803 = vmatpush.msra.mxu0 0.0
      %5804 = vmatpush.msra.mxu0 0.0
      %5805 = vmatpush.msra.mxu0 0.0
      %5806 = vmatpush.msra.mxu0 0.0
      %5807 = vmatpush.msra.mxu0 0.0
      %5808 = vmatpush.msra.mxu0 0.0
      %5809 = vmatpush.msra.mxu0 0.0
      %5810 = vmatpush.msra.mxu0 0.0
      %5811 = vmatpush.msra.mxu0 0.0
      %5812 = vmatpush.msra.mxu0 0.0
      %5813 = vmatpush.msra.mxu0 0.0
      %5814 = vmatpush.msra.mxu0 %v5702
      %5815 = vmatmul.f32.gmra.mxu0 %v5704
      %v5816 = vpop.f32.mrf.mxu0
      %v5817 = vadd.f32 0.0, %v5816
      %5818 = vmatmul.f32.gmra.mxu0 %v5707
      %v5819 = vpop.f32.mrf.mxu0
      %v5820 = vadd.f32 0.0, %v5819
      %5821 = vmatmul.f32.gmra.mxu0 %v5710
      %v5822 = vpop.f32.mrf.mxu0
      %v5823 = vadd.f32 0.0, %v5822
      %5824 = vmatmul.f32.gmra.mxu0 %v5713
      %v5825 = vpop.f32.mrf.mxu0
      %v5826 = vadd.f32 0.0, %v5825
      %5827 = vmatmul.f32.gmra.mxu0 %v5716
      %v5828 = vpop.f32.mrf.mxu0
      %v5829 = vadd.f32 0.0, %v5828
      %5830 = vmatmul.f32.gmra.mxu0 %v5719
      %v5831 = vpop.f32.mrf.mxu0
      %v5832 = vadd.f32 0.0, %v5831
      %5833 = vmatmul.f32.gmra.mxu0 %v5722
      %v5834 = vpop.f32.mrf.mxu0
      %v5835 = vadd.f32 0.0, %v5834
      %5836 = vmatmul.f32.gmra.mxu0 %v5725
      %v5837 = vpop.f32.mrf.mxu0
      %v5838 = vadd.f32 0.0, %v5837
      %5839 = vmatmul.f32.gmra.mxu0 %v5728
      %v5840 = vpop.f32.mrf.mxu0
      %v5841 = vadd.f32 0.0, %v5840
      %5842 = vmatmul.f32.gmra.mxu0 %v5731
      %v5843 = vpop.f32.mrf.mxu0
      %v5844 = vadd.f32 0.0, %v5843
      %5845 = vmatmul.f32.gmra.mxu0 %v5734
      %v5846 = vpop.f32.mrf.mxu0
      %v5847 = vadd.f32 0.0, %v5846
      %5848 = vmatmul.f32.gmra.mxu0 %v5737
      %v5849 = vpop.f32.mrf.mxu0
      %v5850 = vadd.f32 0.0, %v5849
      %5851 = vmatmul.f32.gmra.mxu0 %v5740
      %v5852 = vpop.f32.mrf.mxu0
      %v5853 = vadd.f32 0.0, %v5852
      %5854 = vmatmul.f32.gmra.mxu0 %v5743
      %v5855 = vpop.f32.mrf.mxu0
      %v5856 = vadd.f32 0.0, %v5855
      %5857 = vmatmul.f32.gmra.mxu0 %v5746
      %v5858 = vpop.f32.mrf.mxu0
      %v5859 = vadd.f32 0.0, %v5858
      %5860 = vmatmul.f32.gmra.mxu0 %v5749
      %v5861 = vpop.f32.mrf.mxu0
      %v5862 = vadd.f32 0.0, %v5861
      %5863 = vmatmul.f32.gmra.mxu0 %v5752
      %v5864 = vpop.f32.mrf.mxu0
      %v5865 = vadd.f32 0.0, %v5864
      %5866 = vmatmul.f32.gmra.mxu0 %v5755
      %v5867 = vpop.f32.mrf.mxu0
      %v5868 = vadd.f32 0.0, %v5867
      %5869 = vmatmul.f32.gmra.mxu0 %v5758
      %v5870 = vpop.f32.mrf.mxu0
      %v5871 = vadd.f32 0.0, %v5870
      %5872 = vmatmul.f32.gmra.mxu0 %v5761
      %v5873 = vpop.f32.mrf.mxu0
      %v5874 = vadd.f32 0.0, %v5873
      %5875 = vmatmul.f32.gmra.mxu0 %v5764
      %v5876 = vpop.f32.mrf.mxu0
      %v5877 = vadd.f32 0.0, %v5876
      %5878 = vmatmul.f32.gmra.mxu0 %v5767
      %v5879 = vpop.f32.mrf.mxu0
      %v5880 = vadd.f32 0.0, %v5879
      %5881 = vmatmul.f32.gmra.mxu0 %v5770
      %v5882 = vpop.f32.mrf.mxu0
      %v5883 = vadd.f32 0.0, %v5882
      %5884 = vmatmul.f32.gmra.mxu0 %v5773
      %v5885 = vpop.f32.mrf.mxu0
      %v5886 = vadd.f32 0.0, %v5885
      %5887 = vmatmul.f32.gmra.mxu0 %v5776
      %v5888 = vpop.f32.mrf.mxu0
      %v5889 = vadd.f32 0.0, %v5888
      %5890 = vmatmul.f32.gmra.mxu0 %v5779
      %v5891 = vpop.f32.mrf.mxu0
      %v5892 = vadd.f32 0.0, %v5891
      %5893 = vmatmul.f32.gmra.mxu0 %v5782
      %v5894 = vpop.f32.mrf.mxu0
      %v5895 = vadd.f32 0.0, %v5894
      %5896 = vmatmul.f32.gmra.mxu0 %v5785
      %v5897 = vpop.f32.mrf.mxu0
      %v5898 = vadd.f32 0.0, %v5897
      %5899 = vmatmul.f32.gmra.mxu0 %v5788
      %v5900 = vpop.f32.mrf.mxu0
      %v5901 = vadd.f32 0.0, %v5900
      %5902 = vmatmul.f32.gmra.mxu0 %v5791
      %v5903 = vpop.f32.mrf.mxu0
      %v5904 = vadd.f32 0.0, %v5903
      %5905 = vmatmul.f32.gmra.mxu0 %v5794
      %v5906 = vpop.f32.mrf.mxu0
      %v5907 = vadd.f32 0.0, %v5906
      %5908 = vmatmul.f32.gmra.mxu0 %v5797
      %v5909 = vpop.f32.mrf.mxu0
      %v5910 = vadd.f32 0.0, %v5909
      %5911 = vdwg.mxu0
      %v5912 = vadd.f32 %v5575, %v5817
      %v5913 = vadd.f32 %v5578, %v5820
      %v5914 = vadd.f32 %v5581, %v5823
      %v5915 = vadd.f32 %v5584, %v5826
      %v5916 = vadd.f32 %v5587, %v5829
      %v5917 = vadd.f32 %v5590, %v5832
      %v5918 = vadd.f32 %v5593, %v5835
      %v5919 = vadd.f32 %v5596, %v5838
      %v5920 = vadd.f32 %v5599, %v5841
      %v5921 = vadd.f32 %v5602, %v5844
      %v5922 = vadd.f32 %v5605, %v5847
      %v5923 = vadd.f32 %v5608, %v5850
      %v5924 = vadd.f32 %v5611, %v5853
      %v5925 = vadd.f32 %v5614, %v5856
      %v5926 = vadd.f32 %v5617, %v5859
      %v5927 = vadd.f32 %v5620, %v5862
      %v5928 = vadd.f32 %v5623, %v5865
      %v5929 = vadd.f32 %v5626, %v5868
      %v5930 = vadd.f32 %v5629, %v5871
      %v5931 = vadd.f32 %v5632, %v5874
      %v5932 = vadd.f32 %v5635, %v5877
      %v5933 = vadd.f32 %v5638, %v5880
      %v5934 = vadd.f32 %v5641, %v5883
      %v5935 = vadd.f32 %v5644, %v5886
      %v5936 = vadd.f32 %v5647, %v5889
      %v5937 = vadd.f32 %v5650, %v5892
      %v5938 = vadd.f32 %v5653, %v5895
      %v5939 = vadd.f32 %v5656, %v5898
      %v5940 = vadd.f32 %v5659, %v5901
      %v5941 = vadd.f32 %v5662, %v5904
      %v5942 = vadd.f32 %v5665, %v5907
      %v5943 = vadd.f32 %v5668, %v5910
      %v5944 = vld [vmem:[%s5120 + $0x7] sm:$0xff]
      %v5945 = vld [vmem:[%s5120 + $0xf] sm:$0xff]
      %v5946 = vld [vmem:[%s5120 + $0x27] sm:$0xff]
      %v5947 = vld [vmem:[%s5120 + $0x2f] sm:$0xff]
      %v5948 = vld [vmem:[%s5120 + $0x47] sm:$0xff]
      %v5949 = vld [vmem:[%s5120 + $0x4f] sm:$0xff]
      %v5950 = vld [vmem:[%s5120 + $0x67] sm:$0xff]
      %v5951 = vld [vmem:[%s5120 + $0x6f] sm:$0xff]
      %v5952 = vld [vmem:[%s5120 + $0x87] sm:$0xff]
      %v5953 = vld [vmem:[%s5120 + $0x8f] sm:$0xff]
      %v5954 = vld [vmem:[%s5120 + $0xa7] sm:$0xff]
      %v5955 = vld [vmem:[%s5120 + $0xaf] sm:$0xff]
      %v5956 = vld [vmem:[%s5120 + $0xc7] sm:$0xff]
      %v5957 = vld [vmem:[%s5120 + $0xcf] sm:$0xff]
      %v5958 = vld [vmem:[%s5120 + $0xe7] sm:$0xff]
      %v5959 = vld [vmem:[%s5120 + $0xef] sm:$0xff]
      %v5960 = vld [vmem:[%s5120 + $0x107] sm:$0xff]
      %v5961 = vld [vmem:[%s5120 + $0x10f] sm:$0xff]
      %v5962 = vld [vmem:[%s5120 + $0x127] sm:$0xff]
      %v5963 = vld [vmem:[%s5120 + $0x12f] sm:$0xff]
      %v5964 = vld [vmem:[%s5120 + $0x147] sm:$0xff]
      %v5965 = vld [vmem:[%s5120 + $0x14f] sm:$0xff]
      %v5966 = vld [vmem:[%s5120 + $0x167] sm:$0xff]
      %v5967 = vld [vmem:[%s5120 + $0x16f] sm:$0xff]
      %v5968 = vld [vmem:[%s5120 + $0x187] sm:$0xff]
      %v5969 = vld [vmem:[%s5120 + $0x18f] sm:$0xff]
      %v5970 = vld [vmem:[%s5120 + $0x1a7] sm:$0xff]
      %v5971 = vld [vmem:[%s5120 + $0x1af] sm:$0xff]
      %v5972 = vld [vmem:[%s5120 + $0x1c7] sm:$0xff]
      %v5973 = vld [vmem:[%s5120 + $0x1cf] sm:$0xff]
      %v5974 = vld [vmem:[%s5120 + $0x1e7] sm:$0xff]
      %v5975 = vld [vmem:[%s5120 + $0x1ef] sm:$0xff]
      %v5976 = vld [vmem:[%s10 + $0x18] sm:$0xff]
      %v5978 = vsel %vm4106, %v5944, 0
      %v5981 = vsel %vm4106, %v5945, 0
      %v5984 = vsel %vm4106, %v5946, 0
      %v5987 = vsel %vm4106, %v5947, 0
      %v5990 = vsel %vm4106, %v5948, 0
      %v5993 = vsel %vm4106, %v5949, 0
      %v5996 = vsel %vm4106, %v5950, 0
      %v5999 = vsel %vm4106, %v5951, 0
      %v6002 = vsel %vm4106, %v5952, 0
      %v6005 = vsel %vm4106, %v5953, 0
      %v6008 = vsel %vm4106, %v5954, 0
      %v6011 = vsel %vm4106, %v5955, 0
      %v6014 = vsel %vm4106, %v5956, 0
      %v6017 = vsel %vm4106, %v5957, 0
      %v6020 = vsel %vm4106, %v5958, 0
      %v6023 = vsel %vm4106, %v5959, 0
      %v6026 = vsel %vm4106, %v5960, 0
      %v6029 = vsel %vm4106, %v5961, 0
      %v6032 = vsel %vm4106, %v5962, 0
      %v6035 = vsel %vm4106, %v5963, 0
      %v6038 = vsel %vm4106, %v5964, 0
      %v6041 = vsel %vm4106, %v5965, 0
      %v6044 = vsel %vm4106, %v5966, 0
      %v6047 = vsel %vm4106, %v5967, 0
      %v6050 = vsel %vm4106, %v5968, 0
      %v6053 = vsel %vm4106, %v5969, 0
      %v6056 = vsel %vm4106, %v5970, 0
      %v6059 = vsel %vm4106, %v5971, 0
      %v6062 = vsel %vm4106, %v5972, 0
      %v6065 = vsel %vm4106, %v5973, 0
      %v6068 = vsel %vm4106, %v5974, 0
      %v6071 = vsel %vm4106, %v5975, 0
      %6073 = vmatpush.msra.mxu0 0.0
      %6074 = vmatpush.msra.mxu0 0.0
      %6075 = vmatpush.msra.mxu0 0.0
      %6076 = vmatpush.msra.mxu0 0.0
      %6077 = vmatpush.msra.mxu0 0.0
      %6078 = vmatpush.msra.mxu0 0.0
      %6079 = vmatpush.msra.mxu0 0.0
      %6080 = vmatpush.msra.mxu0 0.0
      %6081 = vmatpush.msra.mxu0 0.0
      %6082 = vmatpush.msra.mxu0 0.0
      %6083 = vmatpush.msra.mxu0 0.0
      %6084 = vmatpush.msra.mxu0 0.0
      %6085 = vmatpush.msra.mxu0 0.0
      %6086 = vmatpush.msra.mxu0 0.0
      %6087 = vmatpush.msra.mxu0 0.0
      %6088 = vmatpush.msra.mxu0 %v5976
      %6089 = vmatmul.f32.gmra.mxu0 %v5978
      %v6090 = vpop.f32.mrf.mxu0
      %v6091 = vadd.f32 0.0, %v6090
      %6092 = vmatmul.f32.gmra.mxu0 %v5981
      %v6093 = vpop.f32.mrf.mxu0
      %v6094 = vadd.f32 0.0, %v6093
      %6095 = vmatmul.f32.gmra.mxu0 %v5984
      %v6096 = vpop.f32.mrf.mxu0
      %v6097 = vadd.f32 0.0, %v6096
      %6098 = vmatmul.f32.gmra.mxu0 %v5987
      %v6099 = vpop.f32.mrf.mxu0
      %v6100 = vadd.f32 0.0, %v6099
      %6101 = vmatmul.f32.gmra.mxu0 %v5990
      %v6102 = vpop.f32.mrf.mxu0
      %v6103 = vadd.f32 0.0, %v6102
      %6104 = vmatmul.f32.gmra.mxu0 %v5993
      %v6105 = vpop.f32.mrf.mxu0
      %v6106 = vadd.f32 0.0, %v6105
      %6107 = vmatmul.f32.gmra.mxu0 %v5996
      %v6108 = vpop.f32.mrf.mxu0
      %v6109 = vadd.f32 0.0, %v6108
      %6110 = vmatmul.f32.gmra.mxu0 %v5999
      %v6111 = vpop.f32.mrf.mxu0
      %v6112 = vadd.f32 0.0, %v6111
      %6113 = vmatmul.f32.gmra.mxu0 %v6002
      %v6114 = vpop.f32.mrf.mxu0
      %v6115 = vadd.f32 0.0, %v6114
      %6116 = vmatmul.f32.gmra.mxu0 %v6005
      %v6117 = vpop.f32.mrf.mxu0
      %v6118 = vadd.f32 0.0, %v6117
      %6119 = vmatmul.f32.gmra.mxu0 %v6008
      %v6120 = vpop.f32.mrf.mxu0
      %v6121 = vadd.f32 0.0, %v6120
      %6122 = vmatmul.f32.gmra.mxu0 %v6011
      %v6123 = vpop.f32.mrf.mxu0
      %v6124 = vadd.f32 0.0, %v6123
      %6125 = vmatmul.f32.gmra.mxu0 %v6014
      %v6126 = vpop.f32.mrf.mxu0
      %v6127 = vadd.f32 0.0, %v6126
      %6128 = vmatmul.f32.gmra.mxu0 %v6017
      %v6129 = vpop.f32.mrf.mxu0
      %v6130 = vadd.f32 0.0, %v6129
      %6131 = vmatmul.f32.gmra.mxu0 %v6020
      %v6132 = vpop.f32.mrf.mxu0
      %v6133 = vadd.f32 0.0, %v6132
      %6134 = vmatmul.f32.gmra.mxu0 %v6023
      %v6135 = vpop.f32.mrf.mxu0
      %v6136 = vadd.f32 0.0, %v6135
      %6137 = vmatmul.f32.gmra.mxu0 %v6026
      %v6138 = vpop.f32.mrf.mxu0
      %v6139 = vadd.f32 0.0, %v6138
      %6140 = vmatmul.f32.gmra.mxu0 %v6029
      %v6141 = vpop.f32.mrf.mxu0
      %v6142 = vadd.f32 0.0, %v6141
      %6143 = vmatmul.f32.gmra.mxu0 %v6032
      %v6144 = vpop.f32.mrf.mxu0
      %v6145 = vadd.f32 0.0, %v6144
      %6146 = vmatmul.f32.gmra.mxu0 %v6035
      %v6147 = vpop.f32.mrf.mxu0
      %v6148 = vadd.f32 0.0, %v6147
      %6149 = vmatmul.f32.gmra.mxu0 %v6038
      %v6150 = vpop.f32.mrf.mxu0
      %v6151 = vadd.f32 0.0, %v6150
      %6152 = vmatmul.f32.gmra.mxu0 %v6041
      %v6153 = vpop.f32.mrf.mxu0
      %v6154 = vadd.f32 0.0, %v6153
      %6155 = vmatmul.f32.gmra.mxu0 %v6044
      %v6156 = vpop.f32.mrf.mxu0
      %v6157 = vadd.f32 0.0, %v6156
      %6158 = vmatmul.f32.gmra.mxu0 %v6047
      %v6159 = vpop.f32.mrf.mxu0
      %v6160 = vadd.f32 0.0, %v6159
      %6161 = vmatmul.f32.gmra.mxu0 %v6050
      %v6162 = vpop.f32.mrf.mxu0
      %v6163 = vadd.f32 0.0, %v6162
      %6164 = vmatmul.f32.gmra.mxu0 %v6053
      %v6165 = vpop.f32.mrf.mxu0
      %v6166 = vadd.f32 0.0, %v6165
      %6167 = vmatmul.f32.gmra.mxu0 %v6056
      %v6168 = vpop.f32.mrf.mxu0
      %v6169 = vadd.f32 0.0, %v6168
      %6170 = vmatmul.f32.gmra.mxu0 %v6059
      %v6171 = vpop.f32.mrf.mxu0
      %v6172 = vadd.f32 0.0, %v6171
      %6173 = vmatmul.f32.gmra.mxu0 %v6062
      %v6174 = vpop.f32.mrf.mxu0
      %v6175 = vadd.f32 0.0, %v6174
      %6176 = vmatmul.f32.gmra.mxu0 %v6065
      %v6177 = vpop.f32.mrf.mxu0
      %v6178 = vadd.f32 0.0, %v6177
      %6179 = vmatmul.f32.gmra.mxu0 %v6068
      %v6180 = vpop.f32.mrf.mxu0
      %v6181 = vadd.f32 0.0, %v6180
      %6182 = vmatmul.f32.gmra.mxu0 %v6071
      %v6183 = vpop.f32.mrf.mxu0
      %v6184 = vadd.f32 0.0, %v6183
      %6185 = vdwg.mxu0
      %v6186 = vadd.f32 %v5912, %v6091
      %v6187 = vadd.f32 %v5913, %v6094
      %v6188 = vadd.f32 %v5914, %v6097
      %v6189 = vadd.f32 %v5915, %v6100
      %v6190 = vadd.f32 %v5916, %v6103
      %v6191 = vadd.f32 %v5917, %v6106
      %v6192 = vadd.f32 %v5918, %v6109
      %v6193 = vadd.f32 %v5919, %v6112
      %v6194 = vadd.f32 %v5920, %v6115
      %v6195 = vadd.f32 %v5921, %v6118
      %v6196 = vadd.f32 %v5922, %v6121
      %v6197 = vadd.f32 %v5923, %v6124
      %v6198 = vadd.f32 %v5924, %v6127
      %v6199 = vadd.f32 %v5925, %v6130
      %v6200 = vadd.f32 %v5926, %v6133
      %v6201 = vadd.f32 %v5927, %v6136
      %v6202 = vadd.f32 %v5928, %v6139
      %v6203 = vadd.f32 %v5929, %v6142
      %v6204 = vadd.f32 %v5930, %v6145
      %v6205 = vadd.f32 %v5931, %v6148
      %v6206 = vadd.f32 %v5932, %v6151
      %v6207 = vadd.f32 %v5933, %v6154
      %v6208 = vadd.f32 %v5934, %v6157
      %v6209 = vadd.f32 %v5935, %v6160
      %v6210 = vadd.f32 %v5936, %v6163
      %v6211 = vadd.f32 %v5937, %v6166
      %v6212 = vadd.f32 %v5938, %v6169
      %v6213 = vadd.f32 %v5939, %v6172
      %v6214 = vadd.f32 %v5940, %v6175
      %v6215 = vadd.f32 %v5941, %v6178
      %v6216 = vadd.f32 %v5942, %v6181
      %v6217 = vadd.f32 %v5943, %v6184
      %v6218 = vld [vmem:[%s5120 + $0x8] sm:$0xff]
      %v6219 = vld [vmem:[%s5120 + $0x10] sm:$0xff]
      %v6220 = vld [vmem:[%s5120 + $0x28] sm:$0xff]
      %v6221 = vld [vmem:[%s5120 + $0x30] sm:$0xff]
      %v6222 = vld [vmem:[%s5120 + $0x48] sm:$0xff]
      %v6223 = vld [vmem:[%s5120 + $0x50] sm:$0xff]
      %v6224 = vld [vmem:[%s5120 + $0x68] sm:$0xff]
      %v6225 = vld [vmem:[%s5120 + $0x70] sm:$0xff]
      %v6226 = vld [vmem:[%s5120 + $0x88] sm:$0xff]
      %v6227 = vld [vmem:[%s5120 + $0x90] sm:$0xff]
      %v6228 = vld [vmem:[%s5120 + $0xa8] sm:$0xff]
      %v6229 = vld [vmem:[%s5120 + $0xb0] sm:$0xff]
      %v6230 = vld [vmem:[%s5120 + $0xc8] sm:$0xff]
      %v6231 = vld [vmem:[%s5120 + $0xd0] sm:$0xff]
      %v6232 = vld [vmem:[%s5120 + $0xe8] sm:$0xff]
      %v6233 = vld [vmem:[%s5120 + $0xf0] sm:$0xff]
      %v6234 = vld [vmem:[%s5120 + $0x108] sm:$0xff]
      %v6235 = vld [vmem:[%s5120 + $0x110] sm:$0xff]
      %v6236 = vld [vmem:[%s5120 + $0x128] sm:$0xff]
      %v6237 = vld [vmem:[%s5120 + $0x130] sm:$0xff]
      %v6238 = vld [vmem:[%s5120 + $0x148] sm:$0xff]
      %v6239 = vld [vmem:[%s5120 + $0x150] sm:$0xff]
      %v6240 = vld [vmem:[%s5120 + $0x168] sm:$0xff]
      %v6241 = vld [vmem:[%s5120 + $0x170] sm:$0xff]
      %v6242 = vld [vmem:[%s5120 + $0x188] sm:$0xff]
      %v6243 = vld [vmem:[%s5120 + $0x190] sm:$0xff]
      %v6244 = vld [vmem:[%s5120 + $0x1a8] sm:$0xff]
      %v6245 = vld [vmem:[%s5120 + $0x1b0] sm:$0xff]
      %v6246 = vld [vmem:[%s5120 + $0x1c8] sm:$0xff]
      %v6247 = vld [vmem:[%s5120 + $0x1d0] sm:$0xff]
      %v6248 = vld [vmem:[%s5120 + $0x1e8] sm:$0xff]
      %v6249 = vld [vmem:[%s5120 + $0x1f0] sm:$0xff]
      %v6250 = vld [vmem:[%s10 + $0x20] sm:$0xff]
      %v6252 = vsel %vm4106, %v6218, 0
      %v6255 = vsel %vm4106, %v6219, 0
      %v6258 = vsel %vm4106, %v6220, 0
      %v6261 = vsel %vm4106, %v6221, 0
      %v6264 = vsel %vm4106, %v6222, 0
      %v6267 = vsel %vm4106, %v6223, 0
      %v6270 = vsel %vm4106, %v6224, 0
      %v6273 = vsel %vm4106, %v6225, 0
      %v6276 = vsel %vm4106, %v6226, 0
      %v6279 = vsel %vm4106, %v6227, 0
      %v6282 = vsel %vm4106, %v6228, 0
      %v6285 = vsel %vm4106, %v6229, 0
      %v6288 = vsel %vm4106, %v6230, 0
      %v6291 = vsel %vm4106, %v6231, 0
      %v6294 = vsel %vm4106, %v6232, 0
      %v6297 = vsel %vm4106, %v6233, 0
      %v6300 = vsel %vm4106, %v6234, 0
      %v6303 = vsel %vm4106, %v6235, 0
      %v6306 = vsel %vm4106, %v6236, 0
      %v6309 = vsel %vm4106, %v6237, 0
      %v6312 = vsel %vm4106, %v6238, 0
      %v6315 = vsel %vm4106, %v6239, 0
      %v6318 = vsel %vm4106, %v6240, 0
      %v6321 = vsel %vm4106, %v6241, 0
      %v6324 = vsel %vm4106, %v6242, 0
      %v6327 = vsel %vm4106, %v6243, 0
      %v6330 = vsel %vm4106, %v6244, 0
      %v6333 = vsel %vm4106, %v6245, 0
      %v6336 = vsel %vm4106, %v6246, 0
      %v6339 = vsel %vm4106, %v6247, 0
      %v6342 = vsel %vm4106, %v6248, 0
      %v6345 = vsel %vm4106, %v6249, 0
      %6347 = vmatpush.msra.mxu0 0.0
      %6348 = vmatpush.msra.mxu0 0.0
      %6349 = vmatpush.msra.mxu0 0.0
      %6350 = vmatpush.msra.mxu0 0.0
      %6351 = vmatpush.msra.mxu0 0.0
      %6352 = vmatpush.msra.mxu0 0.0
      %6353 = vmatpush.msra.mxu0 0.0
      %6354 = vmatpush.msra.mxu0 0.0
      %6355 = vmatpush.msra.mxu0 0.0
      %6356 = vmatpush.msra.mxu0 0.0
      %6357 = vmatpush.msra.mxu0 0.0
      %6358 = vmatpush.msra.mxu0 0.0
      %6359 = vmatpush.msra.mxu0 0.0
      %6360 = vmatpush.msra.mxu0 0.0
      %6361 = vmatpush.msra.mxu0 0.0
      %6362 = vmatpush.msra.mxu0 %v6250
      %6363 = vmatmul.f32.gmra.mxu0 %v6252
      %v6364 = vpop.f32.mrf.mxu0
      %v6365 = vadd.f32 0.0, %v6364
      %6366 = vmatmul.f32.gmra.mxu0 %v6255
      %v6367 = vpop.f32.mrf.mxu0
      %v6368 = vadd.f32 0.0, %v6367
      %6369 = vmatmul.f32.gmra.mxu0 %v6258
      %v6370 = vpop.f32.mrf.mxu0
      %v6371 = vadd.f32 0.0, %v6370
      %6372 = vmatmul.f32.gmra.mxu0 %v6261
      %v6373 = vpop.f32.mrf.mxu0
      %v6374 = vadd.f32 0.0, %v6373
      %6375 = vmatmul.f32.gmra.mxu0 %v6264
      %v6376 = vpop.f32.mrf.mxu0
      %v6377 = vadd.f32 0.0, %v6376
      %6378 = vmatmul.f32.gmra.mxu0 %v6267
      %v6379 = vpop.f32.mrf.mxu0
      %v6380 = vadd.f32 0.0, %v6379
      %6381 = vmatmul.f32.gmra.mxu0 %v6270
      %v6382 = vpop.f32.mrf.mxu0
      %v6383 = vadd.f32 0.0, %v6382
      %6384 = vmatmul.f32.gmra.mxu0 %v6273
      %v6385 = vpop.f32.mrf.mxu0
      %v6386 = vadd.f32 0.0, %v6385
      %6387 = vmatmul.f32.gmra.mxu0 %v6276
      %v6388 = vpop.f32.mrf.mxu0
      %v6389 = vadd.f32 0.0, %v6388
      %6390 = vmatmul.f32.gmra.mxu0 %v6279
      %v6391 = vpop.f32.mrf.mxu0
      %v6392 = vadd.f32 0.0, %v6391
      %6393 = vmatmul.f32.gmra.mxu0 %v6282
      %v6394 = vpop.f32.mrf.mxu0
      %v6395 = vadd.f32 0.0, %v6394
      %6396 = vmatmul.f32.gmra.mxu0 %v6285
      %v6397 = vpop.f32.mrf.mxu0
      %v6398 = vadd.f32 0.0, %v6397
      %6399 = vmatmul.f32.gmra.mxu0 %v6288
      %v6400 = vpop.f32.mrf.mxu0
      %v6401 = vadd.f32 0.0, %v6400
      %6402 = vmatmul.f32.gmra.mxu0 %v6291
      %v6403 = vpop.f32.mrf.mxu0
      %v6404 = vadd.f32 0.0, %v6403
      %6405 = vmatmul.f32.gmra.mxu0 %v6294
      %v6406 = vpop.f32.mrf.mxu0
      %v6407 = vadd.f32 0.0, %v6406
      %6408 = vmatmul.f32.gmra.mxu0 %v6297
      %v6409 = vpop.f32.mrf.mxu0
      %v6410 = vadd.f32 0.0, %v6409
      %6411 = vmatmul.f32.gmra.mxu0 %v6300
      %v6412 = vpop.f32.mrf.mxu0
      %v6413 = vadd.f32 0.0, %v6412
      %6414 = vmatmul.f32.gmra.mxu0 %v6303
      %v6415 = vpop.f32.mrf.mxu0
      %v6416 = vadd.f32 0.0, %v6415
      %6417 = vmatmul.f32.gmra.mxu0 %v6306
      %v6418 = vpop.f32.mrf.mxu0
      %v6419 = vadd.f32 0.0, %v6418
      %6420 = vmatmul.f32.gmra.mxu0 %v6309
      %v6421 = vpop.f32.mrf.mxu0
      %v6422 = vadd.f32 0.0, %v6421
      %6423 = vmatmul.f32.gmra.mxu0 %v6312
      %v6424 = vpop.f32.mrf.mxu0
      %v6425 = vadd.f32 0.0, %v6424
      %6426 = vmatmul.f32.gmra.mxu0 %v6315
      %v6427 = vpop.f32.mrf.mxu0
      %v6428 = vadd.f32 0.0, %v6427
      %6429 = vmatmul.f32.gmra.mxu0 %v6318
      %v6430 = vpop.f32.mrf.mxu0
      %v6431 = vadd.f32 0.0, %v6430
      %6432 = vmatmul.f32.gmra.mxu0 %v6321
      %v6433 = vpop.f32.mrf.mxu0
      %v6434 = vadd.f32 0.0, %v6433
      %6435 = vmatmul.f32.gmra.mxu0 %v6324
      %v6436 = vpop.f32.mrf.mxu0
      %v6437 = vadd.f32 0.0, %v6436
      %6438 = vmatmul.f32.gmra.mxu0 %v6327
      %v6439 = vpop.f32.mrf.mxu0
      %v6440 = vadd.f32 0.0, %v6439
      %6441 = vmatmul.f32.gmra.mxu0 %v6330
      %v6442 = vpop.f32.mrf.mxu0
      %v6443 = vadd.f32 0.0, %v6442
      %6444 = vmatmul.f32.gmra.mxu0 %v6333
      %v6445 = vpop.f32.mrf.mxu0
      %v6446 = vadd.f32 0.0, %v6445
      %6447 = vmatmul.f32.gmra.mxu0 %v6336
      %v6448 = vpop.f32.mrf.mxu0
      %v6449 = vadd.f32 0.0, %v6448
      %6450 = vmatmul.f32.gmra.mxu0 %v6339
      %v6451 = vpop.f32.mrf.mxu0
      %v6452 = vadd.f32 0.0, %v6451
      %6453 = vmatmul.f32.gmra.mxu0 %v6342
      %v6454 = vpop.f32.mrf.mxu0
      %v6455 = vadd.f32 0.0, %v6454
      %6456 = vmatmul.f32.gmra.mxu0 %v6345
      %v6457 = vpop.f32.mrf.mxu0
      %v6458 = vadd.f32 0.0, %v6457
      %6459 = vdwg.mxu0
      %v6460 = vadd.f32 %v6186, %v6365
      %v6461 = vadd.f32 %v6187, %v6368
      %v6462 = vadd.f32 %v6188, %v6371
      %v6463 = vadd.f32 %v6189, %v6374
      %v6464 = vadd.f32 %v6190, %v6377
      %v6465 = vadd.f32 %v6191, %v6380
      %v6466 = vadd.f32 %v6192, %v6383
      %v6467 = vadd.f32 %v6193, %v6386
      %v6468 = vadd.f32 %v6194, %v6389
      %v6469 = vadd.f32 %v6195, %v6392
      %v6470 = vadd.f32 %v6196, %v6395
      %v6471 = vadd.f32 %v6197, %v6398
      %v6472 = vadd.f32 %v6198, %v6401
      %v6473 = vadd.f32 %v6199, %v6404
      %v6474 = vadd.f32 %v6200, %v6407
      %v6475 = vadd.f32 %v6201, %v6410
      %v6476 = vadd.f32 %v6202, %v6413
      %v6477 = vadd.f32 %v6203, %v6416
      %v6478 = vadd.f32 %v6204, %v6419
      %v6479 = vadd.f32 %v6205, %v6422
      %v6480 = vadd.f32 %v6206, %v6425
      %v6481 = vadd.f32 %v6207, %v6428
      %v6482 = vadd.f32 %v6208, %v6431
      %v6483 = vadd.f32 %v6209, %v6434
      %v6484 = vadd.f32 %v6210, %v6437
      %v6485 = vadd.f32 %v6211, %v6440
      %v6486 = vadd.f32 %v6212, %v6443
      %v6487 = vadd.f32 %v6213, %v6446
      %v6488 = vadd.f32 %v6214, %v6449
      %v6489 = vadd.f32 %v6215, %v6452
      %v6490 = vadd.f32 %v6216, %v6455
      %v6491 = vadd.f32 %v6217, %v6458
      %v6492 = vld [vmem:[%s5120 + $0x9] sm:$0xff]
      %v6493 = vld [vmem:[%s5120 + $0x11] sm:$0xff]
      %v6494 = vld [vmem:[%s5120 + $0x29] sm:$0xff]
      %v6495 = vld [vmem:[%s5120 + $0x31] sm:$0xff]
      %v6496 = vld [vmem:[%s5120 + $0x49] sm:$0xff]
      %v6497 = vld [vmem:[%s5120 + $0x51] sm:$0xff]
      %v6498 = vld [vmem:[%s5120 + $0x69] sm:$0xff]
      %v6499 = vld [vmem:[%s5120 + $0x71] sm:$0xff]
      %v6500 = vld [vmem:[%s5120 + $0x89] sm:$0xff]
      %v6501 = vld [vmem:[%s5120 + $0x91] sm:$0xff]
      %v6502 = vld [vmem:[%s5120 + $0xa9] sm:$0xff]
      %v6503 = vld [vmem:[%s5120 + $0xb1] sm:$0xff]
      %v6504 = vld [vmem:[%s5120 + $0xc9] sm:$0xff]
      %v6505 = vld [vmem:[%s5120 + $0xd1] sm:$0xff]
      %v6506 = vld [vmem:[%s5120 + $0xe9] sm:$0xff]
      %v6507 = vld [vmem:[%s5120 + $0xf1] sm:$0xff]
      %v6508 = vld [vmem:[%s5120 + $0x109] sm:$0xff]
      %v6509 = vld [vmem:[%s5120 + $0x111] sm:$0xff]
      %v6510 = vld [vmem:[%s5120 + $0x129] sm:$0xff]
      %v6511 = vld [vmem:[%s5120 + $0x131] sm:$0xff]
      %v6512 = vld [vmem:[%s5120 + $0x149] sm:$0xff]
      %v6513 = vld [vmem:[%s5120 + $0x151] sm:$0xff]
      %v6514 = vld [vmem:[%s5120 + $0x169] sm:$0xff]
      %v6515 = vld [vmem:[%s5120 + $0x171] sm:$0xff]
      %v6516 = vld [vmem:[%s5120 + $0x189] sm:$0xff]
      %v6517 = vld [vmem:[%s5120 + $0x191] sm:$0xff]
      %v6518 = vld [vmem:[%s5120 + $0x1a9] sm:$0xff]
      %v6519 = vld [vmem:[%s5120 + $0x1b1] sm:$0xff]
      %v6520 = vld [vmem:[%s5120 + $0x1c9] sm:$0xff]
      %v6521 = vld [vmem:[%s5120 + $0x1d1] sm:$0xff]
      %v6522 = vld [vmem:[%s5120 + $0x1e9] sm:$0xff]
      %v6523 = vld [vmem:[%s5120 + $0x1f1] sm:$0xff]
      %v6524 = vld [vmem:[%s10 + $0x28] sm:$0xff]
      %v6526 = vsel %vm4106, %v6492, 0
      %v6529 = vsel %vm4106, %v6493, 0
      %v6532 = vsel %vm4106, %v6494, 0
      %v6535 = vsel %vm4106, %v6495, 0
      %v6538 = vsel %vm4106, %v6496, 0
      %v6541 = vsel %vm4106, %v6497, 0
      %v6544 = vsel %vm4106, %v6498, 0
      %v6547 = vsel %vm4106, %v6499, 0
      %v6550 = vsel %vm4106, %v6500, 0
      %v6553 = vsel %vm4106, %v6501, 0
      %v6556 = vsel %vm4106, %v6502, 0
      %v6559 = vsel %vm4106, %v6503, 0
      %v6562 = vsel %vm4106, %v6504, 0
      %v6565 = vsel %vm4106, %v6505, 0
      %v6568 = vsel %vm4106, %v6506, 0
      %v6571 = vsel %vm4106, %v6507, 0
      %v6574 = vsel %vm4106, %v6508, 0
      %v6577 = vsel %vm4106, %v6509, 0
      %v6580 = vsel %vm4106, %v6510, 0
      %v6583 = vsel %vm4106, %v6511, 0
      %v6586 = vsel %vm4106, %v6512, 0
      %v6589 = vsel %vm4106, %v6513, 0
      %v6592 = vsel %vm4106, %v6514, 0
      %v6595 = vsel %vm4106, %v6515, 0
      %v6598 = vsel %vm4106, %v6516, 0
      %v6601 = vsel %vm4106, %v6517, 0
      %v6604 = vsel %vm4106, %v6518, 0
      %v6607 = vsel %vm4106, %v6519, 0
      %v6610 = vsel %vm4106, %v6520, 0
      %v6613 = vsel %vm4106, %v6521, 0
      %v6616 = vsel %vm4106, %v6522, 0
      %v6619 = vsel %vm4106, %v6523, 0
      %6621 = vmatpush.msra.mxu0 0.0
      %6622 = vmatpush.msra.mxu0 0.0
      %6623 = vmatpush.msra.mxu0 0.0
      %6624 = vmatpush.msra.mxu0 0.0
      %6625 = vmatpush.msra.mxu0 0.0
      %6626 = vmatpush.msra.mxu0 0.0
      %6627 = vmatpush.msra.mxu0 0.0
      %6628 = vmatpush.msra.mxu0 0.0
      %6629 = vmatpush.msra.mxu0 0.0
      %6630 = vmatpush.msra.mxu0 0.0
      %6631 = vmatpush.msra.mxu0 0.0
      %6632 = vmatpush.msra.mxu0 0.0
      %6633 = vmatpush.msra.mxu0 0.0
      %6634 = vmatpush.msra.mxu0 0.0
      %6635 = vmatpush.msra.mxu0 0.0
      %6636 = vmatpush.msra.mxu0 %v6524
      %6637 = vmatmul.f32.gmra.mxu0 %v6526
      %v6638 = vpop.f32.mrf.mxu0
      %v6639 = vadd.f32 0.0, %v6638
      %6640 = vmatmul.f32.gmra.mxu0 %v6529
      %v6641 = vpop.f32.mrf.mxu0
      %v6642 = vadd.f32 0.0, %v6641
      %6643 = vmatmul.f32.gmra.mxu0 %v6532
      %v6644 = vpop.f32.mrf.mxu0
      %v6645 = vadd.f32 0.0, %v6644
      %6646 = vmatmul.f32.gmra.mxu0 %v6535
      %v6647 = vpop.f32.mrf.mxu0
      %v6648 = vadd.f32 0.0, %v6647
      %6649 = vmatmul.f32.gmra.mxu0 %v6538
      %v6650 = vpop.f32.mrf.mxu0
      %v6651 = vadd.f32 0.0, %v6650
      %6652 = vmatmul.f32.gmra.mxu0 %v6541
      %v6653 = vpop.f32.mrf.mxu0
      %v6654 = vadd.f32 0.0, %v6653
      %6655 = vmatmul.f32.gmra.mxu0 %v6544
      %v6656 = vpop.f32.mrf.mxu0
      %v6657 = vadd.f32 0.0, %v6656
      %6658 = vmatmul.f32.gmra.mxu0 %v6547
      %v6659 = vpop.f32.mrf.mxu0
      %v6660 = vadd.f32 0.0, %v6659
      %6661 = vmatmul.f32.gmra.mxu0 %v6550
      %v6662 = vpop.f32.mrf.mxu0
      %v6663 = vadd.f32 0.0, %v6662
      %6664 = vmatmul.f32.gmra.mxu0 %v6553
      %v6665 = vpop.f32.mrf.mxu0
      %v6666 = vadd.f32 0.0, %v6665
      %6667 = vmatmul.f32.gmra.mxu0 %v6556
      %v6668 = vpop.f32.mrf.mxu0
      %v6669 = vadd.f32 0.0, %v6668
      %6670 = vmatmul.f32.gmra.mxu0 %v6559
      %v6671 = vpop.f32.mrf.mxu0
      %v6672 = vadd.f32 0.0, %v6671
      %6673 = vmatmul.f32.gmra.mxu0 %v6562
      %v6674 = vpop.f32.mrf.mxu0
      %v6675 = vadd.f32 0.0, %v6674
      %6676 = vmatmul.f32.gmra.mxu0 %v6565
      %v6677 = vpop.f32.mrf.mxu0
      %v6678 = vadd.f32 0.0, %v6677
      %6679 = vmatmul.f32.gmra.mxu0 %v6568
      %v6680 = vpop.f32.mrf.mxu0
      %v6681 = vadd.f32 0.0, %v6680
      %6682 = vmatmul.f32.gmra.mxu0 %v6571
      %v6683 = vpop.f32.mrf.mxu0
      %v6684 = vadd.f32 0.0, %v6683
      %6685 = vmatmul.f32.gmra.mxu0 %v6574
      %v6686 = vpop.f32.mrf.mxu0
      %v6687 = vadd.f32 0.0, %v6686
      %6688 = vmatmul.f32.gmra.mxu0 %v6577
      %v6689 = vpop.f32.mrf.mxu0
      %v6690 = vadd.f32 0.0, %v6689
      %6691 = vmatmul.f32.gmra.mxu0 %v6580
      %v6692 = vpop.f32.mrf.mxu0
      %v6693 = vadd.f32 0.0, %v6692
      %6694 = vmatmul.f32.gmra.mxu0 %v6583
      %v6695 = vpop.f32.mrf.mxu0
      %v6696 = vadd.f32 0.0, %v6695
      %6697 = vmatmul.f32.gmra.mxu0 %v6586
      %v6698 = vpop.f32.mrf.mxu0
      %v6699 = vadd.f32 0.0, %v6698
      %6700 = vmatmul.f32.gmra.mxu0 %v6589
      %v6701 = vpop.f32.mrf.mxu0
      %v6702 = vadd.f32 0.0, %v6701
      %6703 = vmatmul.f32.gmra.mxu0 %v6592
      %v6704 = vpop.f32.mrf.mxu0
      %v6705 = vadd.f32 0.0, %v6704
      %6706 = vmatmul.f32.gmra.mxu0 %v6595
      %v6707 = vpop.f32.mrf.mxu0
      %v6708 = vadd.f32 0.0, %v6707
      %6709 = vmatmul.f32.gmra.mxu0 %v6598
      %v6710 = vpop.f32.mrf.mxu0
      %v6711 = vadd.f32 0.0, %v6710
      %6712 = vmatmul.f32.gmra.mxu0 %v6601
      %v6713 = vpop.f32.mrf.mxu0
      %v6714 = vadd.f32 0.0, %v6713
      %6715 = vmatmul.f32.gmra.mxu0 %v6604
      %v6716 = vpop.f32.mrf.mxu0
      %v6717 = vadd.f32 0.0, %v6716
      %6718 = vmatmul.f32.gmra.mxu0 %v6607
      %v6719 = vpop.f32.mrf.mxu0
      %v6720 = vadd.f32 0.0, %v6719
      %6721 = vmatmul.f32.gmra.mxu0 %v6610
      %v6722 = vpop.f32.mrf.mxu0
      %v6723 = vadd.f32 0.0, %v6722
      %6724 = vmatmul.f32.gmra.mxu0 %v6613
      %v6725 = vpop.f32.mrf.mxu0
      %v6726 = vadd.f32 0.0, %v6725
      %6727 = vmatmul.f32.gmra.mxu0 %v6616
      %v6728 = vpop.f32.mrf.mxu0
      %v6729 = vadd.f32 0.0, %v6728
      %6730 = vmatmul.f32.gmra.mxu0 %v6619
      %v6731 = vpop.f32.mrf.mxu0
      %v6732 = vadd.f32 0.0, %v6731
      %6733 = vdwg.mxu0
      %v6734 = vadd.f32 %v6460, %v6639
      %v6735 = vadd.f32 %v6461, %v6642
      %v6736 = vadd.f32 %v6462, %v6645
      %v6737 = vadd.f32 %v6463, %v6648
      %v6738 = vadd.f32 %v6464, %v6651
      %v6739 = vadd.f32 %v6465, %v6654
      %v6740 = vadd.f32 %v6466, %v6657
      %v6741 = vadd.f32 %v6467, %v6660
      %v6742 = vadd.f32 %v6468, %v6663
      %v6743 = vadd.f32 %v6469, %v6666
      %v6744 = vadd.f32 %v6470, %v6669
      %v6745 = vadd.f32 %v6471, %v6672
      %v6746 = vadd.f32 %v6472, %v6675
      %v6747 = vadd.f32 %v6473, %v6678
      %v6748 = vadd.f32 %v6474, %v6681
      %v6749 = vadd.f32 %v6475, %v6684
      %v6750 = vadd.f32 %v6476, %v6687
      %v6751 = vadd.f32 %v6477, %v6690
      %v6752 = vadd.f32 %v6478, %v6693
      %v6753 = vadd.f32 %v6479, %v6696
      %v6754 = vadd.f32 %v6480, %v6699
      %v6755 = vadd.f32 %v6481, %v6702
      %v6756 = vadd.f32 %v6482, %v6705
      %v6757 = vadd.f32 %v6483, %v6708
      %v6758 = vadd.f32 %v6484, %v6711
      %v6759 = vadd.f32 %v6485, %v6714
      %v6760 = vadd.f32 %v6486, %v6717
      %v6761 = vadd.f32 %v6487, %v6720
      %v6762 = vadd.f32 %v6488, %v6723
      %v6763 = vadd.f32 %v6489, %v6726
      %v6764 = vadd.f32 %v6490, %v6729
      %v6765 = vadd.f32 %v6491, %v6732
      %s6766 = scalar_lea.vmem [#allocation3], 64
      %v6767 = vld [vmem:[%s6766 + $0x7] sm:$0xff]
      %v6768 = vld [vmem:[%s6766 + $0xf] sm:$0xff]
      %v6769 = vld [vmem:[%s6766 + $0x27] sm:$0xff]
      %v6770 = vld [vmem:[%s6766 + $0x2f] sm:$0xff]
      %v6771 = vld [vmem:[%s6766 + $0x47] sm:$0xff]
      %v6772 = vld [vmem:[%s6766 + $0x4f] sm:$0xff]
      %v6773 = vld [vmem:[%s6766 + $0x67] sm:$0xff]
      %v6774 = vld [vmem:[%s6766 + $0x6f] sm:$0xff]
      %v6775 = vld [vmem:[%s6766 + $0x87] sm:$0xff]
      %v6776 = vld [vmem:[%s6766 + $0x8f] sm:$0xff]
      %v6777 = vld [vmem:[%s6766 + $0xa7] sm:$0xff]
      %v6778 = vld [vmem:[%s6766 + $0xaf] sm:$0xff]
      %v6779 = vld [vmem:[%s6766 + $0xc7] sm:$0xff]
      %v6780 = vld [vmem:[%s6766 + $0xcf] sm:$0xff]
      %v6781 = vld [vmem:[%s6766 + $0xe7] sm:$0xff]
      %v6782 = vld [vmem:[%s6766 + $0xef] sm:$0xff]
      %v6783 = vld [vmem:[%s6766 + $0x107] sm:$0xff]
      %v6784 = vld [vmem:[%s6766 + $0x10f] sm:$0xff]
      %v6785 = vld [vmem:[%s6766 + $0x127] sm:$0xff]
      %v6786 = vld [vmem:[%s6766 + $0x12f] sm:$0xff]
      %v6787 = vld [vmem:[%s6766 + $0x147] sm:$0xff]
      %v6788 = vld [vmem:[%s6766 + $0x14f] sm:$0xff]
      %v6789 = vld [vmem:[%s6766 + $0x167] sm:$0xff]
      %v6790 = vld [vmem:[%s6766 + $0x16f] sm:$0xff]
      %v6791 = vld [vmem:[%s6766 + $0x187] sm:$0xff]
      %v6792 = vld [vmem:[%s6766 + $0x18f] sm:$0xff]
      %v6793 = vld [vmem:[%s6766 + $0x1a7] sm:$0xff]
      %v6794 = vld [vmem:[%s6766 + $0x1af] sm:$0xff]
      %v6795 = vld [vmem:[%s6766 + $0x1c7] sm:$0xff]
      %v6796 = vld [vmem:[%s6766 + $0x1cf] sm:$0xff]
      %v6797 = vld [vmem:[%s6766 + $0x1e7] sm:$0xff]
      %v6798 = vld [vmem:[%s6766 + $0x1ef] sm:$0xff]
      %v6799 = vld [vmem:[%s10 + $0x30] sm:$0xff]
      %v6801 = vsel %vm4106, %v6767, 0
      %v6804 = vsel %vm4106, %v6768, 0
      %v6807 = vsel %vm4106, %v6769, 0
      %v6810 = vsel %vm4106, %v6770, 0
      %v6813 = vsel %vm4106, %v6771, 0
      %v6816 = vsel %vm4106, %v6772, 0
      %v6819 = vsel %vm4106, %v6773, 0
      %v6822 = vsel %vm4106, %v6774, 0
      %v6825 = vsel %vm4106, %v6775, 0
      %v6828 = vsel %vm4106, %v6776, 0
      %v6831 = vsel %vm4106, %v6777, 0
      %v6834 = vsel %vm4106, %v6778, 0
      %v6837 = vsel %vm4106, %v6779, 0
      %v6840 = vsel %vm4106, %v6780, 0
      %v6843 = vsel %vm4106, %v6781, 0
      %v6846 = vsel %vm4106, %v6782, 0
      %v6849 = vsel %vm4106, %v6783, 0
      %v6852 = vsel %vm4106, %v6784, 0
      %v6855 = vsel %vm4106, %v6785, 0
      %v6858 = vsel %vm4106, %v6786, 0
      %v6861 = vsel %vm4106, %v6787, 0
      %v6864 = vsel %vm4106, %v6788, 0
      %v6867 = vsel %vm4106, %v6789, 0
      %v6870 = vsel %vm4106, %v6790, 0
      %v6873 = vsel %vm4106, %v6791, 0
      %v6876 = vsel %vm4106, %v6792, 0
      %v6879 = vsel %vm4106, %v6793, 0
      %v6882 = vsel %vm4106, %v6794, 0
      %v6885 = vsel %vm4106, %v6795, 0
      %v6888 = vsel %vm4106, %v6796, 0
      %v6891 = vsel %vm4106, %v6797, 0
      %v6894 = vsel %vm4106, %v6798, 0
      %6896 = vmatpush.msra.mxu0 0.0
      %6897 = vmatpush.msra.mxu0 0.0
      %6898 = vmatpush.msra.mxu0 0.0
      %6899 = vmatpush.msra.mxu0 0.0
      %6900 = vmatpush.msra.mxu0 0.0
      %6901 = vmatpush.msra.mxu0 0.0
      %6902 = vmatpush.msra.mxu0 0.0
      %6903 = vmatpush.msra.mxu0 0.0
      %6904 = vmatpush.msra.mxu0 0.0
      %6905 = vmatpush.msra.mxu0 0.0
      %6906 = vmatpush.msra.mxu0 0.0
      %6907 = vmatpush.msra.mxu0 0.0
      %6908 = vmatpush.msra.mxu0 0.0
      %6909 = vmatpush.msra.mxu0 0.0
      %6910 = vmatpush.msra.mxu0 0.0
      %6911 = vmatpush.msra.mxu0 %v6799
      %6912 = vmatmul.f32.gmra.mxu0 %v6801
      %v6913 = vpop.f32.mrf.mxu0
      %v6914 = vadd.f32 0.0, %v6913
      %6915 = vmatmul.f32.gmra.mxu0 %v6804
      %v6916 = vpop.f32.mrf.mxu0
      %v6917 = vadd.f32 0.0, %v6916
      %6918 = vmatmul.f32.gmra.mxu0 %v6807
      %v6919 = vpop.f32.mrf.mxu0
      %v6920 = vadd.f32 0.0, %v6919
      %6921 = vmatmul.f32.gmra.mxu0 %v6810
      %v6922 = vpop.f32.mrf.mxu0
      %v6923 = vadd.f32 0.0, %v6922
      %6924 = vmatmul.f32.gmra.mxu0 %v6813
      %v6925 = vpop.f32.mrf.mxu0
      %v6926 = vadd.f32 0.0, %v6925
      %6927 = vmatmul.f32.gmra.mxu0 %v6816
      %v6928 = vpop.f32.mrf.mxu0
      %v6929 = vadd.f32 0.0, %v6928
      %6930 = vmatmul.f32.gmra.mxu0 %v6819
      %v6931 = vpop.f32.mrf.mxu0
      %v6932 = vadd.f32 0.0, %v6931
      %6933 = vmatmul.f32.gmra.mxu0 %v6822
      %v6934 = vpop.f32.mrf.mxu0
      %v6935 = vadd.f32 0.0, %v6934
      %6936 = vmatmul.f32.gmra.mxu0 %v6825
      %v6937 = vpop.f32.mrf.mxu0
      %v6938 = vadd.f32 0.0, %v6937
      %6939 = vmatmul.f32.gmra.mxu0 %v6828
      %v6940 = vpop.f32.mrf.mxu0
      %v6941 = vadd.f32 0.0, %v6940
      %6942 = vmatmul.f32.gmra.mxu0 %v6831
      %v6943 = vpop.f32.mrf.mxu0
      %v6944 = vadd.f32 0.0, %v6943
      %6945 = vmatmul.f32.gmra.mxu0 %v6834
      %v6946 = vpop.f32.mrf.mxu0
      %v6947 = vadd.f32 0.0, %v6946
      %6948 = vmatmul.f32.gmra.mxu0 %v6837
      %v6949 = vpop.f32.mrf.mxu0
      %v6950 = vadd.f32 0.0, %v6949
      %6951 = vmatmul.f32.gmra.mxu0 %v6840
      %v6952 = vpop.f32.mrf.mxu0
      %v6953 = vadd.f32 0.0, %v6952
      %6954 = vmatmul.f32.gmra.mxu0 %v6843
      %v6955 = vpop.f32.mrf.mxu0
      %v6956 = vadd.f32 0.0, %v6955
      %6957 = vmatmul.f32.gmra.mxu0 %v6846
      %v6958 = vpop.f32.mrf.mxu0
      %v6959 = vadd.f32 0.0, %v6958
      %6960 = vmatmul.f32.gmra.mxu0 %v6849
      %v6961 = vpop.f32.mrf.mxu0
      %v6962 = vadd.f32 0.0, %v6961
      %6963 = vmatmul.f32.gmra.mxu0 %v6852
      %v6964 = vpop.f32.mrf.mxu0
      %v6965 = vadd.f32 0.0, %v6964
      %6966 = vmatmul.f32.gmra.mxu0 %v6855
      %v6967 = vpop.f32.mrf.mxu0
      %v6968 = vadd.f32 0.0, %v6967
      %6969 = vmatmul.f32.gmra.mxu0 %v6858
      %v6970 = vpop.f32.mrf.mxu0
      %v6971 = vadd.f32 0.0, %v6970
      %6972 = vmatmul.f32.gmra.mxu0 %v6861
      %v6973 = vpop.f32.mrf.mxu0
      %v6974 = vadd.f32 0.0, %v6973
      %6975 = vmatmul.f32.gmra.mxu0 %v6864
      %v6976 = vpop.f32.mrf.mxu0
      %v6977 = vadd.f32 0.0, %v6976
      %6978 = vmatmul.f32.gmra.mxu0 %v6867
      %v6979 = vpop.f32.mrf.mxu0
      %v6980 = vadd.f32 0.0, %v6979
      %6981 = vmatmul.f32.gmra.mxu0 %v6870
      %v6982 = vpop.f32.mrf.mxu0
      %v6983 = vadd.f32 0.0, %v6982
      %6984 = vmatmul.f32.gmra.mxu0 %v6873
      %v6985 = vpop.f32.mrf.mxu0
      %v6986 = vadd.f32 0.0, %v6985
      %6987 = vmatmul.f32.gmra.mxu0 %v6876
      %v6988 = vpop.f32.mrf.mxu0
      %v6989 = vadd.f32 0.0, %v6988
      %6990 = vmatmul.f32.gmra.mxu0 %v6879
      %v6991 = vpop.f32.mrf.mxu0
      %v6992 = vadd.f32 0.0, %v6991
      %6993 = vmatmul.f32.gmra.mxu0 %v6882
      %v6994 = vpop.f32.mrf.mxu0
      %v6995 = vadd.f32 0.0, %v6994
      %6996 = vmatmul.f32.gmra.mxu0 %v6885
      %v6997 = vpop.f32.mrf.mxu0
      %v6998 = vadd.f32 0.0, %v6997
      %6999 = vmatmul.f32.gmra.mxu0 %v6888
      %v7000 = vpop.f32.mrf.mxu0
      %v7001 = vadd.f32 0.0, %v7000
      %7002 = vmatmul.f32.gmra.mxu0 %v6891
      %v7003 = vpop.f32.mrf.mxu0
      %v7004 = vadd.f32 0.0, %v7003
      %7005 = vmatmul.f32.gmra.mxu0 %v6894
      %v7006 = vpop.f32.mrf.mxu0
      %v7007 = vadd.f32 0.0, %v7006
      %7008 = vdwg.mxu0
      %v7009 = vadd.f32 %v6734, %v6914
      %v7010 = vadd.f32 %v6735, %v6917
      %v7011 = vadd.f32 %v6736, %v6920
      %v7012 = vadd.f32 %v6737, %v6923
      %v7013 = vadd.f32 %v6738, %v6926
      %v7014 = vadd.f32 %v6739, %v6929
      %v7015 = vadd.f32 %v6740, %v6932
      %v7016 = vadd.f32 %v6741, %v6935
      %v7017 = vadd.f32 %v6742, %v6938
      %v7018 = vadd.f32 %v6743, %v6941
      %v7019 = vadd.f32 %v6744, %v6944
      %v7020 = vadd.f32 %v6745, %v6947
      %v7021 = vadd.f32 %v6746, %v6950
      %v7022 = vadd.f32 %v6747, %v6953
      %v7023 = vadd.f32 %v6748, %v6956
      %v7024 = vadd.f32 %v6749, %v6959
      %v7025 = vadd.f32 %v6750, %v6962
      %v7026 = vadd.f32 %v6751, %v6965
      %v7027 = vadd.f32 %v6752, %v6968
      %v7028 = vadd.f32 %v6753, %v6971
      %v7029 = vadd.f32 %v6754, %v6974
      %v7030 = vadd.f32 %v6755, %v6977
      %v7031 = vadd.f32 %v6756, %v6980
      %v7032 = vadd.f32 %v6757, %v6983
      %v7033 = vadd.f32 %v6758, %v6986
      %v7034 = vadd.f32 %v6759, %v6989
      %v7035 = vadd.f32 %v6760, %v6992
      %v7036 = vadd.f32 %v6761, %v6995
      %v7037 = vadd.f32 %v6762, %v6998
      %v7038 = vadd.f32 %v6763, %v7001
      %v7039 = vadd.f32 %v6764, %v7004
      %v7040 = vadd.f32 %v6765, %v7007
      %v7041 = vld [vmem:[%s6766 + $0x8] sm:$0xff]
      %v7042 = vld [vmem:[%s6766 + $0x10] sm:$0xff]
      %v7043 = vld [vmem:[%s6766 + $0x28] sm:$0xff]
      %v7044 = vld [vmem:[%s6766 + $0x30] sm:$0xff]
      %v7045 = vld [vmem:[%s6766 + $0x48] sm:$0xff]
      %v7046 = vld [vmem:[%s6766 + $0x50] sm:$0xff]
      %v7047 = vld [vmem:[%s6766 + $0x68] sm:$0xff]
      %v7048 = vld [vmem:[%s6766 + $0x70] sm:$0xff]
      %v7049 = vld [vmem:[%s6766 + $0x88] sm:$0xff]
      %v7050 = vld [vmem:[%s6766 + $0x90] sm:$0xff]
      %v7051 = vld [vmem:[%s6766 + $0xa8] sm:$0xff]
      %v7052 = vld [vmem:[%s6766 + $0xb0] sm:$0xff]
      %v7053 = vld [vmem:[%s6766 + $0xc8] sm:$0xff]
      %v7054 = vld [vmem:[%s6766 + $0xd0] sm:$0xff]
      %v7055 = vld [vmem:[%s6766 + $0xe8] sm:$0xff]
      %v7056 = vld [vmem:[%s6766 + $0xf0] sm:$0xff]
      %v7057 = vld [vmem:[%s6766 + $0x108] sm:$0xff]
      %v7058 = vld [vmem:[%s6766 + $0x110] sm:$0xff]
      %v7059 = vld [vmem:[%s6766 + $0x128] sm:$0xff]
      %v7060 = vld [vmem:[%s6766 + $0x130] sm:$0xff]
      %v7061 = vld [vmem:[%s6766 + $0x148] sm:$0xff]
      %v7062 = vld [vmem:[%s6766 + $0x150] sm:$0xff]
      %v7063 = vld [vmem:[%s6766 + $0x168] sm:$0xff]
      %v7064 = vld [vmem:[%s6766 + $0x170] sm:$0xff]
      %v7065 = vld [vmem:[%s6766 + $0x188] sm:$0xff]
      %v7066 = vld [vmem:[%s6766 + $0x190] sm:$0xff]
      %v7067 = vld [vmem:[%s6766 + $0x1a8] sm:$0xff]
      %v7068 = vld [vmem:[%s6766 + $0x1b0] sm:$0xff]
      %v7069 = vld [vmem:[%s6766 + $0x1c8] sm:$0xff]
      %v7070 = vld [vmem:[%s6766 + $0x1d0] sm:$0xff]
      %v7071 = vld [vmem:[%s6766 + $0x1e8] sm:$0xff]
      %v7072 = vld [vmem:[%s6766 + $0x1f0] sm:$0xff]
      %v7073 = vld [vmem:[%s10 + $0x38] sm:$0xff]
      %v7075 = vsel %vm4106, %v7041, 0
      %v7078 = vsel %vm4106, %v7042, 0
      %v7081 = vsel %vm4106, %v7043, 0
      %v7084 = vsel %vm4106, %v7044, 0
      %v7087 = vsel %vm4106, %v7045, 0
      %v7090 = vsel %vm4106, %v7046, 0
      %v7093 = vsel %vm4106, %v7047, 0
      %v7096 = vsel %vm4106, %v7048, 0
      %v7099 = vsel %vm4106, %v7049, 0
      %v7102 = vsel %vm4106, %v7050, 0
      %v7105 = vsel %vm4106, %v7051, 0
      %v7108 = vsel %vm4106, %v7052, 0
      %v7111 = vsel %vm4106, %v7053, 0
      %v7114 = vsel %vm4106, %v7054, 0
      %v7117 = vsel %vm4106, %v7055, 0
      %v7120 = vsel %vm4106, %v7056, 0
      %v7123 = vsel %vm4106, %v7057, 0
      %v7126 = vsel %vm4106, %v7058, 0
      %v7129 = vsel %vm4106, %v7059, 0
      %v7132 = vsel %vm4106, %v7060, 0
      %v7135 = vsel %vm4106, %v7061, 0
      %v7138 = vsel %vm4106, %v7062, 0
      %v7141 = vsel %vm4106, %v7063, 0
      %v7144 = vsel %vm4106, %v7064, 0
      %v7147 = vsel %vm4106, %v7065, 0
      %v7150 = vsel %vm4106, %v7066, 0
      %v7153 = vsel %vm4106, %v7067, 0
      %v7156 = vsel %vm4106, %v7068, 0
      %v7159 = vsel %vm4106, %v7069, 0
      %v7162 = vsel %vm4106, %v7070, 0
      %v7165 = vsel %vm4106, %v7071, 0
      %v7168 = vsel %vm4106, %v7072, 0
      %7170 = vmatpush.msra.mxu0 0.0
      %7171 = vmatpush.msra.mxu0 0.0
      %7172 = vmatpush.msra.mxu0 0.0
      %7173 = vmatpush.msra.mxu0 0.0
      %7174 = vmatpush.msra.mxu0 0.0
      %7175 = vmatpush.msra.mxu0 0.0
      %7176 = vmatpush.msra.mxu0 0.0
      %7177 = vmatpush.msra.mxu0 0.0
      %7178 = vmatpush.msra.mxu0 0.0
      %7179 = vmatpush.msra.mxu0 0.0
      %7180 = vmatpush.msra.mxu0 0.0
      %7181 = vmatpush.msra.mxu0 0.0
      %7182 = vmatpush.msra.mxu0 0.0
      %7183 = vmatpush.msra.mxu0 0.0
      %7184 = vmatpush.msra.mxu0 0.0
      %7185 = vmatpush.msra.mxu0 %v7073
      %7186 = vmatmul.f32.gmra.mxu0 %v7075
      %v7187 = vpop.f32.mrf.mxu0
      %v7188 = vadd.f32 0.0, %v7187
      %7189 = vmatmul.f32.gmra.mxu0 %v7078
      %v7190 = vpop.f32.mrf.mxu0
      %v7191 = vadd.f32 0.0, %v7190
      %7192 = vmatmul.f32.gmra.mxu0 %v7081
      %v7193 = vpop.f32.mrf.mxu0
      %v7194 = vadd.f32 0.0, %v7193
      %7195 = vmatmul.f32.gmra.mxu0 %v7084
      %v7196 = vpop.f32.mrf.mxu0
      %v7197 = vadd.f32 0.0, %v7196
      %7198 = vmatmul.f32.gmra.mxu0 %v7087
      %v7199 = vpop.f32.mrf.mxu0
      %v7200 = vadd.f32 0.0, %v7199
      %7201 = vmatmul.f32.gmra.mxu0 %v7090
      %v7202 = vpop.f32.mrf.mxu0
      %v7203 = vadd.f32 0.0, %v7202
      %7204 = vmatmul.f32.gmra.mxu0 %v7093
      %v7205 = vpop.f32.mrf.mxu0
      %v7206 = vadd.f32 0.0, %v7205
      %7207 = vmatmul.f32.gmra.mxu0 %v7096
      %v7208 = vpop.f32.mrf.mxu0
      %v7209 = vadd.f32 0.0, %v7208
      %7210 = vmatmul.f32.gmra.mxu0 %v7099
      %v7211 = vpop.f32.mrf.mxu0
      %v7212 = vadd.f32 0.0, %v7211
      %7213 = vmatmul.f32.gmra.mxu0 %v7102
      %v7214 = vpop.f32.mrf.mxu0
      %v7215 = vadd.f32 0.0, %v7214
      %7216 = vmatmul.f32.gmra.mxu0 %v7105
      %v7217 = vpop.f32.mrf.mxu0
      %v7218 = vadd.f32 0.0, %v7217
      %7219 = vmatmul.f32.gmra.mxu0 %v7108
      %v7220 = vpop.f32.mrf.mxu0
      %v7221 = vadd.f32 0.0, %v7220
      %7222 = vmatmul.f32.gmra.mxu0 %v7111
      %v7223 = vpop.f32.mrf.mxu0
      %v7224 = vadd.f32 0.0, %v7223
      %7225 = vmatmul.f32.gmra.mxu0 %v7114
      %v7226 = vpop.f32.mrf.mxu0
      %v7227 = vadd.f32 0.0, %v7226
      %7228 = vmatmul.f32.gmra.mxu0 %v7117
      %v7229 = vpop.f32.mrf.mxu0
      %v7230 = vadd.f32 0.0, %v7229
      %7231 = vmatmul.f32.gmra.mxu0 %v7120
      %v7232 = vpop.f32.mrf.mxu0
      %v7233 = vadd.f32 0.0, %v7232
      %7234 = vmatmul.f32.gmra.mxu0 %v7123
      %v7235 = vpop.f32.mrf.mxu0
      %v7236 = vadd.f32 0.0, %v7235
      %7237 = vmatmul.f32.gmra.mxu0 %v7126
      %v7238 = vpop.f32.mrf.mxu0
      %v7239 = vadd.f32 0.0, %v7238
      %7240 = vmatmul.f32.gmra.mxu0 %v7129
      %v7241 = vpop.f32.mrf.mxu0
      %v7242 = vadd.f32 0.0, %v7241
      %7243 = vmatmul.f32.gmra.mxu0 %v7132
      %v7244 = vpop.f32.mrf.mxu0
      %v7245 = vadd.f32 0.0, %v7244
      %7246 = vmatmul.f32.gmra.mxu0 %v7135
      %v7247 = vpop.f32.mrf.mxu0
      %v7248 = vadd.f32 0.0, %v7247
      %7249 = vmatmul.f32.gmra.mxu0 %v7138
      %v7250 = vpop.f32.mrf.mxu0
      %v7251 = vadd.f32 0.0, %v7250
      %7252 = vmatmul.f32.gmra.mxu0 %v7141
      %v7253 = vpop.f32.mrf.mxu0
      %v7254 = vadd.f32 0.0, %v7253
      %7255 = vmatmul.f32.gmra.mxu0 %v7144
      %v7256 = vpop.f32.mrf.mxu0
      %v7257 = vadd.f32 0.0, %v7256
      %7258 = vmatmul.f32.gmra.mxu0 %v7147
      %v7259 = vpop.f32.mrf.mxu0
      %v7260 = vadd.f32 0.0, %v7259
      %7261 = vmatmul.f32.gmra.mxu0 %v7150
      %v7262 = vpop.f32.mrf.mxu0
      %v7263 = vadd.f32 0.0, %v7262
      %7264 = vmatmul.f32.gmra.mxu0 %v7153
      %v7265 = vpop.f32.mrf.mxu0
      %v7266 = vadd.f32 0.0, %v7265
      %7267 = vmatmul.f32.gmra.mxu0 %v7156
      %v7268 = vpop.f32.mrf.mxu0
      %v7269 = vadd.f32 0.0, %v7268
      %7270 = vmatmul.f32.gmra.mxu0 %v7159
      %v7271 = vpop.f32.mrf.mxu0
      %v7272 = vadd.f32 0.0, %v7271
      %7273 = vmatmul.f32.gmra.mxu0 %v7162
      %v7274 = vpop.f32.mrf.mxu0
      %v7275 = vadd.f32 0.0, %v7274
      %7276 = vmatmul.f32.gmra.mxu0 %v7165
      %v7277 = vpop.f32.mrf.mxu0
      %v7278 = vadd.f32 0.0, %v7277
      %7279 = vmatmul.f32.gmra.mxu0 %v7168
      %v7280 = vpop.f32.mrf.mxu0
      %v7281 = vadd.f32 0.0, %v7280
      %7282 = vdwg.mxu0
      %v7283 = vadd.f32 %v7009, %v7188
      %v7284 = vadd.f32 %v7010, %v7191
      %v7285 = vadd.f32 %v7011, %v7194
      %v7286 = vadd.f32 %v7012, %v7197
      %v7287 = vadd.f32 %v7013, %v7200
      %v7288 = vadd.f32 %v7014, %v7203
      %v7289 = vadd.f32 %v7015, %v7206
      %v7290 = vadd.f32 %v7016, %v7209
      %v7291 = vadd.f32 %v7017, %v7212
      %v7292 = vadd.f32 %v7018, %v7215
      %v7293 = vadd.f32 %v7019, %v7218
      %v7294 = vadd.f32 %v7020, %v7221
      %v7295 = vadd.f32 %v7021, %v7224
      %v7296 = vadd.f32 %v7022, %v7227
      %v7297 = vadd.f32 %v7023, %v7230
      %v7298 = vadd.f32 %v7024, %v7233
      %v7299 = vadd.f32 %v7025, %v7236
      %v7300 = vadd.f32 %v7026, %v7239
      %v7301 = vadd.f32 %v7027, %v7242
      %v7302 = vadd.f32 %v7028, %v7245
      %v7303 = vadd.f32 %v7029, %v7248
      %v7304 = vadd.f32 %v7030, %v7251
      %v7305 = vadd.f32 %v7031, %v7254
      %v7306 = vadd.f32 %v7032, %v7257
      %v7307 = vadd.f32 %v7033, %v7260
      %v7308 = vadd.f32 %v7034, %v7263
      %v7309 = vadd.f32 %v7035, %v7266
      %v7310 = vadd.f32 %v7036, %v7269
      %v7311 = vadd.f32 %v7037, %v7272
      %v7312 = vadd.f32 %v7038, %v7275
      %v7313 = vadd.f32 %v7039, %v7278
      %v7314 = vadd.f32 %v7040, %v7281
      %v7315 = vld [vmem:[%s6766 + $0x9] sm:$0xff]
      %v7316 = vld [vmem:[%s6766 + $0x11] sm:$0xff]
      %v7317 = vld [vmem:[%s6766 + $0x29] sm:$0xff]
      %v7318 = vld [vmem:[%s6766 + $0x31] sm:$0xff]
      %v7319 = vld [vmem:[%s6766 + $0x49] sm:$0xff]
      %v7320 = vld [vmem:[%s6766 + $0x51] sm:$0xff]
      %v7321 = vld [vmem:[%s6766 + $0x69] sm:$0xff]
      %v7322 = vld [vmem:[%s6766 + $0x71] sm:$0xff]
      %v7323 = vld [vmem:[%s6766 + $0x89] sm:$0xff]
      %v7324 = vld [vmem:[%s6766 + $0x91] sm:$0xff]
      %v7325 = vld [vmem:[%s6766 + $0xa9] sm:$0xff]
      %v7326 = vld [vmem:[%s6766 + $0xb1] sm:$0xff]
      %v7327 = vld [vmem:[%s6766 + $0xc9] sm:$0xff]
      %v7328 = vld [vmem:[%s6766 + $0xd1] sm:$0xff]
      %v7329 = vld [vmem:[%s6766 + $0xe9] sm:$0xff]
      %v7330 = vld [vmem:[%s6766 + $0xf1] sm:$0xff]
      %v7331 = vld [vmem:[%s6766 + $0x109] sm:$0xff]
      %v7332 = vld [vmem:[%s6766 + $0x111] sm:$0xff]
      %v7333 = vld [vmem:[%s6766 + $0x129] sm:$0xff]
      %v7334 = vld [vmem:[%s6766 + $0x131] sm:$0xff]
      %v7335 = vld [vmem:[%s6766 + $0x149] sm:$0xff]
      %v7336 = vld [vmem:[%s6766 + $0x151] sm:$0xff]
      %v7337 = vld [vmem:[%s6766 + $0x169] sm:$0xff]
      %v7338 = vld [vmem:[%s6766 + $0x171] sm:$0xff]
      %v7339 = vld [vmem:[%s6766 + $0x189] sm:$0xff]
      %v7340 = vld [vmem:[%s6766 + $0x191] sm:$0xff]
      %v7341 = vld [vmem:[%s6766 + $0x1a9] sm:$0xff]
      %v7342 = vld [vmem:[%s6766 + $0x1b1] sm:$0xff]
      %v7343 = vld [vmem:[%s6766 + $0x1c9] sm:$0xff]
      %v7344 = vld [vmem:[%s6766 + $0x1d1] sm:$0xff]
      %v7345 = vld [vmem:[%s6766 + $0x1e9] sm:$0xff]
      %v7346 = vld [vmem:[%s6766 + $0x1f1] sm:$0xff]
      %v7347 = vld [vmem:[%s10 + $0x40] sm:$0xff]
      %v7349 = vsel %vm4106, %v7315, 0
      %v7352 = vsel %vm4106, %v7316, 0
      %v7355 = vsel %vm4106, %v7317, 0
      %v7358 = vsel %vm4106, %v7318, 0
      %v7361 = vsel %vm4106, %v7319, 0
      %v7364 = vsel %vm4106, %v7320, 0
      %v7367 = vsel %vm4106, %v7321, 0
      %v7370 = vsel %vm4106, %v7322, 0
      %v7373 = vsel %vm4106, %v7323, 0
      %v7376 = vsel %vm4106, %v7324, 0
      %v7379 = vsel %vm4106, %v7325, 0
      %v7382 = vsel %vm4106, %v7326, 0
      %v7385 = vsel %vm4106, %v7327, 0
      %v7388 = vsel %vm4106, %v7328, 0
      %v7391 = vsel %vm4106, %v7329, 0
      %v7394 = vsel %vm4106, %v7330, 0
      %v7397 = vsel %vm4106, %v7331, 0
      %v7400 = vsel %vm4106, %v7332, 0
      %v7403 = vsel %vm4106, %v7333, 0
      %v7406 = vsel %vm4106, %v7334, 0
      %v7409 = vsel %vm4106, %v7335, 0
      %v7412 = vsel %vm4106, %v7336, 0
      %v7415 = vsel %vm4106, %v7337, 0
      %v7418 = vsel %vm4106, %v7338, 0
      %v7421 = vsel %vm4106, %v7339, 0
      %v7424 = vsel %vm4106, %v7340, 0
      %v7427 = vsel %vm4106, %v7341, 0
      %v7430 = vsel %vm4106, %v7342, 0
      %v7433 = vsel %vm4106, %v7343, 0
      %v7436 = vsel %vm4106, %v7344, 0
      %v7439 = vsel %vm4106, %v7345, 0
      %v7442 = vsel %vm4106, %v7346, 0
      %7444 = vmatpush.msra.mxu0 0.0
      %7445 = vmatpush.msra.mxu0 0.0
      %7446 = vmatpush.msra.mxu0 0.0
      %7447 = vmatpush.msra.mxu0 0.0
      %7448 = vmatpush.msra.mxu0 0.0
      %7449 = vmatpush.msra.mxu0 0.0
      %7450 = vmatpush.msra.mxu0 0.0
      %7451 = vmatpush.msra.mxu0 0.0
      %7452 = vmatpush.msra.mxu0 0.0
      %7453 = vmatpush.msra.mxu0 0.0
      %7454 = vmatpush.msra.mxu0 0.0
      %7455 = vmatpush.msra.mxu0 0.0
      %7456 = vmatpush.msra.mxu0 0.0
      %7457 = vmatpush.msra.mxu0 0.0
      %7458 = vmatpush.msra.mxu0 0.0
      %7459 = vmatpush.msra.mxu0 %v7347
      %7460 = vmatmul.f32.gmra.mxu0 %v7349
      %v7461 = vpop.f32.mrf.mxu0
      %v7462 = vadd.f32 0.0, %v7461
      %7463 = vmatmul.f32.gmra.mxu0 %v7352
      %v7464 = vpop.f32.mrf.mxu0
      %v7465 = vadd.f32 0.0, %v7464
      %7466 = vmatmul.f32.gmra.mxu0 %v7355
      %v7467 = vpop.f32.mrf.mxu0
      %v7468 = vadd.f32 0.0, %v7467
      %7469 = vmatmul.f32.gmra.mxu0 %v7358
      %v7470 = vpop.f32.mrf.mxu0
      %v7471 = vadd.f32 0.0, %v7470
      %7472 = vmatmul.f32.gmra.mxu0 %v7361
      %v7473 = vpop.f32.mrf.mxu0
      %v7474 = vadd.f32 0.0, %v7473
      %7475 = vmatmul.f32.gmra.mxu0 %v7364
      %v7476 = vpop.f32.mrf.mxu0
      %v7477 = vadd.f32 0.0, %v7476
      %7478 = vmatmul.f32.gmra.mxu0 %v7367
      %v7479 = vpop.f32.mrf.mxu0
      %v7480 = vadd.f32 0.0, %v7479
      %7481 = vmatmul.f32.gmra.mxu0 %v7370
      %v7482 = vpop.f32.mrf.mxu0
      %v7483 = vadd.f32 0.0, %v7482
      %7484 = vmatmul.f32.gmra.mxu0 %v7373
      %v7485 = vpop.f32.mrf.mxu0
      %v7486 = vadd.f32 0.0, %v7485
      %7487 = vmatmul.f32.gmra.mxu0 %v7376
      %v7488 = vpop.f32.mrf.mxu0
      %v7489 = vadd.f32 0.0, %v7488
      %7490 = vmatmul.f32.gmra.mxu0 %v7379
      %v7491 = vpop.f32.mrf.mxu0
      %v7492 = vadd.f32 0.0, %v7491
      %7493 = vmatmul.f32.gmra.mxu0 %v7382
      %v7494 = vpop.f32.mrf.mxu0
      %v7495 = vadd.f32 0.0, %v7494
      %7496 = vmatmul.f32.gmra.mxu0 %v7385
      %v7497 = vpop.f32.mrf.mxu0
      %v7498 = vadd.f32 0.0, %v7497
      %7499 = vmatmul.f32.gmra.mxu0 %v7388
      %v7500 = vpop.f32.mrf.mxu0
      %v7501 = vadd.f32 0.0, %v7500
      %7502 = vmatmul.f32.gmra.mxu0 %v7391
      %v7503 = vpop.f32.mrf.mxu0
      %v7504 = vadd.f32 0.0, %v7503
      %7505 = vmatmul.f32.gmra.mxu0 %v7394
      %v7506 = vpop.f32.mrf.mxu0
      %v7507 = vadd.f32 0.0, %v7506
      %7508 = vmatmul.f32.gmra.mxu0 %v7397
      %v7509 = vpop.f32.mrf.mxu0
      %v7510 = vadd.f32 0.0, %v7509
      %7511 = vmatmul.f32.gmra.mxu0 %v7400
      %v7512 = vpop.f32.mrf.mxu0
      %v7513 = vadd.f32 0.0, %v7512
      %7514 = vmatmul.f32.gmra.mxu0 %v7403
      %v7515 = vpop.f32.mrf.mxu0
      %v7516 = vadd.f32 0.0, %v7515
      %7517 = vmatmul.f32.gmra.mxu0 %v7406
      %v7518 = vpop.f32.mrf.mxu0
      %v7519 = vadd.f32 0.0, %v7518
      %7520 = vmatmul.f32.gmra.mxu0 %v7409
      %v7521 = vpop.f32.mrf.mxu0
      %v7522 = vadd.f32 0.0, %v7521
      %7523 = vmatmul.f32.gmra.mxu0 %v7412
      %v7524 = vpop.f32.mrf.mxu0
      %v7525 = vadd.f32 0.0, %v7524
      %7526 = vmatmul.f32.gmra.mxu0 %v7415
      %v7527 = vpop.f32.mrf.mxu0
      %v7528 = vadd.f32 0.0, %v7527
      %7529 = vmatmul.f32.gmra.mxu0 %v7418
      %v7530 = vpop.f32.mrf.mxu0
      %v7531 = vadd.f32 0.0, %v7530
      %7532 = vmatmul.f32.gmra.mxu0 %v7421
      %v7533 = vpop.f32.mrf.mxu0
      %v7534 = vadd.f32 0.0, %v7533
      %7535 = vmatmul.f32.gmra.mxu0 %v7424
      %v7536 = vpop.f32.mrf.mxu0
      %v7537 = vadd.f32 0.0, %v7536
      %7538 = vmatmul.f32.gmra.mxu0 %v7427
      %v7539 = vpop.f32.mrf.mxu0
      %v7540 = vadd.f32 0.0, %v7539
      %7541 = vmatmul.f32.gmra.mxu0 %v7430
      %v7542 = vpop.f32.mrf.mxu0
      %v7543 = vadd.f32 0.0, %v7542
      %7544 = vmatmul.f32.gmra.mxu0 %v7433
      %v7545 = vpop.f32.mrf.mxu0
      %v7546 = vadd.f32 0.0, %v7545
      %7547 = vmatmul.f32.gmra.mxu0 %v7436
      %v7548 = vpop.f32.mrf.mxu0
      %v7549 = vadd.f32 0.0, %v7548
      %7550 = vmatmul.f32.gmra.mxu0 %v7439
      %v7551 = vpop.f32.mrf.mxu0
      %v7552 = vadd.f32 0.0, %v7551
      %7553 = vmatmul.f32.gmra.mxu0 %v7442
      %v7554 = vpop.f32.mrf.mxu0
      %v7555 = vadd.f32 0.0, %v7554
      %7556 = vdwg.mxu0
      %v7557 = vadd.f32 %v7283, %v7462
      %v7558 = vadd.f32 %v7284, %v7465
      %v7559 = vadd.f32 %v7285, %v7468
      %v7560 = vadd.f32 %v7286, %v7471
      %v7561 = vadd.f32 %v7287, %v7474
      %v7562 = vadd.f32 %v7288, %v7477
      %v7563 = vadd.f32 %v7289, %v7480
      %v7564 = vadd.f32 %v7290, %v7483
      %v7565 = vadd.f32 %v7291, %v7486
      %v7566 = vadd.f32 %v7292, %v7489
      %v7567 = vadd.f32 %v7293, %v7492
      %v7568 = vadd.f32 %v7294, %v7495
      %v7569 = vadd.f32 %v7295, %v7498
      %v7570 = vadd.f32 %v7296, %v7501
      %v7571 = vadd.f32 %v7297, %v7504
      %v7572 = vadd.f32 %v7298, %v7507
      %v7573 = vadd.f32 %v7299, %v7510
      %v7574 = vadd.f32 %v7300, %v7513
      %v7575 = vadd.f32 %v7301, %v7516
      %v7576 = vadd.f32 %v7302, %v7519
      %v7577 = vadd.f32 %v7303, %v7522
      %v7578 = vadd.f32 %v7304, %v7525
      %v7579 = vadd.f32 %v7305, %v7528
      %v7580 = vadd.f32 %v7306, %v7531
      %v7581 = vadd.f32 %v7307, %v7534
      %v7582 = vadd.f32 %v7308, %v7537
      %v7583 = vadd.f32 %v7309, %v7540
      %v7584 = vadd.f32 %v7310, %v7543
      %v7585 = vadd.f32 %v7311, %v7546
      %v7586 = vadd.f32 %v7312, %v7549
      %v7587 = vadd.f32 %v7313, %v7552
      %v7588 = vadd.f32 %v7314, %v7555
      %v7589 = vld [vmem:[%s11] sm:$0x1]
      %v7591 = vperm.slane %v7589, 0
      %v7593 = vadd.f32 %v7557, %v7591
      %v7594 = vadd.f32 %v7558, %v7591
      %v7595 = vadd.f32 %v7559, %v7591
      %v7596 = vadd.f32 %v7560, %v7591
      %v7597 = vadd.f32 %v7561, %v7591
      %v7598 = vadd.f32 %v7562, %v7591
      %v7599 = vadd.f32 %v7563, %v7591
      %v7600 = vadd.f32 %v7564, %v7591
      %v7601 = vadd.f32 %v7565, %v7591
      %v7602 = vadd.f32 %v7566, %v7591
      %v7603 = vadd.f32 %v7567, %v7591
      %v7604 = vadd.f32 %v7568, %v7591
      %v7605 = vadd.f32 %v7569, %v7591
      %v7606 = vadd.f32 %v7570, %v7591
      %v7607 = vadd.f32 %v7571, %v7591
      %v7608 = vadd.f32 %v7572, %v7591
      %v7609 = vadd.f32 %v7573, %v7591
      %v7610 = vadd.f32 %v7574, %v7591
      %v7611 = vadd.f32 %v7575, %v7591
      %v7612 = vadd.f32 %v7576, %v7591
      %v7613 = vadd.f32 %v7577, %v7591
      %v7614 = vadd.f32 %v7578, %v7591
      %v7615 = vadd.f32 %v7579, %v7591
      %v7616 = vadd.f32 %v7580, %v7591
      %v7617 = vadd.f32 %v7581, %v7591
      %v7618 = vadd.f32 %v7582, %v7591
      %v7619 = vadd.f32 %v7583, %v7591
      %v7620 = vadd.f32 %v7584, %v7591
      %v7621 = vadd.f32 %v7585, %v7591
      %v7622 = vadd.f32 %v7586, %v7591
      %v7623 = vadd.f32 %v7587, %v7591
      %v7624 = vadd.f32 %v7588, %v7591
      %v7625 = vld [vmem:[%s12] sm:$0xf]
      %v7626 = vld [vmem:[%s13] sm:$0x1]
      %v7628 = vperm.slane %v7626, 0
      %v7631 = vsel %vm517, %v482, 0
      %v7634 = vsel %vm517, %v483, 0
      %v7637 = vsel %vm517, %v484, 0
      %v7640 = vsel %vm517, %v485, 0
      %v7643 = vsel %vm517, %v486, 0
      %v7646 = vsel %vm517, %v487, 0
      %v7649 = vsel %vm517, %v488, 0
      %v7652 = vsel %vm517, %v489, 0
      %v7655 = vsel %vm517, %v490, 0
      %v7658 = vsel %vm517, %v491, 0
      %v7661 = vsel %vm517, %v492, 0
      %v7664 = vsel %vm517, %v493, 0
      %v7667 = vsel %vm517, %v494, 0
      %v7670 = vsel %vm517, %v495, 0
      %v7673 = vsel %vm517, %v496, 0
      %v7676 = vsel %vm517, %v497, 0
      %v7679 = vsel %vm517, %v498, 0
      %v7682 = vsel %vm517, %v499, 0
      %v7685 = vsel %vm517, %v500, 0
      %v7688 = vsel %vm517, %v501, 0
      %v7691 = vsel %vm517, %v502, 0
      %v7694 = vsel %vm517, %v503, 0
      %v7697 = vsel %vm517, %v504, 0
      %v7700 = vsel %vm517, %v505, 0
      %v7703 = vsel %vm517, %v506, 0
      %v7706 = vsel %vm517, %v507, 0
      %v7709 = vsel %vm517, %v508, 0
      %v7712 = vsel %vm517, %v509, 0
      %v7715 = vsel %vm517, %v510, 0
      %v7718 = vsel %vm517, %v511, 0
      %v7721 = vsel %vm517, %v512, 0
      %v7724 = vsel %vm517, %v513, 0
      %v7727 = vsel %vm691, %v7625, 0
      %7729 = vmatpush.msra.mxu0 0.0
      %7730 = vmatpush.msra.mxu0 0.0
      %7731 = vmatpush.msra.mxu0 0.0
      %7732 = vmatpush.msra.mxu0 0.0
      %7733 = vmatpush.msra.mxu0 0.0
      %7734 = vmatpush.msra.mxu0 0.0
      %7735 = vmatpush.msra.mxu0 0.0
      %7736 = vmatpush.msra.mxu0 0.0
      %7737 = vmatpush.msra.mxu0 0.0
      %7738 = vmatpush.msra.mxu0 0.0
      %7739 = vmatpush.msra.mxu0 0.0
      %7740 = vmatpush.msra.mxu0 0.0
      %7741 = vmatpush.msra.mxu0 0.0
      %7742 = vmatpush.msra.mxu0 0.0
      %7743 = vmatpush.msra.mxu0 0.0
      %7744 = vmatpush.msra.mxu0 %v7727
      %7745 = vmatmul.f32.gmra.mxu0 %v7631
      %v7746 = vpop.f32.mrf.mxu0
      %v7747 = vadd.f32 %v7628, %v7746
      %7748 = vmatmul.f32.gmra.mxu0 %v7634
      %v7749 = vpop.f32.mrf.mxu0
      %v7750 = vadd.f32 %v7628, %v7749
      %7751 = vmatmul.f32.gmra.mxu0 %v7637
      %v7752 = vpop.f32.mrf.mxu0
      %v7753 = vadd.f32 %v7628, %v7752
      %7754 = vmatmul.f32.gmra.mxu0 %v7640
      %v7755 = vpop.f32.mrf.mxu0
      %v7756 = vadd.f32 %v7628, %v7755
      %7757 = vmatmul.f32.gmra.mxu0 %v7643
      %v7758 = vpop.f32.mrf.mxu0
      %v7759 = vadd.f32 %v7628, %v7758
      %7760 = vmatmul.f32.gmra.mxu0 %v7646
      %v7761 = vpop.f32.mrf.mxu0
      %v7762 = vadd.f32 %v7628, %v7761
      %7763 = vmatmul.f32.gmra.mxu0 %v7649
      %v7764 = vpop.f32.mrf.mxu0
      %v7765 = vadd.f32 %v7628, %v7764
      %7766 = vmatmul.f32.gmra.mxu0 %v7652
      %v7767 = vpop.f32.mrf.mxu0
      %v7768 = vadd.f32 %v7628, %v7767
      %7769 = vmatmul.f32.gmra.mxu0 %v7655
      %v7770 = vpop.f32.mrf.mxu0
      %v7771 = vadd.f32 %v7628, %v7770
      %7772 = vmatmul.f32.gmra.mxu0 %v7658
      %v7773 = vpop.f32.mrf.mxu0
      %v7774 = vadd.f32 %v7628, %v7773
      %7775 = vmatmul.f32.gmra.mxu0 %v7661
      %v7776 = vpop.f32.mrf.mxu0
      %v7777 = vadd.f32 %v7628, %v7776
      %7778 = vmatmul.f32.gmra.mxu0 %v7664
      %v7779 = vpop.f32.mrf.mxu0
      %v7780 = vadd.f32 %v7628, %v7779
      %7781 = vmatmul.f32.gmra.mxu0 %v7667
      %v7782 = vpop.f32.mrf.mxu0
      %v7783 = vadd.f32 %v7628, %v7782
      %7784 = vmatmul.f32.gmra.mxu0 %v7670
      %v7785 = vpop.f32.mrf.mxu0
      %v7786 = vadd.f32 %v7628, %v7785
      %7787 = vmatmul.f32.gmra.mxu0 %v7673
      %v7788 = vpop.f32.mrf.mxu0
      %v7789 = vadd.f32 %v7628, %v7788
      %7790 = vmatmul.f32.gmra.mxu0 %v7676
      %v7791 = vpop.f32.mrf.mxu0
      %v7792 = vadd.f32 %v7628, %v7791
      %7793 = vmatmul.f32.gmra.mxu0 %v7679
      %v7794 = vpop.f32.mrf.mxu0
      %v7795 = vadd.f32 %v7628, %v7794
      %7796 = vmatmul.f32.gmra.mxu0 %v7682
      %v7797 = vpop.f32.mrf.mxu0
      %v7798 = vadd.f32 %v7628, %v7797
      %7799 = vmatmul.f32.gmra.mxu0 %v7685
      %v7800 = vpop.f32.mrf.mxu0
      %v7801 = vadd.f32 %v7628, %v7800
      %7802 = vmatmul.f32.gmra.mxu0 %v7688
      %v7803 = vpop.f32.mrf.mxu0
      %v7804 = vadd.f32 %v7628, %v7803
      %7805 = vmatmul.f32.gmra.mxu0 %v7691
      %v7806 = vpop.f32.mrf.mxu0
      %v7807 = vadd.f32 %v7628, %v7806
      %7808 = vmatmul.f32.gmra.mxu0 %v7694
      %v7809 = vpop.f32.mrf.mxu0
      %v7810 = vadd.f32 %v7628, %v7809
      %7811 = vmatmul.f32.gmra.mxu0 %v7697
      %v7812 = vpop.f32.mrf.mxu0
      %v7813 = vadd.f32 %v7628, %v7812
      %7814 = vmatmul.f32.gmra.mxu0 %v7700
      %v7815 = vpop.f32.mrf.mxu0
      %v7816 = vadd.f32 %v7628, %v7815
      %7817 = vmatmul.f32.gmra.mxu0 %v7703
      %v7818 = vpop.f32.mrf.mxu0
      %v7819 = vadd.f32 %v7628, %v7818
      %7820 = vmatmul.f32.gmra.mxu0 %v7706
      %v7821 = vpop.f32.mrf.mxu0
      %v7822 = vadd.f32 %v7628, %v7821
      %7823 = vmatmul.f32.gmra.mxu0 %v7709
      %v7824 = vpop.f32.mrf.mxu0
      %v7825 = vadd.f32 %v7628, %v7824
      %7826 = vmatmul.f32.gmra.mxu0 %v7712
      %v7827 = vpop.f32.mrf.mxu0
      %v7828 = vadd.f32 %v7628, %v7827
      %7829 = vmatmul.f32.gmra.mxu0 %v7715
      %v7830 = vpop.f32.mrf.mxu0
      %v7831 = vadd.f32 %v7628, %v7830
      %7832 = vmatmul.f32.gmra.mxu0 %v7718
      %v7833 = vpop.f32.mrf.mxu0
      %v7834 = vadd.f32 %v7628, %v7833
      %7835 = vmatmul.f32.gmra.mxu0 %v7721
      %v7836 = vpop.f32.mrf.mxu0
      %v7837 = vadd.f32 %v7628, %v7836
      %7838 = vmatmul.f32.gmra.mxu0 %v7724
      %v7839 = vpop.f32.mrf.mxu0
      %v7840 = vadd.f32 %v7628, %v7839
      %7841 = vdwg.mxu0
      %v7842 = vadd.f32 %v7593, %v7747
      %v7843 = vadd.f32 %v7594, %v7750
      %v7844 = vadd.f32 %v7595, %v7753
      %v7845 = vadd.f32 %v7596, %v7756
      %v7846 = vadd.f32 %v7597, %v7759
      %v7847 = vadd.f32 %v7598, %v7762
      %v7848 = vadd.f32 %v7599, %v7765
      %v7849 = vadd.f32 %v7600, %v7768
      %v7850 = vadd.f32 %v7601, %v7771
      %v7851 = vadd.f32 %v7602, %v7774
      %v7852 = vadd.f32 %v7603, %v7777
      %v7853 = vadd.f32 %v7604, %v7780
      %v7854 = vadd.f32 %v7605, %v7783
      %v7855 = vadd.f32 %v7606, %v7786
      %v7856 = vadd.f32 %v7607, %v7789
      %v7857 = vadd.f32 %v7608, %v7792
      %v7858 = vadd.f32 %v7609, %v7795
      %v7859 = vadd.f32 %v7610, %v7798
      %v7860 = vadd.f32 %v7611, %v7801
      %v7861 = vadd.f32 %v7612, %v7804
      %v7862 = vadd.f32 %v7613, %v7807
      %v7863 = vadd.f32 %v7614, %v7810
      %v7864 = vadd.f32 %v7615, %v7813
      %v7865 = vadd.f32 %v7616, %v7816
      %v7866 = vadd.f32 %v7617, %v7819
      %v7867 = vadd.f32 %v7618, %v7822
      %v7868 = vadd.f32 %v7619, %v7825
      %v7869 = vadd.f32 %v7620, %v7828
      %v7870 = vadd.f32 %v7621, %v7831
      %v7871 = vadd.f32 %v7622, %v7834
      %v7872 = vadd.f32 %v7623, %v7837
      %v7873 = vadd.f32 %v7624, %v7840
      %7874 = vst.msk [vmem:[%s481] sm:$0xff] %vm4106, %v7842
      %7875 = vst.msk [vmem:[%s481 + $0x8] sm:$0xff] %vm4106, %v7843
      %7876 = vst.msk [vmem:[%s481 + $0x10] sm:$0xff] %vm4106, %v7844
      %7877 = vst.msk [vmem:[%s481 + $0x18] sm:$0xff] %vm4106, %v7845
      %7878 = vst.msk [vmem:[%s481 + $0x20] sm:$0xff] %vm4106, %v7846
      %7879 = vst.msk [vmem:[%s481 + $0x28] sm:$0xff] %vm4106, %v7847
      %7880 = vst.msk [vmem:[%s481 + $0x30] sm:$0xff] %vm4106, %v7848
      %7881 = vst.msk [vmem:[%s481 + $0x38] sm:$0xff] %vm4106, %v7849
      %7882 = vst.msk [vmem:[%s481 + $0x40] sm:$0xff] %vm4106, %v7850
      %7883 = vst.msk [vmem:[%s481 + $0x48] sm:$0xff] %vm4106, %v7851
      %7884 = vst.msk [vmem:[%s481 + $0x50] sm:$0xff] %vm4106, %v7852
      %7885 = vst.msk [vmem:[%s481 + $0x58] sm:$0xff] %vm4106, %v7853
      %7886 = vst.msk [vmem:[%s481 + $0x60] sm:$0xff] %vm4106, %v7854
      %7887 = vst.msk [vmem:[%s481 + $0x68] sm:$0xff] %vm4106, %v7855
      %7888 = vst.msk [vmem:[%s481 + $0x70] sm:$0xff] %vm4106, %v7856
      %7889 = vst.msk [vmem:[%s481 + $0x78] sm:$0xff] %vm4106, %v7857
      %7890 = vst.msk [vmem:[%s481 + $0x80] sm:$0xff] %vm4106, %v7858
      %7891 = vst.msk [vmem:[%s481 + $0x88] sm:$0xff] %vm4106, %v7859
      %7892 = vst.msk [vmem:[%s481 + $0x90] sm:$0xff] %vm4106, %v7860
      %7893 = vst.msk [vmem:[%s481 + $0x98] sm:$0xff] %vm4106, %v7861
      %7894 = vst.msk [vmem:[%s481 + $0xa0] sm:$0xff] %vm4106, %v7862
      %7895 = vst.msk [vmem:[%s481 + $0xa8] sm:$0xff] %vm4106, %v7863
      %7896 = vst.msk [vmem:[%s481 + $0xb0] sm:$0xff] %vm4106, %v7864
      %7897 = vst.msk [vmem:[%s481 + $0xb8] sm:$0xff] %vm4106, %v7865
      %7898 = vst.msk [vmem:[%s481 + $0xc0] sm:$0xff] %vm4106, %v7866
      %7899 = vst.msk [vmem:[%s481 + $0xc8] sm:$0xff] %vm4106, %v7867
      %7900 = vst.msk [vmem:[%s481 + $0xd0] sm:$0xff] %vm4106, %v7868
      %7901 = vst.msk [vmem:[%s481 + $0xd8] sm:$0xff] %vm4106, %v7869
      %7902 = vst.msk [vmem:[%s481 + $0xe0] sm:$0xff] %vm4106, %v7870
      %7903 = vst.msk [vmem:[%s481 + $0xe8] sm:$0xff] %vm4106, %v7871
      %7904 = vst.msk [vmem:[%s481 + $0xf0] sm:$0xff] %vm4106, %v7872
      %7905 = vst.msk [vmem:[%s481 + $0xf8] sm:$0xff] %vm4106, %v7873
      %p7906 = scmp.lt.s32.totalorder %s25, 1
      %s7907 = scalar_select %p7906, %s25, 1
      %s7908 = smul.addr %s7907, 32
      %s7909 = smul.addr %s7908, 8
      %s7910 = scalar_lea.vmem %s14, %s7909
      // Predicated region
      $region77: #{tpu_custom_call.1} parent=75 // pred_check
        %p7911 = pneg %p347
      $region78: #{tpu_custom_call.1} parent=75 // pred_check_branch
        %7913 = sbr.rel (%p7911) target = $region80
      $region79: #{tpu_custom_call.1} parent=75 // pred_region
        _
      $region80: #{tpu_custom_call.1} parent=75 // pred_fallthru
        _
    $region76: #{tpu_custom_call.1} parent=5 // pred_fallthru
      _
    %p7914 = scmp.le.s32.totalorder 2, %s20
    // Predicated region
    $region81: #{tpu_custom_call.1} parent=5 // pred_check
      %p7915 = pneg %p7914
    $region82: #{tpu_custom_call.1} parent=5 // pred_check_branch
      %7917 = sbr.rel (%p7915) target = $region84
    $region83: #{tpu_custom_call.1} parent=5 // pred_region
      %s7918 = ssub.s32 %s20, 2
      // Predicated region
      $region85: #{tpu_custom_call.1} parent=83 // pred_check
        %p7919 = pneg %p353
      $region86: #{tpu_custom_call.1} parent=83 // pred_check_branch
        %7921 = sbr.rel (%p7919) target = $region88
      $region87: #{tpu_custom_call.1} parent=83 // pred_region
        %p7922 = scmp.lt.s32.totalorder %s26, 1
        %s7923 = scalar_select %p7922, %s26, 1
        %s7924 = smul.addr %s7923, 32
        %s7925 = smul.addr %s7924, 8
        %s7926 = scalar_lea.vmem %s14, %s7925
      $region88: #{tpu_custom_call.1} parent=83 // pred_fallthru
        _
    $region84: #{tpu_custom_call.1} parent=5 // pred_fallthru
      _
  $region6: #{tpu_custom_call.1} parent=0 // loop_footer
    %s24 = sadd.s32 1, %s20
  $region7: #{tpu_custom_call.1} parent=0 // loop_footer_branch
    %19 = sbr.rel target = $region3
  $region8: #{tpu_custom_call.1} parent=0 // loop_exit
    _

</llo_original>
